<compile_context>
chip_gen: v7x
topology: tpu7x:2x2x1
jax: 0.10.0
libtpu: 0.0.40
codegen_flags: <defaults>
</compile_context>

<pallas_src>
import functools
import math

import jax
import jax.numpy as jnp
from jax.experimental import pallas as pl
from jax.experimental.pallas import tpu as pltpu

ENCODER = 512     # encoder_size
HIDDEN = 512      # hidden_size
QPAD = 128        # lane-dense width for the packed (q1, q2) output
LN_EPS = 1e-5     # torch.nn.LayerNorm default

_CP = getattr(pltpu, "CompilerParams", None) or getattr(pltpu, "TPUCompilerParams")


def _compiler_params(sem):
    return _CP(dimension_semantics=sem)


def _row_tiles(n, max_tile=512):
    """Row-tile size and padded row count for a 1-D batch/row grid."""
    t = n if n <= max_tile else max_tile
    return t, t * pl.cdiv(n, t)


# ---------------------------------------------------------------------------
# Kernel 1: row-tiled linear (+ optional ReLU); used for the conv layers
# (operating on im2col patches).  Weights/bias use constant block indices so
# they stay resident in VMEM across grid steps.
# ---------------------------------------------------------------------------
def _linear_kernel(x_ref, w_ref, b_ref, o_ref, *, relu):
    y = jnp.dot(x_ref[...], w_ref[...], preferred_element_type=jnp.float32)
    y = y + b_ref[...]
    if relu:
        y = jnp.maximum(y, 0.0)
    o_ref[...] = y.astype(o_ref.dtype)


def _pallas_linear(x, w, b, *, relu, out_dtype):
    M, K = x.shape
    N = w.shape[1]
    TM, M_pad = _row_tiles(M)
    if M_pad != M:
        x = jnp.pad(x, ((0, M_pad - M), (0, 0)))
    out = pl.pallas_call(
        functools.partial(_linear_kernel, relu=relu),
        out_shape=jax.ShapeDtypeStruct((M_pad, N), out_dtype),
        grid=(M_pad // TM,),
        in_specs=[
            pl.BlockSpec((TM, K), lambda i: (i, 0)),
            pl.BlockSpec((K, N), lambda i: (0, 0)),
            pl.BlockSpec((1, N), lambda i: (0, 0)),
        ],
        out_specs=pl.BlockSpec((TM, N), lambda i: (i, 0)),
        compiler_params=_compiler_params(("parallel",)),
    )(x, w, b)
    return out[:M] if M_pad != M else out


def _jax_linear(x, w, b, *, relu, out_dtype):
    y = jnp.dot(x, w, preferred_element_type=jnp.float32) + b
    if relu:
        y = jnp.maximum(y, 0.0)
    return y.astype(out_dtype)


# ---------------------------------------------------------------------------
# Kernel 2: fused critic head — encoder fc + LayerNorm + both Q networks.
# ---------------------------------------------------------------------------
def _critic_head_kernel(enc_ref, act_ref,
                        wfc_ref, bfc_ref, g_ref, beta_ref,
                        wh1e_ref, wh1a_ref, bh1_ref,
                        w2_ref, b2_ref, w5_ref, b5_ref,
                        wlast_ref, blast_ref,
                        q_ref):
    # encoder fc + LayerNorm (bf16 matmul inputs, f32 math)
    z = jnp.dot(enc_ref[...], wfc_ref[...], preferred_element_type=jnp.float32)
    z = z + bfc_ref[...]
    mu = jnp.mean(z, axis=-1, keepdims=True)
    zc = z - mu
    var = jnp.mean(zc * zc, axis=-1, keepdims=True)
    ln = zc * jax.lax.rsqrt(var + LN_EPS)
    ln = ln * g_ref[...] + beta_ref[...]
    ln16 = ln.astype(jnp.bfloat16)

    # fused first layer of both Q nets: columns [0:512]=q1, [512:1024]=q2
    h1 = (jnp.dot(ln16, wh1e_ref[...], preferred_element_type=jnp.float32)
          + jnp.dot(act_ref[...], wh1a_ref[...], preferred_element_type=jnp.float32)
          + bh1_ref[...])
    h1 = jnp.maximum(h1, 0.0).astype(jnp.bfloat16)
    h1_q1 = h1[:, :HIDDEN]
    h1_q2 = h1[:, HIDDEN:]

    h2_q1 = jnp.maximum(
        jnp.dot(h1_q1, w2_ref[...], preferred_element_type=jnp.float32) + b2_ref[...],
        0.0).astype(jnp.bfloat16)
    h2_q2 = jnp.maximum(
        jnp.dot(h1_q2, w5_ref[...], preferred_element_type=jnp.float32) + b5_ref[...],
        0.0).astype(jnp.bfloat16)

    # l3 and l6 packed into one lane-dense matmul: col 0 = q1, col 1 = q2.
    h2 = jnp.concatenate([h2_q1, h2_q2], axis=-1)                    # (TB, 1024)
    q = jnp.dot(h2, wlast_ref[...], preferred_element_type=jnp.float32)
    q = q + blast_ref[...]
    q_ref[...] = q.astype(q_ref.dtype)


def _critic_head_pallas(enc, act, p):
    B, F = enc.shape
    A = act.shape[1]
    TB, B_pad = _row_tiles(B)
    if B_pad != B:
        enc = jnp.pad(enc, ((0, B_pad - B), (0, 0)))
        act = jnp.pad(act, ((0, B_pad - B), (0, 0)))

    def row_spec(n):
        return pl.BlockSpec((TB, n), lambda i: (i, 0))

    def fixed_spec(r, c):
        return pl.BlockSpec((r, c), lambda i: (0, 0))

    qpair = pl.pallas_call(
        _critic_head_kernel,
        out_shape=jax.ShapeDtypeStruct((B_pad, QPAD), jnp.float32),
        grid=(B_pad // TB,),
        in_specs=[
            row_spec(F),                      # enc features
            row_spec(A),                      # action
            fixed_spec(F, ENCODER),           # w_fc
            fixed_spec(1, ENCODER),           # b_fc
            fixed_spec(1, ENCODER),           # ln gamma
            fixed_spec(1, ENCODER),           # ln beta
            fixed_spec(ENCODER, 2 * HIDDEN),  # fused l1|l4 (encoder part)
            fixed_spec(A, 2 * HIDDEN),        # fused l1|l4 (action part)
            fixed_spec(1, 2 * HIDDEN),        # fused b1|b4
            fixed_spec(HIDDEN, HIDDEN),       # l2 weight
            fixed_spec(1, HIDDEN),            # l2 bias
            fixed_spec(HIDDEN, HIDDEN),       # l5 weight
            fixed_spec(1, HIDDEN),            # l5 bias
            fixed_spec(2 * HIDDEN, QPAD),     # packed l3|l6 weight
            fixed_spec(1, QPAD),              # packed l3|l6 bias
        ],
        out_specs=row_spec(QPAD),
        compiler_params=_compiler_params(("parallel",)),
    )(enc, act, p["w_fc"], p["b_fc"], p["ln_g"], p["ln_b"],
      p["w_h1_e"], p["w_h1_a"], p["b_h1"],
      p["w_q1_l2"], p["b_q1_l2"], p["w_q2_l2"], p["b_q2_l2"],
      p["w_last"], p["b_last"])
    return qpair[:B, 0:1], qpair[:B, 1:2]


# ---------------------------------------------------------------------------
# Conv encoder glue (patch extraction is wrapper-side; matmuls run in Pallas)
# ---------------------------------------------------------------------------
def _im2col(x, stride):
    """x: (B, H, W, C) -> patches (B*Hout*Wout, 9*C); tap order (dy, dx, c)."""
    B, H, W, C = x.shape
    Hout = (H - 3) // stride + 1
    Wout = (W - 3) // stride + 1
    taps = []
    for dy in range(3):
        for dx in range(3):
            sl = jax.lax.slice(
                x, (0, dy, dx, 0),
                (B, dy + (Hout - 1) * stride + 1, dx + (Wout - 1) * stride + 1, C),
                (1, stride, stride, 1))
            taps.append(sl)
    patches = jnp.concatenate(taps, axis=-1)            # (B, Hout, Wout, 9*C)
    return patches.reshape(B * Hout * Wout, 9 * C), (Hout, Wout)


def _conv_encoder(x, p, linear_fn):
    """4x (3x3 conv + ReLU) with strides (2,1,1,1), then NCHW-order flatten."""
    B = x.shape[0]
    h = x.astype(jnp.bfloat16)
    for layer, stride in enumerate((2, 1, 1, 1)):
        patches, (Hout, Wout) = _im2col(h, stride)
        y = linear_fn(patches, p[f"conv{layer}_w"], p[f"conv{layer}_b"],
                      relu=True, out_dtype=jnp.bfloat16)
        h = y.reshape(B, Hout, Wout, 32)
    # flatten in PyTorch's NCHW order: view(B, C*H*W)
    return jnp.transpose(h, (0, 3, 1, 2)).reshape(B, -1)


# ---------------------------------------------------------------------------
# Forward passes
# ---------------------------------------------------------------------------
@jax.jit
def critic_forward(state, action, params):
    """Pallas forward.  Returns (q1, q2), each (B, 1) float32."""
    enc = _conv_encoder(state, params, _pallas_linear)
    act = action.astype(jnp.bfloat16)
    return _critic_head_pallas(enc, act, params)


def critic_forward_ref(state, action, params):
    """Pure-JAX reference (same bf16 weights / casts) for correctness checks."""
    enc = _conv_encoder(state, params, _jax_linear)
    act = action.astype(jnp.bfloat16)
    p = params
    z = jnp.dot(enc, p["w_fc"], preferred_element_type=jnp.float32) + p["b_fc"]
    mu = jnp.mean(z, axis=-1, keepdims=True)
    zc = z - mu
    var = jnp.mean(zc * zc, axis=-1, keepdims=True)
    ln = zc * jax.lax.rsqrt(var + LN_EPS)
    ln = ln * p["ln_g"] + p["ln_b"]
    ln16 = ln.astype(jnp.bfloat16)
    h1 = (jnp.dot(ln16, p["w_h1_e"], preferred_element_type=jnp.float32)
          + jnp.dot(act, p["w_h1_a"], preferred_element_type=jnp.float32)
          + p["b_h1"])
    h1 = jnp.maximum(h1, 0.0).astype(jnp.bfloat16)
    h1_q1, h1_q2 = h1[:, :HIDDEN], h1[:, HIDDEN:]
    h2_q1 = jnp.maximum(
        jnp.dot(h1_q1, p["w_q1_l2"], preferred_element_type=jnp.float32) + p["b_q1_l2"],
        0.0).astype(jnp.bfloat16)
    h2_q2 = jnp.maximum(
        jnp.dot(h1_q2, p["w_q2_l2"], preferred_element_type=jnp.float32) + p["b_q2_l2"],
        0.0).astype(jnp.bfloat16)
    h2 = jnp.concatenate([h2_q1, h2_q2], axis=-1)
    q = jnp.dot(h2, p["w_last"], preferred_element_type=jnp.float32) + p["b_last"]
    return q[:, 0:1], q[:, 1:2]


# ---------------------------------------------------------------------------
# Parameter construction (all fusion / packing / bf16 casting done ONCE here,
# outside the jitted forward path).
# ---------------------------------------------------------------------------
def _conv_out_hw(h, w):
    def out(s, stride):
        return (s - 3) // stride + 1
    h, w = out(h, 2), out(w, 2)
    for _ in range(3):
        h, w = out(h, 1), out(w, 1)
    return h, w


def init_params(key, in_channels, action_dim, height, width):
    h5, w5 = _conv_out_hw(height, width)
    feat_dim = 32 * h5 * w5
    keys = iter(jax.random.split(key, 24))

    def unif(shape, fan_in):
        bound = 1.0 / math.sqrt(fan_in)
        return jax.random.uniform(next(keys), shape, jnp.float32, -bound, bound)

    p = {}
    cin = in_channels
    for layer in range(4):
        fan = 9 * cin
        p[f"conv{layer}_w"] = unif((fan, 32), fan).astype(jnp.bfloat16)
        p[f"conv{layer}_b"] = unif((1, 32), fan)
        cin = 32

    # encoder fc + LayerNorm
    p["w_fc"] = unif((feat_dim, ENCODER), feat_dim).astype(jnp.bfloat16)
    p["b_fc"] = unif((1, ENCODER), feat_dim)
    p["ln_g"] = jnp.ones((1, ENCODER), jnp.float32)
    p["ln_b"] = jnp.zeros((1, ENCODER), jnp.float32)

    # Q heads: l1/l4 fused along the output dim, split into encoder/action parts
    sa = ENCODER + action_dim
    w1, b1 = unif((sa, HIDDEN), sa), unif((1, HIDDEN), sa)
    w4, b4 = unif((sa, HIDDEN), sa), unif((1, HIDDEN), sa)
    p["w_h1_e"] = jnp.concatenate([w1[:ENCODER], w4[:ENCODER]], axis=1).astype(jnp.bfloat16)
    p["w_h1_a"] = jnp.concatenate([w1[ENCODER:], w4[ENCODER:]], axis=1).astype(jnp.bfloat16)
    p["b_h1"] = jnp.concatenate([b1, b4], axis=1)

    p["w_q1_l2"] = unif((HIDDEN, HIDDEN), HIDDEN).astype(jnp.bfloat16)
    p["b_q1_l2"] = unif((1, HIDDEN), HIDDEN)
    p["w_q2_l2"] = unif((HIDDEN, HIDDEN), HIDDEN).astype(jnp.bfloat16)
    p["b_q2_l2"] = unif((1, HIDDEN), HIDDEN)

    # l3 / l6 (512 -> 1) packed into one lane-dense (1024, 128) weight
    w3, b3 = unif((HIDDEN,), HIDDEN), unif((1,), HIDDEN)
    w6, b6 = unif((HIDDEN,), HIDDEN), unif((1,), HIDDEN)
    w_last = jnp.zeros((2 * HIDDEN, QPAD), jnp.float32)
    w_last = w_last.at[:HIDDEN, 0].set(w3).at[HIDDEN:, 1].set(w6)
    b_last = jnp.zeros((1, QPAD), jnp.float32)
    b_last = b_last.at[0, 0].set(b3[0]).at[0, 1].set(b6[0])
    p["w_last"] = w_last.astype(jnp.bfloat16)
    p["b_last"] = b_last
    return p


if __name__ == "__main__":
    key = jax.random.PRNGKey(0)
    k_state, k_action, k_params = jax.random.split(key, 3)

    # Small shapes consistent with the module: channels-last image input,
    # 20x20 spatial -> 9x9 -> 7x7 -> 5x5 -> 3x3 conv feature map (288 features).
    batch, height, width, channels = 2, 20, 20, 4
    action_dim = 4

    state = jax.random.normal(k_state, (batch, height, width, channels), jnp.float32)
    action = jax.random.uniform(k_action, (batch, action_dim), jnp.float32, -1.0, 1.0)
    params = init_params(k_params, channels, action_dim, height, width)

    q1, q2 = critic_forward(state, action, params)
    jax.block_until_ready((q1, q2))

    q1_ref, q2_ref = critic_forward_ref(state, action, params)
    assert q1.shape == (batch, 1) and q2.shape == (batch, 1)
    assert jnp.all(jnp.isfinite(q1)) and jnp.all(jnp.isfinite(q2))
    assert jnp.allclose(q1, q1_ref, atol=1e-2, rtol=1e-2)
    assert jnp.allclose(q2, q2_ref, atol=1e-2, rtol=1e-2)

    print("KERNEL_OK")
</pallas_src>

<mosaic_0001>
module attributes {stable_mosaic.version = 11 : i64} {
  func.func @_linear_kernel(%arg0: i32, %arg1: memref<162x36xbf16, #tpu.memory_space<vmem>>, %arg2: memref<36x32xbf16, #tpu.memory_space<vmem>>, %arg3: memref<1x32xf32, #tpu.memory_space<vmem>>, %arg4: memref<162x32xbf16, #tpu.memory_space<vmem>>) attributes {dimension_semantics = [#tpu.dimension_semantics<parallel>], iteration_bounds = array<i64: 1>, scalar_prefetch = 0 : i64, scratch_operands = 0 : i64, tpu.core_type = #tpu.core_type<tc>, window_params = [{transform_indices = @transform_0, window_bounds = array<i64: 162, 36>}, {pipeline_mode = #tpu.pipeline_mode<synchronous>, transform_indices = @transform_1, window_bounds = array<i64: 36, 32>}, {pipeline_mode = #tpu.pipeline_mode<synchronous>, transform_indices = @transform_2, window_bounds = array<i64: 1, 32>}, {transform_indices = @transform_3, window_bounds = array<i64: 162, 32>}]} {
    %c0 = arith.constant 0 : index
    %c0_0 = arith.constant 0 : index
    %0 = vector.load %arg1[%c0, %c0_0] : memref<162x36xbf16, #tpu.memory_space<vmem>>, vector<162x36xbf16>
    %c0_1 = arith.constant 0 : index
    %c0_2 = arith.constant 0 : index
    %1 = vector.load %arg2[%c0_1, %c0_2] : memref<36x32xbf16, #tpu.memory_space<vmem>>, vector<36x32xbf16>
    %cst = arith.constant dense<0.000000e+00> : vector<162x32xf32>
    %2 = tpu.matmul %0, %1, %cst {dimension_numbers = #tpu.dot_dimension_numbers<[1], [0], [0], [1], [0, 0, 1, 1], [], []>} : vector<162x36xbf16>, vector<36x32xbf16>, vector<162x32xf32> -> vector<162x32xf32>
    %c0_3 = arith.constant 0 : index
    %c0_4 = arith.constant 0 : index
    %3 = vector.load %arg3[%c0_3, %c0_4] : memref<1x32xf32, #tpu.memory_space<vmem>>, vector<1x32xf32>
    %4 = vector.broadcast %3 : vector<1x32xf32> to vector<162x32xf32>
    %5 = arith.addf %2, %4 : vector<162x32xf32>
    %cst_5 = arith.constant 0.000000e+00 : f32
    %6 = vector.broadcast %cst_5 : f32 to vector<162x32xf32>
    %7 = arith.maximumf %5, %6 : vector<162x32xf32>
    %8 = arith.truncf %7 : vector<162x32xf32> to vector<162x32xbf16>
    %c0_6 = arith.constant 0 : index
    %c0_7 = arith.constant 0 : index
    %9 = vector.load %arg4[%c0_6, %c0_7] : memref<162x32xbf16, #tpu.memory_space<vmem>>, vector<162x32xbf16>
    tpu.vector_store %arg4[%c0_6, %c0_7], %8 {strides = array<i32>} : memref<162x32xbf16, #tpu.memory_space<vmem>>, vector<162x32xbf16>,
    return
  }
  func.func @transform_0(%arg0: i32) -> (i32, i32) {
    %c0_i32 = arith.constant 0 : i32
    %c0_i32_0 = arith.constant 0 : i32
    return %arg0, %c0_i32 : i32, i32
  }
  func.func @transform_1(%arg0: i32) -> (i32, i32) {
    %c0_i32 = arith.constant 0 : i32
    %c0_i32_0 = arith.constant 0 : i32
    %c0_i32_1 = arith.constant 0 : i32
    return %c0_i32, %c0_i32_0 : i32, i32
  }
  func.func @transform_2(%arg0: i32) -> (i32, i32) {
    %c0_i32 = arith.constant 0 : i32
    %c0_i32_0 = arith.constant 0 : i32
    %c0_i32_1 = arith.constant 0 : i32
    return %c0_i32, %c0_i32_0 : i32, i32
  }
  func.func @transform_3(%arg0: i32) -> (i32, i32) {
    %c0_i32 = arith.constant 0 : i32
    %c0_i32_0 = arith.constant 0 : i32
    return %arg0, %c0_i32 : i32, i32
  }
}

module attributes {stable_mosaic.version = 11 : i64} {
  func.func @_linear_kernel(%arg0: i32, %arg1: memref<98x288xbf16, #tpu.memory_space<vmem>>, %arg2: memref<288x32xbf16, #tpu.memory_space<vmem>>, %arg3: memref<1x32xf32, #tpu.memory_space<vmem>>, %arg4: memref<98x32xbf16, #tpu.memory_space<vmem>>) attributes {dimension_semantics = [#tpu.dimension_semantics<parallel>], iteration_bounds = array<i64: 1>, scalar_prefetch = 0 : i64, scratch_operands = 0 : i64, tpu.core_type = #tpu.core_type<tc>, window_params = [{transform_indices = @transform_0, window_bounds = array<i64: 98, 288>}, {pipeline_mode = #tpu.pipeline_mode<synchronous>, transform_indices = @transform_1, window_bounds = array<i64: 288, 32>}, {pipeline_mode = #tpu.pipeline_mode<synchronous>, transform_indices = @transform_2, window_bounds = array<i64: 1, 32>}, {transform_indices = @transform_3, window_bounds = array<i64: 98, 32>}]} {
    %c0 = arith.constant 0 : index
    %c0_0 = arith.constant 0 : index
    %0 = vector.load %arg1[%c0, %c0_0] : memref<98x288xbf16, #tpu.memory_space<vmem>>, vector<98x288xbf16>
    %c0_1 = arith.constant 0 : index
    %c0_2 = arith.constant 0 : index
    %1 = vector.load %arg2[%c0_1, %c0_2] : memref<288x32xbf16, #tpu.memory_space<vmem>>, vector<288x32xbf16>
    %cst = arith.constant dense<0.000000e+00> : vector<98x32xf32>
    %2 = tpu.matmul %0, %1, %cst {dimension_numbers = #tpu.dot_dimension_numbers<[1], [0], [0], [1], [0, 0, 1, 1], [], []>} : vector<98x288xbf16>, vector<288x32xbf16>, vector<98x32xf32> -> vector<98x32xf32>
    %c0_3 = arith.constant 0 : index
    %c0_4 = arith.constant 0 : index
    %3 = vector.load %arg3[%c0_3, %c0_4] : memref<1x32xf32, #tpu.memory_space<vmem>>, vector<1x32xf32>
    %4 = vector.broadcast %3 : vector<1x32xf32> to vector<98x32xf32>
    %5 = arith.addf %2, %4 : vector<98x32xf32>
    %cst_5 = arith.constant 0.000000e+00 : f32
    %6 = vector.broadcast %cst_5 : f32 to vector<98x32xf32>
    %7 = arith.maximumf %5, %6 : vector<98x32xf32>
    %8 = arith.truncf %7 : vector<98x32xf32> to vector<98x32xbf16>
    %c0_6 = arith.constant 0 : index
    %c0_7 = arith.constant 0 : index
    %9 = vector.load %arg4[%c0_6, %c0_7] : memref<98x32xbf16, #tpu.memory_space<vmem>>, vector<98x32xbf16>
    tpu.vector_store %arg4[%c0_6, %c0_7], %8 {strides = array<i32>} : memref<98x32xbf16, #tpu.memory_space<vmem>>, vector<98x32xbf16>,
    return
  }
  func.func @transform_0(%arg0: i32) -> (i32, i32) {
    %c0_i32 = arith.constant 0 : i32
    %c0_i32_0 = arith.constant 0 : i32
    return %arg0, %c0_i32 : i32, i32
  }
  func.func @transform_1(%arg0: i32) -> (i32, i32) {
    %c0_i32 = arith.constant 0 : i32
    %c0_i32_0 = arith.constant 0 : i32
    %c0_i32_1 = arith.constant 0 : i32
    return %c0_i32, %c0_i32_0 : i32, i32
  }
  func.func @transform_2(%arg0: i32) -> (i32, i32) {
    %c0_i32 = arith.constant 0 : i32
    %c0_i32_0 = arith.constant 0 : i32
    %c0_i32_1 = arith.constant 0 : i32
    return %c0_i32, %c0_i32_0 : i32, i32
  }
  func.func @transform_3(%arg0: i32) -> (i32, i32) {
    %c0_i32 = arith.constant 0 : i32
    %c0_i32_0 = arith.constant 0 : i32
    return %arg0, %c0_i32 : i32, i32
  }
}

module attributes {stable_mosaic.version = 11 : i64} {
  func.func @_linear_kernel(%arg0: i32, %arg1: memref<50x288xbf16, #tpu.memory_space<vmem>>, %arg2: memref<288x32xbf16, #tpu.memory_space<vmem>>, %arg3: memref<1x32xf32, #tpu.memory_space<vmem>>, %arg4: memref<50x32xbf16, #tpu.memory_space<vmem>>) attributes {dimension_semantics = [#tpu.dimension_semantics<parallel>], iteration_bounds = array<i64: 1>, scalar_prefetch = 0 : i64, scratch_operands = 0 : i64, tpu.core_type = #tpu.core_type<tc>, window_params = [{transform_indices = @transform_0, window_bounds = array<i64: 50, 288>}, {pipeline_mode = #tpu.pipeline_mode<synchronous>, transform_indices = @transform_1, window_bounds = array<i64: 288, 32>}, {pipeline_mode = #tpu.pipeline_mode<synchronous>, transform_indices = @transform_2, window_bounds = array<i64: 1, 32>}, {transform_indices = @transform_3, window_bounds = array<i64: 50, 32>}]} {
    %c0 = arith.constant 0 : index
    %c0_0 = arith.constant 0 : index
    %0 = vector.load %arg1[%c0, %c0_0] : memref<50x288xbf16, #tpu.memory_space<vmem>>, vector<50x288xbf16>
    %c0_1 = arith.constant 0 : index
    %c0_2 = arith.constant 0 : index
    %1 = vector.load %arg2[%c0_1, %c0_2] : memref<288x32xbf16, #tpu.memory_space<vmem>>, vector<288x32xbf16>
    %cst = arith.constant dense<0.000000e+00> : vector<50x32xf32>
    %2 = tpu.matmul %0, %1, %cst {dimension_numbers = #tpu.dot_dimension_numbers<[1], [0], [0], [1], [0, 0, 1, 1], [], []>} : vector<50x288xbf16>, vector<288x32xbf16>, vector<50x32xf32> -> vector<50x32xf32>
    %c0_3 = arith.constant 0 : index
    %c0_4 = arith.constant 0 : index
    %3 = vector.load %arg3[%c0_3, %c0_4] : memref<1x32xf32, #tpu.memory_space<vmem>>, vector<1x32xf32>
    %4 = vector.broadcast %3 : vector<1x32xf32> to vector<50x32xf32>
    %5 = arith.addf %2, %4 : vector<50x32xf32>
    %cst_5 = arith.constant 0.000000e+00 : f32
    %6 = vector.broadcast %cst_5 : f32 to vector<50x32xf32>
    %7 = arith.maximumf %5, %6 : vector<50x32xf32>
    %8 = arith.truncf %7 : vector<50x32xf32> to vector<50x32xbf16>
    %c0_6 = arith.constant 0 : index
    %c0_7 = arith.constant 0 : index
    %9 = vector.load %arg4[%c0_6, %c0_7] : memref<50x32xbf16, #tpu.memory_space<vmem>>, vector<50x32xbf16>
    tpu.vector_store %arg4[%c0_6, %c0_7], %8 {strides = array<i32>} : memref<50x32xbf16, #tpu.memory_space<vmem>>, vector<50x32xbf16>,
    return
  }
  func.func @transform_0(%arg0: i32) -> (i32, i32) {
    %c0_i32 = arith.constant 0 : i32
    %c0_i32_0 = arith.constant 0 : i32
    return %arg0, %c0_i32 : i32, i32
  }
  func.func @transform_1(%arg0: i32) -> (i32, i32) {
    %c0_i32 = arith.constant 0 : i32
    %c0_i32_0 = arith.constant 0 : i32
    %c0_i32_1 = arith.constant 0 : i32
    return %c0_i32, %c0_i32_0 : i32, i32
  }
  func.func @transform_2(%arg0: i32) -> (i32, i32) {
    %c0_i32 = arith.constant 0 : i32
    %c0_i32_0 = arith.constant 0 : i32
    %c0_i32_1 = arith.constant 0 : i32
    return %c0_i32, %c0_i32_0 : i32, i32
  }
  func.func @transform_3(%arg0: i32) -> (i32, i32) {
    %c0_i32 = arith.constant 0 : i32
    %c0_i32_0 = arith.constant 0 : i32
    return %arg0, %c0_i32 : i32, i32
  }
}

module attributes {stable_mosaic.version = 11 : i64} {
  func.func @_linear_kernel(%arg0: i32, %arg1: memref<18x288xbf16, #tpu.memory_space<vmem>>, %arg2: memref<288x32xbf16, #tpu.memory_space<vmem>>, %arg3: memref<1x32xf32, #tpu.memory_space<vmem>>, %arg4: memref<18x32xbf16, #tpu.memory_space<vmem>>) attributes {dimension_semantics = [#tpu.dimension_semantics<parallel>], iteration_bounds = array<i64: 1>, scalar_prefetch = 0 : i64, scratch_operands = 0 : i64, tpu.core_type = #tpu.core_type<tc>, window_params = [{transform_indices = @transform_0, window_bounds = array<i64: 18, 288>}, {pipeline_mode = #tpu.pipeline_mode<synchronous>, transform_indices = @transform_1, window_bounds = array<i64: 288, 32>}, {pipeline_mode = #tpu.pipeline_mode<synchronous>, transform_indices = @transform_2, window_bounds = array<i64: 1, 32>}, {transform_indices = @transform_3, window_bounds = array<i64: 18, 32>}]} {
    %c0 = arith.constant 0 : index
    %c0_0 = arith.constant 0 : index
    %0 = vector.load %arg1[%c0, %c0_0] : memref<18x288xbf16, #tpu.memory_space<vmem>>, vector<18x288xbf16>
    %c0_1 = arith.constant 0 : index
    %c0_2 = arith.constant 0 : index
    %1 = vector.load %arg2[%c0_1, %c0_2] : memref<288x32xbf16, #tpu.memory_space<vmem>>, vector<288x32xbf16>
    %cst = arith.constant dense<0.000000e+00> : vector<18x32xf32>
    %2 = tpu.matmul %0, %1, %cst {dimension_numbers = #tpu.dot_dimension_numbers<[1], [0], [0], [1], [0, 0, 1, 1], [], []>} : vector<18x288xbf16>, vector<288x32xbf16>, vector<18x32xf32> -> vector<18x32xf32>
    %c0_3 = arith.constant 0 : index
    %c0_4 = arith.constant 0 : index
    %3 = vector.load %arg3[%c0_3, %c0_4] : memref<1x32xf32, #tpu.memory_space<vmem>>, vector<1x32xf32>
    %4 = vector.broadcast %3 : vector<1x32xf32> to vector<18x32xf32>
    %5 = arith.addf %2, %4 : vector<18x32xf32>
    %cst_5 = arith.constant 0.000000e+00 : f32
    %6 = vector.broadcast %cst_5 : f32 to vector<18x32xf32>
    %7 = arith.maximumf %5, %6 : vector<18x32xf32>
    %8 = arith.truncf %7 : vector<18x32xf32> to vector<18x32xbf16>
    %c0_6 = arith.constant 0 : index
    %c0_7 = arith.constant 0 : index
    %9 = vector.load %arg4[%c0_6, %c0_7] : memref<18x32xbf16, #tpu.memory_space<vmem>>, vector<18x32xbf16>
    tpu.vector_store %arg4[%c0_6, %c0_7], %8 {strides = array<i32>} : memref<18x32xbf16, #tpu.memory_space<vmem>>, vector<18x32xbf16>,
    return
  }
  func.func @transform_0(%arg0: i32) -> (i32, i32) {
    %c0_i32 = arith.constant 0 : i32
    %c0_i32_0 = arith.constant 0 : i32
    return %arg0, %c0_i32 : i32, i32
  }
  func.func @transform_1(%arg0: i32) -> (i32, i32) {
    %c0_i32 = arith.constant 0 : i32
    %c0_i32_0 = arith.constant 0 : i32
    %c0_i32_1 = arith.constant 0 : i32
    return %c0_i32, %c0_i32_0 : i32, i32
  }
  func.func @transform_2(%arg0: i32) -> (i32, i32) {
    %c0_i32 = arith.constant 0 : i32
    %c0_i32_0 = arith.constant 0 : i32
    %c0_i32_1 = arith.constant 0 : i32
    return %c0_i32, %c0_i32_0 : i32, i32
  }
  func.func @transform_3(%arg0: i32) -> (i32, i32) {
    %c0_i32 = arith.constant 0 : i32
    %c0_i32_0 = arith.constant 0 : i32
    return %arg0, %c0_i32 : i32, i32
  }
}

module attributes {stable_mosaic.version = 11 : i64} {
  func.func @_critic_head_kernel(%arg0: i32, %arg1: memref<2x288xbf16, #tpu.memory_space<vmem>>, %arg2: memref<2x4xbf16, #tpu.memory_space<vmem>>, %arg3: memref<288x512xbf16, #tpu.memory_space<vmem>>, %arg4: memref<1x512xf32, #tpu.memory_space<vmem>>, %arg5: memref<1x512xf32, #tpu.memory_space<vmem>>, %arg6: memref<1x512xf32, #tpu.memory_space<vmem>>, %arg7: memref<512x1024xbf16, #tpu.memory_space<vmem>>, %arg8: memref<4x1024xbf16, #tpu.memory_space<vmem>>, %arg9: memref<1x1024xf32, #tpu.memory_space<vmem>>, %arg10: memref<512x512xbf16, #tpu.memory_space<vmem>>, %arg11: memref<1x512xf32, #tpu.memory_space<vmem>>, %arg12: memref<512x512xbf16, #tpu.memory_space<vmem>>, %arg13: memref<1x512xf32, #tpu.memory_space<vmem>>, %arg14: memref<1024x128xbf16, #tpu.memory_space<vmem>>, %arg15: memref<1x128xf32, #tpu.memory_space<vmem>>, %arg16: memref<2x128xf32, #tpu.memory_space<vmem>>) attributes {dimension_semantics = [#tpu.dimension_semantics<parallel>], iteration_bounds = array<i64: 1>, scalar_prefetch = 0 : i64, scratch_operands = 0 : i64, tpu.core_type = #tpu.core_type<tc>, window_params = [{transform_indices = @transform_0, window_bounds = array<i64: 2, 288>}, {transform_indices = @transform_1, window_bounds = array<i64: 2, 4>}, {pipeline_mode = #tpu.pipeline_mode<synchronous>, transform_indices = @transform_2, window_bounds = array<i64: 288, 512>}, {pipeline_mode = #tpu.pipeline_mode<synchronous>, transform_indices = @transform_3, window_bounds = array<i64: 1, 512>}, {pipeline_mode = #tpu.pipeline_mode<synchronous>, transform_indices = @transform_4, window_bounds = array<i64: 1, 512>}, {pipeline_mode = #tpu.pipeline_mode<synchronous>, transform_indices = @transform_5, window_bounds = array<i64: 1, 512>}, {pipeline_mode = #tpu.pipeline_mode<synchronous>, transform_indices = @transform_6, window_bounds = array<i64: 512, 1024>}, {pipeline_mode = #tpu.pipeline_mode<synchronous>, transform_indices = @transform_7, window_bounds = array<i64: 4, 1024>}, {pipeline_mode = #tpu.pipeline_mode<synchronous>, transform_indices = @transform_8, window_bounds = array<i64: 1, 1024>}, {pipeline_mode = #tpu.pipeline_mode<synchronous>, transform_indices = @transform_9, window_bounds = array<i64: 512, 512>}, {pipeline_mode = #tpu.pipeline_mode<synchronous>, transform_indices = @transform_10, window_bounds = array<i64: 1, 512>}, {pipeline_mode = #tpu.pipeline_mode<synchronous>, transform_indices = @transform_11, window_bounds = array<i64: 512, 512>}, {pipeline_mode = #tpu.pipeline_mode<synchronous>, transform_indices = @transform_12, window_bounds = array<i64: 1, 512>}, {pipeline_mode = #tpu.pipeline_mode<synchronous>, transform_indices = @transform_13, window_bounds = array<i64: 1024, 128>}, {pipeline_mode = #tpu.pipeline_mode<synchronous>, transform_indices = @transform_14, window_bounds = array<i64: 1, 128>}, {transform_indices = @transform_15, window_bounds = array<i64: 2, 128>}]} {
    %c0 = arith.constant 0 : index
    %c0_0 = arith.constant 0 : index
    %0 = vector.load %arg1[%c0, %c0_0] : memref<2x288xbf16, #tpu.memory_space<vmem>>, vector<2x288xbf16>
    %c0_1 = arith.constant 0 : index
    %c0_2 = arith.constant 0 : index
    %1 = vector.load %arg3[%c0_1, %c0_2] : memref<288x512xbf16, #tpu.memory_space<vmem>>, vector<288x512xbf16>
    %cst = arith.constant dense<0.000000e+00> : vector<2x512xf32>
    %2 = tpu.matmul %0, %1, %cst {dimension_numbers = #tpu.dot_dimension_numbers<[1], [0], [0], [1], [0, 0, 1, 1], [], []>} : vector<2x288xbf16>, vector<288x512xbf16>, vector<2x512xf32> -> vector<2x512xf32>
    %c0_3 = arith.constant 0 : index
    %c0_4 = arith.constant 0 : index
    %3 = vector.load %arg4[%c0_3, %c0_4] : memref<1x512xf32, #tpu.memory_space<vmem>>, vector<1x512xf32>
    %4 = vector.broadcast %3 : vector<1x512xf32> to vector<2x512xf32>
    %5 = arith.addf %2, %4 : vector<2x512xf32>
    %cst_5 = arith.constant dense<0.000000e+00> : vector<2xf32>
    %6 = vector.multi_reduction <add>, %5, %cst_5 [1] : vector<2x512xf32> to vector<2xf32>
    %7 = vector.shape_cast %6 : vector<2xf32> to vector<2x1xf32>
    %cst_6 = arith.constant 5.120000e+02 : f32
    %8 = vector.broadcast %cst_6 : f32 to vector<2x1xf32>
    %9 = arith.divf %7, %8 : vector<2x1xf32>
    %10 = vector.broadcast %9 : vector<2x1xf32> to vector<2x512xf32>
    %11 = arith.subf %5, %10 : vector<2x512xf32>
    %12 = arith.mulf %11, %11 : vector<2x512xf32>
    %cst_7 = arith.constant dense<0.000000e+00> : vector<2xf32>
    %13 = vector.multi_reduction <add>, %12, %cst_7 [1] : vector<2x512xf32> to vector<2xf32>
    %14 = vector.shape_cast %13 : vector<2xf32> to vector<2x1xf32>
    %cst_8 = arith.constant 5.120000e+02 : f32
    %15 = vector.broadcast %cst_8 : f32 to vector<2x1xf32>
    %16 = arith.divf %14, %15 : vector<2x1xf32>
    %cst_9 = arith.constant 9.99999974E-6 : f32
    %17 = vector.broadcast %cst_9 : f32 to vector<2x1xf32>
    %18 = arith.addf %16, %17 : vector<2x1xf32>
    %19 = math.rsqrt %18 : vector<2x1xf32>
    %20 = vector.broadcast %19 : vector<2x1xf32> to vector<2x512xf32>
    %21 = arith.mulf %11, %20 : vector<2x512xf32>
    %c0_10 = arith.constant 0 : index
    %c0_11 = arith.constant 0 : index
    %22 = vector.load %arg5[%c0_10, %c0_11] : memref<1x512xf32, #tpu.memory_space<vmem>>, vector<1x512xf32>
    %23 = vector.broadcast %22 : vector<1x512xf32> to vector<2x512xf32>
    %24 = arith.mulf %21, %23 : vector<2x512xf32>
    %c0_12 = arith.constant 0 : index
    %c0_13 = arith.constant 0 : index
    %25 = vector.load %arg6[%c0_12, %c0_13] : memref<1x512xf32, #tpu.memory_space<vmem>>, vector<1x512xf32>
    %26 = vector.broadcast %25 : vector<1x512xf32> to vector<2x512xf32>
    %27 = arith.addf %24, %26 : vector<2x512xf32>
    %28 = arith.truncf %27 : vector<2x512xf32> to vector<2x512xbf16>
    %c0_14 = arith.constant 0 : index
    %c0_15 = arith.constant 0 : index
    %29 = vector.load %arg7[%c0_14, %c0_15] : memref<512x1024xbf16, #tpu.memory_space<vmem>>, vector<512x1024xbf16>
    %cst_16 = arith.constant dense<0.000000e+00> : vector<2x1024xf32>
    %30 = tpu.matmul %28, %29, %cst_16 {dimension_numbers = #tpu.dot_dimension_numbers<[1], [0], [0], [1], [0, 0, 1, 1], [], []>} : vector<2x512xbf16>, vector<512x1024xbf16>, vector<2x1024xf32> -> vector<2x1024xf32>
    %c0_17 = arith.constant 0 : index
    %c0_18 = arith.constant 0 : index
    %31 = vector.load %arg2[%c0_17, %c0_18] : memref<2x4xbf16, #tpu.memory_space<vmem>>, vector<2x4xbf16>
    %c0_19 = arith.constant 0 : index
    %c0_20 = arith.constant 0 : index
    %32 = vector.load %arg8[%c0_19, %c0_20] : memref<4x1024xbf16, #tpu.memory_space<vmem>>, vector<4x1024xbf16>
    %cst_21 = arith.constant dense<0.000000e+00> : vector<2x1024xf32>
    %33 = tpu.matmul %31, %32, %cst_21 {dimension_numbers = #tpu.dot_dimension_numbers<[1], [0], [0], [1], [0, 0, 1, 1], [], []>} : vector<2x4xbf16>, vector<4x1024xbf16>, vector<2x1024xf32> -> vector<2x1024xf32>
    %34 = arith.addf %30, %33 : vector<2x1024xf32>
    %c0_22 = arith.constant 0 : index
    %c0_23 = arith.constant 0 : index
    %35 = vector.load %arg9[%c0_22, %c0_23] : memref<1x1024xf32, #tpu.memory_space<vmem>>, vector<1x1024xf32>
    %36 = vector.broadcast %35 : vector<1x1024xf32> to vector<2x1024xf32>
    %37 = arith.addf %34, %36 : vector<2x1024xf32>
    %cst_24 = arith.constant 0.000000e+00 : f32
    %38 = vector.broadcast %cst_24 : f32 to vector<2x1024xf32>
    %39 = arith.maximumf %37, %38 : vector<2x1024xf32>
    %40 = arith.truncf %39 : vector<2x1024xf32> to vector<2x1024xbf16>
    %41 = vector.extract_strided_slice %40 {offsets = [0, 0], sizes = [2, 512], strides = [1, 1]} : vector<2x1024xbf16> to vector<2x512xbf16>
    %42 = vector.extract_strided_slice %40 {offsets = [0, 512], sizes = [2, 512], strides = [1, 1]} : vector<2x1024xbf16> to vector<2x512xbf16>
    %c0_25 = arith.constant 0 : index
    %c0_26 = arith.constant 0 : index
    %43 = vector.load %arg10[%c0_25, %c0_26] : memref<512x512xbf16, #tpu.memory_space<vmem>>, vector<512x512xbf16>
    %cst_27 = arith.constant dense<0.000000e+00> : vector<2x512xf32>
    %44 = tpu.matmul %41, %43, %cst_27 {dimension_numbers = #tpu.dot_dimension_numbers<[1], [0], [0], [1], [0, 0, 1, 1], [], []>} : vector<2x512xbf16>, vector<512x512xbf16>, vector<2x512xf32> -> vector<2x512xf32>
    %c0_28 = arith.constant 0 : index
    %c0_29 = arith.constant 0 : index
    %45 = vector.load %arg11[%c0_28, %c0_29] : memref<1x512xf32, #tpu.memory_space<vmem>>, vector<1x512xf32>
    %46 = vector.broadcast %45 : vector<1x512xf32> to vector<2x512xf32>
    %47 = arith.addf %44, %46 : vector<2x512xf32>
    %cst_30 = arith.constant 0.000000e+00 : f32
    %48 = vector.broadcast %cst_30 : f32 to vector<2x512xf32>
    %49 = arith.maximumf %47, %48 : vector<2x512xf32>
    %50 = arith.truncf %49 : vector<2x512xf32> to vector<2x512xbf16>
    %c0_31 = arith.constant 0 : index
    %c0_32 = arith.constant 0 : index
    %51 = vector.load %arg12[%c0_31, %c0_32] : memref<512x512xbf16, #tpu.memory_space<vmem>>, vector<512x512xbf16>
    %cst_33 = arith.constant dense<0.000000e+00> : vector<2x512xf32>
    %52 = tpu.matmul %42, %51, %cst_33 {dimension_numbers = #tpu.dot_dimension_numbers<[1], [0], [0], [1], [0, 0, 1, 1], [], []>} : vector<2x512xbf16>, vector<512x512xbf16>, vector<2x512xf32> -> vector<2x512xf32>
    %c0_34 = arith.constant 0 : index
    %c0_35 = arith.constant 0 : index
    %53 = vector.load %arg13[%c0_34, %c0_35] : memref<1x512xf32, #tpu.memory_space<vmem>>, vector<1x512xf32>
    %54 = vector.broadcast %53 : vector<1x512xf32> to vector<2x512xf32>
    %55 = arith.addf %52, %54 : vector<2x512xf32>
    %cst_36 = arith.constant 0.000000e+00 : f32
    %56 = vector.broadcast %cst_36 : f32 to vector<2x512xf32>
    %57 = arith.maximumf %55, %56 : vector<2x512xf32>
    %58 = arith.truncf %57 : vector<2x512xf32> to vector<2x512xbf16>
    %59 = tpu.concatenate %50, %58 in 1 : vector<2x512xbf16>, vector<2x512xbf16> -> vector<2x1024xbf16>
    %c0_37 = arith.constant 0 : index
    %c0_38 = arith.constant 0 : index
    %60 = vector.load %arg14[%c0_37, %c0_38] : memref<1024x128xbf16, #tpu.memory_space<vmem>>, vector<1024x128xbf16>
    %cst_39 = arith.constant dense<0.000000e+00> : vector<2x128xf32>
    %61 = tpu.matmul %59, %60, %cst_39 {dimension_numbers = #tpu.dot_dimension_numbers<[1], [0], [0], [1], [0, 0, 1, 1], [], []>} : vector<2x1024xbf16>, vector<1024x128xbf16>, vector<2x128xf32> -> vector<2x128xf32>
    %c0_40 = arith.constant 0 : index
    %c0_41 = arith.constant 0 : index
    %62 = vector.load %arg15[%c0_40, %c0_41] : memref<1x128xf32, #tpu.memory_space<vmem>>, vector<1x128xf32>
    %63 = vector.broadcast %62 : vector<1x128xf32> to vector<2x128xf32>
    %64 = arith.addf %61, %63 : vector<2x128xf32>
    %c0_42 = arith.constant 0 : index
    %c0_43 = arith.constant 0 : index
    %65 = vector.load %arg16[%c0_42, %c0_43] : memref<2x128xf32, #tpu.memory_space<vmem>>, vector<2x128xf32>
    tpu.vector_store %arg16[%c0_42, %c0_43], %64 {strides = array<i32>} : memref<2x128xf32, #tpu.memory_space<vmem>>, vector<2x128xf32>,
    return
  }
  func.func @transform_0(%arg0: i32) -> (i32, i32) {
    %c0_i32 = arith.constant 0 : i32
    %c0_i32_0 = arith.constant 0 : i32
    return %arg0, %c0_i32 : i32, i32
  }
  func.func @transform_1(%arg0: i32) -> (i32, i32) {
    %c0_i32 = arith.constant 0 : i32
    %c0_i32_0 = arith.constant 0 : i32
    return %arg0, %c0_i32 : i32, i32
  }
  func.func @transform_2(%arg0: i32) -> (i32, i32) {
    %c0_i32 = arith.constant 0 : i32
    %c0_i32_0 = arith.constant 0 : i32
    %c0_i32_1 = arith.constant 0 : i32
    return %c0_i32, %c0_i32_0 : i32, i32
  }
  func.func @transform_3(%arg0: i32) -> (i32, i32) {
    %c0_i32 = arith.constant 0 : i32
    %c0_i32_0 = arith.constant 0 : i32
    %c0_i32_1 = arith.constant 0 : i32
    return %c0_i32, %c0_i32_0 : i32, i32
  }
  func.func @transform_4(%arg0: i32) -> (i32, i32) {
    %c0_i32 = arith.constant 0 : i32
    %c0_i32_0 = arith.constant 0 : i32
    %c0_i32_1 = arith.constant 0 : i32
    return %c0_i32, %c0_i32_0 : i32, i32
  }
  func.func @transform_5(%arg0: i32) -> (i32, i32) {
    %c0_i32 = arith.constant 0 : i32
    %c0_i32_0 = arith.constant 0 : i32
    %c0_i32_1 = arith.constant 0 : i32
    return %c0_i32, %c0_i32_0 : i32, i32
  }
  func.func @transform_6(%arg0: i32) -> (i32, i32) {
    %c0_i32 = arith.constant 0 : i32
    %c0_i32_0 = arith.constant 0 : i32
    %c0_i32_1 = arith.constant 0 : i32
    return %c0_i32, %c0_i32_0 : i32, i32
  }
  func.func @transform_7(%arg0: i32) -> (i32, i32) {
    %c0_i32 = arith.constant 0 : i32
    %c0_i32_0 = arith.constant 0 : i32
    %c0_i32_1 = arith.constant 0 : i32
    return %c0_i32, %c0_i32_0 : i32, i32
  }
  func.func @transform_8(%arg0: i32) -> (i32, i32) {
    %c0_i32 = arith.constant 0 : i32
    %c0_i32_0 = arith.constant 0 : i32
    %c0_i32_1 = arith.constant 0 : i32
    return %c0_i32, %c0_i32_0 : i32, i32
  }
  func.func @transform_9(%arg0: i32) -> (i32, i32) {
    %c0_i32 = arith.constant 0 : i32
    %c0_i32_0 = arith.constant 0 : i32
    %c0_i32_1 = arith.constant 0 : i32
    return %c0_i32, %c0_i32_0 : i32, i32
  }
  func.func @transform_10(%arg0: i32) -> (i32, i32) {
    %c0_i32 = arith.constant 0 : i32
    %c0_i32_0 = arith.constant 0 : i32
    %c0_i32_1 = arith.constant 0 : i32
    return %c0_i32, %c0_i32_0 : i32, i32
  }
  func.func @transform_11(%arg0: i32) -> (i32, i32) {
    %c0_i32 = arith.constant 0 : i32
    %c0_i32_0 = arith.constant 0 : i32
    %c0_i32_1 = arith.constant 0 : i32
    return %c0_i32, %c0_i32_0 : i32, i32
  }
  func.func @transform_12(%arg0: i32) -> (i32, i32) {
    %c0_i32 = arith.constant 0 : i32
    %c0_i32_0 = arith.constant 0 : i32
    %c0_i32_1 = arith.constant 0 : i32
    return %c0_i32, %c0_i32_0 : i32, i32
  }
  func.func @transform_13(%arg0: i32) -> (i32, i32) {
    %c0_i32 = arith.constant 0 : i32
    %c0_i32_0 = arith.constant 0 : i32
    %c0_i32_1 = arith.constant 0 : i32
    return %c0_i32, %c0_i32_0 : i32, i32
  }
  func.func @transform_14(%arg0: i32) -> (i32, i32) {
    %c0_i32 = arith.constant 0 : i32
    %c0_i32_0 = arith.constant 0 : i32
    %c0_i32_1 = arith.constant 0 : i32
    return %c0_i32, %c0_i32_0 : i32, i32
  }
  func.func @transform_15(%arg0: i32) -> (i32, i32) {
    %c0_i32 = arith.constant 0 : i32
    %c0_i32_0 = arith.constant 0 : i32
    return %arg0, %c0_i32 : i32, i32
  }
}

</mosaic_0001>

<llo_original>
// kernel: critic_forward.5
$region0: #{critic_forward.5}
  #allocation0 [shape = 'u32[]', space=smem, size = 0x4, offset = 0x4, fixed_abs, tag = 'smem constant byte address 0x4 - core index']
  #allocation1 [shape = 'u32[144,128]{1,0:T(1,128)}', space=vmem, size = 0x12000, scoped, tag = 'internal scratch']
  %s0 = inlined_call_operand.vmem [shape: bf16[162,36], index: 0, kind: input, shape index: {}]
  %s1 = inlined_call_operand.vmem [shape: bf16[36,32], index: 1, kind: input, shape index: {}]
  %s2 = inlined_call_operand.vmem [shape: f32[1,32], index: 2, kind: input, shape index: {}]
  %s3 = inlined_call_operand.vmem [shape: bf16[162,32], index: 3, kind: output, shape index: {}]
  %s4 = sld [smem:[#allocation0]]
  $region22: #{critic_forward.5} parent=0
    _
  %s6 = ssub.s32 1, %s4
  %s7 = scalar_select 0, %s6, %s4
  // Predicated region
  $region2: #{critic_forward.5} parent=0 // pred_check
    _
  $region3: #{critic_forward.5} parent=0 // pred_check_branch
    %9 = sbr.rel (0) target = $region5
  $region4: #{critic_forward.5} parent=0 // pred_region
    _
  $region5: #{critic_forward.5} parent=0 // pred_fallthru
    _
  // Predicated region
  $region6: #{critic_forward.5} parent=0 // pred_check
    _
  $region7: #{critic_forward.5} parent=0 // pred_check_branch
    %11 = sbr.rel (0) target = $region9
  $region8: #{critic_forward.5} parent=0 // pred_region
    _
  $region9: #{critic_forward.5} parent=0 // pred_fallthru
    _
  // Predicated region
  $region10: #{critic_forward.5} parent=0 // pred_check
    _
  $region11: #{critic_forward.5} parent=0 // pred_check_branch
    %13 = sbr.rel (0) target = $region13
  $region12: #{critic_forward.5} parent=0 // pred_region
    _
  $region13: #{critic_forward.5} parent=0 // pred_fallthru
    _
  %v15 = vld [vmem:[%s0] sm:$0xf]
  %v16 = vld [vmem:[%s0 + $0x4] sm:$0xf]
  %v17 = vld [vmem:[%s0 + $0x8] sm:$0xf]
  %v18 = vld [vmem:[%s0 + $0xc] sm:$0xf]
  %v19 = vld [vmem:[%s0 + $0x10] sm:$0xf]
  %v20 = vld [vmem:[%s0 + $0x14] sm:$0xf]
  %v21 = vld [vmem:[%s0 + $0x18] sm:$0xf]
  %v22 = vld [vmem:[%s0 + $0x1c] sm:$0xf]
  %v23 = vld [vmem:[%s0 + $0x20] sm:$0xf]
  %v24 = vld [vmem:[%s0 + $0x24] sm:$0xf]
  %v25 = vld [vmem:[%s0 + $0x28] sm:$0xf]
  %v26 = vld [vmem:[%s0 + $0x2c] sm:$0xf]
  %v27 = vld [vmem:[%s0 + $0x30] sm:$0xf]
  %v28 = vld [vmem:[%s0 + $0x34] sm:$0xf]
  %v29 = vld [vmem:[%s0 + $0x38] sm:$0xf]
  %v30 = vld [vmem:[%s0 + $0x3c] sm:$0xf]
  %v31 = vld [vmem:[%s0 + $0x40] sm:$0xf]
  %v32 = vld [vmem:[%s0 + $0x44] sm:$0xf]
  %v33 = vld [vmem:[%s0 + $0x48] sm:$0xf]
  %v34 = vld [vmem:[%s0 + $0x4c] sm:$0xf]
  %v35 = vld [vmem:[%s0 + $0x50] sm:$0x1]
  %v36 = vld [vmem:[%s1] sm:$0xf]
  %v37 = vld [vmem:[%s1 + $0x4] sm:$0xf]
  %v38 = vld [vmem:[%s1 + $0x8] sm:$0xf]
  %v39 = vld [vmem:[%s1 + $0xc] sm:$0xf]
  %v40 = vld [vmem:[%s1 + $0x10] sm:$0x3]
  %v41 = vld [vmem:[%s2] sm:$0x1]
  %v43 = vlaneseq
  %v44 = vshrl.u32 %v43, 7
  %v45 = vsub.s32 0, %v44
  %v46 = vrot.slane %v41, %v45
  %v69 = vunpack.c.l.b16 %v15
  %v70 = vunpack.c.l.b16 %v16
  %v71 = vunpack.c.l.b16 %v17
  %v72 = vunpack.c.l.b16 %v18
  %v73 = vunpack.c.l.b16 %v19
  %v74 = vunpack.c.l.b16 %v20
  %v75 = vunpack.c.l.b16 %v21
  %v76 = vunpack.c.l.b16 %v22
  %v77 = vunpack.c.l.b16 %v23
  %v78 = vunpack.c.l.b16 %v24
  %v79 = vunpack.c.l.b16 %v25
  %v80 = vunpack.c.l.b16 %v26
  %v81 = vunpack.c.l.b16 %v27
  %v82 = vunpack.c.l.b16 %v28
  %v83 = vunpack.c.l.b16 %v29
  %v84 = vunpack.c.l.b16 %v30
  %v85 = vunpack.c.l.b16 %v31
  %v86 = vunpack.c.l.b16 %v32
  %v87 = vunpack.c.l.b16 %v33
  %v88 = vunpack.c.l.b16 %v34
  %v89 = vunpack.c.l.b16 %v35
  %v90 = vpack.c.b16 %v70, %v69
  %v91 = vpack.c.b16 %v72, %v71
  %v92 = vpack.c.b16 %v74, %v73
  %v93 = vpack.c.b16 %v76, %v75
  %v94 = vpack.c.b16 %v78, %v77
  %v95 = vpack.c.b16 %v80, %v79
  %v96 = vpack.c.b16 %v82, %v81
  %v97 = vpack.c.b16 %v84, %v83
  %v98 = vpack.c.b16 %v86, %v85
  %v99 = vpack.c.b16 %v88, %v87
  %v100 = vpack.c.b16 %v89, %v89
  %v106 = vunpack.c.l.b16 %v36
  %v107 = vunpack.c.l.b16 %v37
  %v108 = vunpack.c.l.b16 %v38
  %v109 = vunpack.c.l.b16 %v39
  %v110 = vunpack.c.l.b16 %v40
  %v111 = vpack.c.b16 %v107, %v106
  %v112 = vpack.c.b16 %v109, %v108
  %v113 = vpack.c.b16 %v110, %v110
  %vm116 = vcmask 293888
  %v118 = vsel %vm116, %v90, 0
  %v121 = vsel %vm116, %v91, 0
  %v124 = vsel %vm116, %v92, 0
  %v127 = vsel %vm116, %v93, 0
  %v130 = vsel %vm116, %v94, 0
  %v133 = vsel %vm116, %v95, 0
  %v136 = vsel %vm116, %v96, 0
  %v139 = vsel %vm116, %v97, 0
  %v142 = vsel %vm116, %v98, 0
  %v145 = vsel %vm116, %v99, 0
  %v148 = vsel %vm116, %v100, 0
  %vm150 = vcmask 1041408
  %v152 = vsel %vm150, %v113, 0
  %154 = vmatprep.subr.bf16.mxu0 0
  %155 = vmatpush1.bf16.msra.mxu0 %v111
  %156 = vmatprep.subr.bf16.mxu0 0
  %157 = vmatpush1.bf16.msra.mxu0 %v112
  %158 = vmatprep.subr.bf16.mxu0 0
  %159 = vmatpush1.bf16.msra.mxu0 %v152
  %160 = vmatprep.subr.bf16.mxu0 0
  %161 = vmatpush1.bf16.msra.mxu0 0
  %162 = vmatprep.subr.bf16.mxu0 0
  %163 = vmatpush1.bf16.msra.mxu0 0
  %164 = vmatprep.subr.bf16.mxu0 0
  %165 = vmatpush1.bf16.msra.mxu0 0
  %166 = vmatprep.subr.bf16.mxu0 0
  %167 = vmatpush1.bf16.msra.mxu0 0
  %168 = vmatprep.subr.bf16.mxu0 0
  %169 = vmatpush1.bf16.msra.mxu0 0
  %170 = vmatprep.subr.bf16.mxu0 0
  %171 = vmatpush1.bf16.msra.mxu0 0
  %172 = vmatprep.subr.bf16.mxu0 0
  %173 = vmatpush1.bf16.msra.mxu0 0
  %174 = vmatprep.subr.bf16.mxu0 0
  %175 = vmatpush1.bf16.msra.mxu0 0
  %176 = vmatprep.subr.bf16.mxu0 0
  %177 = vmatpush1.bf16.msra.mxu0 0
  %178 = vmatprep.subr.bf16.mxu0 0
  %179 = vmatpush1.bf16.msra.mxu0 0
  %180 = vmatprep.subr.bf16.mxu0 0
  %181 = vmatpush1.bf16.msra.mxu0 0
  %182 = vmatprep.subr.bf16.mxu0 0
  %183 = vmatpush1.bf16.msra.mxu0 0
  %184 = vmatprep.subr.bf16.mxu0 0
  %185 = vmatpush1.bf16.msra.mxu0 0
  %186 = vmatprep.mubr.bf16.mxu0 0
  %187 = vmatmul.mubr.bf16.gmra.mrb[0].mxu0 %v118
  %v188 = vpop.f32.mrb[0].mxu0
  %v189 = vadd.f32 %v46, %v188
  %v190 = vpop.f32.mrb[0].mxu0
  %v191 = vpop.f32.mrb[0].mxu0
  %v192 = vadd.f32 %v46, %v191
  %v193 = vpop.f32.mrb[0].mxu0
  %194 = vmatprep.mubr.bf16.mxu0 0
  %195 = vmatmul.mubr.bf16.gmra.mrb[0].mxu0 %v121
  %v196 = vpop.f32.mrb[0].mxu0
  %v197 = vadd.f32 %v46, %v196
  %v198 = vpop.f32.mrb[0].mxu0
  %v199 = vpop.f32.mrb[0].mxu0
  %v200 = vadd.f32 %v46, %v199
  %v201 = vpop.f32.mrb[0].mxu0
  %202 = vmatprep.mubr.bf16.mxu0 0
  %203 = vmatmul.mubr.bf16.gmra.mrb[0].mxu0 %v124
  %v204 = vpop.f32.mrb[0].mxu0
  %v205 = vadd.f32 %v46, %v204
  %v206 = vpop.f32.mrb[0].mxu0
  %v207 = vpop.f32.mrb[0].mxu0
  %v208 = vadd.f32 %v46, %v207
  %v209 = vpop.f32.mrb[0].mxu0
  %210 = vmatprep.mubr.bf16.mxu0 0
  %211 = vmatmul.mubr.bf16.gmra.mrb[0].mxu0 %v127
  %v212 = vpop.f32.mrb[0].mxu0
  %v213 = vadd.f32 %v46, %v212
  %v214 = vpop.f32.mrb[0].mxu0
  %v215 = vpop.f32.mrb[0].mxu0
  %v216 = vadd.f32 %v46, %v215
  %v217 = vpop.f32.mrb[0].mxu0
  %218 = vmatprep.mubr.bf16.mxu0 0
  %219 = vmatmul.mubr.bf16.gmra.mrb[0].mxu0 %v130
  %v220 = vpop.f32.mrb[0].mxu0
  %v221 = vadd.f32 %v46, %v220
  %v222 = vpop.f32.mrb[0].mxu0
  %v223 = vpop.f32.mrb[0].mxu0
  %v224 = vadd.f32 %v46, %v223
  %v225 = vpop.f32.mrb[0].mxu0
  %226 = vmatprep.mubr.bf16.mxu0 0
  %227 = vmatmul.mubr.bf16.gmra.mrb[0].mxu0 %v133
  %v228 = vpop.f32.mrb[0].mxu0
  %v229 = vadd.f32 %v46, %v228
  %v230 = vpop.f32.mrb[0].mxu0
  %v231 = vpop.f32.mrb[0].mxu0
  %v232 = vadd.f32 %v46, %v231
  %v233 = vpop.f32.mrb[0].mxu0
  %234 = vmatprep.mubr.bf16.mxu0 0
  %235 = vmatmul.mubr.bf16.gmra.mrb[0].mxu0 %v136
  %v236 = vpop.f32.mrb[0].mxu0
  %v237 = vadd.f32 %v46, %v236
  %v238 = vpop.f32.mrb[0].mxu0
  %v239 = vpop.f32.mrb[0].mxu0
  %v240 = vadd.f32 %v46, %v239
  %v241 = vpop.f32.mrb[0].mxu0
  %242 = vmatprep.mubr.bf16.mxu0 0
  %243 = vmatmul.mubr.bf16.gmra.mrb[0].mxu0 %v139
  %v244 = vpop.f32.mrb[0].mxu0
  %v245 = vadd.f32 %v46, %v244
  %v246 = vpop.f32.mrb[0].mxu0
  %v247 = vpop.f32.mrb[0].mxu0
  %v248 = vadd.f32 %v46, %v247
  %v249 = vpop.f32.mrb[0].mxu0
  %250 = vmatprep.mubr.bf16.mxu0 0
  %251 = vmatmul.mubr.bf16.gmra.mrb[0].mxu0 %v142
  %v252 = vpop.f32.mrb[0].mxu0
  %v253 = vadd.f32 %v46, %v252
  %v254 = vpop.f32.mrb[0].mxu0
  %v255 = vpop.f32.mrb[0].mxu0
  %v256 = vadd.f32 %v46, %v255
  %v257 = vpop.f32.mrb[0].mxu0
  %258 = vmatprep.mubr.bf16.mxu0 0
  %259 = vmatmul.mubr.bf16.gmra.mrb[0].mxu0 %v145
  %v260 = vpop.f32.mrb[0].mxu0
  %v261 = vadd.f32 %v46, %v260
  %v262 = vpop.f32.mrb[0].mxu0
  %v263 = vpop.f32.mrb[0].mxu0
  %v264 = vadd.f32 %v46, %v263
  %v265 = vpop.f32.mrb[0].mxu0
  %266 = vmatprep.mubr.bf16.mxu0 0
  %267 = vmatmul.mubr.bf16.gmra.mrb[0].mxu0 %v148
  %v268 = vpop.f32.mrb[0].mxu0
  %v269 = vadd.f32 %v46, %v268
  %v270 = vpop.f32.mrb[0].mxu0
  %v271 = vpop.f32.mrb[0].mxu0
  %v272 = vpop.f32.mrb[0].mxu0
  %273 = vdwg.mxu0
  %v274 = vmax.f32 %v189, 0.0
  %v275 = vmax.f32 %v192, 0.0
  %v276 = vmax.f32 %v197, 0.0
  %v277 = vmax.f32 %v200, 0.0
  %v278 = vmax.f32 %v205, 0.0
  %v279 = vmax.f32 %v208, 0.0
  %v280 = vmax.f32 %v213, 0.0
  %v281 = vmax.f32 %v216, 0.0
  %v282 = vmax.f32 %v221, 0.0
  %v283 = vmax.f32 %v224, 0.0
  %v284 = vmax.f32 %v229, 0.0
  %v285 = vmax.f32 %v232, 0.0
  %v286 = vmax.f32 %v237, 0.0
  %v287 = vmax.f32 %v240, 0.0
  %v288 = vmax.f32 %v245, 0.0
  %v289 = vmax.f32 %v248, 0.0
  %v290 = vmax.f32 %v253, 0.0
  %v291 = vmax.f32 %v256, 0.0
  %v292 = vmax.f32 %v261, 0.0
  %v293 = vmax.f32 %v264, 0.0
  %v294 = vmax.f32 %v269, 0.0
  %v295 = vpack.c.bf16 %v275, %v274
  %v296 = vpack.c.bf16 %v277, %v276
  %v297 = vpack.c.bf16 %v279, %v278
  %v298 = vpack.c.bf16 %v281, %v280
  %v299 = vpack.c.bf16 %v283, %v282
  %v300 = vpack.c.bf16 %v285, %v284
  %v301 = vpack.c.bf16 %v287, %v286
  %v302 = vpack.c.bf16 %v289, %v288
  %v303 = vpack.c.bf16 %v291, %v290
  %v304 = vpack.c.bf16 %v293, %v292
  %v305 = vpack.c.bf16 %v294, %v294
  %v317 = vunpack.c.l.b16 %v295
  %v318 = vunpack.c.h.b16 %v295
  %v319 = vunpack.c.l.b16 %v296
  %v320 = vunpack.c.h.b16 %v296
  %v321 = vunpack.c.l.b16 %v297
  %v322 = vunpack.c.h.b16 %v297
  %v323 = vunpack.c.l.b16 %v298
  %v324 = vunpack.c.h.b16 %v298
  %v325 = vunpack.c.l.b16 %v299
  %v326 = vunpack.c.h.b16 %v299
  %v327 = vunpack.c.l.b16 %v300
  %v328 = vunpack.c.h.b16 %v300
  %v329 = vunpack.c.l.b16 %v301
  %v330 = vunpack.c.h.b16 %v301
  %v331 = vunpack.c.l.b16 %v302
  %v332 = vunpack.c.h.b16 %v302
  %v333 = vunpack.c.l.b16 %v303
  %v334 = vunpack.c.h.b16 %v303
  %v335 = vunpack.c.l.b16 %v304
  %v336 = vunpack.c.h.b16 %v304
  %v337 = vunpack.c.l.b16 %v305
  %v338 = vpack.c.b16 %v317, %v317
  %v339 = vpack.c.b16 %v318, %v318
  %v340 = vpack.c.b16 %v319, %v319
  %v341 = vpack.c.b16 %v320, %v320
  %v342 = vpack.c.b16 %v321, %v321
  %v343 = vpack.c.b16 %v322, %v322
  %v344 = vpack.c.b16 %v323, %v323
  %v345 = vpack.c.b16 %v324, %v324
  %v346 = vpack.c.b16 %v325, %v325
  %v347 = vpack.c.b16 %v326, %v326
  %v348 = vpack.c.b16 %v327, %v327
  %v349 = vpack.c.b16 %v328, %v328
  %v350 = vpack.c.b16 %v329, %v329
  %v351 = vpack.c.b16 %v330, %v330
  %v352 = vpack.c.b16 %v331, %v331
  %v353 = vpack.c.b16 %v332, %v332
  %v354 = vpack.c.b16 %v333, %v333
  %v355 = vpack.c.b16 %v334, %v334
  %v356 = vpack.c.b16 %v335, %v335
  %v357 = vpack.c.b16 %v336, %v336
  %v358 = vpack.c.b16 %v337, %v337
  %vm380 = vcmask 257024
  %381 = vst.msk [vmem:[%s3] sm:$0xf] %vm380, %v338
  %382 = vst.msk [vmem:[%s3 + $0x4] sm:$0xf] %vm380, %v339
  %383 = vst.msk [vmem:[%s3 + $0x8] sm:$0xf] %vm380, %v340
  %384 = vst.msk [vmem:[%s3 + $0xc] sm:$0xf] %vm380, %v341
  %385 = vst.msk [vmem:[%s3 + $0x10] sm:$0xf] %vm380, %v342
  %386 = vst.msk [vmem:[%s3 + $0x14] sm:$0xf] %vm380, %v343
  %387 = vst.msk [vmem:[%s3 + $0x18] sm:$0xf] %vm380, %v344
  %388 = vst.msk [vmem:[%s3 + $0x1c] sm:$0xf] %vm380, %v345
  %389 = vst.msk [vmem:[%s3 + $0x20] sm:$0xf] %vm380, %v346
  %390 = vst.msk [vmem:[%s3 + $0x24] sm:$0xf] %vm380, %v347
  %391 = vst.msk [vmem:[%s3 + $0x28] sm:$0xf] %vm380, %v348
  %392 = vst.msk [vmem:[%s3 + $0x2c] sm:$0xf] %vm380, %v349
  %393 = vst.msk [vmem:[%s3 + $0x30] sm:$0xf] %vm380, %v350
  %394 = vst.msk [vmem:[%s3 + $0x34] sm:$0xf] %vm380, %v351
  %395 = vst.msk [vmem:[%s3 + $0x38] sm:$0xf] %vm380, %v352
  %396 = vst.msk [vmem:[%s3 + $0x3c] sm:$0xf] %vm380, %v353
  %397 = vst.msk [vmem:[%s3 + $0x40] sm:$0xf] %vm380, %v354
  %398 = vst.msk [vmem:[%s3 + $0x44] sm:$0xf] %vm380, %v355
  %399 = vst.msk [vmem:[%s3 + $0x48] sm:$0xf] %vm380, %v356
  %400 = vst.msk [vmem:[%s3 + $0x4c] sm:$0xf] %vm380, %v357
  %vm401 = vcmask 253952
  %402 = vst.msk [vmem:[%s3 + $0x50] sm:$0x1] %vm401, %v358
  // Predicated region
  $region14: #{critic_forward.5} parent=0 // pred_check
    _
  $region15: #{critic_forward.5} parent=0 // pred_check_branch
    %404 = sbr.rel (0) target = $region17
  $region16: #{critic_forward.5} parent=0 // pred_region
    _
  $region17: #{critic_forward.5} parent=0 // pred_fallthru
    _
  // Predicated region
  $region18: #{critic_forward.5} parent=0 // pred_check
    _
  $region19: #{critic_forward.5} parent=0 // pred_check_branch
    %406 = sbr.rel (0) target = $region21
  $region20: #{critic_forward.5} parent=0 // pred_region
    _
  $region21: #{critic_forward.5} parent=0 // pred_fallthru
    _

// kernel: critic_forward.6
$region0: #{critic_forward.6}
  #allocation0 [shape = 'u32[]', space=smem, size = 0x4, offset = 0x4, fixed_abs, tag = 'smem constant byte address 0x4 - core index']
  #allocation1 [shape = 'u32[144,128]{1,0:T(1,128)}', space=vmem, size = 0x12000, scoped, tag = 'internal scratch']
  %s0 = inlined_call_operand.vmem [shape: bf16[98,288], index: 0, kind: input, shape index: {}]
  %s1 = inlined_call_operand.vmem [shape: bf16[288,32], index: 1, kind: input, shape index: {}]
  %s2 = inlined_call_operand.vmem [shape: f32[1,32], index: 2, kind: input, shape index: {}]
  %s3 = inlined_call_operand.vmem [shape: bf16[98,32], index: 3, kind: output, shape index: {}]
  %s4 = sld [smem:[#allocation0]]
  $region22: #{critic_forward.6} parent=0
    _
  %s6 = ssub.s32 1, %s4
  %s7 = scalar_select 0, %s6, %s4
  // Predicated region
  $region2: #{critic_forward.6} parent=0 // pred_check
    _
  $region3: #{critic_forward.6} parent=0 // pred_check_branch
    %9 = sbr.rel (0) target = $region5
  $region4: #{critic_forward.6} parent=0 // pred_region
    _
  $region5: #{critic_forward.6} parent=0 // pred_fallthru
    _
  // Predicated region
  $region6: #{critic_forward.6} parent=0 // pred_check
    _
  $region7: #{critic_forward.6} parent=0 // pred_check_branch
    %11 = sbr.rel (0) target = $region9
  $region8: #{critic_forward.6} parent=0 // pred_region
    _
  $region9: #{critic_forward.6} parent=0 // pred_fallthru
    _
  // Predicated region
  $region10: #{critic_forward.6} parent=0 // pred_check
    _
  $region11: #{critic_forward.6} parent=0 // pred_check_branch
    %13 = sbr.rel (0) target = $region13
  $region12: #{critic_forward.6} parent=0 // pred_region
    _
  $region13: #{critic_forward.6} parent=0 // pred_fallthru
    _
  %v15 = vld [vmem:[%s0] sm:$0xff]
  %v16 = vld [vmem:[%s0 + $0x8] sm:$0xf]
  %v17 = vld [vmem:[%s0 + $0xc] sm:$0xff]
  %v18 = vld [vmem:[%s0 + $0x14] sm:$0xf]
  %v19 = vld [vmem:[%s0 + $0x18] sm:$0xff]
  %v20 = vld [vmem:[%s0 + $0x20] sm:$0xf]
  %v21 = vld [vmem:[%s0 + $0x24] sm:$0xff]
  %v22 = vld [vmem:[%s0 + $0x2c] sm:$0xf]
  %v23 = vld [vmem:[%s0 + $0x30] sm:$0xff]
  %v24 = vld [vmem:[%s0 + $0x38] sm:$0xf]
  %v25 = vld [vmem:[%s0 + $0x3c] sm:$0xff]
  %v26 = vld [vmem:[%s0 + $0x44] sm:$0xf]
  %v27 = vld [vmem:[%s0 + $0x48] sm:$0xff]
  %v28 = vld [vmem:[%s0 + $0x50] sm:$0xf]
  %v29 = vld [vmem:[%s0 + $0x54] sm:$0xff]
  %v30 = vld [vmem:[%s0 + $0x5c] sm:$0xf]
  %v31 = vld [vmem:[%s0 + $0x60] sm:$0xff]
  %v32 = vld [vmem:[%s0 + $0x68] sm:$0xf]
  %v33 = vld [vmem:[%s0 + $0x6c] sm:$0xff]
  %v34 = vld [vmem:[%s0 + $0x74] sm:$0xf]
  %v35 = vld [vmem:[%s0 + $0x78] sm:$0xff]
  %v36 = vld [vmem:[%s0 + $0x80] sm:$0xf]
  %v37 = vld [vmem:[%s0 + $0x84] sm:$0xff]
  %v38 = vld [vmem:[%s0 + $0x8c] sm:$0xf]
  %v39 = vld [vmem:[%s0 + $0x90] sm:$0x11]
  %v40 = vld [vmem:[%s0 + $0x98] sm:$0x1]
  %v41 = vld [vmem:[%s1] sm:$0xf]
  %v42 = vld [vmem:[%s1 + $0x4] sm:$0xf]
  %v43 = vld [vmem:[%s1 + $0x8] sm:$0xf]
  %v44 = vld [vmem:[%s1 + $0xc] sm:$0xf]
  %v45 = vld [vmem:[%s1 + $0x10] sm:$0xf]
  %v46 = vld [vmem:[%s1 + $0x14] sm:$0xf]
  %v47 = vld [vmem:[%s1 + $0x18] sm:$0xf]
  %v48 = vld [vmem:[%s1 + $0x1c] sm:$0xf]
  %v49 = vld [vmem:[%s1 + $0x20] sm:$0xf]
  %v50 = vld [vmem:[%s1 + $0x24] sm:$0xf]
  %v51 = vld [vmem:[%s1 + $0x28] sm:$0xf]
  %v52 = vld [vmem:[%s1 + $0x2c] sm:$0xf]
  %v53 = vld [vmem:[%s1 + $0x30] sm:$0xf]
  %v54 = vld [vmem:[%s1 + $0x34] sm:$0xf]
  %v55 = vld [vmem:[%s1 + $0x38] sm:$0xf]
  %v56 = vld [vmem:[%s1 + $0x3c] sm:$0xf]
  %v57 = vld [vmem:[%s1 + $0x40] sm:$0xf]
  %v58 = vld [vmem:[%s1 + $0x44] sm:$0xf]
  %v59 = vld [vmem:[%s1 + $0x48] sm:$0xf]
  %v60 = vld [vmem:[%s1 + $0x4c] sm:$0xf]
  %v61 = vld [vmem:[%s1 + $0x50] sm:$0xf]
  %v62 = vld [vmem:[%s1 + $0x54] sm:$0xf]
  %v63 = vld [vmem:[%s1 + $0x58] sm:$0xf]
  %v64 = vld [vmem:[%s1 + $0x5c] sm:$0xf]
  %v65 = vld [vmem:[%s1 + $0x60] sm:$0xf]
  %v66 = vld [vmem:[%s1 + $0x64] sm:$0xf]
  %v67 = vld [vmem:[%s1 + $0x68] sm:$0xf]
  %v68 = vld [vmem:[%s1 + $0x6c] sm:$0xf]
  %v69 = vld [vmem:[%s1 + $0x70] sm:$0xf]
  %v70 = vld [vmem:[%s1 + $0x74] sm:$0xf]
  %v71 = vld [vmem:[%s1 + $0x78] sm:$0xf]
  %v72 = vld [vmem:[%s1 + $0x7c] sm:$0xf]
  %v73 = vld [vmem:[%s1 + $0x80] sm:$0xf]
  %v74 = vld [vmem:[%s1 + $0x84] sm:$0xf]
  %v75 = vld [vmem:[%s1 + $0x88] sm:$0xf]
  %v76 = vld [vmem:[%s1 + $0x8c] sm:$0xf]
  %v77 = vld [vmem:[%s2] sm:$0x1]
  %v79 = vlaneseq
  %v80 = vshrl.u32 %v79, 7
  %v81 = vsub.s32 0, %v80
  %v82 = vrot.slane %v77, %v81
  %v110 = vunpack.c.l.b16 %v15
  %v111 = vunpack.c.h.b16 %v15
  %v112 = vunpack.c.l.b16 %v16
  %v113 = vunpack.c.l.b16 %v17
  %v114 = vunpack.c.h.b16 %v17
  %v115 = vunpack.c.l.b16 %v18
  %v116 = vunpack.c.l.b16 %v19
  %v117 = vunpack.c.h.b16 %v19
  %v118 = vunpack.c.l.b16 %v20
  %v119 = vunpack.c.l.b16 %v21
  %v120 = vunpack.c.h.b16 %v21
  %v121 = vunpack.c.l.b16 %v22
  %v122 = vunpack.c.l.b16 %v23
  %v123 = vunpack.c.h.b16 %v23
  %v124 = vunpack.c.l.b16 %v24
  %v125 = vunpack.c.l.b16 %v25
  %v126 = vunpack.c.h.b16 %v25
  %v127 = vunpack.c.l.b16 %v26
  %v128 = vunpack.c.l.b16 %v27
  %v129 = vunpack.c.h.b16 %v27
  %v130 = vunpack.c.l.b16 %v28
  %v131 = vunpack.c.l.b16 %v29
  %v132 = vunpack.c.h.b16 %v29
  %v133 = vunpack.c.l.b16 %v30
  %v134 = vunpack.c.l.b16 %v31
  %v135 = vunpack.c.h.b16 %v31
  %v136 = vunpack.c.l.b16 %v32
  %v137 = vunpack.c.l.b16 %v33
  %v138 = vunpack.c.h.b16 %v33
  %v139 = vunpack.c.l.b16 %v34
  %v140 = vunpack.c.l.b16 %v35
  %v141 = vunpack.c.h.b16 %v35
  %v142 = vunpack.c.l.b16 %v36
  %v143 = vunpack.c.l.b16 %v37
  %v144 = vunpack.c.h.b16 %v37
  %v145 = vunpack.c.l.b16 %v38
  %v146 = vunpack.c.l.b16 %v39
  %v147 = vunpack.c.h.b16 %v39
  %v148 = vunpack.c.l.b16 %v40
  %v149 = vpack.c.b16 %v113, %v110
  %v150 = vpack.c.b16 %v114, %v111
  %v151 = vpack.c.b16 %v115, %v112
  %v152 = vpack.c.b16 %v119, %v116
  %v153 = vpack.c.b16 %v120, %v117
  %v154 = vpack.c.b16 %v121, %v118
  %v155 = vpack.c.b16 %v125, %v122
  %v156 = vpack.c.b16 %v126, %v123
  %v157 = vpack.c.b16 %v127, %v124
  %v158 = vpack.c.b16 %v131, %v128
  %v159 = vpack.c.b16 %v132, %v129
  %v160 = vpack.c.b16 %v133, %v130
  %v161 = vpack.c.b16 %v137, %v134
  %v162 = vpack.c.b16 %v138, %v135
  %v163 = vpack.c.b16 %v139, %v136
  %v164 = vpack.c.b16 %v143, %v140
  %v165 = vpack.c.b16 %v144, %v141
  %v166 = vpack.c.b16 %v145, %v142
  %v167 = vpack.c.b16 %v146, %v146
  %v168 = vpack.c.b16 %v147, %v147
  %v169 = vpack.c.b16 %v148, %v148
  %v220 = vunpack.c.l.b16 %v41
  %v221 = vunpack.c.l.b16 %v42
  %v222 = vunpack.c.l.b16 %v43
  %v223 = vunpack.c.l.b16 %v44
  %v224 = vunpack.c.l.b16 %v45
  %v225 = vunpack.c.l.b16 %v46
  %v226 = vunpack.c.l.b16 %v47
  %v227 = vunpack.c.l.b16 %v48
  %v228 = vunpack.c.l.b16 %v49
  %v229 = vunpack.c.l.b16 %v50
  %v230 = vunpack.c.l.b16 %v51
  %v231 = vunpack.c.l.b16 %v52
  %v232 = vunpack.c.l.b16 %v53
  %v233 = vunpack.c.l.b16 %v54
  %v234 = vunpack.c.l.b16 %v55
  %v235 = vunpack.c.l.b16 %v56
  %v236 = vunpack.c.l.b16 %v57
  %v237 = vunpack.c.l.b16 %v58
  %v238 = vunpack.c.l.b16 %v59
  %v239 = vunpack.c.l.b16 %v60
  %v240 = vunpack.c.l.b16 %v61
  %v241 = vunpack.c.l.b16 %v62
  %v242 = vunpack.c.l.b16 %v63
  %v243 = vunpack.c.l.b16 %v64
  %v244 = vunpack.c.l.b16 %v65
  %v245 = vunpack.c.l.b16 %v66
  %v246 = vunpack.c.l.b16 %v67
  %v247 = vunpack.c.l.b16 %v68
  %v248 = vunpack.c.l.b16 %v69
  %v249 = vunpack.c.l.b16 %v70
  %v250 = vunpack.c.l.b16 %v71
  %v251 = vunpack.c.l.b16 %v72
  %v252 = vunpack.c.l.b16 %v73
  %v253 = vunpack.c.l.b16 %v74
  %v254 = vunpack.c.l.b16 %v75
  %v255 = vunpack.c.l.b16 %v76
  %v256 = vpack.c.b16 %v221, %v220
  %v257 = vpack.c.b16 %v223, %v222
  %v258 = vpack.c.b16 %v225, %v224
  %v259 = vpack.c.b16 %v227, %v226
  %v260 = vpack.c.b16 %v229, %v228
  %v261 = vpack.c.b16 %v231, %v230
  %v262 = vpack.c.b16 %v233, %v232
  %v263 = vpack.c.b16 %v235, %v234
  %v264 = vpack.c.b16 %v237, %v236
  %v265 = vpack.c.b16 %v239, %v238
  %v266 = vpack.c.b16 %v241, %v240
  %v267 = vpack.c.b16 %v243, %v242
  %v268 = vpack.c.b16 %v245, %v244
  %v269 = vpack.c.b16 %v247, %v246
  %v270 = vpack.c.b16 %v249, %v248
  %v271 = vpack.c.b16 %v251, %v250
  %v272 = vpack.c.b16 %v253, %v252
  %v273 = vpack.c.b16 %v255, %v254
  %vm292 = vcmask 261120
  %v294 = vsel %vm292, %v151, 0
  %v297 = vsel %vm292, %v154, 0
  %v300 = vsel %vm292, %v157, 0
  %v303 = vsel %vm292, %v160, 0
  %v306 = vsel %vm292, %v163, 0
  %v309 = vsel %vm292, %v166, 0
  %v312 = vsel %vm292, %v169, 0
  %314 = vmatprep.subr.bf16.mxu0 0
  %315 = vmatpush1.bf16.msra.mxu0 %v256
  %316 = vmatprep.subr.bf16.mxu0 0
  %317 = vmatpush1.bf16.msra.mxu0 %v257
  %318 = vmatprep.subr.bf16.mxu0 0
  %319 = vmatpush1.bf16.msra.mxu0 %v258
  %320 = vmatprep.subr.bf16.mxu0 0
  %321 = vmatpush1.bf16.msra.mxu0 %v259
  %322 = vmatprep.subr.bf16.mxu0 0
  %323 = vmatpush1.bf16.msra.mxu0 %v260
  %324 = vmatprep.subr.bf16.mxu0 0
  %325 = vmatpush1.bf16.msra.mxu0 %v261
  %326 = vmatprep.subr.bf16.mxu0 0
  %327 = vmatpush1.bf16.msra.mxu0 %v262
  %328 = vmatprep.subr.bf16.mxu0 0
  %329 = vmatpush1.bf16.msra.mxu0 %v263
  %330 = vmatprep.subr.bf16.mxu0 0
  %331 = vmatpush1.bf16.msra.mxu0 %v264
  %332 = vmatprep.subr.bf16.mxu0 0
  %333 = vmatpush1.bf16.msra.mxu0 %v265
  %334 = vmatprep.subr.bf16.mxu0 0
  %335 = vmatpush1.bf16.msra.mxu0 %v266
  %336 = vmatprep.subr.bf16.mxu0 0
  %337 = vmatpush1.bf16.msra.mxu0 %v267
  %338 = vmatprep.subr.bf16.mxu0 0
  %339 = vmatpush1.bf16.msra.mxu0 %v268
  %340 = vmatprep.subr.bf16.mxu0 0
  %341 = vmatpush1.bf16.msra.mxu0 %v269
  %342 = vmatprep.subr.bf16.mxu0 0
  %343 = vmatpush1.bf16.msra.mxu0 %v270
  %344 = vmatprep.subr.bf16.mxu0 0
  %345 = vmatpush1.bf16.msra.mxu0 %v271
  %346 = vmatprep.mubr.bf16.mxu0 %v150
  %347 = vmatmul.mubr.bf16.gmra.mrb[0].mxu0 %v149
  %v348 = vpop.f32.mrb[0].mxu0
  %v349 = vadd.f32 %v82, %v348
  %v350 = vpop.f32.mrb[0].mxu0
  %v351 = vpop.f32.mrb[0].mxu0
  %v352 = vadd.f32 %v82, %v351
  %v353 = vpop.f32.mrb[0].mxu0
  %354 = vmatprep.mubr.bf16.mxu0 %v153
  %355 = vmatmul.mubr.bf16.gmra.mrb[0].mxu0 %v152
  %v356 = vpop.f32.mrb[0].mxu0
  %v357 = vadd.f32 %v82, %v356
  %v358 = vpop.f32.mrb[0].mxu0
  %v359 = vpop.f32.mrb[0].mxu0
  %v360 = vadd.f32 %v82, %v359
  %v361 = vpop.f32.mrb[0].mxu0
  %362 = vmatprep.mubr.bf16.mxu0 %v156
  %363 = vmatmul.mubr.bf16.gmra.mrb[0].mxu0 %v155
  %v364 = vpop.f32.mrb[0].mxu0
  %v365 = vadd.f32 %v82, %v364
  %v366 = vpop.f32.mrb[0].mxu0
  %v367 = vpop.f32.mrb[0].mxu0
  %v368 = vadd.f32 %v82, %v367
  %v369 = vpop.f32.mrb[0].mxu0
  %370 = vmatprep.mubr.bf16.mxu0 %v159
  %371 = vmatmul.mubr.bf16.gmra.mrb[0].mxu0 %v158
  %v372 = vpop.f32.mrb[0].mxu0
  %v373 = vadd.f32 %v82, %v372
  %v374 = vpop.f32.mrb[0].mxu0
  %v375 = vpop.f32.mrb[0].mxu0
  %v376 = vadd.f32 %v82, %v375
  %v377 = vpop.f32.mrb[0].mxu0
  %378 = vmatprep.mubr.bf16.mxu0 %v162
  %379 = vmatmul.mubr.bf16.gmra.mrb[0].mxu0 %v161
  %v380 = vpop.f32.mrb[0].mxu0
  %v381 = vadd.f32 %v82, %v380
  %v382 = vpop.f32.mrb[0].mxu0
  %v383 = vpop.f32.mrb[0].mxu0
  %v384 = vadd.f32 %v82, %v383
  %v385 = vpop.f32.mrb[0].mxu0
  %386 = vmatprep.mubr.bf16.mxu0 %v165
  %387 = vmatmul.mubr.bf16.gmra.mrb[0].mxu0 %v164
  %v388 = vpop.f32.mrb[0].mxu0
  %v389 = vadd.f32 %v82, %v388
  %v390 = vpop.f32.mrb[0].mxu0
  %v391 = vpop.f32.mrb[0].mxu0
  %v392 = vadd.f32 %v82, %v391
  %v393 = vpop.f32.mrb[0].mxu0
  %394 = vmatprep.mubr.bf16.mxu0 %v168
  %395 = vmatmul.mubr.bf16.gmra.mrb[0].mxu0 %v167
  %v396 = vpop.f32.mrb[0].mxu0
  %v397 = vadd.f32 %v82, %v396
  %v398 = vpop.f32.mrb[0].mxu0
  %v399 = vpop.f32.mrb[0].mxu0
  %v400 = vpop.f32.mrb[0].mxu0
  %401 = vdwg.mxu0
  %402 = vmatprep.subr.bf16.mxu0 0
  %403 = vmatpush1.bf16.msra.mxu0 %v272
  %404 = vmatprep.subr.bf16.mxu0 0
  %405 = vmatpush1.bf16.msra.mxu0 %v273
  %406 = vmatprep.subr.bf16.mxu0 0
  %407 = vmatpush1.bf16.msra.mxu0 0
  %408 = vmatprep.subr.bf16.mxu0 0
  %409 = vmatpush1.bf16.msra.mxu0 0
  %410 = vmatprep.subr.bf16.mxu0 0
  %411 = vmatpush1.bf16.msra.mxu0 0
  %412 = vmatprep.subr.bf16.mxu0 0
  %413 = vmatpush1.bf16.msra.mxu0 0
  %414 = vmatprep.subr.bf16.mxu0 0
  %415 = vmatpush1.bf16.msra.mxu0 0
  %416 = vmatprep.subr.bf16.mxu0 0
  %417 = vmatpush1.bf16.msra.mxu0 0
  %418 = vmatprep.subr.bf16.mxu0 0
  %419 = vmatpush1.bf16.msra.mxu0 0
  %420 = vmatprep.subr.bf16.mxu0 0
  %421 = vmatpush1.bf16.msra.mxu0 0
  %422 = vmatprep.subr.bf16.mxu0 0
  %423 = vmatpush1.bf16.msra.mxu0 0
  %424 = vmatprep.subr.bf16.mxu0 0
  %425 = vmatpush1.bf16.msra.mxu0 0
  %426 = vmatprep.subr.bf16.mxu0 0
  %427 = vmatpush1.bf16.msra.mxu0 0
  %428 = vmatprep.subr.bf16.mxu0 0
  %429 = vmatpush1.bf16.msra.mxu0 0
  %430 = vmatprep.subr.bf16.mxu0 0
  %431 = vmatpush1.bf16.msra.mxu0 0
  %432 = vmatprep.subr.bf16.mxu0 0
  %433 = vmatpush1.bf16.msra.mxu0 0
  %434 = vmatprep.mubr.bf16.mxu0 0
  %435 = vmatmul.mubr.bf16.gmra.mrb[0].mxu0 %v294
  %v436 = vpop.f32.mrb[0].mxu0
  %v437 = vadd.f32 %v349, %v436
  %v438 = vpop.f32.mrb[0].mxu0
  %v439 = vpop.f32.mrb[0].mxu0
  %v440 = vadd.f32 %v352, %v439
  %v441 = vpop.f32.mrb[0].mxu0
  %442 = vmatprep.mubr.bf16.mxu0 0
  %443 = vmatmul.mubr.bf16.gmra.mrb[0].mxu0 %v297
  %v444 = vpop.f32.mrb[0].mxu0
  %v445 = vadd.f32 %v357, %v444
  %v446 = vpop.f32.mrb[0].mxu0
  %v447 = vpop.f32.mrb[0].mxu0
  %v448 = vadd.f32 %v360, %v447
  %v449 = vpop.f32.mrb[0].mxu0
  %450 = vmatprep.mubr.bf16.mxu0 0
  %451 = vmatmul.mubr.bf16.gmra.mrb[0].mxu0 %v300
  %v452 = vpop.f32.mrb[0].mxu0
  %v453 = vadd.f32 %v365, %v452
  %v454 = vpop.f32.mrb[0].mxu0
  %v455 = vpop.f32.mrb[0].mxu0
  %v456 = vadd.f32 %v368, %v455
  %v457 = vpop.f32.mrb[0].mxu0
  %458 = vmatprep.mubr.bf16.mxu0 0
  %459 = vmatmul.mubr.bf16.gmra.mrb[0].mxu0 %v303
  %v460 = vpop.f32.mrb[0].mxu0
  %v461 = vadd.f32 %v373, %v460
  %v462 = vpop.f32.mrb[0].mxu0
  %v463 = vpop.f32.mrb[0].mxu0
  %v464 = vadd.f32 %v376, %v463
  %v465 = vpop.f32.mrb[0].mxu0
  %466 = vmatprep.mubr.bf16.mxu0 0
  %467 = vmatmul.mubr.bf16.gmra.mrb[0].mxu0 %v306
  %v468 = vpop.f32.mrb[0].mxu0
  %v469 = vadd.f32 %v381, %v468
  %v470 = vpop.f32.mrb[0].mxu0
  %v471 = vpop.f32.mrb[0].mxu0
  %v472 = vadd.f32 %v384, %v471
  %v473 = vpop.f32.mrb[0].mxu0
  %474 = vmatprep.mubr.bf16.mxu0 0
  %475 = vmatmul.mubr.bf16.gmra.mrb[0].mxu0 %v309
  %v476 = vpop.f32.mrb[0].mxu0
  %v477 = vadd.f32 %v389, %v476
  %v478 = vpop.f32.mrb[0].mxu0
  %v479 = vpop.f32.mrb[0].mxu0
  %v480 = vadd.f32 %v392, %v479
  %v481 = vpop.f32.mrb[0].mxu0
  %482 = vmatprep.mubr.bf16.mxu0 0
  %483 = vmatmul.mubr.bf16.gmra.mrb[0].mxu0 %v312
  %v484 = vpop.f32.mrb[0].mxu0
  %v485 = vadd.f32 %v397, %v484
  %v486 = vpop.f32.mrb[0].mxu0
  %v487 = vpop.f32.mrb[0].mxu0
  %v488 = vpop.f32.mrb[0].mxu0
  %489 = vdwg.mxu0
  %v490 = vmax.f32 %v437, 0.0
  %v491 = vmax.f32 %v440, 0.0
  %v492 = vmax.f32 %v445, 0.0
  %v493 = vmax.f32 %v448, 0.0
  %v494 = vmax.f32 %v453, 0.0
  %v495 = vmax.f32 %v456, 0.0
  %v496 = vmax.f32 %v461, 0.0
  %v497 = vmax.f32 %v464, 0.0
  %v498 = vmax.f32 %v469, 0.0
  %v499 = vmax.f32 %v472, 0.0
  %v500 = vmax.f32 %v477, 0.0
  %v501 = vmax.f32 %v480, 0.0
  %v502 = vmax.f32 %v485, 0.0
  %v503 = vpack.c.bf16 %v491, %v490
  %v504 = vpack.c.bf16 %v493, %v492
  %v505 = vpack.c.bf16 %v495, %v494
  %v506 = vpack.c.bf16 %v497, %v496
  %v507 = vpack.c.bf16 %v499, %v498
  %v508 = vpack.c.bf16 %v501, %v500
  %v509 = vpack.c.bf16 %v502, %v502
  %v517 = vunpack.c.l.b16 %v503
  %v518 = vunpack.c.h.b16 %v503
  %v519 = vunpack.c.l.b16 %v504
  %v520 = vunpack.c.h.b16 %v504
  %v521 = vunpack.c.l.b16 %v505
  %v522 = vunpack.c.h.b16 %v505
  %v523 = vunpack.c.l.b16 %v506
  %v524 = vunpack.c.h.b16 %v506
  %v525 = vunpack.c.l.b16 %v507
  %v526 = vunpack.c.h.b16 %v507
  %v527 = vunpack.c.l.b16 %v508
  %v528 = vunpack.c.h.b16 %v508
  %v529 = vunpack.c.l.b16 %v509
  %v530 = vpack.c.b16 %v517, %v517
  %v531 = vpack.c.b16 %v518, %v518
  %v532 = vpack.c.b16 %v519, %v519
  %v533 = vpack.c.b16 %v520, %v520
  %v534 = vpack.c.b16 %v521, %v521
  %v535 = vpack.c.b16 %v522, %v522
  %v536 = vpack.c.b16 %v523, %v523
  %v537 = vpack.c.b16 %v524, %v524
  %v538 = vpack.c.b16 %v525, %v525
  %v539 = vpack.c.b16 %v526, %v526
  %v540 = vpack.c.b16 %v527, %v527
  %v541 = vpack.c.b16 %v528, %v528
  %v542 = vpack.c.b16 %v529, %v529
  %vm556 = vcmask 257024
  %557 = vst.msk [vmem:[%s3] sm:$0xf] %vm556, %v530
  %558 = vst.msk [vmem:[%s3 + $0x4] sm:$0xf] %vm556, %v531
  %559 = vst.msk [vmem:[%s3 + $0x8] sm:$0xf] %vm556, %v532
  %560 = vst.msk [vmem:[%s3 + $0xc] sm:$0xf] %vm556, %v533
  %561 = vst.msk [vmem:[%s3 + $0x10] sm:$0xf] %vm556, %v534
  %562 = vst.msk [vmem:[%s3 + $0x14] sm:$0xf] %vm556, %v535
  %563 = vst.msk [vmem:[%s3 + $0x18] sm:$0xf] %vm556, %v536
  %564 = vst.msk [vmem:[%s3 + $0x1c] sm:$0xf] %vm556, %v537
  %565 = vst.msk [vmem:[%s3 + $0x20] sm:$0xf] %vm556, %v538
  %566 = vst.msk [vmem:[%s3 + $0x24] sm:$0xf] %vm556, %v539
  %567 = vst.msk [vmem:[%s3 + $0x28] sm:$0xf] %vm556, %v540
  %568 = vst.msk [vmem:[%s3 + $0x2c] sm:$0xf] %vm556, %v541
  %vm569 = vcmask 253952
  %570 = vst.msk [vmem:[%s3 + $0x30] sm:$0x1] %vm569, %v542
  // Predicated region
  $region14: #{critic_forward.6} parent=0 // pred_check
    _
  $region15: #{critic_forward.6} parent=0 // pred_check_branch
    %572 = sbr.rel (0) target = $region17
  $region16: #{critic_forward.6} parent=0 // pred_region
    _
  $region17: #{critic_forward.6} parent=0 // pred_fallthru
    _
  // Predicated region
  $region18: #{critic_forward.6} parent=0 // pred_check
    _
  $region19: #{critic_forward.6} parent=0 // pred_check_branch
    %574 = sbr.rel (0) target = $region21
  $region20: #{critic_forward.6} parent=0 // pred_region
    _
  $region21: #{critic_forward.6} parent=0 // pred_fallthru
    _

// kernel: critic_forward.7
$region0: #{critic_forward.7}
  #allocation0 [shape = 'u32[]', space=smem, size = 0x4, offset = 0x4, fixed_abs, tag = 'smem constant byte address 0x4 - core index']
  #allocation1 [shape = 'u32[144,128]{1,0:T(1,128)}', space=vmem, size = 0x12000, scoped, tag = 'internal scratch']
  %s0 = inlined_call_operand.vmem [shape: bf16[50,288], index: 0, kind: input, shape index: {}]
  %s1 = inlined_call_operand.vmem [shape: bf16[288,32], index: 1, kind: input, shape index: {}]
  %s2 = inlined_call_operand.vmem [shape: f32[1,32], index: 2, kind: input, shape index: {}]
  %s3 = inlined_call_operand.vmem [shape: bf16[50,32], index: 3, kind: output, shape index: {}]
  %s4 = sld [smem:[#allocation0]]
  $region22: #{critic_forward.7} parent=0
    _
  %s6 = ssub.s32 1, %s4
  %s7 = scalar_select 0, %s6, %s4
  // Predicated region
  $region2: #{critic_forward.7} parent=0 // pred_check
    _
  $region3: #{critic_forward.7} parent=0 // pred_check_branch
    %9 = sbr.rel (0) target = $region5
  $region4: #{critic_forward.7} parent=0 // pred_region
    _
  $region5: #{critic_forward.7} parent=0 // pred_fallthru
    _
  // Predicated region
  $region6: #{critic_forward.7} parent=0 // pred_check
    _
  $region7: #{critic_forward.7} parent=0 // pred_check_branch
    %11 = sbr.rel (0) target = $region9
  $region8: #{critic_forward.7} parent=0 // pred_region
    _
  $region9: #{critic_forward.7} parent=0 // pred_fallthru
    _
  // Predicated region
  $region10: #{critic_forward.7} parent=0 // pred_check
    _
  $region11: #{critic_forward.7} parent=0 // pred_check_branch
    %13 = sbr.rel (0) target = $region13
  $region12: #{critic_forward.7} parent=0 // pred_region
    _
  $region13: #{critic_forward.7} parent=0 // pred_fallthru
    _
  %v15 = vld [vmem:[%s0] sm:$0xff]
  %v16 = vld [vmem:[%s0 + $0x8] sm:$0xf]
  %v17 = vld [vmem:[%s0 + $0xc] sm:$0xff]
  %v18 = vld [vmem:[%s0 + $0x14] sm:$0xf]
  %v19 = vld [vmem:[%s0 + $0x18] sm:$0xff]
  %v20 = vld [vmem:[%s0 + $0x20] sm:$0xf]
  %v21 = vld [vmem:[%s0 + $0x24] sm:$0xff]
  %v22 = vld [vmem:[%s0 + $0x2c] sm:$0xf]
  %v23 = vld [vmem:[%s0 + $0x30] sm:$0xff]
  %v24 = vld [vmem:[%s0 + $0x38] sm:$0xf]
  %v25 = vld [vmem:[%s0 + $0x3c] sm:$0xff]
  %v26 = vld [vmem:[%s0 + $0x44] sm:$0xf]
  %v27 = vld [vmem:[%s0 + $0x48] sm:$0x11]
  %v28 = vld [vmem:[%s0 + $0x50] sm:$0x1]
  %v29 = vld [vmem:[%s1] sm:$0xf]
  %v30 = vld [vmem:[%s1 + $0x4] sm:$0xf]
  %v31 = vld [vmem:[%s1 + $0x8] sm:$0xf]
  %v32 = vld [vmem:[%s1 + $0xc] sm:$0xf]
  %v33 = vld [vmem:[%s1 + $0x10] sm:$0xf]
  %v34 = vld [vmem:[%s1 + $0x14] sm:$0xf]
  %v35 = vld [vmem:[%s1 + $0x18] sm:$0xf]
  %v36 = vld [vmem:[%s1 + $0x1c] sm:$0xf]
  %v37 = vld [vmem:[%s1 + $0x20] sm:$0xf]
  %v38 = vld [vmem:[%s1 + $0x24] sm:$0xf]
  %v39 = vld [vmem:[%s1 + $0x28] sm:$0xf]
  %v40 = vld [vmem:[%s1 + $0x2c] sm:$0xf]
  %v41 = vld [vmem:[%s1 + $0x30] sm:$0xf]
  %v42 = vld [vmem:[%s1 + $0x34] sm:$0xf]
  %v43 = vld [vmem:[%s1 + $0x38] sm:$0xf]
  %v44 = vld [vmem:[%s1 + $0x3c] sm:$0xf]
  %v45 = vld [vmem:[%s1 + $0x40] sm:$0xf]
  %v46 = vld [vmem:[%s1 + $0x44] sm:$0xf]
  %v47 = vld [vmem:[%s1 + $0x48] sm:$0xf]
  %v48 = vld [vmem:[%s1 + $0x4c] sm:$0xf]
  %v49 = vld [vmem:[%s1 + $0x50] sm:$0xf]
  %v50 = vld [vmem:[%s1 + $0x54] sm:$0xf]
  %v51 = vld [vmem:[%s1 + $0x58] sm:$0xf]
  %v52 = vld [vmem:[%s1 + $0x5c] sm:$0xf]
  %v53 = vld [vmem:[%s1 + $0x60] sm:$0xf]
  %v54 = vld [vmem:[%s1 + $0x64] sm:$0xf]
  %v55 = vld [vmem:[%s1 + $0x68] sm:$0xf]
  %v56 = vld [vmem:[%s1 + $0x6c] sm:$0xf]
  %v57 = vld [vmem:[%s1 + $0x70] sm:$0xf]
  %v58 = vld [vmem:[%s1 + $0x74] sm:$0xf]
  %v59 = vld [vmem:[%s1 + $0x78] sm:$0xf]
  %v60 = vld [vmem:[%s1 + $0x7c] sm:$0xf]
  %v61 = vld [vmem:[%s1 + $0x80] sm:$0xf]
  %v62 = vld [vmem:[%s1 + $0x84] sm:$0xf]
  %v63 = vld [vmem:[%s1 + $0x88] sm:$0xf]
  %v64 = vld [vmem:[%s1 + $0x8c] sm:$0xf]
  %v65 = vld [vmem:[%s2] sm:$0x1]
  %v67 = vlaneseq
  %v68 = vshrl.u32 %v67, 7
  %v69 = vsub.s32 0, %v68
  %v70 = vrot.slane %v65, %v69
  %v86 = vunpack.c.l.b16 %v15
  %v87 = vunpack.c.h.b16 %v15
  %v88 = vunpack.c.l.b16 %v16
  %v89 = vunpack.c.l.b16 %v17
  %v90 = vunpack.c.h.b16 %v17
  %v91 = vunpack.c.l.b16 %v18
  %v92 = vunpack.c.l.b16 %v19
  %v93 = vunpack.c.h.b16 %v19
  %v94 = vunpack.c.l.b16 %v20
  %v95 = vunpack.c.l.b16 %v21
  %v96 = vunpack.c.h.b16 %v21
  %v97 = vunpack.c.l.b16 %v22
  %v98 = vunpack.c.l.b16 %v23
  %v99 = vunpack.c.h.b16 %v23
  %v100 = vunpack.c.l.b16 %v24
  %v101 = vunpack.c.l.b16 %v25
  %v102 = vunpack.c.h.b16 %v25
  %v103 = vunpack.c.l.b16 %v26
  %v104 = vunpack.c.l.b16 %v27
  %v105 = vunpack.c.h.b16 %v27
  %v106 = vunpack.c.l.b16 %v28
  %v107 = vpack.c.b16 %v89, %v86
  %v108 = vpack.c.b16 %v90, %v87
  %v109 = vpack.c.b16 %v91, %v88
  %v110 = vpack.c.b16 %v95, %v92
  %v111 = vpack.c.b16 %v96, %v93
  %v112 = vpack.c.b16 %v97, %v94
  %v113 = vpack.c.b16 %v101, %v98
  %v114 = vpack.c.b16 %v102, %v99
  %v115 = vpack.c.b16 %v103, %v100
  %v116 = vpack.c.b16 %v104, %v104
  %v117 = vpack.c.b16 %v105, %v105
  %v118 = vpack.c.b16 %v106, %v106
  %v163 = vunpack.c.l.b16 %v29
  %v164 = vunpack.c.l.b16 %v30
  %v165 = vunpack.c.l.b16 %v31
  %v166 = vunpack.c.l.b16 %v32
  %v167 = vunpack.c.l.b16 %v33
  %v168 = vunpack.c.l.b16 %v34
  %v169 = vunpack.c.l.b16 %v35
  %v170 = vunpack.c.l.b16 %v36
  %v171 = vunpack.c.l.b16 %v37
  %v172 = vunpack.c.l.b16 %v38
  %v173 = vunpack.c.l.b16 %v39
  %v174 = vunpack.c.l.b16 %v40
  %v175 = vunpack.c.l.b16 %v41
  %v176 = vunpack.c.l.b16 %v42
  %v177 = vunpack.c.l.b16 %v43
  %v178 = vunpack.c.l.b16 %v44
  %v179 = vunpack.c.l.b16 %v45
  %v180 = vunpack.c.l.b16 %v46
  %v181 = vunpack.c.l.b16 %v47
  %v182 = vunpack.c.l.b16 %v48
  %v183 = vunpack.c.l.b16 %v49
  %v184 = vunpack.c.l.b16 %v50
  %v185 = vunpack.c.l.b16 %v51
  %v186 = vunpack.c.l.b16 %v52
  %v187 = vunpack.c.l.b16 %v53
  %v188 = vunpack.c.l.b16 %v54
  %v189 = vunpack.c.l.b16 %v55
  %v190 = vunpack.c.l.b16 %v56
  %v191 = vunpack.c.l.b16 %v57
  %v192 = vunpack.c.l.b16 %v58
  %v193 = vunpack.c.l.b16 %v59
  %v194 = vunpack.c.l.b16 %v60
  %v195 = vunpack.c.l.b16 %v61
  %v196 = vunpack.c.l.b16 %v62
  %v197 = vunpack.c.l.b16 %v63
  %v198 = vunpack.c.l.b16 %v64
  %v199 = vpack.c.b16 %v164, %v163
  %v200 = vpack.c.b16 %v166, %v165
  %v201 = vpack.c.b16 %v168, %v167
  %v202 = vpack.c.b16 %v170, %v169
  %v203 = vpack.c.b16 %v172, %v171
  %v204 = vpack.c.b16 %v174, %v173
  %v205 = vpack.c.b16 %v176, %v175
  %v206 = vpack.c.b16 %v178, %v177
  %v207 = vpack.c.b16 %v180, %v179
  %v208 = vpack.c.b16 %v182, %v181
  %v209 = vpack.c.b16 %v184, %v183
  %v210 = vpack.c.b16 %v186, %v185
  %v211 = vpack.c.b16 %v188, %v187
  %v212 = vpack.c.b16 %v190, %v189
  %v213 = vpack.c.b16 %v192, %v191
  %v214 = vpack.c.b16 %v194, %v193
  %v215 = vpack.c.b16 %v196, %v195
  %v216 = vpack.c.b16 %v198, %v197
  %vm235 = vcmask 261120
  %v237 = vsel %vm235, %v109, 0
  %v240 = vsel %vm235, %v112, 0
  %v243 = vsel %vm235, %v115, 0
  %v246 = vsel %vm235, %v118, 0
  %248 = vmatprep.subr.bf16.mxu0 0
  %249 = vmatpush1.bf16.msra.mxu0 %v199
  %250 = vmatprep.subr.bf16.mxu0 0
  %251 = vmatpush1.bf16.msra.mxu0 %v200
  %252 = vmatprep.subr.bf16.mxu0 0
  %253 = vmatpush1.bf16.msra.mxu0 %v201
  %254 = vmatprep.subr.bf16.mxu0 0
  %255 = vmatpush1.bf16.msra.mxu0 %v202
  %256 = vmatprep.subr.bf16.mxu0 0
  %257 = vmatpush1.bf16.msra.mxu0 %v203
  %258 = vmatprep.subr.bf16.mxu0 0
  %259 = vmatpush1.bf16.msra.mxu0 %v204
  %260 = vmatprep.subr.bf16.mxu0 0
  %261 = vmatpush1.bf16.msra.mxu0 %v205
  %262 = vmatprep.subr.bf16.mxu0 0
  %263 = vmatpush1.bf16.msra.mxu0 %v206
  %264 = vmatprep.subr.bf16.mxu0 0
  %265 = vmatpush1.bf16.msra.mxu0 %v207
  %266 = vmatprep.subr.bf16.mxu0 0
  %267 = vmatpush1.bf16.msra.mxu0 %v208
  %268 = vmatprep.subr.bf16.mxu0 0
  %269 = vmatpush1.bf16.msra.mxu0 %v209
  %270 = vmatprep.subr.bf16.mxu0 0
  %271 = vmatpush1.bf16.msra.mxu0 %v210
  %272 = vmatprep.subr.bf16.mxu0 0
  %273 = vmatpush1.bf16.msra.mxu0 %v211
  %274 = vmatprep.subr.bf16.mxu0 0
  %275 = vmatpush1.bf16.msra.mxu0 %v212
  %276 = vmatprep.subr.bf16.mxu0 0
  %277 = vmatpush1.bf16.msra.mxu0 %v213
  %278 = vmatprep.subr.bf16.mxu0 0
  %279 = vmatpush1.bf16.msra.mxu0 %v214
  %280 = vmatprep.mubr.bf16.mxu0 %v108
  %281 = vmatmul.mubr.bf16.gmra.mrb[0].mxu0 %v107
  %v282 = vpop.f32.mrb[0].mxu0
  %v283 = vadd.f32 %v70, %v282
  %v284 = vpop.f32.mrb[0].mxu0
  %v285 = vpop.f32.mrb[0].mxu0
  %v286 = vadd.f32 %v70, %v285
  %v287 = vpop.f32.mrb[0].mxu0
  %288 = vmatprep.mubr.bf16.mxu0 %v111
  %289 = vmatmul.mubr.bf16.gmra.mrb[0].mxu0 %v110
  %v290 = vpop.f32.mrb[0].mxu0
  %v291 = vadd.f32 %v70, %v290
  %v292 = vpop.f32.mrb[0].mxu0
  %v293 = vpop.f32.mrb[0].mxu0
  %v294 = vadd.f32 %v70, %v293
  %v295 = vpop.f32.mrb[0].mxu0
  %296 = vmatprep.mubr.bf16.mxu0 %v114
  %297 = vmatmul.mubr.bf16.gmra.mrb[0].mxu0 %v113
  %v298 = vpop.f32.mrb[0].mxu0
  %v299 = vadd.f32 %v70, %v298
  %v300 = vpop.f32.mrb[0].mxu0
  %v301 = vpop.f32.mrb[0].mxu0
  %v302 = vadd.f32 %v70, %v301
  %v303 = vpop.f32.mrb[0].mxu0
  %304 = vmatprep.mubr.bf16.mxu0 %v117
  %305 = vmatmul.mubr.bf16.gmra.mrb[0].mxu0 %v116
  %v306 = vpop.f32.mrb[0].mxu0
  %v307 = vadd.f32 %v70, %v306
  %v308 = vpop.f32.mrb[0].mxu0
  %v309 = vpop.f32.mrb[0].mxu0
  %v310 = vpop.f32.mrb[0].mxu0
  %311 = vdwg.mxu0
  %312 = vmatprep.subr.bf16.mxu0 0
  %313 = vmatpush1.bf16.msra.mxu0 %v215
  %314 = vmatprep.subr.bf16.mxu0 0
  %315 = vmatpush1.bf16.msra.mxu0 %v216
  %316 = vmatprep.subr.bf16.mxu0 0
  %317 = vmatpush1.bf16.msra.mxu0 0
  %318 = vmatprep.subr.bf16.mxu0 0
  %319 = vmatpush1.bf16.msra.mxu0 0
  %320 = vmatprep.subr.bf16.mxu0 0
  %321 = vmatpush1.bf16.msra.mxu0 0
  %322 = vmatprep.subr.bf16.mxu0 0
  %323 = vmatpush1.bf16.msra.mxu0 0
  %324 = vmatprep.subr.bf16.mxu0 0
  %325 = vmatpush1.bf16.msra.mxu0 0
  %326 = vmatprep.subr.bf16.mxu0 0
  %327 = vmatpush1.bf16.msra.mxu0 0
  %328 = vmatprep.subr.bf16.mxu0 0
  %329 = vmatpush1.bf16.msra.mxu0 0
  %330 = vmatprep.subr.bf16.mxu0 0
  %331 = vmatpush1.bf16.msra.mxu0 0
  %332 = vmatprep.subr.bf16.mxu0 0
  %333 = vmatpush1.bf16.msra.mxu0 0
  %334 = vmatprep.subr.bf16.mxu0 0
  %335 = vmatpush1.bf16.msra.mxu0 0
  %336 = vmatprep.subr.bf16.mxu0 0
  %337 = vmatpush1.bf16.msra.mxu0 0
  %338 = vmatprep.subr.bf16.mxu0 0
  %339 = vmatpush1.bf16.msra.mxu0 0
  %340 = vmatprep.subr.bf16.mxu0 0
  %341 = vmatpush1.bf16.msra.mxu0 0
  %342 = vmatprep.subr.bf16.mxu0 0
  %343 = vmatpush1.bf16.msra.mxu0 0
  %344 = vmatprep.mubr.bf16.mxu0 0
  %345 = vmatmul.mubr.bf16.gmra.mrb[0].mxu0 %v237
  %v346 = vpop.f32.mrb[0].mxu0
  %v347 = vadd.f32 %v283, %v346
  %v348 = vpop.f32.mrb[0].mxu0
  %v349 = vpop.f32.mrb[0].mxu0
  %v350 = vadd.f32 %v286, %v349
  %v351 = vpop.f32.mrb[0].mxu0
  %352 = vmatprep.mubr.bf16.mxu0 0
  %353 = vmatmul.mubr.bf16.gmra.mrb[0].mxu0 %v240
  %v354 = vpop.f32.mrb[0].mxu0
  %v355 = vadd.f32 %v291, %v354
  %v356 = vpop.f32.mrb[0].mxu0
  %v357 = vpop.f32.mrb[0].mxu0
  %v358 = vadd.f32 %v294, %v357
  %v359 = vpop.f32.mrb[0].mxu0
  %360 = vmatprep.mubr.bf16.mxu0 0
  %361 = vmatmul.mubr.bf16.gmra.mrb[0].mxu0 %v243
  %v362 = vpop.f32.mrb[0].mxu0
  %v363 = vadd.f32 %v299, %v362
  %v364 = vpop.f32.mrb[0].mxu0
  %v365 = vpop.f32.mrb[0].mxu0
  %v366 = vadd.f32 %v302, %v365
  %v367 = vpop.f32.mrb[0].mxu0
  %368 = vmatprep.mubr.bf16.mxu0 0
  %369 = vmatmul.mubr.bf16.gmra.mrb[0].mxu0 %v246
  %v370 = vpop.f32.mrb[0].mxu0
  %v371 = vadd.f32 %v307, %v370
  %v372 = vpop.f32.mrb[0].mxu0
  %v373 = vpop.f32.mrb[0].mxu0
  %v374 = vpop.f32.mrb[0].mxu0
  %375 = vdwg.mxu0
  %v376 = vmax.f32 %v347, 0.0
  %v377 = vmax.f32 %v350, 0.0
  %v378 = vmax.f32 %v355, 0.0
  %v379 = vmax.f32 %v358, 0.0
  %v380 = vmax.f32 %v363, 0.0
  %v381 = vmax.f32 %v366, 0.0
  %v382 = vmax.f32 %v371, 0.0
  %v383 = vpack.c.bf16 %v377, %v376
  %v384 = vpack.c.bf16 %v379, %v378
  %v385 = vpack.c.bf16 %v381, %v380
  %v386 = vpack.c.bf16 %v382, %v382
  %v391 = vunpack.c.l.b16 %v383
  %v392 = vunpack.c.h.b16 %v383
  %v393 = vunpack.c.l.b16 %v384
  %v394 = vunpack.c.h.b16 %v384
  %v395 = vunpack.c.l.b16 %v385
  %v396 = vunpack.c.h.b16 %v385
  %v397 = vunpack.c.l.b16 %v386
  %v398 = vpack.c.b16 %v391, %v391
  %v399 = vpack.c.b16 %v392, %v392
  %v400 = vpack.c.b16 %v393, %v393
  %v401 = vpack.c.b16 %v394, %v394
  %v402 = vpack.c.b16 %v395, %v395
  %v403 = vpack.c.b16 %v396, %v396
  %v404 = vpack.c.b16 %v397, %v397
  %vm412 = vcmask 257024
  %413 = vst.msk [vmem:[%s3] sm:$0xf] %vm412, %v398
  %414 = vst.msk [vmem:[%s3 + $0x4] sm:$0xf] %vm412, %v399
  %415 = vst.msk [vmem:[%s3 + $0x8] sm:$0xf] %vm412, %v400
  %416 = vst.msk [vmem:[%s3 + $0xc] sm:$0xf] %vm412, %v401
  %417 = vst.msk [vmem:[%s3 + $0x10] sm:$0xf] %vm412, %v402
  %418 = vst.msk [vmem:[%s3 + $0x14] sm:$0xf] %vm412, %v403
  %vm419 = vcmask 253952
  %420 = vst.msk [vmem:[%s3 + $0x18] sm:$0x1] %vm419, %v404
  // Predicated region
  $region14: #{critic_forward.7} parent=0 // pred_check
    _
  $region15: #{critic_forward.7} parent=0 // pred_check_branch
    %422 = sbr.rel (0) target = $region17
  $region16: #{critic_forward.7} parent=0 // pred_region
    _
  $region17: #{critic_forward.7} parent=0 // pred_fallthru
    _
  // Predicated region
  $region18: #{critic_forward.7} parent=0 // pred_check
    _
  $region19: #{critic_forward.7} parent=0 // pred_check_branch
    %424 = sbr.rel (0) target = $region21
  $region20: #{critic_forward.7} parent=0 // pred_region
    _
  $region21: #{critic_forward.7} parent=0 // pred_fallthru
    _

// kernel: critic_forward.8
$region0: #{critic_forward.8}
  #allocation0 [shape = 'u32[]', space=smem, size = 0x4, offset = 0x4, fixed_abs, tag = 'smem constant byte address 0x4 - core index']
  #allocation1 [shape = 'u32[144,128]{1,0:T(1,128)}', space=vmem, size = 0x12000, scoped, tag = 'internal scratch']
  %s0 = inlined_call_operand.vmem [shape: bf16[18,288], index: 0, kind: input, shape index: {}]
  %s1 = inlined_call_operand.vmem [shape: bf16[288,32], index: 1, kind: input, shape index: {}]
  %s2 = inlined_call_operand.vmem [shape: f32[1,32], index: 2, kind: input, shape index: {}]
  %s3 = inlined_call_operand.vmem [shape: bf16[18,32], index: 3, kind: output, shape index: {}]
  %s4 = sld [smem:[#allocation0]]
  $region22: #{critic_forward.8} parent=0
    _
  %s6 = ssub.s32 1, %s4
  %s7 = scalar_select 0, %s6, %s4
  // Predicated region
  $region2: #{critic_forward.8} parent=0 // pred_check
    _
  $region3: #{critic_forward.8} parent=0 // pred_check_branch
    %9 = sbr.rel (0) target = $region5
  $region4: #{critic_forward.8} parent=0 // pred_region
    _
  $region5: #{critic_forward.8} parent=0 // pred_fallthru
    _
  // Predicated region
  $region6: #{critic_forward.8} parent=0 // pred_check
    _
  $region7: #{critic_forward.8} parent=0 // pred_check_branch
    %11 = sbr.rel (0) target = $region9
  $region8: #{critic_forward.8} parent=0 // pred_region
    _
  $region9: #{critic_forward.8} parent=0 // pred_fallthru
    _
  // Predicated region
  $region10: #{critic_forward.8} parent=0 // pred_check
    _
  $region11: #{critic_forward.8} parent=0 // pred_check_branch
    %13 = sbr.rel (0) target = $region13
  $region12: #{critic_forward.8} parent=0 // pred_region
    _
  $region13: #{critic_forward.8} parent=0 // pred_fallthru
    _
  %v15 = vld [vmem:[%s0] sm:$0xff]
  %v16 = vld [vmem:[%s0 + $0x8] sm:$0xf]
  %v17 = vld [vmem:[%s0 + $0xc] sm:$0xff]
  %v18 = vld [vmem:[%s0 + $0x14] sm:$0xf]
  %v19 = vld [vmem:[%s0 + $0x18] sm:$0x11]
  %v20 = vld [vmem:[%s0 + $0x20] sm:$0x1]
  %v21 = vld [vmem:[%s1] sm:$0xf]
  %v22 = vld [vmem:[%s1 + $0x4] sm:$0xf]
  %v23 = vld [vmem:[%s1 + $0x8] sm:$0xf]
  %v24 = vld [vmem:[%s1 + $0xc] sm:$0xf]
  %v25 = vld [vmem:[%s1 + $0x10] sm:$0xf]
  %v26 = vld [vmem:[%s1 + $0x14] sm:$0xf]
  %v27 = vld [vmem:[%s1 + $0x18] sm:$0xf]
  %v28 = vld [vmem:[%s1 + $0x1c] sm:$0xf]
  %v29 = vld [vmem:[%s1 + $0x20] sm:$0xf]
  %v30 = vld [vmem:[%s1 + $0x24] sm:$0xf]
  %v31 = vld [vmem:[%s1 + $0x28] sm:$0xf]
  %v32 = vld [vmem:[%s1 + $0x2c] sm:$0xf]
  %v33 = vld [vmem:[%s1 + $0x30] sm:$0xf]
  %v34 = vld [vmem:[%s1 + $0x34] sm:$0xf]
  %v35 = vld [vmem:[%s1 + $0x38] sm:$0xf]
  %v36 = vld [vmem:[%s1 + $0x3c] sm:$0xf]
  %v37 = vld [vmem:[%s1 + $0x40] sm:$0xf]
  %v38 = vld [vmem:[%s1 + $0x44] sm:$0xf]
  %v39 = vld [vmem:[%s1 + $0x48] sm:$0xf]
  %v40 = vld [vmem:[%s1 + $0x4c] sm:$0xf]
  %v41 = vld [vmem:[%s1 + $0x50] sm:$0xf]
  %v42 = vld [vmem:[%s1 + $0x54] sm:$0xf]
  %v43 = vld [vmem:[%s1 + $0x58] sm:$0xf]
  %v44 = vld [vmem:[%s1 + $0x5c] sm:$0xf]
  %v45 = vld [vmem:[%s1 + $0x60] sm:$0xf]
  %v46 = vld [vmem:[%s1 + $0x64] sm:$0xf]
  %v47 = vld [vmem:[%s1 + $0x68] sm:$0xf]
  %v48 = vld [vmem:[%s1 + $0x6c] sm:$0xf]
  %v49 = vld [vmem:[%s1 + $0x70] sm:$0xf]
  %v50 = vld [vmem:[%s1 + $0x74] sm:$0xf]
  %v51 = vld [vmem:[%s1 + $0x78] sm:$0xf]
  %v52 = vld [vmem:[%s1 + $0x7c] sm:$0xf]
  %v53 = vld [vmem:[%s1 + $0x80] sm:$0xf]
  %v54 = vld [vmem:[%s1 + $0x84] sm:$0xf]
  %v55 = vld [vmem:[%s1 + $0x88] sm:$0xf]
  %v56 = vld [vmem:[%s1 + $0x8c] sm:$0xf]
  %v57 = vld [vmem:[%s2] sm:$0x1]
  %v59 = vlaneseq
  %v60 = vshrl.u32 %v59, 7
  %v61 = vsub.s32 0, %v60
  %v62 = vrot.slane %v57, %v61
  %v70 = vunpack.c.l.b16 %v15
  %v71 = vunpack.c.h.b16 %v15
  %v72 = vunpack.c.l.b16 %v16
  %v73 = vunpack.c.l.b16 %v17
  %v74 = vunpack.c.h.b16 %v17
  %v75 = vunpack.c.l.b16 %v18
  %v76 = vunpack.c.l.b16 %v19
  %v77 = vunpack.c.h.b16 %v19
  %v78 = vunpack.c.l.b16 %v20
  %v79 = vpack.c.b16 %v73, %v70
  %v80 = vpack.c.b16 %v74, %v71
  %v81 = vpack.c.b16 %v75, %v72
  %v82 = vpack.c.b16 %v76, %v76
  %v83 = vpack.c.b16 %v77, %v77
  %v84 = vpack.c.b16 %v78, %v78
  %v125 = vunpack.c.l.b16 %v21
  %v126 = vunpack.c.l.b16 %v22
  %v127 = vunpack.c.l.b16 %v23
  %v128 = vunpack.c.l.b16 %v24
  %v129 = vunpack.c.l.b16 %v25
  %v130 = vunpack.c.l.b16 %v26
  %v131 = vunpack.c.l.b16 %v27
  %v132 = vunpack.c.l.b16 %v28
  %v133 = vunpack.c.l.b16 %v29
  %v134 = vunpack.c.l.b16 %v30
  %v135 = vunpack.c.l.b16 %v31
  %v136 = vunpack.c.l.b16 %v32
  %v137 = vunpack.c.l.b16 %v33
  %v138 = vunpack.c.l.b16 %v34
  %v139 = vunpack.c.l.b16 %v35
  %v140 = vunpack.c.l.b16 %v36
  %v141 = vunpack.c.l.b16 %v37
  %v142 = vunpack.c.l.b16 %v38
  %v143 = vunpack.c.l.b16 %v39
  %v144 = vunpack.c.l.b16 %v40
  %v145 = vunpack.c.l.b16 %v41
  %v146 = vunpack.c.l.b16 %v42
  %v147 = vunpack.c.l.b16 %v43
  %v148 = vunpack.c.l.b16 %v44
  %v149 = vunpack.c.l.b16 %v45
  %v150 = vunpack.c.l.b16 %v46
  %v151 = vunpack.c.l.b16 %v47
  %v152 = vunpack.c.l.b16 %v48
  %v153 = vunpack.c.l.b16 %v49
  %v154 = vunpack.c.l.b16 %v50
  %v155 = vunpack.c.l.b16 %v51
  %v156 = vunpack.c.l.b16 %v52
  %v157 = vunpack.c.l.b16 %v53
  %v158 = vunpack.c.l.b16 %v54
  %v159 = vunpack.c.l.b16 %v55
  %v160 = vunpack.c.l.b16 %v56
  %v161 = vpack.c.b16 %v126, %v125
  %v162 = vpack.c.b16 %v128, %v127
  %v163 = vpack.c.b16 %v130, %v129
  %v164 = vpack.c.b16 %v132, %v131
  %v165 = vpack.c.b16 %v134, %v133
  %v166 = vpack.c.b16 %v136, %v135
  %v167 = vpack.c.b16 %v138, %v137
  %v168 = vpack.c.b16 %v140, %v139
  %v169 = vpack.c.b16 %v142, %v141
  %v170 = vpack.c.b16 %v144, %v143
  %v171 = vpack.c.b16 %v146, %v145
  %v172 = vpack.c.b16 %v148, %v147
  %v173 = vpack.c.b16 %v150, %v149
  %v174 = vpack.c.b16 %v152, %v151
  %v175 = vpack.c.b16 %v154, %v153
  %v176 = vpack.c.b16 %v156, %v155
  %v177 = vpack.c.b16 %v158, %v157
  %v178 = vpack.c.b16 %v160, %v159
  %vm197 = vcmask 261120
  %v199 = vsel %vm197, %v81, 0
  %v202 = vsel %vm197, %v84, 0
  %204 = vmatprep.subr.bf16.mxu0 0
  %205 = vmatpush1.bf16.msra.mxu0 %v161
  %206 = vmatprep.subr.bf16.mxu0 0
  %207 = vmatpush1.bf16.msra.mxu0 %v162
  %208 = vmatprep.subr.bf16.mxu0 0
  %209 = vmatpush1.bf16.msra.mxu0 %v163
  %210 = vmatprep.subr.bf16.mxu0 0
  %211 = vmatpush1.bf16.msra.mxu0 %v164
  %212 = vmatprep.subr.bf16.mxu0 0
  %213 = vmatpush1.bf16.msra.mxu0 %v165
  %214 = vmatprep.subr.bf16.mxu0 0
  %215 = vmatpush1.bf16.msra.mxu0 %v166
  %216 = vmatprep.subr.bf16.mxu0 0
  %217 = vmatpush1.bf16.msra.mxu0 %v167
  %218 = vmatprep.subr.bf16.mxu0 0
  %219 = vmatpush1.bf16.msra.mxu0 %v168
  %220 = vmatprep.subr.bf16.mxu0 0
  %221 = vmatpush1.bf16.msra.mxu0 %v169
  %222 = vmatprep.subr.bf16.mxu0 0
  %223 = vmatpush1.bf16.msra.mxu0 %v170
  %224 = vmatprep.subr.bf16.mxu0 0
  %225 = vmatpush1.bf16.msra.mxu0 %v171
  %226 = vmatprep.subr.bf16.mxu0 0
  %227 = vmatpush1.bf16.msra.mxu0 %v172
  %228 = vmatprep.subr.bf16.mxu0 0
  %229 = vmatpush1.bf16.msra.mxu0 %v173
  %230 = vmatprep.subr.bf16.mxu0 0
  %231 = vmatpush1.bf16.msra.mxu0 %v174
  %232 = vmatprep.subr.bf16.mxu0 0
  %233 = vmatpush1.bf16.msra.mxu0 %v175
  %234 = vmatprep.subr.bf16.mxu0 0
  %235 = vmatpush1.bf16.msra.mxu0 %v176
  %236 = vmatprep.mubr.bf16.mxu0 %v80
  %237 = vmatmul.mubr.bf16.gmra.mrb[0].mxu0 %v79
  %v238 = vpop.f32.mrb[0].mxu0
  %v239 = vadd.f32 %v62, %v238
  %v240 = vpop.f32.mrb[0].mxu0
  %v241 = vpop.f32.mrb[0].mxu0
  %v242 = vadd.f32 %v62, %v241
  %v243 = vpop.f32.mrb[0].mxu0
  %244 = vmatprep.mubr.bf16.mxu0 %v83
  %245 = vmatmul.mubr.bf16.gmra.mrb[0].mxu0 %v82
  %v246 = vpop.f32.mrb[0].mxu0
  %v247 = vadd.f32 %v62, %v246
  %v248 = vpop.f32.mrb[0].mxu0
  %v249 = vpop.f32.mrb[0].mxu0
  %v250 = vpop.f32.mrb[0].mxu0
  %251 = vdwg.mxu0
  %252 = vmatprep.subr.bf16.mxu0 0
  %253 = vmatpush1.bf16.msra.mxu0 %v177
  %254 = vmatprep.subr.bf16.mxu0 0
  %255 = vmatpush1.bf16.msra.mxu0 %v178
  %256 = vmatprep.subr.bf16.mxu0 0
  %257 = vmatpush1.bf16.msra.mxu0 0
  %258 = vmatprep.subr.bf16.mxu0 0
  %259 = vmatpush1.bf16.msra.mxu0 0
  %260 = vmatprep.subr.bf16.mxu0 0
  %261 = vmatpush1.bf16.msra.mxu0 0
  %262 = vmatprep.subr.bf16.mxu0 0
  %263 = vmatpush1.bf16.msra.mxu0 0
  %264 = vmatprep.subr.bf16.mxu0 0
  %265 = vmatpush1.bf16.msra.mxu0 0
  %266 = vmatprep.subr.bf16.mxu0 0
  %267 = vmatpush1.bf16.msra.mxu0 0
  %268 = vmatprep.subr.bf16.mxu0 0
  %269 = vmatpush1.bf16.msra.mxu0 0
  %270 = vmatprep.subr.bf16.mxu0 0
  %271 = vmatpush1.bf16.msra.mxu0 0
  %272 = vmatprep.subr.bf16.mxu0 0
  %273 = vmatpush1.bf16.msra.mxu0 0
  %274 = vmatprep.subr.bf16.mxu0 0
  %275 = vmatpush1.bf16.msra.mxu0 0
  %276 = vmatprep.subr.bf16.mxu0 0
  %277 = vmatpush1.bf16.msra.mxu0 0
  %278 = vmatprep.subr.bf16.mxu0 0
  %279 = vmatpush1.bf16.msra.mxu0 0
  %280 = vmatprep.subr.bf16.mxu0 0
  %281 = vmatpush1.bf16.msra.mxu0 0
  %282 = vmatprep.subr.bf16.mxu0 0
  %283 = vmatpush1.bf16.msra.mxu0 0
  %284 = vmatprep.mubr.bf16.mxu0 0
  %285 = vmatmul.mubr.bf16.gmra.mrb[0].mxu0 %v199
  %v286 = vpop.f32.mrb[0].mxu0
  %v287 = vadd.f32 %v239, %v286
  %v288 = vpop.f32.mrb[0].mxu0
  %v289 = vpop.f32.mrb[0].mxu0
  %v290 = vadd.f32 %v242, %v289
  %v291 = vpop.f32.mrb[0].mxu0
  %292 = vmatprep.mubr.bf16.mxu0 0
  %293 = vmatmul.mubr.bf16.gmra.mrb[0].mxu0 %v202
  %v294 = vpop.f32.mrb[0].mxu0
  %v295 = vadd.f32 %v247, %v294
  %v296 = vpop.f32.mrb[0].mxu0
  %v297 = vpop.f32.mrb[0].mxu0
  %v298 = vpop.f32.mrb[0].mxu0
  %299 = vdwg.mxu0
  %v300 = vmax.f32 %v287, 0.0
  %v301 = vmax.f32 %v290, 0.0
  %v302 = vmax.f32 %v295, 0.0
  %v303 = vpack.c.bf16 %v301, %v300
  %v304 = vpack.c.bf16 %v302, %v302
  %v307 = vunpack.c.l.b16 %v303
  %v308 = vunpack.c.h.b16 %v303
  %v309 = vunpack.c.l.b16 %v304
  %v310 = vpack.c.b16 %v307, %v307
  %v311 = vpack.c.b16 %v308, %v308
  %v312 = vpack.c.b16 %v309, %v309
  %vm316 = vcmask 257024
  %317 = vst.msk [vmem:[%s3] sm:$0xf] %vm316, %v310
  %318 = vst.msk [vmem:[%s3 + $0x4] sm:$0xf] %vm316, %v311
  %vm319 = vcmask 253952
  %320 = vst.msk [vmem:[%s3 + $0x8] sm:$0x1] %vm319, %v312
  // Predicated region
  $region14: #{critic_forward.8} parent=0 // pred_check
    _
  $region15: #{critic_forward.8} parent=0 // pred_check_branch
    %322 = sbr.rel (0) target = $region17
  $region16: #{critic_forward.8} parent=0 // pred_region
    _
  $region17: #{critic_forward.8} parent=0 // pred_fallthru
    _
  // Predicated region
  $region18: #{critic_forward.8} parent=0 // pred_check
    _
  $region19: #{critic_forward.8} parent=0 // pred_check_branch
    %324 = sbr.rel (0) target = $region21
  $region20: #{critic_forward.8} parent=0 // pred_region
    _
  $region21: #{critic_forward.8} parent=0 // pred_fallthru
    _

// kernel: critic_forward.9
$region0: #{critic_forward.9}
  #allocation0 [shape = 'u32[]', space=smem, size = 0x4, offset = 0x4, fixed_abs, tag = 'smem constant byte address 0x4 - core index']
  #allocation1 [shape = 'u32[144,128]{1,0:T(1,128)}', space=vmem, size = 0x12000, scoped, tag = 'internal scratch']
  %s0 = inlined_call_operand.vmem [shape: bf16[2,288], index: 0, kind: input, shape index: {}]
  %s1 = inlined_call_operand.vmem [shape: bf16[2,4], index: 1, kind: input, shape index: {}]
  %s2 = inlined_call_operand.vmem [shape: bf16[288,512], index: 2, kind: input, shape index: {}]
  %s3 = inlined_call_operand.vmem [shape: f32[1,512], index: 3, kind: input, shape index: {}]
  %s4 = inlined_call_operand.vmem [shape: f32[1,512], index: 4, kind: input, shape index: {}]
  %s5 = inlined_call_operand.vmem [shape: f32[1,512], index: 5, kind: input, shape index: {}]
  %s6 = inlined_call_operand.vmem [shape: bf16[512,1024], index: 6, kind: input, shape index: {}]
  %s7 = inlined_call_operand.vmem [shape: bf16[4,1024], index: 7, kind: input, shape index: {}]
  %s8 = inlined_call_operand.vmem [shape: f32[1,1024], index: 8, kind: input, shape index: {}]
  %s9 = inlined_call_operand.vmem [shape: bf16[512,512], index: 9, kind: input, shape index: {}]
  %s10 = inlined_call_operand.vmem [shape: f32[1,512], index: 10, kind: input, shape index: {}]
  %s11 = inlined_call_operand.vmem [shape: bf16[512,512], index: 11, kind: input, shape index: {}]
  %s12 = inlined_call_operand.vmem [shape: f32[1,512], index: 12, kind: input, shape index: {}]
  %s13 = inlined_call_operand.vmem [shape: bf16[1024,128], index: 13, kind: input, shape index: {}]
  %s14 = inlined_call_operand.vmem [shape: f32[1,128], index: 14, kind: input, shape index: {}]
  %s15 = inlined_call_operand.vmem [shape: f32[2,128], index: 15, kind: output, shape index: {}]
  %s16 = sld [smem:[#allocation0]]
  $region70: #{critic_forward.9} parent=0
    _
  %s18 = ssub.s32 1, %s16
  %s19 = scalar_select 0, %s18, %s16
  // Predicated region
  $region2: #{critic_forward.9} parent=0 // pred_check
    _
  $region3: #{critic_forward.9} parent=0 // pred_check_branch
    %21 = sbr.rel (0) target = $region5
  $region4: #{critic_forward.9} parent=0 // pred_region
    _
  $region5: #{critic_forward.9} parent=0 // pred_fallthru
    _
  // Predicated region
  $region6: #{critic_forward.9} parent=0 // pred_check
    _
  $region7: #{critic_forward.9} parent=0 // pred_check_branch
    %23 = sbr.rel (0) target = $region9
  $region8: #{critic_forward.9} parent=0 // pred_region
    _
  $region9: #{critic_forward.9} parent=0 // pred_fallthru
    _
  // Predicated region
  $region10: #{critic_forward.9} parent=0 // pred_check
    _
  $region11: #{critic_forward.9} parent=0 // pred_check_branch
    %25 = sbr.rel (0) target = $region13
  $region12: #{critic_forward.9} parent=0 // pred_region
    _
  $region13: #{critic_forward.9} parent=0 // pred_fallthru
    _
  // Predicated region
  $region14: #{critic_forward.9} parent=0 // pred_check
    _
  $region15: #{critic_forward.9} parent=0 // pred_check_branch
    %27 = sbr.rel (0) target = $region17
  $region16: #{critic_forward.9} parent=0 // pred_region
    _
  $region17: #{critic_forward.9} parent=0 // pred_fallthru
    _
  // Predicated region
  $region18: #{critic_forward.9} parent=0 // pred_check
    _
  $region19: #{critic_forward.9} parent=0 // pred_check_branch
    %29 = sbr.rel (0) target = $region21
  $region20: #{critic_forward.9} parent=0 // pred_region
    _
  $region21: #{critic_forward.9} parent=0 // pred_fallthru
    _
  // Predicated region
  $region22: #{critic_forward.9} parent=0 // pred_check
    _
  $region23: #{critic_forward.9} parent=0 // pred_check_branch
    %31 = sbr.rel (0) target = $region25
  $region24: #{critic_forward.9} parent=0 // pred_region
    _
  $region25: #{critic_forward.9} parent=0 // pred_fallthru
    _
  // Predicated region
  $region26: #{critic_forward.9} parent=0 // pred_check
    _
  $region27: #{critic_forward.9} parent=0 // pred_check_branch
    %33 = sbr.rel (0) target = $region29
  $region28: #{critic_forward.9} parent=0 // pred_region
    _
  $region29: #{critic_forward.9} parent=0 // pred_fallthru
    _
  // Predicated region
  $region30: #{critic_forward.9} parent=0 // pred_check
    _
  $region31: #{critic_forward.9} parent=0 // pred_check_branch
    %35 = sbr.rel (0) target = $region33
  $region32: #{critic_forward.9} parent=0 // pred_region
    _
  $region33: #{critic_forward.9} parent=0 // pred_fallthru
    _
  // Predicated region
  $region34: #{critic_forward.9} parent=0 // pred_check
    _
  $region35: #{critic_forward.9} parent=0 // pred_check_branch
    %37 = sbr.rel (0) target = $region37
  $region36: #{critic_forward.9} parent=0 // pred_region
    _
  $region37: #{critic_forward.9} parent=0 // pred_fallthru
    _
  // Predicated region
  $region38: #{critic_forward.9} parent=0 // pred_check
    _
  $region39: #{critic_forward.9} parent=0 // pred_check_branch
    %39 = sbr.rel (0) target = $region41
  $region40: #{critic_forward.9} parent=0 // pred_region
    _
  $region41: #{critic_forward.9} parent=0 // pred_fallthru
    _
  // Predicated region
  $region42: #{critic_forward.9} parent=0 // pred_check
    _
  $region43: #{critic_forward.9} parent=0 // pred_check_branch
    %41 = sbr.rel (0) target = $region45
  $region44: #{critic_forward.9} parent=0 // pred_region
    _
  $region45: #{critic_forward.9} parent=0 // pred_fallthru
    _
  // Predicated region
  $region46: #{critic_forward.9} parent=0 // pred_check
    _
  $region47: #{critic_forward.9} parent=0 // pred_check_branch
    %43 = sbr.rel (0) target = $region49
  $region48: #{critic_forward.9} parent=0 // pred_region
    _
  $region49: #{critic_forward.9} parent=0 // pred_fallthru
    _
  // Predicated region
  $region50: #{critic_forward.9} parent=0 // pred_check
    _
  $region51: #{critic_forward.9} parent=0 // pred_check_branch
    %45 = sbr.rel (0) target = $region53
  $region52: #{critic_forward.9} parent=0 // pred_region
    _
  $region53: #{critic_forward.9} parent=0 // pred_fallthru
    _
  // Predicated region
  $region54: #{critic_forward.9} parent=0 // pred_check
    _
  $region55: #{critic_forward.9} parent=0 // pred_check_branch
    %47 = sbr.rel (0) target = $region57
  $region56: #{critic_forward.9} parent=0 // pred_region
    _
  $region57: #{critic_forward.9} parent=0 // pred_fallthru
    _
  // Predicated region
  $region58: #{critic_forward.9} parent=0 // pred_check
    _
  $region59: #{critic_forward.9} parent=0 // pred_check_branch
    %49 = sbr.rel (0) target = $region61
  $region60: #{critic_forward.9} parent=0 // pred_region
    _
  $region61: #{critic_forward.9} parent=0 // pred_fallthru
    _
  %v51 = vld [vmem:[%s0] sm:$0x7]
  %v52 = vld [vmem:[%s2] sm:$0xff]
  %v53 = vld [vmem:[%s2 + $0x8] sm:$0xff]
  %v54 = vld [vmem:[%s2 + $0x10] sm:$0xff]
  %v55 = vld [vmem:[%s2 + $0x18] sm:$0xff]
  %v56 = vld [vmem:[%s2 + $0x20] sm:$0xff]
  %v57 = vld [vmem:[%s2 + $0x28] sm:$0xff]
  %v58 = vld [vmem:[%s2 + $0x30] sm:$0xff]
  %v59 = vld [vmem:[%s2 + $0x38] sm:$0xff]
  %v60 = vld [vmem:[%s2 + $0x40] sm:$0xff]
  %v61 = vld [vmem:[%s2 + $0x48] sm:$0xff]
  %v62 = vld [vmem:[%s2 + $0x50] sm:$0xff]
  %v63 = vld [vmem:[%s2 + $0x58] sm:$0xff]
  %v64 = vld [vmem:[%s2 + $0x60] sm:$0xff]
  %v65 = vld [vmem:[%s2 + $0x68] sm:$0xff]
  %v66 = vld [vmem:[%s2 + $0x70] sm:$0xff]
  %v67 = vld [vmem:[%s2 + $0x78] sm:$0xff]
  %v68 = vld [vmem:[%s2 + $0x80] sm:$0xff]
  %v69 = vld [vmem:[%s2 + $0x88] sm:$0xff]
  %v70 = vld [vmem:[%s2 + $0x90] sm:$0xff]
  %v71 = vld [vmem:[%s2 + $0x98] sm:$0xff]
  %v72 = vld [vmem:[%s2 + $0xa0] sm:$0xff]
  %v73 = vld [vmem:[%s2 + $0xa8] sm:$0xff]
  %v74 = vld [vmem:[%s2 + $0xb0] sm:$0xff]
  %v75 = vld [vmem:[%s2 + $0xb8] sm:$0xff]
  %v76 = vld [vmem:[%s2 + $0xc0] sm:$0xff]
  %v77 = vld [vmem:[%s2 + $0xc8] sm:$0xff]
  %v78 = vld [vmem:[%s2 + $0xd0] sm:$0xff]
  %v79 = vld [vmem:[%s2 + $0xd8] sm:$0xff]
  %v80 = vld [vmem:[%s2 + $0xe0] sm:$0xff]
  %v81 = vld [vmem:[%s2 + $0xe8] sm:$0xff]
  %v82 = vld [vmem:[%s2 + $0xf0] sm:$0xff]
  %v83 = vld [vmem:[%s2 + $0xf8] sm:$0xff]
  %v84 = vld [vmem:[%s2 + $0x100] sm:$0xff]
  %v85 = vld [vmem:[%s2 + $0x108] sm:$0xff]
  %v86 = vld [vmem:[%s2 + $0x110] sm:$0xff]
  %v87 = vld [vmem:[%s2 + $0x118] sm:$0xff]
  %v88 = vld [vmem:[%s2 + $0x120] sm:$0xff]
  %v89 = vld [vmem:[%s2 + $0x128] sm:$0xff]
  %v90 = vld [vmem:[%s2 + $0x130] sm:$0xff]
  %v91 = vld [vmem:[%s2 + $0x138] sm:$0xff]
  %v92 = vld [vmem:[%s2 + $0x140] sm:$0xff]
  %v93 = vld [vmem:[%s2 + $0x148] sm:$0xff]
  %v94 = vld [vmem:[%s2 + $0x150] sm:$0xff]
  %v95 = vld [vmem:[%s2 + $0x158] sm:$0xff]
  %v96 = vld [vmem:[%s2 + $0x160] sm:$0xff]
  %v97 = vld [vmem:[%s2 + $0x168] sm:$0xff]
  %v98 = vld [vmem:[%s2 + $0x170] sm:$0xff]
  %v99 = vld [vmem:[%s2 + $0x178] sm:$0xff]
  %v100 = vld [vmem:[%s2 + $0x180] sm:$0xff]
  %v101 = vld [vmem:[%s2 + $0x188] sm:$0xff]
  %v102 = vld [vmem:[%s2 + $0x190] sm:$0xff]
  %v103 = vld [vmem:[%s2 + $0x198] sm:$0xff]
  %v104 = vld [vmem:[%s2 + $0x1a0] sm:$0xff]
  %v105 = vld [vmem:[%s2 + $0x1a8] sm:$0xff]
  %v106 = vld [vmem:[%s2 + $0x1b0] sm:$0xff]
  %v107 = vld [vmem:[%s2 + $0x1b8] sm:$0xff]
  %v108 = vld [vmem:[%s2 + $0x1c0] sm:$0xff]
  %v109 = vld [vmem:[%s2 + $0x1c8] sm:$0xff]
  %v110 = vld [vmem:[%s2 + $0x1d0] sm:$0xff]
  %v111 = vld [vmem:[%s2 + $0x1d8] sm:$0xff]
  %v112 = vld [vmem:[%s2 + $0x1e0] sm:$0xff]
  %v113 = vld [vmem:[%s2 + $0x1e8] sm:$0xff]
  %v114 = vld [vmem:[%s2 + $0x1f0] sm:$0xff]
  %v115 = vld [vmem:[%s2 + $0x1f8] sm:$0xff]
  %v116 = vld [vmem:[%s2 + $0x200] sm:$0xff]
  %v117 = vld [vmem:[%s2 + $0x208] sm:$0xff]
  %v118 = vld [vmem:[%s2 + $0x210] sm:$0xff]
  %v119 = vld [vmem:[%s2 + $0x218] sm:$0xff]
  %v120 = vld [vmem:[%s2 + $0x220] sm:$0xff]
  %v121 = vld [vmem:[%s2 + $0x228] sm:$0xff]
  %v122 = vld [vmem:[%s2 + $0x230] sm:$0xff]
  %v123 = vld [vmem:[%s2 + $0x238] sm:$0xff]
  %v124 = vld [vmem:[%s3] sm:$0xf]
  %v126 = vlaneseq
  %v127 = vshrl.u32 %v126, 7
  %v128 = vsub.s32 0, %v127
  %v129 = vrot.slane %v124, %v128
  %v130 = vlaneseq
  %v131 = vshrl.u32 %v130, 7
  %v132 = vsub.s32 1, %v131
  %v133 = vrot.slane %v124, %v132
  %v134 = vlaneseq
  %v135 = vshrl.u32 %v134, 7
  %v136 = vsub.s32 2, %v135
  %v137 = vrot.slane %v124, %v136
  %v138 = vlaneseq
  %v139 = vshrl.u32 %v138, 7
  %v140 = vsub.s32 3, %v139
  %v141 = vrot.slane %v124, %v140
  %v148 = vunpack.c.l.s4 1966171168
  %v149 = vunpack.c.0.s8 %v148
  %v150 = vlaneseq
  %v151 = vshrl.u32 %v150, 7
  %v152 = vsub.s32 %v149, %v151
  %v153 = vrot.slane %v51, %v152
  %v154 = vcombine.high %v153, %v153
  %v156 = vunpack.c.l.s4 1966171168
  %v157 = vunpack.c.0.s8 %v156
  %v158 = vlaneseq
  %v159 = vshrl.u32 %v158, 7
  %v160 = vsub.s32 %v157, %v159
  %v161 = vrot.slane %v153, %v160
  %v163 = vunpack.c.l.s4 1966171168
  %v164 = vunpack.c.0.s8 %v163
  %v165 = vlaneseq
  %v166 = vshrl.u32 %v165, 7
  %v167 = vsub.s32 %v164, %v166
  %v168 = vrot.slane %v154, %v167
  %v169 = vcombine.high %v161, %v161
  %v244 = vunpack.c.l.b16 %v52
  %v245 = vunpack.c.h.b16 %v52
  %v246 = vunpack.c.l.b16 %v53
  %v247 = vunpack.c.h.b16 %v53
  %v248 = vunpack.c.l.b16 %v54
  %v249 = vunpack.c.h.b16 %v54
  %v250 = vunpack.c.l.b16 %v55
  %v251 = vunpack.c.h.b16 %v55
  %v252 = vunpack.c.l.b16 %v56
  %v253 = vunpack.c.h.b16 %v56
  %v254 = vunpack.c.l.b16 %v57
  %v255 = vunpack.c.h.b16 %v57
  %v256 = vunpack.c.l.b16 %v58
  %v257 = vunpack.c.h.b16 %v58
  %v258 = vunpack.c.l.b16 %v59
  %v259 = vunpack.c.h.b16 %v59
  %v260 = vunpack.c.l.b16 %v60
  %v261 = vunpack.c.h.b16 %v60
  %v262 = vunpack.c.l.b16 %v61
  %v263 = vunpack.c.h.b16 %v61
  %v264 = vunpack.c.l.b16 %v62
  %v265 = vunpack.c.h.b16 %v62
  %v266 = vunpack.c.l.b16 %v63
  %v267 = vunpack.c.h.b16 %v63
  %v268 = vunpack.c.l.b16 %v64
  %v269 = vunpack.c.h.b16 %v64
  %v270 = vunpack.c.l.b16 %v65
  %v271 = vunpack.c.h.b16 %v65
  %v272 = vunpack.c.l.b16 %v66
  %v273 = vunpack.c.h.b16 %v66
  %v274 = vunpack.c.l.b16 %v67
  %v275 = vunpack.c.h.b16 %v67
  %v276 = vunpack.c.l.b16 %v68
  %v277 = vunpack.c.h.b16 %v68
  %v278 = vunpack.c.l.b16 %v69
  %v279 = vunpack.c.h.b16 %v69
  %v280 = vunpack.c.l.b16 %v70
  %v281 = vunpack.c.h.b16 %v70
  %v282 = vunpack.c.l.b16 %v71
  %v283 = vunpack.c.h.b16 %v71
  %v284 = vunpack.c.l.b16 %v72
  %v285 = vunpack.c.h.b16 %v72
  %v286 = vunpack.c.l.b16 %v73
  %v287 = vunpack.c.h.b16 %v73
  %v288 = vunpack.c.l.b16 %v74
  %v289 = vunpack.c.h.b16 %v74
  %v290 = vunpack.c.l.b16 %v75
  %v291 = vunpack.c.h.b16 %v75
  %v292 = vunpack.c.l.b16 %v76
  %v293 = vunpack.c.h.b16 %v76
  %v294 = vunpack.c.l.b16 %v77
  %v295 = vunpack.c.h.b16 %v77
  %v296 = vunpack.c.l.b16 %v78
  %v297 = vunpack.c.h.b16 %v78
  %v298 = vunpack.c.l.b16 %v79
  %v299 = vunpack.c.h.b16 %v79
  %v300 = vunpack.c.l.b16 %v80
  %v301 = vunpack.c.h.b16 %v80
  %v302 = vunpack.c.l.b16 %v81
  %v303 = vunpack.c.h.b16 %v81
  %v304 = vunpack.c.l.b16 %v82
  %v305 = vunpack.c.h.b16 %v82
  %v306 = vunpack.c.l.b16 %v83
  %v307 = vunpack.c.h.b16 %v83
  %v308 = vunpack.c.l.b16 %v84
  %v309 = vunpack.c.h.b16 %v84
  %v310 = vunpack.c.l.b16 %v85
  %v311 = vunpack.c.h.b16 %v85
  %v312 = vunpack.c.l.b16 %v86
  %v313 = vunpack.c.h.b16 %v86
  %v314 = vunpack.c.l.b16 %v87
  %v315 = vunpack.c.h.b16 %v87
  %v316 = vunpack.c.l.b16 %v88
  %v317 = vunpack.c.h.b16 %v88
  %v318 = vunpack.c.l.b16 %v89
  %v319 = vunpack.c.h.b16 %v89
  %v320 = vunpack.c.l.b16 %v90
  %v321 = vunpack.c.h.b16 %v90
  %v322 = vunpack.c.l.b16 %v91
  %v323 = vunpack.c.h.b16 %v91
  %v324 = vunpack.c.l.b16 %v92
  %v325 = vunpack.c.h.b16 %v92
  %v326 = vunpack.c.l.b16 %v93
  %v327 = vunpack.c.h.b16 %v93
  %v328 = vunpack.c.l.b16 %v94
  %v329 = vunpack.c.h.b16 %v94
  %v330 = vunpack.c.l.b16 %v95
  %v331 = vunpack.c.h.b16 %v95
  %v332 = vunpack.c.l.b16 %v96
  %v333 = vunpack.c.h.b16 %v96
  %v334 = vunpack.c.l.b16 %v97
  %v335 = vunpack.c.h.b16 %v97
  %v336 = vunpack.c.l.b16 %v98
  %v337 = vunpack.c.h.b16 %v98
  %v338 = vunpack.c.l.b16 %v99
  %v339 = vunpack.c.h.b16 %v99
  %v340 = vunpack.c.l.b16 %v100
  %v341 = vunpack.c.h.b16 %v100
  %v342 = vunpack.c.l.b16 %v101
  %v343 = vunpack.c.h.b16 %v101
  %v344 = vunpack.c.l.b16 %v102
  %v345 = vunpack.c.h.b16 %v102
  %v346 = vunpack.c.l.b16 %v103
  %v347 = vunpack.c.h.b16 %v103
  %v348 = vunpack.c.l.b16 %v104
  %v349 = vunpack.c.h.b16 %v104
  %v350 = vunpack.c.l.b16 %v105
  %v351 = vunpack.c.h.b16 %v105
  %v352 = vunpack.c.l.b16 %v106
  %v353 = vunpack.c.h.b16 %v106
  %v354 = vunpack.c.l.b16 %v107
  %v355 = vunpack.c.h.b16 %v107
  %v356 = vunpack.c.l.b16 %v108
  %v357 = vunpack.c.h.b16 %v108
  %v358 = vunpack.c.l.b16 %v109
  %v359 = vunpack.c.h.b16 %v109
  %v360 = vunpack.c.l.b16 %v110
  %v361 = vunpack.c.h.b16 %v110
  %v362 = vunpack.c.l.b16 %v111
  %v363 = vunpack.c.h.b16 %v111
  %v364 = vunpack.c.l.b16 %v112
  %v365 = vunpack.c.h.b16 %v112
  %v366 = vunpack.c.l.b16 %v113
  %v367 = vunpack.c.h.b16 %v113
  %v368 = vunpack.c.l.b16 %v114
  %v369 = vunpack.c.h.b16 %v114
  %v370 = vunpack.c.l.b16 %v115
  %v371 = vunpack.c.h.b16 %v115
  %v372 = vunpack.c.l.b16 %v116
  %v373 = vunpack.c.h.b16 %v116
  %v374 = vunpack.c.l.b16 %v117
  %v375 = vunpack.c.h.b16 %v117
  %v376 = vunpack.c.l.b16 %v118
  %v377 = vunpack.c.h.b16 %v118
  %v378 = vunpack.c.l.b16 %v119
  %v379 = vunpack.c.h.b16 %v119
  %v380 = vunpack.c.l.b16 %v120
  %v381 = vunpack.c.h.b16 %v120
  %v382 = vunpack.c.l.b16 %v121
  %v383 = vunpack.c.h.b16 %v121
  %v384 = vunpack.c.l.b16 %v122
  %v385 = vunpack.c.h.b16 %v122
  %v386 = vunpack.c.l.b16 %v123
  %v387 = vunpack.c.h.b16 %v123
  %v388 = vpack.c.b16 %v248, %v244
  %v389 = vpack.c.b16 %v249, %v245
  %v390 = vpack.c.b16 %v250, %v246
  %v391 = vpack.c.b16 %v251, %v247
  %v392 = vpack.c.b16 %v256, %v252
  %v393 = vpack.c.b16 %v257, %v253
  %v394 = vpack.c.b16 %v258, %v254
  %v395 = vpack.c.b16 %v259, %v255
  %v396 = vpack.c.b16 %v264, %v260
  %v397 = vpack.c.b16 %v265, %v261
  %v398 = vpack.c.b16 %v266, %v262
  %v399 = vpack.c.b16 %v267, %v263
  %v400 = vpack.c.b16 %v272, %v268
  %v401 = vpack.c.b16 %v273, %v269
  %v402 = vpack.c.b16 %v274, %v270
  %v403 = vpack.c.b16 %v275, %v271
  %v404 = vpack.c.b16 %v280, %v276
  %v405 = vpack.c.b16 %v281, %v277
  %v406 = vpack.c.b16 %v282, %v278
  %v407 = vpack.c.b16 %v283, %v279
  %v408 = vpack.c.b16 %v288, %v284
  %v409 = vpack.c.b16 %v289, %v285
  %v410 = vpack.c.b16 %v290, %v286
  %v411 = vpack.c.b16 %v291, %v287
  %v412 = vpack.c.b16 %v296, %v292
  %v413 = vpack.c.b16 %v297, %v293
  %v414 = vpack.c.b16 %v298, %v294
  %v415 = vpack.c.b16 %v299, %v295
  %v416 = vpack.c.b16 %v304, %v300
  %v417 = vpack.c.b16 %v305, %v301
  %v418 = vpack.c.b16 %v306, %v302
  %v419 = vpack.c.b16 %v307, %v303
  %v420 = vpack.c.b16 %v312, %v308
  %v421 = vpack.c.b16 %v313, %v309
  %v422 = vpack.c.b16 %v314, %v310
  %v423 = vpack.c.b16 %v315, %v311
  %v424 = vpack.c.b16 %v320, %v316
  %v425 = vpack.c.b16 %v321, %v317
  %v426 = vpack.c.b16 %v322, %v318
  %v427 = vpack.c.b16 %v323, %v319
  %v428 = vpack.c.b16 %v328, %v324
  %v429 = vpack.c.b16 %v329, %v325
  %v430 = vpack.c.b16 %v330, %v326
  %v431 = vpack.c.b16 %v331, %v327
  %v432 = vpack.c.b16 %v336, %v332
  %v433 = vpack.c.b16 %v337, %v333
  %v434 = vpack.c.b16 %v338, %v334
  %v435 = vpack.c.b16 %v339, %v335
  %v436 = vpack.c.b16 %v344, %v340
  %v437 = vpack.c.b16 %v345, %v341
  %v438 = vpack.c.b16 %v346, %v342
  %v439 = vpack.c.b16 %v347, %v343
  %v440 = vpack.c.b16 %v352, %v348
  %v441 = vpack.c.b16 %v353, %v349
  %v442 = vpack.c.b16 %v354, %v350
  %v443 = vpack.c.b16 %v355, %v351
  %v444 = vpack.c.b16 %v360, %v356
  %v445 = vpack.c.b16 %v361, %v357
  %v446 = vpack.c.b16 %v362, %v358
  %v447 = vpack.c.b16 %v363, %v359
  %v448 = vpack.c.b16 %v368, %v364
  %v449 = vpack.c.b16 %v369, %v365
  %v450 = vpack.c.b16 %v370, %v366
  %v451 = vpack.c.b16 %v371, %v367
  %v452 = vpack.c.b16 %v376, %v372
  %v453 = vpack.c.b16 %v377, %v373
  %v454 = vpack.c.b16 %v378, %v374
  %v455 = vpack.c.b16 %v379, %v375
  %v456 = vpack.c.b16 %v384, %v380
  %v457 = vpack.c.b16 %v385, %v381
  %v458 = vpack.c.b16 %v386, %v382
  %v459 = vpack.c.b16 %v387, %v383
  %vm532 = vcmask 261120
  %v534 = vsel %vm532, %v169, 0
  %536 = vmatprep.subr.bf16.mxu0 %v389
  %537 = vmatpush1.bf16.msra.mxu0 %v388
  %538 = vmatprep.subr.bf16.mxu0 %v393
  %539 = vmatpush1.bf16.msra.mxu0 %v392
  %540 = vmatprep.subr.bf16.mxu0 %v397
  %541 = vmatpush1.bf16.msra.mxu0 %v396
  %542 = vmatprep.subr.bf16.mxu0 %v401
  %543 = vmatpush1.bf16.msra.mxu0 %v400
  %544 = vmatprep.subr.bf16.mxu0 %v405
  %545 = vmatpush1.bf16.msra.mxu0 %v404
  %546 = vmatprep.subr.bf16.mxu0 %v409
  %547 = vmatpush1.bf16.msra.mxu0 %v408
  %548 = vmatprep.subr.bf16.mxu0 %v413
  %549 = vmatpush1.bf16.msra.mxu0 %v412
  %550 = vmatprep.subr.bf16.mxu0 %v417
  %551 = vmatpush1.bf16.msra.mxu0 %v416
  %552 = vmatprep.subr.bf16.mxu0 %v421
  %553 = vmatpush1.bf16.msra.mxu0 %v420
  %554 = vmatprep.subr.bf16.mxu0 %v425
  %555 = vmatpush1.bf16.msra.mxu0 %v424
  %556 = vmatprep.subr.bf16.mxu0 %v429
  %557 = vmatpush1.bf16.msra.mxu0 %v428
  %558 = vmatprep.subr.bf16.mxu0 %v433
  %559 = vmatpush1.bf16.msra.mxu0 %v432
  %560 = vmatprep.subr.bf16.mxu0 %v437
  %561 = vmatpush1.bf16.msra.mxu0 %v436
  %562 = vmatprep.subr.bf16.mxu0 %v441
  %563 = vmatpush1.bf16.msra.mxu0 %v440
  %564 = vmatprep.subr.bf16.mxu0 %v445
  %565 = vmatpush1.bf16.msra.mxu0 %v444
  %566 = vmatprep.subr.bf16.mxu0 %v449
  %567 = vmatpush1.bf16.msra.mxu0 %v448
  %568 = vmatprep.mubr.bf16.mxu0 %v168
  %569 = vmatmul.mubr.bf16.gmra.mrb[0].mxu0 %v161
  %v570 = vpop.f32.mrb[0].mxu0
  %v571 = vadd.f32 %v129, %v570
  %v572 = vpop.f32.mrb[0].mxu0
  %v573 = vadd.f32 %v133, %v572
  %v574 = vpop.f32.mrb[0].mxu0
  %v575 = vpop.f32.mrb[0].mxu0
  %576 = vdwg.mxu0
  %577 = vmatprep.subr.bf16.mxu0 %v453
  %578 = vmatpush1.bf16.msra.mxu0 %v452
  %579 = vmatprep.subr.bf16.mxu0 %v457
  %580 = vmatpush1.bf16.msra.mxu0 %v456
  %581 = vmatprep.subr.bf16.mxu0 0
  %582 = vmatpush1.bf16.msra.mxu0 0
  %583 = vmatprep.subr.bf16.mxu0 0
  %584 = vmatpush1.bf16.msra.mxu0 0
  %585 = vmatprep.subr.bf16.mxu0 0
  %586 = vmatpush1.bf16.msra.mxu0 0
  %587 = vmatprep.subr.bf16.mxu0 0
  %588 = vmatpush1.bf16.msra.mxu0 0
  %589 = vmatprep.subr.bf16.mxu0 0
  %590 = vmatpush1.bf16.msra.mxu0 0
  %591 = vmatprep.subr.bf16.mxu0 0
  %592 = vmatpush1.bf16.msra.mxu0 0
  %593 = vmatprep.subr.bf16.mxu0 0
  %594 = vmatpush1.bf16.msra.mxu0 0
  %595 = vmatprep.subr.bf16.mxu0 0
  %596 = vmatpush1.bf16.msra.mxu0 0
  %597 = vmatprep.subr.bf16.mxu0 0
  %598 = vmatpush1.bf16.msra.mxu0 0
  %599 = vmatprep.subr.bf16.mxu0 0
  %600 = vmatpush1.bf16.msra.mxu0 0
  %601 = vmatprep.subr.bf16.mxu0 0
  %602 = vmatpush1.bf16.msra.mxu0 0
  %603 = vmatprep.subr.bf16.mxu0 0
  %604 = vmatpush1.bf16.msra.mxu0 0
  %605 = vmatprep.subr.bf16.mxu0 0
  %606 = vmatpush1.bf16.msra.mxu0 0
  %607 = vmatprep.subr.bf16.mxu0 0
  %608 = vmatpush1.bf16.msra.mxu0 0
  %609 = vmatprep.mubr.bf16.mxu0 0
  %610 = vmatmul.mubr.bf16.gmra.mrb[0].mxu0 %v534
  %v611 = vpop.f32.mrb[0].mxu0
  %v612 = vadd.f32 %v571, %v611
  %v613 = vpop.f32.mrb[0].mxu0
  %v614 = vadd.f32 %v573, %v613
  %v615 = vpop.f32.mrb[0].mxu0
  %v616 = vpop.f32.mrb[0].mxu0
  %617 = vdwg.mxu0
  %618 = vmatprep.subr.bf16.mxu0 %v391
  %619 = vmatpush1.bf16.msra.mxu0 %v390
  %620 = vmatprep.subr.bf16.mxu0 %v395
  %621 = vmatpush1.bf16.msra.mxu0 %v394
  %622 = vmatprep.subr.bf16.mxu0 %v399
  %623 = vmatpush1.bf16.msra.mxu0 %v398
  %624 = vmatprep.subr.bf16.mxu0 %v403
  %625 = vmatpush1.bf16.msra.mxu0 %v402
  %626 = vmatprep.subr.bf16.mxu0 %v407
  %627 = vmatpush1.bf16.msra.mxu0 %v406
  %628 = vmatprep.subr.bf16.mxu0 %v411
  %629 = vmatpush1.bf16.msra.mxu0 %v410
  %630 = vmatprep.subr.bf16.mxu0 %v415
  %631 = vmatpush1.bf16.msra.mxu0 %v414
  %632 = vmatprep.subr.bf16.mxu0 %v419
  %633 = vmatpush1.bf16.msra.mxu0 %v418
  %634 = vmatprep.subr.bf16.mxu0 %v423
  %635 = vmatpush1.bf16.msra.mxu0 %v422
  %636 = vmatprep.subr.bf16.mxu0 %v427
  %637 = vmatpush1.bf16.msra.mxu0 %v426
  %638 = vmatprep.subr.bf16.mxu0 %v431
  %639 = vmatpush1.bf16.msra.mxu0 %v430
  %640 = vmatprep.subr.bf16.mxu0 %v435
  %641 = vmatpush1.bf16.msra.mxu0 %v434
  %642 = vmatprep.subr.bf16.mxu0 %v439
  %643 = vmatpush1.bf16.msra.mxu0 %v438
  %644 = vmatprep.subr.bf16.mxu0 %v443
  %645 = vmatpush1.bf16.msra.mxu0 %v442
  %646 = vmatprep.subr.bf16.mxu0 %v447
  %647 = vmatpush1.bf16.msra.mxu0 %v446
  %648 = vmatprep.subr.bf16.mxu0 %v451
  %649 = vmatpush1.bf16.msra.mxu0 %v450
  %650 = vmatprep.mubr.bf16.mxu0 %v168
  %651 = vmatmul.mubr.bf16.gmra.mrb[0].mxu0 %v161
  %v652 = vpop.f32.mrb[0].mxu0
  %v653 = vadd.f32 %v137, %v652
  %v654 = vpop.f32.mrb[0].mxu0
  %v655 = vadd.f32 %v141, %v654
  %v656 = vpop.f32.mrb[0].mxu0
  %v657 = vpop.f32.mrb[0].mxu0
  %658 = vdwg.mxu0
  %659 = vmatprep.subr.bf16.mxu0 %v455
  %660 = vmatpush1.bf16.msra.mxu0 %v454
  %661 = vmatprep.subr.bf16.mxu0 %v459
  %662 = vmatpush1.bf16.msra.mxu0 %v458
  %663 = vmatprep.subr.bf16.mxu0 0
  %664 = vmatpush1.bf16.msra.mxu0 0
  %665 = vmatprep.subr.bf16.mxu0 0
  %666 = vmatpush1.bf16.msra.mxu0 0
  %667 = vmatprep.subr.bf16.mxu0 0
  %668 = vmatpush1.bf16.msra.mxu0 0
  %669 = vmatprep.subr.bf16.mxu0 0
  %670 = vmatpush1.bf16.msra.mxu0 0
  %671 = vmatprep.subr.bf16.mxu0 0
  %672 = vmatpush1.bf16.msra.mxu0 0
  %673 = vmatprep.subr.bf16.mxu0 0
  %674 = vmatpush1.bf16.msra.mxu0 0
  %675 = vmatprep.subr.bf16.mxu0 0
  %676 = vmatpush1.bf16.msra.mxu0 0
  %677 = vmatprep.subr.bf16.mxu0 0
  %678 = vmatpush1.bf16.msra.mxu0 0
  %679 = vmatprep.subr.bf16.mxu0 0
  %680 = vmatpush1.bf16.msra.mxu0 0
  %681 = vmatprep.subr.bf16.mxu0 0
  %682 = vmatpush1.bf16.msra.mxu0 0
  %683 = vmatprep.subr.bf16.mxu0 0
  %684 = vmatpush1.bf16.msra.mxu0 0
  %685 = vmatprep.subr.bf16.mxu0 0
  %686 = vmatpush1.bf16.msra.mxu0 0
  %687 = vmatprep.subr.bf16.mxu0 0
  %688 = vmatpush1.bf16.msra.mxu0 0
  %689 = vmatprep.subr.bf16.mxu0 0
  %690 = vmatpush1.bf16.msra.mxu0 0
  %691 = vmatprep.mubr.bf16.mxu0 0
  %692 = vmatmul.mubr.bf16.gmra.mrb[0].mxu0 %v534
  %v693 = vpop.f32.mrb[0].mxu0
  %v694 = vadd.f32 %v653, %v693
  %v695 = vpop.f32.mrb[0].mxu0
  %v696 = vadd.f32 %v655, %v695
  %v697 = vpop.f32.mrb[0].mxu0
  %v698 = vpop.f32.mrb[0].mxu0
  %699 = vdwg.mxu0
  %vm700 = vcmask 1041408
  %v701 = vsel %vm700, %v612, 0.0
  %v702 = vsel %vm700, %v614, 0.0
  %v703 = vadd.f32 %v701, %v702
  %v704 = vsel %vm700, %v694, 0.0
  %v705 = vadd.f32 %v703, %v704
  %v706 = vsel %vm700, %v696, 0.0
  %v707 = vadd.f32 %v705, %v706
  %708 = vadd.xlane.f32.xlu0 %v707
  %v709 = vpop.xlane.xlu0 %708
  %v710 = vrcp.pop 512.0
  %v711 = vmul.f32 %v709, %v710
  %v712 = vsub.f32 %v612, %v711
  %v713 = vsub.f32 %v614, %v711
  %v714 = vsub.f32 %v694, %v711
  %v715 = vsub.f32 %v696, %v711
  %v716 = vmul.f32 %v712, %v712
  %v717 = vmul.f32 %v713, %v713
  %v718 = vmul.f32 %v714, %v714
  %v719 = vmul.f32 %v715, %v715
  %v720 = vsel %vm700, %v716, 0.0
  %v721 = vsel %vm700, %v717, 0.0
  %v722 = vadd.f32 %v720, %v721
  %v723 = vsel %vm700, %v718, 0.0
  %v724 = vadd.f32 %v722, %v723
  %v725 = vsel %vm700, %v719, 0.0
  %v726 = vadd.f32 %v724, %v725
  %727 = vadd.xlane.f32.xlu0 %v726
  %v728 = vpop.xlane.xlu0 %727
  %v729 = vmul.f32 %v728, %v710
  %v730 = vadd.f32 %v729, 1e-05
  %v731 = vrsqrt.pop %v730
  %v732 = vmul.f32 %v712, %v731
  %v733 = vmul.f32 %v713, %v731
  %v734 = vmul.f32 %v714, %v731
  %v735 = vmul.f32 %v715, %v731
  %v736 = vld [vmem:[%s4] sm:$0xf]
  %v738 = vlaneseq
  %v739 = vshrl.u32 %v738, 7
  %v740 = vsub.s32 0, %v739
  %v741 = vrot.slane %v736, %v740
  %v742 = vlaneseq
  %v743 = vshrl.u32 %v742, 7
  %v744 = vsub.s32 1, %v743
  %v745 = vrot.slane %v736, %v744
  %v746 = vlaneseq
  %v747 = vshrl.u32 %v746, 7
  %v748 = vsub.s32 2, %v747
  %v749 = vrot.slane %v736, %v748
  %v750 = vlaneseq
  %v751 = vshrl.u32 %v750, 7
  %v752 = vsub.s32 3, %v751
  %v753 = vrot.slane %v736, %v752
  %v758 = vmul.f32 %v732, %v741
  %v759 = vmul.f32 %v733, %v745
  %v760 = vmul.f32 %v734, %v749
  %v761 = vmul.f32 %v735, %v753
  %v762 = vld [vmem:[%s5] sm:$0xf]
  %v764 = vlaneseq
  %v765 = vshrl.u32 %v764, 7
  %v766 = vsub.s32 0, %v765
  %v767 = vrot.slane %v762, %v766
  %v768 = vlaneseq
  %v769 = vshrl.u32 %v768, 7
  %v770 = vsub.s32 1, %v769
  %v771 = vrot.slane %v762, %v770
  %v772 = vlaneseq
  %v773 = vshrl.u32 %v772, 7
  %v774 = vsub.s32 2, %v773
  %v775 = vrot.slane %v762, %v774
  %v776 = vlaneseq
  %v777 = vshrl.u32 %v776, 7
  %v778 = vsub.s32 3, %v777
  %v779 = vrot.slane %v762, %v778
  %v784 = vadd.f32 %v758, %v767
  %v785 = vadd.f32 %v759, %v771
  %v786 = vadd.f32 %v760, %v775
  %v787 = vadd.f32 %v761, %v779
  %v788 = vpack.c.bf16 %v784, %v784
  %v789 = vpack.c.bf16 %v785, %v785
  %v790 = vpack.c.bf16 %v786, %v786
  %v791 = vpack.c.bf16 %v787, %v787
  %v792 = vld [vmem:[%s6] sm:$0xff]
  %v793 = vld [vmem:[%s6 + $0x8] sm:$0xff]
  %v794 = vld [vmem:[%s6 + $0x10] sm:$0xff]
  %v795 = vld [vmem:[%s6 + $0x18] sm:$0xff]
  %v796 = vld [vmem:[%s6 + $0x20] sm:$0xff]
  %v797 = vld [vmem:[%s6 + $0x28] sm:$0xff]
  %v798 = vld [vmem:[%s6 + $0x30] sm:$0xff]
  %v799 = vld [vmem:[%s6 + $0x38] sm:$0xff]
  %v800 = vld [vmem:[%s6 + $0x40] sm:$0xff]
  %v801 = vld [vmem:[%s6 + $0x48] sm:$0xff]
  %v802 = vld [vmem:[%s6 + $0x50] sm:$0xff]
  %v803 = vld [vmem:[%s6 + $0x58] sm:$0xff]
  %v804 = vld [vmem:[%s6 + $0x60] sm:$0xff]
  %v805 = vld [vmem:[%s6 + $0x68] sm:$0xff]
  %v806 = vld [vmem:[%s6 + $0x70] sm:$0xff]
  %v807 = vld [vmem:[%s6 + $0x78] sm:$0xff]
  %v808 = vld [vmem:[%s6 + $0x80] sm:$0xff]
  %v809 = vld [vmem:[%s6 + $0x88] sm:$0xff]
  %v810 = vld [vmem:[%s6 + $0x90] sm:$0xff]
  %v811 = vld [vmem:[%s6 + $0x98] sm:$0xff]
  %v812 = vld [vmem:[%s6 + $0xa0] sm:$0xff]
  %v813 = vld [vmem:[%s6 + $0xa8] sm:$0xff]
  %v814 = vld [vmem:[%s6 + $0xb0] sm:$0xff]
  %v815 = vld [vmem:[%s6 + $0xb8] sm:$0xff]
  %v816 = vld [vmem:[%s6 + $0xc0] sm:$0xff]
  %v817 = vld [vmem:[%s6 + $0xc8] sm:$0xff]
  %v818 = vld [vmem:[%s6 + $0xd0] sm:$0xff]
  %v819 = vld [vmem:[%s6 + $0xd8] sm:$0xff]
  %v820 = vld [vmem:[%s6 + $0xe0] sm:$0xff]
  %v821 = vld [vmem:[%s6 + $0xe8] sm:$0xff]
  %v822 = vld [vmem:[%s6 + $0xf0] sm:$0xff]
  %v823 = vld [vmem:[%s6 + $0xf8] sm:$0xff]
  %v824 = vld [vmem:[%s6 + $0x100] sm:$0xff]
  %v825 = vld [vmem:[%s6 + $0x108] sm:$0xff]
  %v826 = vld [vmem:[%s6 + $0x110] sm:$0xff]
  %v827 = vld [vmem:[%s6 + $0x118] sm:$0xff]
  %v828 = vld [vmem:[%s6 + $0x120] sm:$0xff]
  %v829 = vld [vmem:[%s6 + $0x128] sm:$0xff]
  %v830 = vld [vmem:[%s6 + $0x130] sm:$0xff]
  %v831 = vld [vmem:[%s6 + $0x138] sm:$0xff]
  %v832 = vld [vmem:[%s6 + $0x140] sm:$0xff]
  %v833 = vld [vmem:[%s6 + $0x148] sm:$0xff]
  %v834 = vld [vmem:[%s6 + $0x150] sm:$0xff]
  %v835 = vld [vmem:[%s6 + $0x158] sm:$0xff]
  %v836 = vld [vmem:[%s6 + $0x160] sm:$0xff]
  %v837 = vld [vmem:[%s6 + $0x168] sm:$0xff]
  %v838 = vld [vmem:[%s6 + $0x170] sm:$0xff]
  %v839 = vld [vmem:[%s6 + $0x178] sm:$0xff]
  %v840 = vld [vmem:[%s6 + $0x180] sm:$0xff]
  %v841 = vld [vmem:[%s6 + $0x188] sm:$0xff]
  %v842 = vld [vmem:[%s6 + $0x190] sm:$0xff]
  %v843 = vld [vmem:[%s6 + $0x198] sm:$0xff]
  %v844 = vld [vmem:[%s6 + $0x1a0] sm:$0xff]
  %v845 = vld [vmem:[%s6 + $0x1a8] sm:$0xff]
  %v846 = vld [vmem:[%s6 + $0x1b0] sm:$0xff]
  %v847 = vld [vmem:[%s6 + $0x1b8] sm:$0xff]
  %v848 = vld [vmem:[%s6 + $0x1c0] sm:$0xff]
  %v849 = vld [vmem:[%s6 + $0x1c8] sm:$0xff]
  %v850 = vld [vmem:[%s6 + $0x1d0] sm:$0xff]
  %v851 = vld [vmem:[%s6 + $0x1d8] sm:$0xff]
  %v852 = vld [vmem:[%s6 + $0x1e0] sm:$0xff]
  %v853 = vld [vmem:[%s6 + $0x1e8] sm:$0xff]
  %v854 = vld [vmem:[%s6 + $0x1f0] sm:$0xff]
  %v855 = vld [vmem:[%s6 + $0x1f8] sm:$0xff]
  %v856 = vld [vmem:[%s6 + $0x200] sm:$0xff]
  %v857 = vld [vmem:[%s6 + $0x208] sm:$0xff]
  %v858 = vld [vmem:[%s6 + $0x210] sm:$0xff]
  %v859 = vld [vmem:[%s6 + $0x218] sm:$0xff]
  %v860 = vld [vmem:[%s6 + $0x220] sm:$0xff]
  %v861 = vld [vmem:[%s6 + $0x228] sm:$0xff]
  %v862 = vld [vmem:[%s6 + $0x230] sm:$0xff]
  %v863 = vld [vmem:[%s6 + $0x238] sm:$0xff]
  %v864 = vld [vmem:[%s6 + $0x240] sm:$0xff]
  %v865 = vld [vmem:[%s6 + $0x248] sm:$0xff]
  %v866 = vld [vmem:[%s6 + $0x250] sm:$0xff]
  %v867 = vld [vmem:[%s6 + $0x258] sm:$0xff]
  %v868 = vld [vmem:[%s6 + $0x260] sm:$0xff]
  %v869 = vld [vmem:[%s6 + $0x268] sm:$0xff]
  %v870 = vld [vmem:[%s6 + $0x270] sm:$0xff]
  %v871 = vld [vmem:[%s6 + $0x278] sm:$0xff]
  %v872 = vld [vmem:[%s6 + $0x280] sm:$0xff]
  %v873 = vld [vmem:[%s6 + $0x288] sm:$0xff]
  %v874 = vld [vmem:[%s6 + $0x290] sm:$0xff]
  %v875 = vld [vmem:[%s6 + $0x298] sm:$0xff]
  %v876 = vld [vmem:[%s6 + $0x2a0] sm:$0xff]
  %v877 = vld [vmem:[%s6 + $0x2a8] sm:$0xff]
  %v878 = vld [vmem:[%s6 + $0x2b0] sm:$0xff]
  %v879 = vld [vmem:[%s6 + $0x2b8] sm:$0xff]
  %v880 = vld [vmem:[%s6 + $0x2c0] sm:$0xff]
  %v881 = vld [vmem:[%s6 + $0x2c8] sm:$0xff]
  %v882 = vld [vmem:[%s6 + $0x2d0] sm:$0xff]
  %v883 = vld [vmem:[%s6 + $0x2d8] sm:$0xff]
  %v884 = vld [vmem:[%s6 + $0x2e0] sm:$0xff]
  %v885 = vld [vmem:[%s6 + $0x2e8] sm:$0xff]
  %v886 = vld [vmem:[%s6 + $0x2f0] sm:$0xff]
  %v887 = vld [vmem:[%s6 + $0x2f8] sm:$0xff]
  %v888 = vld [vmem:[%s6 + $0x300] sm:$0xff]
  %v889 = vld [vmem:[%s6 + $0x308] sm:$0xff]
  %v890 = vld [vmem:[%s6 + $0x310] sm:$0xff]
  %v891 = vld [vmem:[%s6 + $0x318] sm:$0xff]
  %v892 = vld [vmem:[%s6 + $0x320] sm:$0xff]
  %v893 = vld [vmem:[%s6 + $0x328] sm:$0xff]
  %v894 = vld [vmem:[%s6 + $0x330] sm:$0xff]
  %v895 = vld [vmem:[%s6 + $0x338] sm:$0xff]
  %v896 = vld [vmem:[%s6 + $0x340] sm:$0xff]
  %v897 = vld [vmem:[%s6 + $0x348] sm:$0xff]
  %v898 = vld [vmem:[%s6 + $0x350] sm:$0xff]
  %v899 = vld [vmem:[%s6 + $0x358] sm:$0xff]
  %v900 = vld [vmem:[%s6 + $0x360] sm:$0xff]
  %v901 = vld [vmem:[%s6 + $0x368] sm:$0xff]
  %v902 = vld [vmem:[%s6 + $0x370] sm:$0xff]
  %v903 = vld [vmem:[%s6 + $0x378] sm:$0xff]
  %v904 = vld [vmem:[%s6 + $0x380] sm:$0xff]
  %v905 = vld [vmem:[%s6 + $0x388] sm:$0xff]
  %v906 = vld [vmem:[%s6 + $0x390] sm:$0xff]
  %v907 = vld [vmem:[%s6 + $0x398] sm:$0xff]
  %v908 = vld [vmem:[%s6 + $0x3a0] sm:$0xff]
  %v909 = vld [vmem:[%s6 + $0x3a8] sm:$0xff]
  %v910 = vld [vmem:[%s6 + $0x3b0] sm:$0xff]
  %v911 = vld [vmem:[%s6 + $0x3b8] sm:$0xff]
  %v912 = vld [vmem:[%s6 + $0x3c0] sm:$0xff]
  %v913 = vld [vmem:[%s6 + $0x3c8] sm:$0xff]
  %v914 = vld [vmem:[%s6 + $0x3d0] sm:$0xff]
  %v915 = vld [vmem:[%s6 + $0x3d8] sm:$0xff]
  %v916 = vld [vmem:[%s6 + $0x3e0] sm:$0xff]
  %v917 = vld [vmem:[%s6 + $0x3e8] sm:$0xff]
  %v918 = vld [vmem:[%s6 + $0x3f0] sm:$0xff]
  %v919 = vld [vmem:[%s6 + $0x3f8] sm:$0xff]
  %v920 = vld [vmem:[%s6 + $0x400] sm:$0xff]
  %v921 = vld [vmem:[%s6 + $0x408] sm:$0xff]
  %v922 = vld [vmem:[%s6 + $0x410] sm:$0xff]
  %v923 = vld [vmem:[%s6 + $0x418] sm:$0xff]
  %v924 = vld [vmem:[%s6 + $0x420] sm:$0xff]
  %v925 = vld [vmem:[%s6 + $0x428] sm:$0xff]
  %v926 = vld [vmem:[%s6 + $0x430] sm:$0xff]
  %v927 = vld [vmem:[%s6 + $0x438] sm:$0xff]
  %v928 = vld [vmem:[%s6 + $0x440] sm:$0xff]
  %v929 = vld [vmem:[%s6 + $0x448] sm:$0xff]
  %v930 = vld [vmem:[%s6 + $0x450] sm:$0xff]
  %v931 = vld [vmem:[%s6 + $0x458] sm:$0xff]
  %v932 = vld [vmem:[%s6 + $0x460] sm:$0xff]
  %v933 = vld [vmem:[%s6 + $0x468] sm:$0xff]
  %v934 = vld [vmem:[%s6 + $0x470] sm:$0xff]
  %v935 = vld [vmem:[%s6 + $0x478] sm:$0xff]
  %v936 = vld [vmem:[%s6 + $0x480] sm:$0xff]
  %v937 = vld [vmem:[%s6 + $0x488] sm:$0xff]
  %v938 = vld [vmem:[%s6 + $0x490] sm:$0xff]
  %v939 = vld [vmem:[%s6 + $0x498] sm:$0xff]
  %v940 = vld [vmem:[%s6 + $0x4a0] sm:$0xff]
  %v941 = vld [vmem:[%s6 + $0x4a8] sm:$0xff]
  %v942 = vld [vmem:[%s6 + $0x4b0] sm:$0xff]
  %v943 = vld [vmem:[%s6 + $0x4b8] sm:$0xff]
  %v944 = vld [vmem:[%s6 + $0x4c0] sm:$0xff]
  %v945 = vld [vmem:[%s6 + $0x4c8] sm:$0xff]
  %v946 = vld [vmem:[%s6 + $0x4d0] sm:$0xff]
  %v947 = vld [vmem:[%s6 + $0x4d8] sm:$0xff]
  %v948 = vld [vmem:[%s6 + $0x4e0] sm:$0xff]
  %v949 = vld [vmem:[%s6 + $0x4e8] sm:$0xff]
  %v950 = vld [vmem:[%s6 + $0x4f0] sm:$0xff]
  %v951 = vld [vmem:[%s6 + $0x4f8] sm:$0xff]
  %v952 = vld [vmem:[%s6 + $0x500] sm:$0xff]
  %v953 = vld [vmem:[%s6 + $0x508] sm:$0xff]
  %v954 = vld [vmem:[%s6 + $0x510] sm:$0xff]
  %v955 = vld [vmem:[%s6 + $0x518] sm:$0xff]
  %v956 = vld [vmem:[%s6 + $0x520] sm:$0xff]
  %v957 = vld [vmem:[%s6 + $0x528] sm:$0xff]
  %v958 = vld [vmem:[%s6 + $0x530] sm:$0xff]
  %v959 = vld [vmem:[%s6 + $0x538] sm:$0xff]
  %v960 = vld [vmem:[%s6 + $0x540] sm:$0xff]
  %v961 = vld [vmem:[%s6 + $0x548] sm:$0xff]
  %v962 = vld [vmem:[%s6 + $0x550] sm:$0xff]
  %v963 = vld [vmem:[%s6 + $0x558] sm:$0xff]
  %v964 = vld [vmem:[%s6 + $0x560] sm:$0xff]
  %v965 = vld [vmem:[%s6 + $0x568] sm:$0xff]
  %v966 = vld [vmem:[%s6 + $0x570] sm:$0xff]
  %v967 = vld [vmem:[%s6 + $0x578] sm:$0xff]
  %v968 = vld [vmem:[%s6 + $0x580] sm:$0xff]
  %v969 = vld [vmem:[%s6 + $0x588] sm:$0xff]
  %v970 = vld [vmem:[%s6 + $0x590] sm:$0xff]
  %v971 = vld [vmem:[%s6 + $0x598] sm:$0xff]
  %v972 = vld [vmem:[%s6 + $0x5a0] sm:$0xff]
  %v973 = vld [vmem:[%s6 + $0x5a8] sm:$0xff]
  %v974 = vld [vmem:[%s6 + $0x5b0] sm:$0xff]
  %v975 = vld [vmem:[%s6 + $0x5b8] sm:$0xff]
  %v976 = vld [vmem:[%s6 + $0x5c0] sm:$0xff]
  %v977 = vld [vmem:[%s6 + $0x5c8] sm:$0xff]
  %v978 = vld [vmem:[%s6 + $0x5d0] sm:$0xff]
  %v979 = vld [vmem:[%s6 + $0x5d8] sm:$0xff]
  %v980 = vld [vmem:[%s6 + $0x5e0] sm:$0xff]
  %v981 = vld [vmem:[%s6 + $0x5e8] sm:$0xff]
  %v982 = vld [vmem:[%s6 + $0x5f0] sm:$0xff]
  %v983 = vld [vmem:[%s6 + $0x5f8] sm:$0xff]
  %v984 = vld [vmem:[%s6 + $0x600] sm:$0xff]
  %v985 = vld [vmem:[%s6 + $0x608] sm:$0xff]
  %v986 = vld [vmem:[%s6 + $0x610] sm:$0xff]
  %v987 = vld [vmem:[%s6 + $0x618] sm:$0xff]
  %v988 = vld [vmem:[%s6 + $0x620] sm:$0xff]
  %v989 = vld [vmem:[%s6 + $0x628] sm:$0xff]
  %v990 = vld [vmem:[%s6 + $0x630] sm:$0xff]
  %v991 = vld [vmem:[%s6 + $0x638] sm:$0xff]
  %v992 = vld [vmem:[%s6 + $0x640] sm:$0xff]
  %v993 = vld [vmem:[%s6 + $0x648] sm:$0xff]
  %v994 = vld [vmem:[%s6 + $0x650] sm:$0xff]
  %v995 = vld [vmem:[%s6 + $0x658] sm:$0xff]
  %v996 = vld [vmem:[%s6 + $0x660] sm:$0xff]
  %v997 = vld [vmem:[%s6 + $0x668] sm:$0xff]
  %v998 = vld [vmem:[%s6 + $0x670] sm:$0xff]
  %v999 = vld [vmem:[%s6 + $0x678] sm:$0xff]
  %v1000 = vld [vmem:[%s6 + $0x680] sm:$0xff]
  %v1001 = vld [vmem:[%s6 + $0x688] sm:$0xff]
  %v1002 = vld [vmem:[%s6 + $0x690] sm:$0xff]
  %v1003 = vld [vmem:[%s6 + $0x698] sm:$0xff]
  %v1004 = vld [vmem:[%s6 + $0x6a0] sm:$0xff]
  %v1005 = vld [vmem:[%s6 + $0x6a8] sm:$0xff]
  %v1006 = vld [vmem:[%s6 + $0x6b0] sm:$0xff]
  %v1007 = vld [vmem:[%s6 + $0x6b8] sm:$0xff]
  %v1008 = vld [vmem:[%s6 + $0x6c0] sm:$0xff]
  %v1009 = vld [vmem:[%s6 + $0x6c8] sm:$0xff]
  %v1010 = vld [vmem:[%s6 + $0x6d0] sm:$0xff]
  %v1011 = vld [vmem:[%s6 + $0x6d8] sm:$0xff]
  %v1012 = vld [vmem:[%s6 + $0x6e0] sm:$0xff]
  %v1013 = vld [vmem:[%s6 + $0x6e8] sm:$0xff]
  %v1014 = vld [vmem:[%s6 + $0x6f0] sm:$0xff]
  %v1015 = vld [vmem:[%s6 + $0x6f8] sm:$0xff]
  %v1016 = vld [vmem:[%s6 + $0x700] sm:$0xff]
  %v1017 = vld [vmem:[%s6 + $0x708] sm:$0xff]
  %v1018 = vld [vmem:[%s6 + $0x710] sm:$0xff]
  %v1019 = vld [vmem:[%s6 + $0x718] sm:$0xff]
  %v1020 = vld [vmem:[%s6 + $0x720] sm:$0xff]
  %v1021 = vld [vmem:[%s6 + $0x728] sm:$0xff]
  %v1022 = vld [vmem:[%s6 + $0x730] sm:$0xff]
  %v1023 = vld [vmem:[%s6 + $0x738] sm:$0xff]
  %v1024 = vld [vmem:[%s6 + $0x740] sm:$0xff]
  %v1025 = vld [vmem:[%s6 + $0x748] sm:$0xff]
  %v1026 = vld [vmem:[%s6 + $0x750] sm:$0xff]
  %v1027 = vld [vmem:[%s6 + $0x758] sm:$0xff]
  %v1028 = vld [vmem:[%s6 + $0x760] sm:$0xff]
  %v1029 = vld [vmem:[%s6 + $0x768] sm:$0xff]
  %v1030 = vld [vmem:[%s6 + $0x770] sm:$0xff]
  %v1031 = vld [vmem:[%s6 + $0x778] sm:$0xff]
  %v1032 = vld [vmem:[%s6 + $0x780] sm:$0xff]
  %v1033 = vld [vmem:[%s6 + $0x788] sm:$0xff]
  %v1034 = vld [vmem:[%s6 + $0x790] sm:$0xff]
  %v1035 = vld [vmem:[%s6 + $0x798] sm:$0xff]
  %v1036 = vld [vmem:[%s6 + $0x7a0] sm:$0xff]
  %v1037 = vld [vmem:[%s6 + $0x7a8] sm:$0xff]
  %v1038 = vld [vmem:[%s6 + $0x7b0] sm:$0xff]
  %v1039 = vld [vmem:[%s6 + $0x7b8] sm:$0xff]
  %v1040 = vld [vmem:[%s6 + $0x7c0] sm:$0xff]
  %v1041 = vld [vmem:[%s6 + $0x7c8] sm:$0xff]
  %v1042 = vld [vmem:[%s6 + $0x7d0] sm:$0xff]
  %v1043 = vld [vmem:[%s6 + $0x7d8] sm:$0xff]
  %v1044 = vld [vmem:[%s6 + $0x7e0] sm:$0xff]
  %v1045 = vld [vmem:[%s6 + $0x7e8] sm:$0xff]
  %v1046 = vld [vmem:[%s6 + $0x7f0] sm:$0xff]
  %v1047 = vld [vmem:[%s6 + $0x7f8] sm:$0xff]
  %v1048 = vld [vmem:[%s1] sm:$0x1]
  %v1049 = vld [vmem:[%s7] sm:$0xff]
  %v1050 = vld [vmem:[%s7 + $0x8] sm:$0xff]
  %v1053 = vcombine.high %v1049, %v1049
  %v1055 = vunpack.c.l.s4 1983009808
  %v1056 = vunpack.c.0.s8 %v1055
  %v1057 = vlaneseq
  %v1058 = vshrl.u32 %v1057, 7
  %v1059 = vsub.s32 %v1056, %v1058
  %v1060 = vrot.slane %v1049, %v1059
  %v1062 = vunpack.c.l.s4 1983009808
  %v1063 = vunpack.c.0.s8 %v1062
  %v1064 = vlaneseq
  %v1065 = vshrl.u32 %v1064, 7
  %v1066 = vsub.s32 %v1063, %v1065
  %v1067 = vrot.slane %v1053, %v1066
  %v1068 = vcombine.high %v1060, %v1060
  %v1069 = vcombine.high %v1067, %v1067
  %v1070 = vcombine.high %v1050, %v1050
  %v1072 = vunpack.c.l.s4 1983009808
  %v1073 = vunpack.c.0.s8 %v1072
  %v1074 = vlaneseq
  %v1075 = vshrl.u32 %v1074, 7
  %v1076 = vsub.s32 %v1073, %v1075
  %v1077 = vrot.slane %v1050, %v1076
  %v1079 = vunpack.c.l.s4 1983009808
  %v1080 = vunpack.c.0.s8 %v1079
  %v1081 = vlaneseq
  %v1082 = vshrl.u32 %v1081, 7
  %v1083 = vsub.s32 %v1080, %v1082
  %v1084 = vrot.slane %v1070, %v1083
  %v1085 = vcombine.high %v1077, %v1077
  %v1086 = vcombine.high %v1084, %v1084
  %vm1087 = vcmask 31744
  %v1089 = vsel %vm1087, %v1048, 0
  %v1092 = vsel %vm700, %v1060, 0
  %v1095 = vsel %vm700, %v1068, 0
  %v1098 = vsel %vm700, %v1067, 0
  %v1101 = vsel %vm700, %v1069, 0
  %v1104 = vsel %vm700, %v1077, 0
  %v1107 = vsel %vm700, %v1085, 0
  %v1110 = vsel %vm700, %v1084, 0
  %v1113 = vsel %vm700, %v1086, 0
  %1115 = vmatprep.subr.bf16.mxu0 %v1095
  %1116 = vmatpush1.bf16.msra.mxu0 %v1092
  %1117 = vmatprep.subr.bf16.mxu0 0
  %1118 = vmatpush1.bf16.msra.mxu0 0
  %1119 = vmatprep.subr.bf16.mxu0 0
  %1120 = vmatpush1.bf16.msra.mxu0 0
  %1121 = vmatprep.subr.bf16.mxu0 0
  %1122 = vmatpush1.bf16.msra.mxu0 0
  %1123 = vmatprep.subr.bf16.mxu0 0
  %1124 = vmatpush1.bf16.msra.mxu0 0
  %1125 = vmatprep.subr.bf16.mxu0 0
  %1126 = vmatpush1.bf16.msra.mxu0 0
  %1127 = vmatprep.subr.bf16.mxu0 0
  %1128 = vmatpush1.bf16.msra.mxu0 0
  %1129 = vmatprep.subr.bf16.mxu0 0
  %1130 = vmatpush1.bf16.msra.mxu0 0
  %1131 = vmatprep.subr.bf16.mxu0 0
  %1132 = vmatpush1.bf16.msra.mxu0 0
  %1133 = vmatprep.subr.bf16.mxu0 0
  %1134 = vmatpush1.bf16.msra.mxu0 0
  %1135 = vmatprep.subr.bf16.mxu0 0
  %1136 = vmatpush1.bf16.msra.mxu0 0
  %1137 = vmatprep.subr.bf16.mxu0 0
  %1138 = vmatpush1.bf16.msra.mxu0 0
  %1139 = vmatprep.subr.bf16.mxu0 0
  %1140 = vmatpush1.bf16.msra.mxu0 0
  %1141 = vmatprep.subr.bf16.mxu0 0
  %1142 = vmatpush1.bf16.msra.mxu0 0
  %1143 = vmatprep.subr.bf16.mxu0 0
  %1144 = vmatpush1.bf16.msra.mxu0 0
  %1145 = vmatprep.subr.bf16.mxu0 0
  %1146 = vmatpush1.bf16.msra.mxu0 0
  %1147 = vmatprep.mubr.bf16.mxu0 0
  %1148 = vmatmul.mubr.bf16.gmra.mrb[0].mxu0 %v1089
  %v1149 = vpop.f32.mrb[0].mxu0
  %v1150 = vadd.f32 0.0, %v1149
  %v1151 = vpop.f32.mrb[0].mxu0
  %v1152 = vadd.f32 0.0, %v1151
  %v1153 = vpop.f32.mrb[0].mxu0
  %v1154 = vpop.f32.mrb[0].mxu0
  %1155 = vdwg.mxu0
  %1156 = vmatprep.subr.bf16.mxu0 %v1101
  %1157 = vmatpush1.bf16.msra.mxu0 %v1098
  %1158 = vmatprep.subr.bf16.mxu0 0
  %1159 = vmatpush1.bf16.msra.mxu0 0
  %1160 = vmatprep.subr.bf16.mxu0 0
  %1161 = vmatpush1.bf16.msra.mxu0 0
  %1162 = vmatprep.subr.bf16.mxu0 0
  %1163 = vmatpush1.bf16.msra.mxu0 0
  %1164 = vmatprep.subr.bf16.mxu0 0
  %1165 = vmatpush1.bf16.msra.mxu0 0
  %1166 = vmatprep.subr.bf16.mxu0 0
  %1167 = vmatpush1.bf16.msra.mxu0 0
  %1168 = vmatprep.subr.bf16.mxu0 0
  %1169 = vmatpush1.bf16.msra.mxu0 0
  %1170 = vmatprep.subr.bf16.mxu0 0
  %1171 = vmatpush1.bf16.msra.mxu0 0
  %1172 = vmatprep.subr.bf16.mxu0 0
  %1173 = vmatpush1.bf16.msra.mxu0 0
  %1174 = vmatprep.subr.bf16.mxu0 0
  %1175 = vmatpush1.bf16.msra.mxu0 0
  %1176 = vmatprep.subr.bf16.mxu0 0
  %1177 = vmatpush1.bf16.msra.mxu0 0
  %1178 = vmatprep.subr.bf16.mxu0 0
  %1179 = vmatpush1.bf16.msra.mxu0 0
  %1180 = vmatprep.subr.bf16.mxu0 0
  %1181 = vmatpush1.bf16.msra.mxu0 0
  %1182 = vmatprep.subr.bf16.mxu0 0
  %1183 = vmatpush1.bf16.msra.mxu0 0
  %1184 = vmatprep.subr.bf16.mxu0 0
  %1185 = vmatpush1.bf16.msra.mxu0 0
  %1186 = vmatprep.subr.bf16.mxu0 0
  %1187 = vmatpush1.bf16.msra.mxu0 0
  %1188 = vmatprep.mubr.bf16.mxu0 0
  %1189 = vmatmul.mubr.bf16.gmra.mrb[0].mxu0 %v1089
  %v1190 = vpop.f32.mrb[0].mxu0
  %v1191 = vadd.f32 0.0, %v1190
  %v1192 = vpop.f32.mrb[0].mxu0
  %v1193 = vadd.f32 0.0, %v1192
  %v1194 = vpop.f32.mrb[0].mxu0
  %v1195 = vpop.f32.mrb[0].mxu0
  %1196 = vdwg.mxu0
  %1197 = vmatprep.subr.bf16.mxu0 %v1107
  %1198 = vmatpush1.bf16.msra.mxu0 %v1104
  %1199 = vmatprep.subr.bf16.mxu0 0
  %1200 = vmatpush1.bf16.msra.mxu0 0
  %1201 = vmatprep.subr.bf16.mxu0 0
  %1202 = vmatpush1.bf16.msra.mxu0 0
  %1203 = vmatprep.subr.bf16.mxu0 0
  %1204 = vmatpush1.bf16.msra.mxu0 0
  %1205 = vmatprep.subr.bf16.mxu0 0
  %1206 = vmatpush1.bf16.msra.mxu0 0
  %1207 = vmatprep.subr.bf16.mxu0 0
  %1208 = vmatpush1.bf16.msra.mxu0 0
  %1209 = vmatprep.subr.bf16.mxu0 0
  %1210 = vmatpush1.bf16.msra.mxu0 0
  %1211 = vmatprep.subr.bf16.mxu0 0
  %1212 = vmatpush1.bf16.msra.mxu0 0
  %1213 = vmatprep.subr.bf16.mxu0 0
  %1214 = vmatpush1.bf16.msra.mxu0 0
  %1215 = vmatprep.subr.bf16.mxu0 0
  %1216 = vmatpush1.bf16.msra.mxu0 0
  %1217 = vmatprep.subr.bf16.mxu0 0
  %1218 = vmatpush1.bf16.msra.mxu0 0
  %1219 = vmatprep.subr.bf16.mxu0 0
  %1220 = vmatpush1.bf16.msra.mxu0 0
  %1221 = vmatprep.subr.bf16.mxu0 0
  %1222 = vmatpush1.bf16.msra.mxu0 0
  %1223 = vmatprep.subr.bf16.mxu0 0
  %1224 = vmatpush1.bf16.msra.mxu0 0
  %1225 = vmatprep.subr.bf16.mxu0 0
  %1226 = vmatpush1.bf16.msra.mxu0 0
  %1227 = vmatprep.subr.bf16.mxu0 0
  %1228 = vmatpush1.bf16.msra.mxu0 0
  %1229 = vmatprep.mubr.bf16.mxu0 0
  %1230 = vmatmul.mubr.bf16.gmra.mrb[0].mxu0 %v1089
  %v1231 = vpop.f32.mrb[0].mxu0
  %v1232 = vadd.f32 0.0, %v1231
  %v1233 = vpop.f32.mrb[0].mxu0
  %v1234 = vadd.f32 0.0, %v1233
  %v1235 = vpop.f32.mrb[0].mxu0
  %v1236 = vpop.f32.mrb[0].mxu0
  %1237 = vdwg.mxu0
  %1238 = vmatprep.subr.bf16.mxu0 %v1113
  %1239 = vmatpush1.bf16.msra.mxu0 %v1110
  %1240 = vmatprep.subr.bf16.mxu0 0
  %1241 = vmatpush1.bf16.msra.mxu0 0
  %1242 = vmatprep.subr.bf16.mxu0 0
  %1243 = vmatpush1.bf16.msra.mxu0 0
  %1244 = vmatprep.subr.bf16.mxu0 0
  %1245 = vmatpush1.bf16.msra.mxu0 0
  %1246 = vmatprep.subr.bf16.mxu0 0
  %1247 = vmatpush1.bf16.msra.mxu0 0
  %1248 = vmatprep.subr.bf16.mxu0 0
  %1249 = vmatpush1.bf16.msra.mxu0 0
  %1250 = vmatprep.subr.bf16.mxu0 0
  %1251 = vmatpush1.bf16.msra.mxu0 0
  %1252 = vmatprep.subr.bf16.mxu0 0
  %1253 = vmatpush1.bf16.msra.mxu0 0
  %1254 = vmatprep.subr.bf16.mxu0 0
  %1255 = vmatpush1.bf16.msra.mxu0 0
  %1256 = vmatprep.subr.bf16.mxu0 0
  %1257 = vmatpush1.bf16.msra.mxu0 0
  %1258 = vmatprep.subr.bf16.mxu0 0
  %1259 = vmatpush1.bf16.msra.mxu0 0
  %1260 = vmatprep.subr.bf16.mxu0 0
  %1261 = vmatpush1.bf16.msra.mxu0 0
  %1262 = vmatprep.subr.bf16.mxu0 0
  %1263 = vmatpush1.bf16.msra.mxu0 0
  %1264 = vmatprep.subr.bf16.mxu0 0
  %1265 = vmatpush1.bf16.msra.mxu0 0
  %1266 = vmatprep.subr.bf16.mxu0 0
  %1267 = vmatpush1.bf16.msra.mxu0 0
  %1268 = vmatprep.subr.bf16.mxu0 0
  %1269 = vmatpush1.bf16.msra.mxu0 0
  %1270 = vmatprep.mubr.bf16.mxu0 0
  %1271 = vmatmul.mubr.bf16.gmra.mrb[0].mxu0 %v1089
  %v1272 = vpop.f32.mrb[0].mxu0
  %v1273 = vadd.f32 0.0, %v1272
  %v1274 = vpop.f32.mrb[0].mxu0
  %v1275 = vadd.f32 0.0, %v1274
  %v1276 = vpop.f32.mrb[0].mxu0
  %v1277 = vpop.f32.mrb[0].mxu0
  %1278 = vdwg.mxu0
  %v1535 = vunpack.c.l.b16 %v792
  %v1536 = vunpack.c.h.b16 %v792
  %v1537 = vunpack.c.l.b16 %v793
  %v1538 = vunpack.c.h.b16 %v793
  %v1539 = vunpack.c.l.b16 %v794
  %v1540 = vunpack.c.h.b16 %v794
  %v1541 = vunpack.c.l.b16 %v795
  %v1542 = vunpack.c.h.b16 %v795
  %v1543 = vunpack.c.l.b16 %v796
  %v1544 = vunpack.c.h.b16 %v796
  %v1545 = vunpack.c.l.b16 %v797
  %v1546 = vunpack.c.h.b16 %v797
  %v1547 = vunpack.c.l.b16 %v798
  %v1548 = vunpack.c.h.b16 %v798
  %v1549 = vunpack.c.l.b16 %v799
  %v1550 = vunpack.c.h.b16 %v799
  %v1551 = vunpack.c.l.b16 %v800
  %v1552 = vunpack.c.h.b16 %v800
  %v1553 = vunpack.c.l.b16 %v801
  %v1554 = vunpack.c.h.b16 %v801
  %v1555 = vunpack.c.l.b16 %v802
  %v1556 = vunpack.c.h.b16 %v802
  %v1557 = vunpack.c.l.b16 %v803
  %v1558 = vunpack.c.h.b16 %v803
  %v1559 = vunpack.c.l.b16 %v804
  %v1560 = vunpack.c.h.b16 %v804
  %v1561 = vunpack.c.l.b16 %v805
  %v1562 = vunpack.c.h.b16 %v805
  %v1563 = vunpack.c.l.b16 %v806
  %v1564 = vunpack.c.h.b16 %v806
  %v1565 = vunpack.c.l.b16 %v807
  %v1566 = vunpack.c.h.b16 %v807
  %v1567 = vunpack.c.l.b16 %v808
  %v1568 = vunpack.c.h.b16 %v808
  %v1569 = vunpack.c.l.b16 %v809
  %v1570 = vunpack.c.h.b16 %v809
  %v1571 = vunpack.c.l.b16 %v810
  %v1572 = vunpack.c.h.b16 %v810
  %v1573 = vunpack.c.l.b16 %v811
  %v1574 = vunpack.c.h.b16 %v811
  %v1575 = vunpack.c.l.b16 %v812
  %v1576 = vunpack.c.h.b16 %v812
  %v1577 = vunpack.c.l.b16 %v813
  %v1578 = vunpack.c.h.b16 %v813
  %v1579 = vunpack.c.l.b16 %v814
  %v1580 = vunpack.c.h.b16 %v814
  %v1581 = vunpack.c.l.b16 %v815
  %v1582 = vunpack.c.h.b16 %v815
  %v1583 = vunpack.c.l.b16 %v816
  %v1584 = vunpack.c.h.b16 %v816
  %v1585 = vunpack.c.l.b16 %v817
  %v1586 = vunpack.c.h.b16 %v817
  %v1587 = vunpack.c.l.b16 %v818
  %v1588 = vunpack.c.h.b16 %v818
  %v1589 = vunpack.c.l.b16 %v819
  %v1590 = vunpack.c.h.b16 %v819
  %v1591 = vunpack.c.l.b16 %v820
  %v1592 = vunpack.c.h.b16 %v820
  %v1593 = vunpack.c.l.b16 %v821
  %v1594 = vunpack.c.h.b16 %v821
  %v1595 = vunpack.c.l.b16 %v822
  %v1596 = vunpack.c.h.b16 %v822
  %v1597 = vunpack.c.l.b16 %v823
  %v1598 = vunpack.c.h.b16 %v823
  %v1599 = vunpack.c.l.b16 %v824
  %v1600 = vunpack.c.h.b16 %v824
  %v1601 = vunpack.c.l.b16 %v825
  %v1602 = vunpack.c.h.b16 %v825
  %v1603 = vunpack.c.l.b16 %v826
  %v1604 = vunpack.c.h.b16 %v826
  %v1605 = vunpack.c.l.b16 %v827
  %v1606 = vunpack.c.h.b16 %v827
  %v1607 = vunpack.c.l.b16 %v828
  %v1608 = vunpack.c.h.b16 %v828
  %v1609 = vunpack.c.l.b16 %v829
  %v1610 = vunpack.c.h.b16 %v829
  %v1611 = vunpack.c.l.b16 %v830
  %v1612 = vunpack.c.h.b16 %v830
  %v1613 = vunpack.c.l.b16 %v831
  %v1614 = vunpack.c.h.b16 %v831
  %v1615 = vunpack.c.l.b16 %v832
  %v1616 = vunpack.c.h.b16 %v832
  %v1617 = vunpack.c.l.b16 %v833
  %v1618 = vunpack.c.h.b16 %v833
  %v1619 = vunpack.c.l.b16 %v834
  %v1620 = vunpack.c.h.b16 %v834
  %v1621 = vunpack.c.l.b16 %v835
  %v1622 = vunpack.c.h.b16 %v835
  %v1623 = vunpack.c.l.b16 %v836
  %v1624 = vunpack.c.h.b16 %v836
  %v1625 = vunpack.c.l.b16 %v837
  %v1626 = vunpack.c.h.b16 %v837
  %v1627 = vunpack.c.l.b16 %v838
  %v1628 = vunpack.c.h.b16 %v838
  %v1629 = vunpack.c.l.b16 %v839
  %v1630 = vunpack.c.h.b16 %v839
  %v1631 = vunpack.c.l.b16 %v840
  %v1632 = vunpack.c.h.b16 %v840
  %v1633 = vunpack.c.l.b16 %v841
  %v1634 = vunpack.c.h.b16 %v841
  %v1635 = vunpack.c.l.b16 %v842
  %v1636 = vunpack.c.h.b16 %v842
  %v1637 = vunpack.c.l.b16 %v843
  %v1638 = vunpack.c.h.b16 %v843
  %v1639 = vunpack.c.l.b16 %v844
  %v1640 = vunpack.c.h.b16 %v844
  %v1641 = vunpack.c.l.b16 %v845
  %v1642 = vunpack.c.h.b16 %v845
  %v1643 = vunpack.c.l.b16 %v846
  %v1644 = vunpack.c.h.b16 %v846
  %v1645 = vunpack.c.l.b16 %v847
  %v1646 = vunpack.c.h.b16 %v847
  %v1647 = vunpack.c.l.b16 %v848
  %v1648 = vunpack.c.h.b16 %v848
  %v1649 = vunpack.c.l.b16 %v849
  %v1650 = vunpack.c.h.b16 %v849
  %v1651 = vunpack.c.l.b16 %v850
  %v1652 = vunpack.c.h.b16 %v850
  %v1653 = vunpack.c.l.b16 %v851
  %v1654 = vunpack.c.h.b16 %v851
  %v1655 = vunpack.c.l.b16 %v852
  %v1656 = vunpack.c.h.b16 %v852
  %v1657 = vunpack.c.l.b16 %v853
  %v1658 = vunpack.c.h.b16 %v853
  %v1659 = vunpack.c.l.b16 %v854
  %v1660 = vunpack.c.h.b16 %v854
  %v1661 = vunpack.c.l.b16 %v855
  %v1662 = vunpack.c.h.b16 %v855
  %v1663 = vunpack.c.l.b16 %v856
  %v1664 = vunpack.c.h.b16 %v856
  %v1665 = vunpack.c.l.b16 %v857
  %v1666 = vunpack.c.h.b16 %v857
  %v1667 = vunpack.c.l.b16 %v858
  %v1668 = vunpack.c.h.b16 %v858
  %v1669 = vunpack.c.l.b16 %v859
  %v1670 = vunpack.c.h.b16 %v859
  %v1671 = vunpack.c.l.b16 %v860
  %v1672 = vunpack.c.h.b16 %v860
  %v1673 = vunpack.c.l.b16 %v861
  %v1674 = vunpack.c.h.b16 %v861
  %v1675 = vunpack.c.l.b16 %v862
  %v1676 = vunpack.c.h.b16 %v862
  %v1677 = vunpack.c.l.b16 %v863
  %v1678 = vunpack.c.h.b16 %v863
  %v1679 = vunpack.c.l.b16 %v864
  %v1680 = vunpack.c.h.b16 %v864
  %v1681 = vunpack.c.l.b16 %v865
  %v1682 = vunpack.c.h.b16 %v865
  %v1683 = vunpack.c.l.b16 %v866
  %v1684 = vunpack.c.h.b16 %v866
  %v1685 = vunpack.c.l.b16 %v867
  %v1686 = vunpack.c.h.b16 %v867
  %v1687 = vunpack.c.l.b16 %v868
  %v1688 = vunpack.c.h.b16 %v868
  %v1689 = vunpack.c.l.b16 %v869
  %v1690 = vunpack.c.h.b16 %v869
  %v1691 = vunpack.c.l.b16 %v870
  %v1692 = vunpack.c.h.b16 %v870
  %v1693 = vunpack.c.l.b16 %v871
  %v1694 = vunpack.c.h.b16 %v871
  %v1695 = vunpack.c.l.b16 %v872
  %v1696 = vunpack.c.h.b16 %v872
  %v1697 = vunpack.c.l.b16 %v873
  %v1698 = vunpack.c.h.b16 %v873
  %v1699 = vunpack.c.l.b16 %v874
  %v1700 = vunpack.c.h.b16 %v874
  %v1701 = vunpack.c.l.b16 %v875
  %v1702 = vunpack.c.h.b16 %v875
  %v1703 = vunpack.c.l.b16 %v876
  %v1704 = vunpack.c.h.b16 %v876
  %v1705 = vunpack.c.l.b16 %v877
  %v1706 = vunpack.c.h.b16 %v877
  %v1707 = vunpack.c.l.b16 %v878
  %v1708 = vunpack.c.h.b16 %v878
  %v1709 = vunpack.c.l.b16 %v879
  %v1710 = vunpack.c.h.b16 %v879
  %v1711 = vunpack.c.l.b16 %v880
  %v1712 = vunpack.c.h.b16 %v880
  %v1713 = vunpack.c.l.b16 %v881
  %v1714 = vunpack.c.h.b16 %v881
  %v1715 = vunpack.c.l.b16 %v882
  %v1716 = vunpack.c.h.b16 %v882
  %v1717 = vunpack.c.l.b16 %v883
  %v1718 = vunpack.c.h.b16 %v883
  %v1719 = vunpack.c.l.b16 %v884
  %v1720 = vunpack.c.h.b16 %v884
  %v1721 = vunpack.c.l.b16 %v885
  %v1722 = vunpack.c.h.b16 %v885
  %v1723 = vunpack.c.l.b16 %v886
  %v1724 = vunpack.c.h.b16 %v886
  %v1725 = vunpack.c.l.b16 %v887
  %v1726 = vunpack.c.h.b16 %v887
  %v1727 = vunpack.c.l.b16 %v888
  %v1728 = vunpack.c.h.b16 %v888
  %v1729 = vunpack.c.l.b16 %v889
  %v1730 = vunpack.c.h.b16 %v889
  %v1731 = vunpack.c.l.b16 %v890
  %v1732 = vunpack.c.h.b16 %v890
  %v1733 = vunpack.c.l.b16 %v891
  %v1734 = vunpack.c.h.b16 %v891
  %v1735 = vunpack.c.l.b16 %v892
  %v1736 = vunpack.c.h.b16 %v892
  %v1737 = vunpack.c.l.b16 %v893
  %v1738 = vunpack.c.h.b16 %v893
  %v1739 = vunpack.c.l.b16 %v894
  %v1740 = vunpack.c.h.b16 %v894
  %v1741 = vunpack.c.l.b16 %v895
  %v1742 = vunpack.c.h.b16 %v895
  %v1743 = vunpack.c.l.b16 %v896
  %v1744 = vunpack.c.h.b16 %v896
  %v1745 = vunpack.c.l.b16 %v897
  %v1746 = vunpack.c.h.b16 %v897
  %v1747 = vunpack.c.l.b16 %v898
  %v1748 = vunpack.c.h.b16 %v898
  %v1749 = vunpack.c.l.b16 %v899
  %v1750 = vunpack.c.h.b16 %v899
  %v1751 = vunpack.c.l.b16 %v900
  %v1752 = vunpack.c.h.b16 %v900
  %v1753 = vunpack.c.l.b16 %v901
  %v1754 = vunpack.c.h.b16 %v901
  %v1755 = vunpack.c.l.b16 %v902
  %v1756 = vunpack.c.h.b16 %v902
  %v1757 = vunpack.c.l.b16 %v903
  %v1758 = vunpack.c.h.b16 %v903
  %v1759 = vunpack.c.l.b16 %v904
  %v1760 = vunpack.c.h.b16 %v904
  %v1761 = vunpack.c.l.b16 %v905
  %v1762 = vunpack.c.h.b16 %v905
  %v1763 = vunpack.c.l.b16 %v906
  %v1764 = vunpack.c.h.b16 %v906
  %v1765 = vunpack.c.l.b16 %v907
  %v1766 = vunpack.c.h.b16 %v907
  %v1767 = vunpack.c.l.b16 %v908
  %v1768 = vunpack.c.h.b16 %v908
  %v1769 = vunpack.c.l.b16 %v909
  %v1770 = vunpack.c.h.b16 %v909
  %v1771 = vunpack.c.l.b16 %v910
  %v1772 = vunpack.c.h.b16 %v910
  %v1773 = vunpack.c.l.b16 %v911
  %v1774 = vunpack.c.h.b16 %v911
  %v1775 = vunpack.c.l.b16 %v912
  %v1776 = vunpack.c.h.b16 %v912
  %v1777 = vunpack.c.l.b16 %v913
  %v1778 = vunpack.c.h.b16 %v913
  %v1779 = vunpack.c.l.b16 %v914
  %v1780 = vunpack.c.h.b16 %v914
  %v1781 = vunpack.c.l.b16 %v915
  %v1782 = vunpack.c.h.b16 %v915
  %v1783 = vunpack.c.l.b16 %v916
  %v1784 = vunpack.c.h.b16 %v916
  %v1785 = vunpack.c.l.b16 %v917
  %v1786 = vunpack.c.h.b16 %v917
  %v1787 = vunpack.c.l.b16 %v918
  %v1788 = vunpack.c.h.b16 %v918
  %v1789 = vunpack.c.l.b16 %v919
  %v1790 = vunpack.c.h.b16 %v919
  %v1791 = vunpack.c.l.b16 %v920
  %v1792 = vunpack.c.h.b16 %v920
  %v1793 = vunpack.c.l.b16 %v921
  %v1794 = vunpack.c.h.b16 %v921
  %v1795 = vunpack.c.l.b16 %v922
  %v1796 = vunpack.c.h.b16 %v922
  %v1797 = vunpack.c.l.b16 %v923
  %v1798 = vunpack.c.h.b16 %v923
  %v1799 = vunpack.c.l.b16 %v924
  %v1800 = vunpack.c.h.b16 %v924
  %v1801 = vunpack.c.l.b16 %v925
  %v1802 = vunpack.c.h.b16 %v925
  %v1803 = vunpack.c.l.b16 %v926
  %v1804 = vunpack.c.h.b16 %v926
  %v1805 = vunpack.c.l.b16 %v927
  %v1806 = vunpack.c.h.b16 %v927
  %v1807 = vunpack.c.l.b16 %v928
  %v1808 = vunpack.c.h.b16 %v928
  %v1809 = vunpack.c.l.b16 %v929
  %v1810 = vunpack.c.h.b16 %v929
  %v1811 = vunpack.c.l.b16 %v930
  %v1812 = vunpack.c.h.b16 %v930
  %v1813 = vunpack.c.l.b16 %v931
  %v1814 = vunpack.c.h.b16 %v931
  %v1815 = vunpack.c.l.b16 %v932
  %v1816 = vunpack.c.h.b16 %v932
  %v1817 = vunpack.c.l.b16 %v933
  %v1818 = vunpack.c.h.b16 %v933
  %v1819 = vunpack.c.l.b16 %v934
  %v1820 = vunpack.c.h.b16 %v934
  %v1821 = vunpack.c.l.b16 %v935
  %v1822 = vunpack.c.h.b16 %v935
  %v1823 = vunpack.c.l.b16 %v936
  %v1824 = vunpack.c.h.b16 %v936
  %v1825 = vunpack.c.l.b16 %v937
  %v1826 = vunpack.c.h.b16 %v937
  %v1827 = vunpack.c.l.b16 %v938
  %v1828 = vunpack.c.h.b16 %v938
  %v1829 = vunpack.c.l.b16 %v939
  %v1830 = vunpack.c.h.b16 %v939
  %v1831 = vunpack.c.l.b16 %v940
  %v1832 = vunpack.c.h.b16 %v940
  %v1833 = vunpack.c.l.b16 %v941
  %v1834 = vunpack.c.h.b16 %v941
  %v1835 = vunpack.c.l.b16 %v942
  %v1836 = vunpack.c.h.b16 %v942
  %v1837 = vunpack.c.l.b16 %v943
  %v1838 = vunpack.c.h.b16 %v943
  %v1839 = vunpack.c.l.b16 %v944
  %v1840 = vunpack.c.h.b16 %v944
  %v1841 = vunpack.c.l.b16 %v945
  %v1842 = vunpack.c.h.b16 %v945
  %v1843 = vunpack.c.l.b16 %v946
  %v1844 = vunpack.c.h.b16 %v946
  %v1845 = vunpack.c.l.b16 %v947
  %v1846 = vunpack.c.h.b16 %v947
  %v1847 = vunpack.c.l.b16 %v948
  %v1848 = vunpack.c.h.b16 %v948
  %v1849 = vunpack.c.l.b16 %v949
  %v1850 = vunpack.c.h.b16 %v949
  %v1851 = vunpack.c.l.b16 %v950
  %v1852 = vunpack.c.h.b16 %v950
  %v1853 = vunpack.c.l.b16 %v951
  %v1854 = vunpack.c.h.b16 %v951
  %v1855 = vunpack.c.l.b16 %v952
  %v1856 = vunpack.c.h.b16 %v952
  %v1857 = vunpack.c.l.b16 %v953
  %v1858 = vunpack.c.h.b16 %v953
  %v1859 = vunpack.c.l.b16 %v954
  %v1860 = vunpack.c.h.b16 %v954
  %v1861 = vunpack.c.l.b16 %v955
  %v1862 = vunpack.c.h.b16 %v955
  %v1863 = vunpack.c.l.b16 %v956
  %v1864 = vunpack.c.h.b16 %v956
  %v1865 = vunpack.c.l.b16 %v957
  %v1866 = vunpack.c.h.b16 %v957
  %v1867 = vunpack.c.l.b16 %v958
  %v1868 = vunpack.c.h.b16 %v958
  %v1869 = vunpack.c.l.b16 %v959
  %v1870 = vunpack.c.h.b16 %v959
  %v1871 = vunpack.c.l.b16 %v960
  %v1872 = vunpack.c.h.b16 %v960
  %v1873 = vunpack.c.l.b16 %v961
  %v1874 = vunpack.c.h.b16 %v961
  %v1875 = vunpack.c.l.b16 %v962
  %v1876 = vunpack.c.h.b16 %v962
  %v1877 = vunpack.c.l.b16 %v963
  %v1878 = vunpack.c.h.b16 %v963
  %v1879 = vunpack.c.l.b16 %v964
  %v1880 = vunpack.c.h.b16 %v964
  %v1881 = vunpack.c.l.b16 %v965
  %v1882 = vunpack.c.h.b16 %v965
  %v1883 = vunpack.c.l.b16 %v966
  %v1884 = vunpack.c.h.b16 %v966
  %v1885 = vunpack.c.l.b16 %v967
  %v1886 = vunpack.c.h.b16 %v967
  %v1887 = vunpack.c.l.b16 %v968
  %v1888 = vunpack.c.h.b16 %v968
  %v1889 = vunpack.c.l.b16 %v969
  %v1890 = vunpack.c.h.b16 %v969
  %v1891 = vunpack.c.l.b16 %v970
  %v1892 = vunpack.c.h.b16 %v970
  %v1893 = vunpack.c.l.b16 %v971
  %v1894 = vunpack.c.h.b16 %v971
  %v1895 = vunpack.c.l.b16 %v972
  %v1896 = vunpack.c.h.b16 %v972
  %v1897 = vunpack.c.l.b16 %v973
  %v1898 = vunpack.c.h.b16 %v973
  %v1899 = vunpack.c.l.b16 %v974
  %v1900 = vunpack.c.h.b16 %v974
  %v1901 = vunpack.c.l.b16 %v975
  %v1902 = vunpack.c.h.b16 %v975
  %v1903 = vunpack.c.l.b16 %v976
  %v1904 = vunpack.c.h.b16 %v976
  %v1905 = vunpack.c.l.b16 %v977
  %v1906 = vunpack.c.h.b16 %v977
  %v1907 = vunpack.c.l.b16 %v978
  %v1908 = vunpack.c.h.b16 %v978
  %v1909 = vunpack.c.l.b16 %v979
  %v1910 = vunpack.c.h.b16 %v979
  %v1911 = vunpack.c.l.b16 %v980
  %v1912 = vunpack.c.h.b16 %v980
  %v1913 = vunpack.c.l.b16 %v981
  %v1914 = vunpack.c.h.b16 %v981
  %v1915 = vunpack.c.l.b16 %v982
  %v1916 = vunpack.c.h.b16 %v982
  %v1917 = vunpack.c.l.b16 %v983
  %v1918 = vunpack.c.h.b16 %v983
  %v1919 = vunpack.c.l.b16 %v984
  %v1920 = vunpack.c.h.b16 %v984
  %v1921 = vunpack.c.l.b16 %v985
  %v1922 = vunpack.c.h.b16 %v985
  %v1923 = vunpack.c.l.b16 %v986
  %v1924 = vunpack.c.h.b16 %v986
  %v1925 = vunpack.c.l.b16 %v987
  %v1926 = vunpack.c.h.b16 %v987
  %v1927 = vunpack.c.l.b16 %v988
  %v1928 = vunpack.c.h.b16 %v988
  %v1929 = vunpack.c.l.b16 %v989
  %v1930 = vunpack.c.h.b16 %v989
  %v1931 = vunpack.c.l.b16 %v990
  %v1932 = vunpack.c.h.b16 %v990
  %v1933 = vunpack.c.l.b16 %v991
  %v1934 = vunpack.c.h.b16 %v991
  %v1935 = vunpack.c.l.b16 %v992
  %v1936 = vunpack.c.h.b16 %v992
  %v1937 = vunpack.c.l.b16 %v993
  %v1938 = vunpack.c.h.b16 %v993
  %v1939 = vunpack.c.l.b16 %v994
  %v1940 = vunpack.c.h.b16 %v994
  %v1941 = vunpack.c.l.b16 %v995
  %v1942 = vunpack.c.h.b16 %v995
  %v1943 = vunpack.c.l.b16 %v996
  %v1944 = vunpack.c.h.b16 %v996
  %v1945 = vunpack.c.l.b16 %v997
  %v1946 = vunpack.c.h.b16 %v997
  %v1947 = vunpack.c.l.b16 %v998
  %v1948 = vunpack.c.h.b16 %v998
  %v1949 = vunpack.c.l.b16 %v999
  %v1950 = vunpack.c.h.b16 %v999
  %v1951 = vunpack.c.l.b16 %v1000
  %v1952 = vunpack.c.h.b16 %v1000
  %v1953 = vunpack.c.l.b16 %v1001
  %v1954 = vunpack.c.h.b16 %v1001
  %v1955 = vunpack.c.l.b16 %v1002
  %v1956 = vunpack.c.h.b16 %v1002
  %v1957 = vunpack.c.l.b16 %v1003
  %v1958 = vunpack.c.h.b16 %v1003
  %v1959 = vunpack.c.l.b16 %v1004
  %v1960 = vunpack.c.h.b16 %v1004
  %v1961 = vunpack.c.l.b16 %v1005
  %v1962 = vunpack.c.h.b16 %v1005
  %v1963 = vunpack.c.l.b16 %v1006
  %v1964 = vunpack.c.h.b16 %v1006
  %v1965 = vunpack.c.l.b16 %v1007
  %v1966 = vunpack.c.h.b16 %v1007
  %v1967 = vunpack.c.l.b16 %v1008
  %v1968 = vunpack.c.h.b16 %v1008
  %v1969 = vunpack.c.l.b16 %v1009
  %v1970 = vunpack.c.h.b16 %v1009
  %v1971 = vunpack.c.l.b16 %v1010
  %v1972 = vunpack.c.h.b16 %v1010
  %v1973 = vunpack.c.l.b16 %v1011
  %v1974 = vunpack.c.h.b16 %v1011
  %v1975 = vunpack.c.l.b16 %v1012
  %v1976 = vunpack.c.h.b16 %v1012
  %v1977 = vunpack.c.l.b16 %v1013
  %v1978 = vunpack.c.h.b16 %v1013
  %v1979 = vunpack.c.l.b16 %v1014
  %v1980 = vunpack.c.h.b16 %v1014
  %v1981 = vunpack.c.l.b16 %v1015
  %v1982 = vunpack.c.h.b16 %v1015
  %v1983 = vunpack.c.l.b16 %v1016
  %v1984 = vunpack.c.h.b16 %v1016
  %v1985 = vunpack.c.l.b16 %v1017
  %v1986 = vunpack.c.h.b16 %v1017
  %v1987 = vunpack.c.l.b16 %v1018
  %v1988 = vunpack.c.h.b16 %v1018
  %v1989 = vunpack.c.l.b16 %v1019
  %v1990 = vunpack.c.h.b16 %v1019
  %v1991 = vunpack.c.l.b16 %v1020
  %v1992 = vunpack.c.h.b16 %v1020
  %v1993 = vunpack.c.l.b16 %v1021
  %v1994 = vunpack.c.h.b16 %v1021
  %v1995 = vunpack.c.l.b16 %v1022
  %v1996 = vunpack.c.h.b16 %v1022
  %v1997 = vunpack.c.l.b16 %v1023
  %v1998 = vunpack.c.h.b16 %v1023
  %v1999 = vunpack.c.l.b16 %v1024
  %v2000 = vunpack.c.h.b16 %v1024
  %v2001 = vunpack.c.l.b16 %v1025
  %v2002 = vunpack.c.h.b16 %v1025
  %v2003 = vunpack.c.l.b16 %v1026
  %v2004 = vunpack.c.h.b16 %v1026
  %v2005 = vunpack.c.l.b16 %v1027
  %v2006 = vunpack.c.h.b16 %v1027
  %v2007 = vunpack.c.l.b16 %v1028
  %v2008 = vunpack.c.h.b16 %v1028
  %v2009 = vunpack.c.l.b16 %v1029
  %v2010 = vunpack.c.h.b16 %v1029
  %v2011 = vunpack.c.l.b16 %v1030
  %v2012 = vunpack.c.h.b16 %v1030
  %v2013 = vunpack.c.l.b16 %v1031
  %v2014 = vunpack.c.h.b16 %v1031
  %v2015 = vunpack.c.l.b16 %v1032
  %v2016 = vunpack.c.h.b16 %v1032
  %v2017 = vunpack.c.l.b16 %v1033
  %v2018 = vunpack.c.h.b16 %v1033
  %v2019 = vunpack.c.l.b16 %v1034
  %v2020 = vunpack.c.h.b16 %v1034
  %v2021 = vunpack.c.l.b16 %v1035
  %v2022 = vunpack.c.h.b16 %v1035
  %v2023 = vunpack.c.l.b16 %v1036
  %v2024 = vunpack.c.h.b16 %v1036
  %v2025 = vunpack.c.l.b16 %v1037
  %v2026 = vunpack.c.h.b16 %v1037
  %v2027 = vunpack.c.l.b16 %v1038
  %v2028 = vunpack.c.h.b16 %v1038
  %v2029 = vunpack.c.l.b16 %v1039
  %v2030 = vunpack.c.h.b16 %v1039
  %v2031 = vunpack.c.l.b16 %v1040
  %v2032 = vunpack.c.h.b16 %v1040
  %v2033 = vunpack.c.l.b16 %v1041
  %v2034 = vunpack.c.h.b16 %v1041
  %v2035 = vunpack.c.l.b16 %v1042
  %v2036 = vunpack.c.h.b16 %v1042
  %v2037 = vunpack.c.l.b16 %v1043
  %v2038 = vunpack.c.h.b16 %v1043
  %v2039 = vunpack.c.l.b16 %v1044
  %v2040 = vunpack.c.h.b16 %v1044
  %v2041 = vunpack.c.l.b16 %v1045
  %v2042 = vunpack.c.h.b16 %v1045
  %v2043 = vunpack.c.l.b16 %v1046
  %v2044 = vunpack.c.h.b16 %v1046
  %v2045 = vunpack.c.l.b16 %v1047
  %v2046 = vunpack.c.h.b16 %v1047
  %v2047 = vpack.c.b16 %v1543, %v1535
  %v2048 = vpack.c.b16 %v1544, %v1536
  %v2049 = vpack.c.b16 %v1545, %v1537
  %v2050 = vpack.c.b16 %v1546, %v1538
  %v2051 = vpack.c.b16 %v1547, %v1539
  %v2052 = vpack.c.b16 %v1548, %v1540
  %v2053 = vpack.c.b16 %v1549, %v1541
  %v2054 = vpack.c.b16 %v1550, %v1542
  %v2055 = vpack.c.b16 %v1559, %v1551
  %v2056 = vpack.c.b16 %v1560, %v1552
  %v2057 = vpack.c.b16 %v1561, %v1553
  %v2058 = vpack.c.b16 %v1562, %v1554
  %v2059 = vpack.c.b16 %v1563, %v1555
  %v2060 = vpack.c.b16 %v1564, %v1556
  %v2061 = vpack.c.b16 %v1565, %v1557
  %v2062 = vpack.c.b16 %v1566, %v1558
  %v2063 = vpack.c.b16 %v1575, %v1567
  %v2064 = vpack.c.b16 %v1576, %v1568
  %v2065 = vpack.c.b16 %v1577, %v1569
  %v2066 = vpack.c.b16 %v1578, %v1570
  %v2067 = vpack.c.b16 %v1579, %v1571
  %v2068 = vpack.c.b16 %v1580, %v1572
  %v2069 = vpack.c.b16 %v1581, %v1573
  %v2070 = vpack.c.b16 %v1582, %v1574
  %v2071 = vpack.c.b16 %v1591, %v1583
  %v2072 = vpack.c.b16 %v1592, %v1584
  %v2073 = vpack.c.b16 %v1593, %v1585
  %v2074 = vpack.c.b16 %v1594, %v1586
  %v2075 = vpack.c.b16 %v1595, %v1587
  %v2076 = vpack.c.b16 %v1596, %v1588
  %v2077 = vpack.c.b16 %v1597, %v1589
  %v2078 = vpack.c.b16 %v1598, %v1590
  %v2079 = vpack.c.b16 %v1607, %v1599
  %v2080 = vpack.c.b16 %v1608, %v1600
  %v2081 = vpack.c.b16 %v1609, %v1601
  %v2082 = vpack.c.b16 %v1610, %v1602
  %v2083 = vpack.c.b16 %v1611, %v1603
  %v2084 = vpack.c.b16 %v1612, %v1604
  %v2085 = vpack.c.b16 %v1613, %v1605
  %v2086 = vpack.c.b16 %v1614, %v1606
  %v2087 = vpack.c.b16 %v1623, %v1615
  %v2088 = vpack.c.b16 %v1624, %v1616
  %v2089 = vpack.c.b16 %v1625, %v1617
  %v2090 = vpack.c.b16 %v1626, %v1618
  %v2091 = vpack.c.b16 %v1627, %v1619
  %v2092 = vpack.c.b16 %v1628, %v1620
  %v2093 = vpack.c.b16 %v1629, %v1621
  %v2094 = vpack.c.b16 %v1630, %v1622
  %v2095 = vpack.c.b16 %v1639, %v1631
  %v2096 = vpack.c.b16 %v1640, %v1632
  %v2097 = vpack.c.b16 %v1641, %v1633
  %v2098 = vpack.c.b16 %v1642, %v1634
  %v2099 = vpack.c.b16 %v1643, %v1635
  %v2100 = vpack.c.b16 %v1644, %v1636
  %v2101 = vpack.c.b16 %v1645, %v1637
  %v2102 = vpack.c.b16 %v1646, %v1638
  %v2103 = vpack.c.b16 %v1655, %v1647
  %v2104 = vpack.c.b16 %v1656, %v1648
  %v2105 = vpack.c.b16 %v1657, %v1649
  %v2106 = vpack.c.b16 %v1658, %v1650
  %v2107 = vpack.c.b16 %v1659, %v1651
  %v2108 = vpack.c.b16 %v1660, %v1652
  %v2109 = vpack.c.b16 %v1661, %v1653
  %v2110 = vpack.c.b16 %v1662, %v1654
  %v2111 = vpack.c.b16 %v1671, %v1663
  %v2112 = vpack.c.b16 %v1672, %v1664
  %v2113 = vpack.c.b16 %v1673, %v1665
  %v2114 = vpack.c.b16 %v1674, %v1666
  %v2115 = vpack.c.b16 %v1675, %v1667
  %v2116 = vpack.c.b16 %v1676, %v1668
  %v2117 = vpack.c.b16 %v1677, %v1669
  %v2118 = vpack.c.b16 %v1678, %v1670
  %v2119 = vpack.c.b16 %v1687, %v1679
  %v2120 = vpack.c.b16 %v1688, %v1680
  %v2121 = vpack.c.b16 %v1689, %v1681
  %v2122 = vpack.c.b16 %v1690, %v1682
  %v2123 = vpack.c.b16 %v1691, %v1683
  %v2124 = vpack.c.b16 %v1692, %v1684
  %v2125 = vpack.c.b16 %v1693, %v1685
  %v2126 = vpack.c.b16 %v1694, %v1686
  %v2127 = vpack.c.b16 %v1703, %v1695
  %v2128 = vpack.c.b16 %v1704, %v1696
  %v2129 = vpack.c.b16 %v1705, %v1697
  %v2130 = vpack.c.b16 %v1706, %v1698
  %v2131 = vpack.c.b16 %v1707, %v1699
  %v2132 = vpack.c.b16 %v1708, %v1700
  %v2133 = vpack.c.b16 %v1709, %v1701
  %v2134 = vpack.c.b16 %v1710, %v1702
  %v2135 = vpack.c.b16 %v1719, %v1711
  %v2136 = vpack.c.b16 %v1720, %v1712
  %v2137 = vpack.c.b16 %v1721, %v1713
  %v2138 = vpack.c.b16 %v1722, %v1714
  %v2139 = vpack.c.b16 %v1723, %v1715
  %v2140 = vpack.c.b16 %v1724, %v1716
  %v2141 = vpack.c.b16 %v1725, %v1717
  %v2142 = vpack.c.b16 %v1726, %v1718
  %v2143 = vpack.c.b16 %v1735, %v1727
  %v2144 = vpack.c.b16 %v1736, %v1728
  %v2145 = vpack.c.b16 %v1737, %v1729
  %v2146 = vpack.c.b16 %v1738, %v1730
  %v2147 = vpack.c.b16 %v1739, %v1731
  %v2148 = vpack.c.b16 %v1740, %v1732
  %v2149 = vpack.c.b16 %v1741, %v1733
  %v2150 = vpack.c.b16 %v1742, %v1734
  %v2151 = vpack.c.b16 %v1751, %v1743
  %v2152 = vpack.c.b16 %v1752, %v1744
  %v2153 = vpack.c.b16 %v1753, %v1745
  %v2154 = vpack.c.b16 %v1754, %v1746
  %v2155 = vpack.c.b16 %v1755, %v1747
  %v2156 = vpack.c.b16 %v1756, %v1748
  %v2157 = vpack.c.b16 %v1757, %v1749
  %v2158 = vpack.c.b16 %v1758, %v1750
  %v2159 = vpack.c.b16 %v1767, %v1759
  %v2160 = vpack.c.b16 %v1768, %v1760
  %v2161 = vpack.c.b16 %v1769, %v1761
  %v2162 = vpack.c.b16 %v1770, %v1762
  %v2163 = vpack.c.b16 %v1771, %v1763
  %v2164 = vpack.c.b16 %v1772, %v1764
  %v2165 = vpack.c.b16 %v1773, %v1765
  %v2166 = vpack.c.b16 %v1774, %v1766
  %v2167 = vpack.c.b16 %v1783, %v1775
  %v2168 = vpack.c.b16 %v1784, %v1776
  %v2169 = vpack.c.b16 %v1785, %v1777
  %v2170 = vpack.c.b16 %v1786, %v1778
  %v2171 = vpack.c.b16 %v1787, %v1779
  %v2172 = vpack.c.b16 %v1788, %v1780
  %v2173 = vpack.c.b16 %v1789, %v1781
  %v2174 = vpack.c.b16 %v1790, %v1782
  %v2175 = vpack.c.b16 %v1799, %v1791
  %v2176 = vpack.c.b16 %v1800, %v1792
  %v2177 = vpack.c.b16 %v1801, %v1793
  %v2178 = vpack.c.b16 %v1802, %v1794
  %v2179 = vpack.c.b16 %v1803, %v1795
  %v2180 = vpack.c.b16 %v1804, %v1796
  %v2181 = vpack.c.b16 %v1805, %v1797
  %v2182 = vpack.c.b16 %v1806, %v1798
  %v2183 = vpack.c.b16 %v1815, %v1807
  %v2184 = vpack.c.b16 %v1816, %v1808
  %v2185 = vpack.c.b16 %v1817, %v1809
  %v2186 = vpack.c.b16 %v1818, %v1810
  %v2187 = vpack.c.b16 %v1819, %v1811
  %v2188 = vpack.c.b16 %v1820, %v1812
  %v2189 = vpack.c.b16 %v1821, %v1813
  %v2190 = vpack.c.b16 %v1822, %v1814
  %v2191 = vpack.c.b16 %v1831, %v1823
  %v2192 = vpack.c.b16 %v1832, %v1824
  %v2193 = vpack.c.b16 %v1833, %v1825
  %v2194 = vpack.c.b16 %v1834, %v1826
  %v2195 = vpack.c.b16 %v1835, %v1827
  %v2196 = vpack.c.b16 %v1836, %v1828
  %v2197 = vpack.c.b16 %v1837, %v1829
  %v2198 = vpack.c.b16 %v1838, %v1830
  %v2199 = vpack.c.b16 %v1847, %v1839
  %v2200 = vpack.c.b16 %v1848, %v1840
  %v2201 = vpack.c.b16 %v1849, %v1841
  %v2202 = vpack.c.b16 %v1850, %v1842
  %v2203 = vpack.c.b16 %v1851, %v1843
  %v2204 = vpack.c.b16 %v1852, %v1844
  %v2205 = vpack.c.b16 %v1853, %v1845
  %v2206 = vpack.c.b16 %v1854, %v1846
  %v2207 = vpack.c.b16 %v1863, %v1855
  %v2208 = vpack.c.b16 %v1864, %v1856
  %v2209 = vpack.c.b16 %v1865, %v1857
  %v2210 = vpack.c.b16 %v1866, %v1858
  %v2211 = vpack.c.b16 %v1867, %v1859
  %v2212 = vpack.c.b16 %v1868, %v1860
  %v2213 = vpack.c.b16 %v1869, %v1861
  %v2214 = vpack.c.b16 %v1870, %v1862
  %v2215 = vpack.c.b16 %v1879, %v1871
  %v2216 = vpack.c.b16 %v1880, %v1872
  %v2217 = vpack.c.b16 %v1881, %v1873
  %v2218 = vpack.c.b16 %v1882, %v1874
  %v2219 = vpack.c.b16 %v1883, %v1875
  %v2220 = vpack.c.b16 %v1884, %v1876
  %v2221 = vpack.c.b16 %v1885, %v1877
  %v2222 = vpack.c.b16 %v1886, %v1878
  %v2223 = vpack.c.b16 %v1895, %v1887
  %v2224 = vpack.c.b16 %v1896, %v1888
  %v2225 = vpack.c.b16 %v1897, %v1889
  %v2226 = vpack.c.b16 %v1898, %v1890
  %v2227 = vpack.c.b16 %v1899, %v1891
  %v2228 = vpack.c.b16 %v1900, %v1892
  %v2229 = vpack.c.b16 %v1901, %v1893
  %v2230 = vpack.c.b16 %v1902, %v1894
  %v2231 = vpack.c.b16 %v1911, %v1903
  %v2232 = vpack.c.b16 %v1912, %v1904
  %v2233 = vpack.c.b16 %v1913, %v1905
  %v2234 = vpack.c.b16 %v1914, %v1906
  %v2235 = vpack.c.b16 %v1915, %v1907
  %v2236 = vpack.c.b16 %v1916, %v1908
  %v2237 = vpack.c.b16 %v1917, %v1909
  %v2238 = vpack.c.b16 %v1918, %v1910
  %v2239 = vpack.c.b16 %v1927, %v1919
  %v2240 = vpack.c.b16 %v1928, %v1920
  %v2241 = vpack.c.b16 %v1929, %v1921
  %v2242 = vpack.c.b16 %v1930, %v1922
  %v2243 = vpack.c.b16 %v1931, %v1923
  %v2244 = vpack.c.b16 %v1932, %v1924
  %v2245 = vpack.c.b16 %v1933, %v1925
  %v2246 = vpack.c.b16 %v1934, %v1926
  %v2247 = vpack.c.b16 %v1943, %v1935
  %v2248 = vpack.c.b16 %v1944, %v1936
  %v2249 = vpack.c.b16 %v1945, %v1937
  %v2250 = vpack.c.b16 %v1946, %v1938
  %v2251 = vpack.c.b16 %v1947, %v1939
  %v2252 = vpack.c.b16 %v1948, %v1940
  %v2253 = vpack.c.b16 %v1949, %v1941
  %v2254 = vpack.c.b16 %v1950, %v1942
  %v2255 = vpack.c.b16 %v1959, %v1951
  %v2256 = vpack.c.b16 %v1960, %v1952
  %v2257 = vpack.c.b16 %v1961, %v1953
  %v2258 = vpack.c.b16 %v1962, %v1954
  %v2259 = vpack.c.b16 %v1963, %v1955
  %v2260 = vpack.c.b16 %v1964, %v1956
  %v2261 = vpack.c.b16 %v1965, %v1957
  %v2262 = vpack.c.b16 %v1966, %v1958
  %v2263 = vpack.c.b16 %v1975, %v1967
  %v2264 = vpack.c.b16 %v1976, %v1968
  %v2265 = vpack.c.b16 %v1977, %v1969
  %v2266 = vpack.c.b16 %v1978, %v1970
  %v2267 = vpack.c.b16 %v1979, %v1971
  %v2268 = vpack.c.b16 %v1980, %v1972
  %v2269 = vpack.c.b16 %v1981, %v1973
  %v2270 = vpack.c.b16 %v1982, %v1974
  %v2271 = vpack.c.b16 %v1991, %v1983
  %v2272 = vpack.c.b16 %v1992, %v1984
  %v2273 = vpack.c.b16 %v1993, %v1985
  %v2274 = vpack.c.b16 %v1994, %v1986
  %v2275 = vpack.c.b16 %v1995, %v1987
  %v2276 = vpack.c.b16 %v1996, %v1988
  %v2277 = vpack.c.b16 %v1997, %v1989
  %v2278 = vpack.c.b16 %v1998, %v1990
  %v2279 = vpack.c.b16 %v2007, %v1999
  %v2280 = vpack.c.b16 %v2008, %v2000
  %v2281 = vpack.c.b16 %v2009, %v2001
  %v2282 = vpack.c.b16 %v2010, %v2002
  %v2283 = vpack.c.b16 %v2011, %v2003
  %v2284 = vpack.c.b16 %v2012, %v2004
  %v2285 = vpack.c.b16 %v2013, %v2005
  %v2286 = vpack.c.b16 %v2014, %v2006
  %v2287 = vpack.c.b16 %v2023, %v2015
  %v2288 = vpack.c.b16 %v2024, %v2016
  %v2289 = vpack.c.b16 %v2025, %v2017
  %v2290 = vpack.c.b16 %v2026, %v2018
  %v2291 = vpack.c.b16 %v2027, %v2019
  %v2292 = vpack.c.b16 %v2028, %v2020
  %v2293 = vpack.c.b16 %v2029, %v2021
  %v2294 = vpack.c.b16 %v2030, %v2022
  %v2295 = vpack.c.b16 %v2039, %v2031
  %v2296 = vpack.c.b16 %v2040, %v2032
  %v2297 = vpack.c.b16 %v2041, %v2033
  %v2298 = vpack.c.b16 %v2042, %v2034
  %v2299 = vpack.c.b16 %v2043, %v2035
  %v2300 = vpack.c.b16 %v2044, %v2036
  %v2301 = vpack.c.b16 %v2045, %v2037
  %v2302 = vpack.c.b16 %v2046, %v2038
  %2559 = vmatprep.subr.bf16.mxu0 %v2048
  %2560 = vmatpush1.bf16.msra.mxu0 %v2047
  %2561 = vmatprep.subr.bf16.mxu0 %v2056
  %2562 = vmatpush1.bf16.msra.mxu0 %v2055
  %2563 = vmatprep.subr.bf16.mxu0 %v2064
  %2564 = vmatpush1.bf16.msra.mxu0 %v2063
  %2565 = vmatprep.subr.bf16.mxu0 %v2072
  %2566 = vmatpush1.bf16.msra.mxu0 %v2071
  %2567 = vmatprep.subr.bf16.mxu0 %v2080
  %2568 = vmatpush1.bf16.msra.mxu0 %v2079
  %2569 = vmatprep.subr.bf16.mxu0 %v2088
  %2570 = vmatpush1.bf16.msra.mxu0 %v2087
  %2571 = vmatprep.subr.bf16.mxu0 %v2096
  %2572 = vmatpush1.bf16.msra.mxu0 %v2095
  %2573 = vmatprep.subr.bf16.mxu0 %v2104
  %2574 = vmatpush1.bf16.msra.mxu0 %v2103
  %2575 = vmatprep.subr.bf16.mxu0 %v2112
  %2576 = vmatpush1.bf16.msra.mxu0 %v2111
  %2577 = vmatprep.subr.bf16.mxu0 %v2120
  %2578 = vmatpush1.bf16.msra.mxu0 %v2119
  %2579 = vmatprep.subr.bf16.mxu0 %v2128
  %2580 = vmatpush1.bf16.msra.mxu0 %v2127
  %2581 = vmatprep.subr.bf16.mxu0 %v2136
  %2582 = vmatpush1.bf16.msra.mxu0 %v2135
  %2583 = vmatprep.subr.bf16.mxu0 %v2144
  %2584 = vmatpush1.bf16.msra.mxu0 %v2143
  %2585 = vmatprep.subr.bf16.mxu0 %v2152
  %2586 = vmatpush1.bf16.msra.mxu0 %v2151
  %2587 = vmatprep.subr.bf16.mxu0 %v2160
  %2588 = vmatpush1.bf16.msra.mxu0 %v2159
  %2589 = vmatprep.subr.bf16.mxu0 %v2168
  %2590 = vmatpush1.bf16.msra.mxu0 %v2167
  %2591 = vmatprep.mubr.bf16.mxu0 %v789
  %2592 = vmatmul.mubr.bf16.gmra.mrb[0].mxu0 %v788
  %v2593 = vpop.f32.mrb[0].mxu0
  %v2594 = vadd.f32 %v1150, %v2593
  %v2595 = vpop.f32.mrb[0].mxu0
  %v2596 = vadd.f32 %v1152, %v2595
  %v2597 = vpop.f32.mrb[0].mxu0
  %v2598 = vpop.f32.mrb[0].mxu0
  %2599 = vdwg.mxu0
  %2600 = vmatprep.subr.bf16.mxu0 %v2176
  %2601 = vmatpush1.bf16.msra.mxu0 %v2175
  %2602 = vmatprep.subr.bf16.mxu0 %v2184
  %2603 = vmatpush1.bf16.msra.mxu0 %v2183
  %2604 = vmatprep.subr.bf16.mxu0 %v2192
  %2605 = vmatpush1.bf16.msra.mxu0 %v2191
  %2606 = vmatprep.subr.bf16.mxu0 %v2200
  %2607 = vmatpush1.bf16.msra.mxu0 %v2199
  %2608 = vmatprep.subr.bf16.mxu0 %v2208
  %2609 = vmatpush1.bf16.msra.mxu0 %v2207
  %2610 = vmatprep.subr.bf16.mxu0 %v2216
  %2611 = vmatpush1.bf16.msra.mxu0 %v2215
  %2612 = vmatprep.subr.bf16.mxu0 %v2224
  %2613 = vmatpush1.bf16.msra.mxu0 %v2223
  %2614 = vmatprep.subr.bf16.mxu0 %v2232
  %2615 = vmatpush1.bf16.msra.mxu0 %v2231
  %2616 = vmatprep.subr.bf16.mxu0 %v2240
  %2617 = vmatpush1.bf16.msra.mxu0 %v2239
  %2618 = vmatprep.subr.bf16.mxu0 %v2248
  %2619 = vmatpush1.bf16.msra.mxu0 %v2247
  %2620 = vmatprep.subr.bf16.mxu0 %v2256
  %2621 = vmatpush1.bf16.msra.mxu0 %v2255
  %2622 = vmatprep.subr.bf16.mxu0 %v2264
  %2623 = vmatpush1.bf16.msra.mxu0 %v2263
  %2624 = vmatprep.subr.bf16.mxu0 %v2272
  %2625 = vmatpush1.bf16.msra.mxu0 %v2271
  %2626 = vmatprep.subr.bf16.mxu0 %v2280
  %2627 = vmatpush1.bf16.msra.mxu0 %v2279
  %2628 = vmatprep.subr.bf16.mxu0 %v2288
  %2629 = vmatpush1.bf16.msra.mxu0 %v2287
  %2630 = vmatprep.subr.bf16.mxu0 %v2296
  %2631 = vmatpush1.bf16.msra.mxu0 %v2295
  %2632 = vmatprep.mubr.bf16.mxu0 %v791
  %2633 = vmatmul.mubr.bf16.gmra.mrb[0].mxu0 %v790
  %v2634 = vpop.f32.mrb[0].mxu0
  %v2635 = vadd.f32 %v2594, %v2634
  %v2636 = vpop.f32.mrb[0].mxu0
  %v2637 = vadd.f32 %v2596, %v2636
  %v2638 = vpop.f32.mrb[0].mxu0
  %v2639 = vpop.f32.mrb[0].mxu0
  %2640 = vdwg.mxu0
  %2641 = vmatprep.subr.bf16.mxu0 %v2050
  %2642 = vmatpush1.bf16.msra.mxu0 %v2049
  %2643 = vmatprep.subr.bf16.mxu0 %v2058
  %2644 = vmatpush1.bf16.msra.mxu0 %v2057
  %2645 = vmatprep.subr.bf16.mxu0 %v2066
  %2646 = vmatpush1.bf16.msra.mxu0 %v2065
  %2647 = vmatprep.subr.bf16.mxu0 %v2074
  %2648 = vmatpush1.bf16.msra.mxu0 %v2073
  %2649 = vmatprep.subr.bf16.mxu0 %v2082
  %2650 = vmatpush1.bf16.msra.mxu0 %v2081
  %2651 = vmatprep.subr.bf16.mxu0 %v2090
  %2652 = vmatpush1.bf16.msra.mxu0 %v2089
  %2653 = vmatprep.subr.bf16.mxu0 %v2098
  %2654 = vmatpush1.bf16.msra.mxu0 %v2097
  %2655 = vmatprep.subr.bf16.mxu0 %v2106
  %2656 = vmatpush1.bf16.msra.mxu0 %v2105
  %2657 = vmatprep.subr.bf16.mxu0 %v2114
  %2658 = vmatpush1.bf16.msra.mxu0 %v2113
  %2659 = vmatprep.subr.bf16.mxu0 %v2122
  %2660 = vmatpush1.bf16.msra.mxu0 %v2121
  %2661 = vmatprep.subr.bf16.mxu0 %v2130
  %2662 = vmatpush1.bf16.msra.mxu0 %v2129
  %2663 = vmatprep.subr.bf16.mxu0 %v2138
  %2664 = vmatpush1.bf16.msra.mxu0 %v2137
  %2665 = vmatprep.subr.bf16.mxu0 %v2146
  %2666 = vmatpush1.bf16.msra.mxu0 %v2145
  %2667 = vmatprep.subr.bf16.mxu0 %v2154
  %2668 = vmatpush1.bf16.msra.mxu0 %v2153
  %2669 = vmatprep.subr.bf16.mxu0 %v2162
  %2670 = vmatpush1.bf16.msra.mxu0 %v2161
  %2671 = vmatprep.subr.bf16.mxu0 %v2170
  %2672 = vmatpush1.bf16.msra.mxu0 %v2169
  %2673 = vmatprep.mubr.bf16.mxu0 %v789
  %2674 = vmatmul.mubr.bf16.gmra.mrb[0].mxu0 %v788
  %v2675 = vpop.f32.mrb[0].mxu0
  %v2676 = vadd.f32 %v1191, %v2675
  %v2677 = vpop.f32.mrb[0].mxu0
  %v2678 = vadd.f32 %v1193, %v2677
  %v2679 = vpop.f32.mrb[0].mxu0
  %v2680 = vpop.f32.mrb[0].mxu0
  %2681 = vdwg.mxu0
  %2682 = vmatprep.subr.bf16.mxu0 %v2178
  %2683 = vmatpush1.bf16.msra.mxu0 %v2177
  %2684 = vmatprep.subr.bf16.mxu0 %v2186
  %2685 = vmatpush1.bf16.msra.mxu0 %v2185
  %2686 = vmatprep.subr.bf16.mxu0 %v2194
  %2687 = vmatpush1.bf16.msra.mxu0 %v2193
  %2688 = vmatprep.subr.bf16.mxu0 %v2202
  %2689 = vmatpush1.bf16.msra.mxu0 %v2201
  %2690 = vmatprep.subr.bf16.mxu0 %v2210
  %2691 = vmatpush1.bf16.msra.mxu0 %v2209
  %2692 = vmatprep.subr.bf16.mxu0 %v2218
  %2693 = vmatpush1.bf16.msra.mxu0 %v2217
  %2694 = vmatprep.subr.bf16.mxu0 %v2226
  %2695 = vmatpush1.bf16.msra.mxu0 %v2225
  %2696 = vmatprep.subr.bf16.mxu0 %v2234
  %2697 = vmatpush1.bf16.msra.mxu0 %v2233
  %2698 = vmatprep.subr.bf16.mxu0 %v2242
  %2699 = vmatpush1.bf16.msra.mxu0 %v2241
  %2700 = vmatprep.subr.bf16.mxu0 %v2250
  %2701 = vmatpush1.bf16.msra.mxu0 %v2249
  %2702 = vmatprep.subr.bf16.mxu0 %v2258
  %2703 = vmatpush1.bf16.msra.mxu0 %v2257
  %2704 = vmatprep.subr.bf16.mxu0 %v2266
  %2705 = vmatpush1.bf16.msra.mxu0 %v2265
  %2706 = vmatprep.subr.bf16.mxu0 %v2274
  %2707 = vmatpush1.bf16.msra.mxu0 %v2273
  %2708 = vmatprep.subr.bf16.mxu0 %v2282
  %2709 = vmatpush1.bf16.msra.mxu0 %v2281
  %2710 = vmatprep.subr.bf16.mxu0 %v2290
  %2711 = vmatpush1.bf16.msra.mxu0 %v2289
  %2712 = vmatprep.subr.bf16.mxu0 %v2298
  %2713 = vmatpush1.bf16.msra.mxu0 %v2297
  %2714 = vmatprep.mubr.bf16.mxu0 %v791
  %2715 = vmatmul.mubr.bf16.gmra.mrb[0].mxu0 %v790
  %v2716 = vpop.f32.mrb[0].mxu0
  %v2717 = vadd.f32 %v2676, %v2716
  %v2718 = vpop.f32.mrb[0].mxu0
  %v2719 = vadd.f32 %v2678, %v2718
  %v2720 = vpop.f32.mrb[0].mxu0
  %v2721 = vpop.f32.mrb[0].mxu0
  %2722 = vdwg.mxu0
  %2723 = vmatprep.subr.bf16.mxu0 %v2052
  %2724 = vmatpush1.bf16.msra.mxu0 %v2051
  %2725 = vmatprep.subr.bf16.mxu0 %v2060
  %2726 = vmatpush1.bf16.msra.mxu0 %v2059
  %2727 = vmatprep.subr.bf16.mxu0 %v2068
  %2728 = vmatpush1.bf16.msra.mxu0 %v2067
  %2729 = vmatprep.subr.bf16.mxu0 %v2076
  %2730 = vmatpush1.bf16.msra.mxu0 %v2075
  %2731 = vmatprep.subr.bf16.mxu0 %v2084
  %2732 = vmatpush1.bf16.msra.mxu0 %v2083
  %2733 = vmatprep.subr.bf16.mxu0 %v2092
  %2734 = vmatpush1.bf16.msra.mxu0 %v2091
  %2735 = vmatprep.subr.bf16.mxu0 %v2100
  %2736 = vmatpush1.bf16.msra.mxu0 %v2099
  %2737 = vmatprep.subr.bf16.mxu0 %v2108
  %2738 = vmatpush1.bf16.msra.mxu0 %v2107
  %2739 = vmatprep.subr.bf16.mxu0 %v2116
  %2740 = vmatpush1.bf16.msra.mxu0 %v2115
  %2741 = vmatprep.subr.bf16.mxu0 %v2124
  %2742 = vmatpush1.bf16.msra.mxu0 %v2123
  %2743 = vmatprep.subr.bf16.mxu0 %v2132
  %2744 = vmatpush1.bf16.msra.mxu0 %v2131
  %2745 = vmatprep.subr.bf16.mxu0 %v2140
  %2746 = vmatpush1.bf16.msra.mxu0 %v2139
  %2747 = vmatprep.subr.bf16.mxu0 %v2148
  %2748 = vmatpush1.bf16.msra.mxu0 %v2147
  %2749 = vmatprep.subr.bf16.mxu0 %v2156
  %2750 = vmatpush1.bf16.msra.mxu0 %v2155
  %2751 = vmatprep.subr.bf16.mxu0 %v2164
  %2752 = vmatpush1.bf16.msra.mxu0 %v2163
  %2753 = vmatprep.subr.bf16.mxu0 %v2172
  %2754 = vmatpush1.bf16.msra.mxu0 %v2171
  %2755 = vmatprep.mubr.bf16.mxu0 %v789
  %2756 = vmatmul.mubr.bf16.gmra.mrb[0].mxu0 %v788
  %v2757 = vpop.f32.mrb[0].mxu0
  %v2758 = vadd.f32 %v1232, %v2757
  %v2759 = vpop.f32.mrb[0].mxu0
  %v2760 = vadd.f32 %v1234, %v2759
  %v2761 = vpop.f32.mrb[0].mxu0
  %v2762 = vpop.f32.mrb[0].mxu0
  %2763 = vdwg.mxu0
  %2764 = vmatprep.subr.bf16.mxu0 %v2180
  %2765 = vmatpush1.bf16.msra.mxu0 %v2179
  %2766 = vmatprep.subr.bf16.mxu0 %v2188
  %2767 = vmatpush1.bf16.msra.mxu0 %v2187
  %2768 = vmatprep.subr.bf16.mxu0 %v2196
  %2769 = vmatpush1.bf16.msra.mxu0 %v2195
  %2770 = vmatprep.subr.bf16.mxu0 %v2204
  %2771 = vmatpush1.bf16.msra.mxu0 %v2203
  %2772 = vmatprep.subr.bf16.mxu0 %v2212
  %2773 = vmatpush1.bf16.msra.mxu0 %v2211
  %2774 = vmatprep.subr.bf16.mxu0 %v2220
  %2775 = vmatpush1.bf16.msra.mxu0 %v2219
  %2776 = vmatprep.subr.bf16.mxu0 %v2228
  %2777 = vmatpush1.bf16.msra.mxu0 %v2227
  %2778 = vmatprep.subr.bf16.mxu0 %v2236
  %2779 = vmatpush1.bf16.msra.mxu0 %v2235
  %2780 = vmatprep.subr.bf16.mxu0 %v2244
  %2781 = vmatpush1.bf16.msra.mxu0 %v2243
  %2782 = vmatprep.subr.bf16.mxu0 %v2252
  %2783 = vmatpush1.bf16.msra.mxu0 %v2251
  %2784 = vmatprep.subr.bf16.mxu0 %v2260
  %2785 = vmatpush1.bf16.msra.mxu0 %v2259
  %2786 = vmatprep.subr.bf16.mxu0 %v2268
  %2787 = vmatpush1.bf16.msra.mxu0 %v2267
  %2788 = vmatprep.subr.bf16.mxu0 %v2276
  %2789 = vmatpush1.bf16.msra.mxu0 %v2275
  %2790 = vmatprep.subr.bf16.mxu0 %v2284
  %2791 = vmatpush1.bf16.msra.mxu0 %v2283
  %2792 = vmatprep.subr.bf16.mxu0 %v2292
  %2793 = vmatpush1.bf16.msra.mxu0 %v2291
  %2794 = vmatprep.subr.bf16.mxu0 %v2300
  %2795 = vmatpush1.bf16.msra.mxu0 %v2299
  %2796 = vmatprep.mubr.bf16.mxu0 %v791
  %2797 = vmatmul.mubr.bf16.gmra.mrb[0].mxu0 %v790
  %v2798 = vpop.f32.mrb[0].mxu0
  %v2799 = vadd.f32 %v2758, %v2798
  %v2800 = vpop.f32.mrb[0].mxu0
  %v2801 = vadd.f32 %v2760, %v2800
  %v2802 = vpop.f32.mrb[0].mxu0
  %v2803 = vpop.f32.mrb[0].mxu0
  %2804 = vdwg.mxu0
  %2805 = vmatprep.subr.bf16.mxu0 %v2054
  %2806 = vmatpush1.bf16.msra.mxu0 %v2053
  %2807 = vmatprep.subr.bf16.mxu0 %v2062
  %2808 = vmatpush1.bf16.msra.mxu0 %v2061
  %2809 = vmatprep.subr.bf16.mxu0 %v2070
  %2810 = vmatpush1.bf16.msra.mxu0 %v2069
  %2811 = vmatprep.subr.bf16.mxu0 %v2078
  %2812 = vmatpush1.bf16.msra.mxu0 %v2077
  %2813 = vmatprep.subr.bf16.mxu0 %v2086
  %2814 = vmatpush1.bf16.msra.mxu0 %v2085
  %2815 = vmatprep.subr.bf16.mxu0 %v2094
  %2816 = vmatpush1.bf16.msra.mxu0 %v2093
  %2817 = vmatprep.subr.bf16.mxu0 %v2102
  %2818 = vmatpush1.bf16.msra.mxu0 %v2101
  %2819 = vmatprep.subr.bf16.mxu0 %v2110
  %2820 = vmatpush1.bf16.msra.mxu0 %v2109
  %2821 = vmatprep.subr.bf16.mxu0 %v2118
  %2822 = vmatpush1.bf16.msra.mxu0 %v2117
  %2823 = vmatprep.subr.bf16.mxu0 %v2126
  %2824 = vmatpush1.bf16.msra.mxu0 %v2125
  %2825 = vmatprep.subr.bf16.mxu0 %v2134
  %2826 = vmatpush1.bf16.msra.mxu0 %v2133
  %2827 = vmatprep.subr.bf16.mxu0 %v2142
  %2828 = vmatpush1.bf16.msra.mxu0 %v2141
  %2829 = vmatprep.subr.bf16.mxu0 %v2150
  %2830 = vmatpush1.bf16.msra.mxu0 %v2149
  %2831 = vmatprep.subr.bf16.mxu0 %v2158
  %2832 = vmatpush1.bf16.msra.mxu0 %v2157
  %2833 = vmatprep.subr.bf16.mxu0 %v2166
  %2834 = vmatpush1.bf16.msra.mxu0 %v2165
  %2835 = vmatprep.subr.bf16.mxu0 %v2174
  %2836 = vmatpush1.bf16.msra.mxu0 %v2173
  %2837 = vmatprep.mubr.bf16.mxu0 %v789
  %2838 = vmatmul.mubr.bf16.gmra.mrb[0].mxu0 %v788
  %v2839 = vpop.f32.mrb[0].mxu0
  %v2840 = vadd.f32 %v1273, %v2839
  %v2841 = vpop.f32.mrb[0].mxu0
  %v2842 = vadd.f32 %v1275, %v2841
  %v2843 = vpop.f32.mrb[0].mxu0
  %v2844 = vpop.f32.mrb[0].mxu0
  %2845 = vdwg.mxu0
  %2846 = vmatprep.subr.bf16.mxu0 %v2182
  %2847 = vmatpush1.bf16.msra.mxu0 %v2181
  %2848 = vmatprep.subr.bf16.mxu0 %v2190
  %2849 = vmatpush1.bf16.msra.mxu0 %v2189
  %2850 = vmatprep.subr.bf16.mxu0 %v2198
  %2851 = vmatpush1.bf16.msra.mxu0 %v2197
  %2852 = vmatprep.subr.bf16.mxu0 %v2206
  %2853 = vmatpush1.bf16.msra.mxu0 %v2205
  %2854 = vmatprep.subr.bf16.mxu0 %v2214
  %2855 = vmatpush1.bf16.msra.mxu0 %v2213
  %2856 = vmatprep.subr.bf16.mxu0 %v2222
  %2857 = vmatpush1.bf16.msra.mxu0 %v2221
  %2858 = vmatprep.subr.bf16.mxu0 %v2230
  %2859 = vmatpush1.bf16.msra.mxu0 %v2229
  %2860 = vmatprep.subr.bf16.mxu0 %v2238
  %2861 = vmatpush1.bf16.msra.mxu0 %v2237
  %2862 = vmatprep.subr.bf16.mxu0 %v2246
  %2863 = vmatpush1.bf16.msra.mxu0 %v2245
  %2864 = vmatprep.subr.bf16.mxu0 %v2254
  %2865 = vmatpush1.bf16.msra.mxu0 %v2253
  %2866 = vmatprep.subr.bf16.mxu0 %v2262
  %2867 = vmatpush1.bf16.msra.mxu0 %v2261
  %2868 = vmatprep.subr.bf16.mxu0 %v2270
  %2869 = vmatpush1.bf16.msra.mxu0 %v2269
  %2870 = vmatprep.subr.bf16.mxu0 %v2278
  %2871 = vmatpush1.bf16.msra.mxu0 %v2277
  %2872 = vmatprep.subr.bf16.mxu0 %v2286
  %2873 = vmatpush1.bf16.msra.mxu0 %v2285
  %2874 = vmatprep.subr.bf16.mxu0 %v2294
  %2875 = vmatpush1.bf16.msra.mxu0 %v2293
  %2876 = vmatprep.subr.bf16.mxu0 %v2302
  %2877 = vmatpush1.bf16.msra.mxu0 %v2301
  %2878 = vmatprep.mubr.bf16.mxu0 %v791
  %2879 = vmatmul.mubr.bf16.gmra.mrb[0].mxu0 %v790
  %v2880 = vpop.f32.mrb[0].mxu0
  %v2881 = vadd.f32 %v2840, %v2880
  %v2882 = vpop.f32.mrb[0].mxu0
  %v2883 = vadd.f32 %v2842, %v2882
  %v2884 = vpop.f32.mrb[0].mxu0
  %v2885 = vpop.f32.mrb[0].mxu0
  %2886 = vdwg.mxu0
  %v2887 = vld [vmem:[%s8] sm:$0xff]
  %v2889 = vlaneseq
  %v2890 = vshrl.u32 %v2889, 7
  %v2891 = vsub.s32 0, %v2890
  %v2892 = vrot.slane %v2887, %v2891
  %v2893 = vlaneseq
  %v2894 = vshrl.u32 %v2893, 7
  %v2895 = vsub.s32 1, %v2894
  %v2896 = vrot.slane %v2887, %v2895
  %v2897 = vlaneseq
  %v2898 = vshrl.u32 %v2897, 7
  %v2899 = vsub.s32 2, %v2898
  %v2900 = vrot.slane %v2887, %v2899
  %v2901 = vlaneseq
  %v2902 = vshrl.u32 %v2901, 7
  %v2903 = vsub.s32 3, %v2902
  %v2904 = vrot.slane %v2887, %v2903
  %v2905 = vlaneseq
  %v2906 = vshrl.u32 %v2905, 7
  %v2907 = vsub.s32 4, %v2906
  %v2908 = vrot.slane %v2887, %v2907
  %v2909 = vlaneseq
  %v2910 = vshrl.u32 %v2909, 7
  %v2911 = vsub.s32 5, %v2910
  %v2912 = vrot.slane %v2887, %v2911
  %v2913 = vlaneseq
  %v2914 = vshrl.u32 %v2913, 7
  %v2915 = vsub.s32 6, %v2914
  %v2916 = vrot.slane %v2887, %v2915
  %v2917 = vlaneseq
  %v2918 = vshrl.u32 %v2917, 7
  %v2919 = vsub.s32 7, %v2918
  %v2920 = vrot.slane %v2887, %v2919
  %v2929 = vadd.f32 %v2635, %v2892
  %v2930 = vadd.f32 %v2637, %v2896
  %v2931 = vadd.f32 %v2717, %v2900
  %v2932 = vadd.f32 %v2719, %v2904
  %v2933 = vadd.f32 %v2799, %v2908
  %v2934 = vadd.f32 %v2801, %v2912
  %v2935 = vadd.f32 %v2881, %v2916
  %v2936 = vadd.f32 %v2883, %v2920
  %v2937 = vmax.f32 %v2929, 0.0
  %v2938 = vmax.f32 %v2930, 0.0
  %v2939 = vmax.f32 %v2931, 0.0
  %v2940 = vmax.f32 %v2932, 0.0
  %v2941 = vmax.f32 %v2933, 0.0
  %v2942 = vmax.f32 %v2934, 0.0
  %v2943 = vmax.f32 %v2935, 0.0
  %v2944 = vmax.f32 %v2936, 0.0
  %v2945 = vpack.c.bf16 %v2937, %v2937
  %v2946 = vpack.c.bf16 %v2938, %v2938
  %v2947 = vpack.c.bf16 %v2939, %v2939
  %v2948 = vpack.c.bf16 %v2940, %v2940
  %v2949 = vpack.c.bf16 %v2941, %v2941
  %v2950 = vpack.c.bf16 %v2942, %v2942
  %v2951 = vpack.c.bf16 %v2943, %v2943
  %v2952 = vpack.c.bf16 %v2944, %v2944
  %v2953 = vld [vmem:[%s9] sm:$0xff]
  %v2954 = vld [vmem:[%s9 + $0x8] sm:$0xff]
  %v2955 = vld [vmem:[%s9 + $0x10] sm:$0xff]
  %v2956 = vld [vmem:[%s9 + $0x18] sm:$0xff]
  %v2957 = vld [vmem:[%s9 + $0x20] sm:$0xff]
  %v2958 = vld [vmem:[%s9 + $0x28] sm:$0xff]
  %v2959 = vld [vmem:[%s9 + $0x30] sm:$0xff]
  %v2960 = vld [vmem:[%s9 + $0x38] sm:$0xff]
  %v2961 = vld [vmem:[%s9 + $0x40] sm:$0xff]
  %v2962 = vld [vmem:[%s9 + $0x48] sm:$0xff]
  %v2963 = vld [vmem:[%s9 + $0x50] sm:$0xff]
  %v2964 = vld [vmem:[%s9 + $0x58] sm:$0xff]
  %v2965 = vld [vmem:[%s9 + $0x60] sm:$0xff]
  %v2966 = vld [vmem:[%s9 + $0x68] sm:$0xff]
  %v2967 = vld [vmem:[%s9 + $0x70] sm:$0xff]
  %v2968 = vld [vmem:[%s9 + $0x78] sm:$0xff]
  %v2969 = vld [vmem:[%s9 + $0x80] sm:$0xff]
  %v2970 = vld [vmem:[%s9 + $0x88] sm:$0xff]
  %v2971 = vld [vmem:[%s9 + $0x90] sm:$0xff]
  %v2972 = vld [vmem:[%s9 + $0x98] sm:$0xff]
  %v2973 = vld [vmem:[%s9 + $0xa0] sm:$0xff]
  %v2974 = vld [vmem:[%s9 + $0xa8] sm:$0xff]
  %v2975 = vld [vmem:[%s9 + $0xb0] sm:$0xff]
  %v2976 = vld [vmem:[%s9 + $0xb8] sm:$0xff]
  %v2977 = vld [vmem:[%s9 + $0xc0] sm:$0xff]
  %v2978 = vld [vmem:[%s9 + $0xc8] sm:$0xff]
  %v2979 = vld [vmem:[%s9 + $0xd0] sm:$0xff]
  %v2980 = vld [vmem:[%s9 + $0xd8] sm:$0xff]
  %v2981 = vld [vmem:[%s9 + $0xe0] sm:$0xff]
  %v2982 = vld [vmem:[%s9 + $0xe8] sm:$0xff]
  %v2983 = vld [vmem:[%s9 + $0xf0] sm:$0xff]
  %v2984 = vld [vmem:[%s9 + $0xf8] sm:$0xff]
  %v2985 = vld [vmem:[%s9 + $0x100] sm:$0xff]
  %v2986 = vld [vmem:[%s9 + $0x108] sm:$0xff]
  %v2987 = vld [vmem:[%s9 + $0x110] sm:$0xff]
  %v2988 = vld [vmem:[%s9 + $0x118] sm:$0xff]
  %v2989 = vld [vmem:[%s9 + $0x120] sm:$0xff]
  %v2990 = vld [vmem:[%s9 + $0x128] sm:$0xff]
  %v2991 = vld [vmem:[%s9 + $0x130] sm:$0xff]
  %v2992 = vld [vmem:[%s9 + $0x138] sm:$0xff]
  %v2993 = vld [vmem:[%s9 + $0x140] sm:$0xff]
  %v2994 = vld [vmem:[%s9 + $0x148] sm:$0xff]
  %v2995 = vld [vmem:[%s9 + $0x150] sm:$0xff]
  %v2996 = vld [vmem:[%s9 + $0x158] sm:$0xff]
  %v2997 = vld [vmem:[%s9 + $0x160] sm:$0xff]
  %v2998 = vld [vmem:[%s9 + $0x168] sm:$0xff]
  %v2999 = vld [vmem:[%s9 + $0x170] sm:$0xff]
  %v3000 = vld [vmem:[%s9 + $0x178] sm:$0xff]
  %v3001 = vld [vmem:[%s9 + $0x180] sm:$0xff]
  %v3002 = vld [vmem:[%s9 + $0x188] sm:$0xff]
  %v3003 = vld [vmem:[%s9 + $0x190] sm:$0xff]
  %v3004 = vld [vmem:[%s9 + $0x198] sm:$0xff]
  %v3005 = vld [vmem:[%s9 + $0x1a0] sm:$0xff]
  %v3006 = vld [vmem:[%s9 + $0x1a8] sm:$0xff]
  %v3007 = vld [vmem:[%s9 + $0x1b0] sm:$0xff]
  %v3008 = vld [vmem:[%s9 + $0x1b8] sm:$0xff]
  %v3009 = vld [vmem:[%s9 + $0x1c0] sm:$0xff]
  %v3010 = vld [vmem:[%s9 + $0x1c8] sm:$0xff]
  %v3011 = vld [vmem:[%s9 + $0x1d0] sm:$0xff]
  %v3012 = vld [vmem:[%s9 + $0x1d8] sm:$0xff]
  %v3013 = vld [vmem:[%s9 + $0x1e0] sm:$0xff]
  %v3014 = vld [vmem:[%s9 + $0x1e8] sm:$0xff]
  %v3015 = vld [vmem:[%s9 + $0x1f0] sm:$0xff]
  %v3016 = vld [vmem:[%s9 + $0x1f8] sm:$0xff]
  %v3017 = vld [vmem:[%s9 + $0x200] sm:$0xff]
  %v3018 = vld [vmem:[%s9 + $0x208] sm:$0xff]
  %v3019 = vld [vmem:[%s9 + $0x210] sm:$0xff]
  %v3020 = vld [vmem:[%s9 + $0x218] sm:$0xff]
  %v3021 = vld [vmem:[%s9 + $0x220] sm:$0xff]
  %v3022 = vld [vmem:[%s9 + $0x228] sm:$0xff]
  %v3023 = vld [vmem:[%s9 + $0x230] sm:$0xff]
  %v3024 = vld [vmem:[%s9 + $0x238] sm:$0xff]
  %v3025 = vld [vmem:[%s9 + $0x240] sm:$0xff]
  %v3026 = vld [vmem:[%s9 + $0x248] sm:$0xff]
  %v3027 = vld [vmem:[%s9 + $0x250] sm:$0xff]
  %v3028 = vld [vmem:[%s9 + $0x258] sm:$0xff]
  %v3029 = vld [vmem:[%s9 + $0x260] sm:$0xff]
  %v3030 = vld [vmem:[%s9 + $0x268] sm:$0xff]
  %v3031 = vld [vmem:[%s9 + $0x270] sm:$0xff]
  %v3032 = vld [vmem:[%s9 + $0x278] sm:$0xff]
  %v3033 = vld [vmem:[%s9 + $0x280] sm:$0xff]
  %v3034 = vld [vmem:[%s9 + $0x288] sm:$0xff]
  %v3035 = vld [vmem:[%s9 + $0x290] sm:$0xff]
  %v3036 = vld [vmem:[%s9 + $0x298] sm:$0xff]
  %v3037 = vld [vmem:[%s9 + $0x2a0] sm:$0xff]
  %v3038 = vld [vmem:[%s9 + $0x2a8] sm:$0xff]
  %v3039 = vld [vmem:[%s9 + $0x2b0] sm:$0xff]
  %v3040 = vld [vmem:[%s9 + $0x2b8] sm:$0xff]
  %v3041 = vld [vmem:[%s9 + $0x2c0] sm:$0xff]
  %v3042 = vld [vmem:[%s9 + $0x2c8] sm:$0xff]
  %v3043 = vld [vmem:[%s9 + $0x2d0] sm:$0xff]
  %v3044 = vld [vmem:[%s9 + $0x2d8] sm:$0xff]
  %v3045 = vld [vmem:[%s9 + $0x2e0] sm:$0xff]
  %v3046 = vld [vmem:[%s9 + $0x2e8] sm:$0xff]
  %v3047 = vld [vmem:[%s9 + $0x2f0] sm:$0xff]
  %v3048 = vld [vmem:[%s9 + $0x2f8] sm:$0xff]
  %v3049 = vld [vmem:[%s9 + $0x300] sm:$0xff]
  %v3050 = vld [vmem:[%s9 + $0x308] sm:$0xff]
  %v3051 = vld [vmem:[%s9 + $0x310] sm:$0xff]
  %v3052 = vld [vmem:[%s9 + $0x318] sm:$0xff]
  %v3053 = vld [vmem:[%s9 + $0x320] sm:$0xff]
  %v3054 = vld [vmem:[%s9 + $0x328] sm:$0xff]
  %v3055 = vld [vmem:[%s9 + $0x330] sm:$0xff]
  %v3056 = vld [vmem:[%s9 + $0x338] sm:$0xff]
  %v3057 = vld [vmem:[%s9 + $0x340] sm:$0xff]
  %v3058 = vld [vmem:[%s9 + $0x348] sm:$0xff]
  %v3059 = vld [vmem:[%s9 + $0x350] sm:$0xff]
  %v3060 = vld [vmem:[%s9 + $0x358] sm:$0xff]
  %v3061 = vld [vmem:[%s9 + $0x360] sm:$0xff]
  %v3062 = vld [vmem:[%s9 + $0x368] sm:$0xff]
  %v3063 = vld [vmem:[%s9 + $0x370] sm:$0xff]
  %v3064 = vld [vmem:[%s9 + $0x378] sm:$0xff]
  %v3065 = vld [vmem:[%s9 + $0x380] sm:$0xff]
  %v3066 = vld [vmem:[%s9 + $0x388] sm:$0xff]
  %v3067 = vld [vmem:[%s9 + $0x390] sm:$0xff]
  %v3068 = vld [vmem:[%s9 + $0x398] sm:$0xff]
  %v3069 = vld [vmem:[%s9 + $0x3a0] sm:$0xff]
  %v3070 = vld [vmem:[%s9 + $0x3a8] sm:$0xff]
  %v3071 = vld [vmem:[%s9 + $0x3b0] sm:$0xff]
  %v3072 = vld [vmem:[%s9 + $0x3b8] sm:$0xff]
  %v3073 = vld [vmem:[%s9 + $0x3c0] sm:$0xff]
  %v3074 = vld [vmem:[%s9 + $0x3c8] sm:$0xff]
  %v3075 = vld [vmem:[%s9 + $0x3d0] sm:$0xff]
  %v3076 = vld [vmem:[%s9 + $0x3d8] sm:$0xff]
  %v3077 = vld [vmem:[%s9 + $0x3e0] sm:$0xff]
  %v3078 = vld [vmem:[%s9 + $0x3e8] sm:$0xff]
  %v3079 = vld [vmem:[%s9 + $0x3f0] sm:$0xff]
  %v3080 = vld [vmem:[%s9 + $0x3f8] sm:$0xff]
  %v3081 = vld [vmem:[%s10] sm:$0xf]
  %v3083 = vlaneseq
  %v3084 = vshrl.u32 %v3083, 7
  %v3085 = vsub.s32 0, %v3084
  %v3086 = vrot.slane %v3081, %v3085
  %v3087 = vlaneseq
  %v3088 = vshrl.u32 %v3087, 7
  %v3089 = vsub.s32 1, %v3088
  %v3090 = vrot.slane %v3081, %v3089
  %v3091 = vlaneseq
  %v3092 = vshrl.u32 %v3091, 7
  %v3093 = vsub.s32 2, %v3092
  %v3094 = vrot.slane %v3081, %v3093
  %v3095 = vlaneseq
  %v3096 = vshrl.u32 %v3095, 7
  %v3097 = vsub.s32 3, %v3096
  %v3098 = vrot.slane %v3081, %v3097
  %v3231 = vunpack.c.l.b16 %v2953
  %v3232 = vunpack.c.h.b16 %v2953
  %v3233 = vunpack.c.l.b16 %v2954
  %v3234 = vunpack.c.h.b16 %v2954
  %v3235 = vunpack.c.l.b16 %v2955
  %v3236 = vunpack.c.h.b16 %v2955
  %v3237 = vunpack.c.l.b16 %v2956
  %v3238 = vunpack.c.h.b16 %v2956
  %v3239 = vunpack.c.l.b16 %v2957
  %v3240 = vunpack.c.h.b16 %v2957
  %v3241 = vunpack.c.l.b16 %v2958
  %v3242 = vunpack.c.h.b16 %v2958
  %v3243 = vunpack.c.l.b16 %v2959
  %v3244 = vunpack.c.h.b16 %v2959
  %v3245 = vunpack.c.l.b16 %v2960
  %v3246 = vunpack.c.h.b16 %v2960
  %v3247 = vunpack.c.l.b16 %v2961
  %v3248 = vunpack.c.h.b16 %v2961
  %v3249 = vunpack.c.l.b16 %v2962
  %v3250 = vunpack.c.h.b16 %v2962
  %v3251 = vunpack.c.l.b16 %v2963
  %v3252 = vunpack.c.h.b16 %v2963
  %v3253 = vunpack.c.l.b16 %v2964
  %v3254 = vunpack.c.h.b16 %v2964
  %v3255 = vunpack.c.l.b16 %v2965
  %v3256 = vunpack.c.h.b16 %v2965
  %v3257 = vunpack.c.l.b16 %v2966
  %v3258 = vunpack.c.h.b16 %v2966
  %v3259 = vunpack.c.l.b16 %v2967
  %v3260 = vunpack.c.h.b16 %v2967
  %v3261 = vunpack.c.l.b16 %v2968
  %v3262 = vunpack.c.h.b16 %v2968
  %v3263 = vunpack.c.l.b16 %v2969
  %v3264 = vunpack.c.h.b16 %v2969
  %v3265 = vunpack.c.l.b16 %v2970
  %v3266 = vunpack.c.h.b16 %v2970
  %v3267 = vunpack.c.l.b16 %v2971
  %v3268 = vunpack.c.h.b16 %v2971
  %v3269 = vunpack.c.l.b16 %v2972
  %v3270 = vunpack.c.h.b16 %v2972
  %v3271 = vunpack.c.l.b16 %v2973
  %v3272 = vunpack.c.h.b16 %v2973
  %v3273 = vunpack.c.l.b16 %v2974
  %v3274 = vunpack.c.h.b16 %v2974
  %v3275 = vunpack.c.l.b16 %v2975
  %v3276 = vunpack.c.h.b16 %v2975
  %v3277 = vunpack.c.l.b16 %v2976
  %v3278 = vunpack.c.h.b16 %v2976
  %v3279 = vunpack.c.l.b16 %v2977
  %v3280 = vunpack.c.h.b16 %v2977
  %v3281 = vunpack.c.l.b16 %v2978
  %v3282 = vunpack.c.h.b16 %v2978
  %v3283 = vunpack.c.l.b16 %v2979
  %v3284 = vunpack.c.h.b16 %v2979
  %v3285 = vunpack.c.l.b16 %v2980
  %v3286 = vunpack.c.h.b16 %v2980
  %v3287 = vunpack.c.l.b16 %v2981
  %v3288 = vunpack.c.h.b16 %v2981
  %v3289 = vunpack.c.l.b16 %v2982
  %v3290 = vunpack.c.h.b16 %v2982
  %v3291 = vunpack.c.l.b16 %v2983
  %v3292 = vunpack.c.h.b16 %v2983
  %v3293 = vunpack.c.l.b16 %v2984
  %v3294 = vunpack.c.h.b16 %v2984
  %v3295 = vunpack.c.l.b16 %v2985
  %v3296 = vunpack.c.h.b16 %v2985
  %v3297 = vunpack.c.l.b16 %v2986
  %v3298 = vunpack.c.h.b16 %v2986
  %v3299 = vunpack.c.l.b16 %v2987
  %v3300 = vunpack.c.h.b16 %v2987
  %v3301 = vunpack.c.l.b16 %v2988
  %v3302 = vunpack.c.h.b16 %v2988
  %v3303 = vunpack.c.l.b16 %v2989
  %v3304 = vunpack.c.h.b16 %v2989
  %v3305 = vunpack.c.l.b16 %v2990
  %v3306 = vunpack.c.h.b16 %v2990
  %v3307 = vunpack.c.l.b16 %v2991
  %v3308 = vunpack.c.h.b16 %v2991
  %v3309 = vunpack.c.l.b16 %v2992
  %v3310 = vunpack.c.h.b16 %v2992
  %v3311 = vunpack.c.l.b16 %v2993
  %v3312 = vunpack.c.h.b16 %v2993
  %v3313 = vunpack.c.l.b16 %v2994
  %v3314 = vunpack.c.h.b16 %v2994
  %v3315 = vunpack.c.l.b16 %v2995
  %v3316 = vunpack.c.h.b16 %v2995
  %v3317 = vunpack.c.l.b16 %v2996
  %v3318 = vunpack.c.h.b16 %v2996
  %v3319 = vunpack.c.l.b16 %v2997
  %v3320 = vunpack.c.h.b16 %v2997
  %v3321 = vunpack.c.l.b16 %v2998
  %v3322 = vunpack.c.h.b16 %v2998
  %v3323 = vunpack.c.l.b16 %v2999
  %v3324 = vunpack.c.h.b16 %v2999
  %v3325 = vunpack.c.l.b16 %v3000
  %v3326 = vunpack.c.h.b16 %v3000
  %v3327 = vunpack.c.l.b16 %v3001
  %v3328 = vunpack.c.h.b16 %v3001
  %v3329 = vunpack.c.l.b16 %v3002
  %v3330 = vunpack.c.h.b16 %v3002
  %v3331 = vunpack.c.l.b16 %v3003
  %v3332 = vunpack.c.h.b16 %v3003
  %v3333 = vunpack.c.l.b16 %v3004
  %v3334 = vunpack.c.h.b16 %v3004
  %v3335 = vunpack.c.l.b16 %v3005
  %v3336 = vunpack.c.h.b16 %v3005
  %v3337 = vunpack.c.l.b16 %v3006
  %v3338 = vunpack.c.h.b16 %v3006
  %v3339 = vunpack.c.l.b16 %v3007
  %v3340 = vunpack.c.h.b16 %v3007
  %v3341 = vunpack.c.l.b16 %v3008
  %v3342 = vunpack.c.h.b16 %v3008
  %v3343 = vunpack.c.l.b16 %v3009
  %v3344 = vunpack.c.h.b16 %v3009
  %v3345 = vunpack.c.l.b16 %v3010
  %v3346 = vunpack.c.h.b16 %v3010
  %v3347 = vunpack.c.l.b16 %v3011
  %v3348 = vunpack.c.h.b16 %v3011
  %v3349 = vunpack.c.l.b16 %v3012
  %v3350 = vunpack.c.h.b16 %v3012
  %v3351 = vunpack.c.l.b16 %v3013
  %v3352 = vunpack.c.h.b16 %v3013
  %v3353 = vunpack.c.l.b16 %v3014
  %v3354 = vunpack.c.h.b16 %v3014
  %v3355 = vunpack.c.l.b16 %v3015
  %v3356 = vunpack.c.h.b16 %v3015
  %v3357 = vunpack.c.l.b16 %v3016
  %v3358 = vunpack.c.h.b16 %v3016
  %v3359 = vunpack.c.l.b16 %v3017
  %v3360 = vunpack.c.h.b16 %v3017
  %v3361 = vunpack.c.l.b16 %v3018
  %v3362 = vunpack.c.h.b16 %v3018
  %v3363 = vunpack.c.l.b16 %v3019
  %v3364 = vunpack.c.h.b16 %v3019
  %v3365 = vunpack.c.l.b16 %v3020
  %v3366 = vunpack.c.h.b16 %v3020
  %v3367 = vunpack.c.l.b16 %v3021
  %v3368 = vunpack.c.h.b16 %v3021
  %v3369 = vunpack.c.l.b16 %v3022
  %v3370 = vunpack.c.h.b16 %v3022
  %v3371 = vunpack.c.l.b16 %v3023
  %v3372 = vunpack.c.h.b16 %v3023
  %v3373 = vunpack.c.l.b16 %v3024
  %v3374 = vunpack.c.h.b16 %v3024
  %v3375 = vunpack.c.l.b16 %v3025
  %v3376 = vunpack.c.h.b16 %v3025
  %v3377 = vunpack.c.l.b16 %v3026
  %v3378 = vunpack.c.h.b16 %v3026
  %v3379 = vunpack.c.l.b16 %v3027
  %v3380 = vunpack.c.h.b16 %v3027
  %v3381 = vunpack.c.l.b16 %v3028
  %v3382 = vunpack.c.h.b16 %v3028
  %v3383 = vunpack.c.l.b16 %v3029
  %v3384 = vunpack.c.h.b16 %v3029
  %v3385 = vunpack.c.l.b16 %v3030
  %v3386 = vunpack.c.h.b16 %v3030
  %v3387 = vunpack.c.l.b16 %v3031
  %v3388 = vunpack.c.h.b16 %v3031
  %v3389 = vunpack.c.l.b16 %v3032
  %v3390 = vunpack.c.h.b16 %v3032
  %v3391 = vunpack.c.l.b16 %v3033
  %v3392 = vunpack.c.h.b16 %v3033
  %v3393 = vunpack.c.l.b16 %v3034
  %v3394 = vunpack.c.h.b16 %v3034
  %v3395 = vunpack.c.l.b16 %v3035
  %v3396 = vunpack.c.h.b16 %v3035
  %v3397 = vunpack.c.l.b16 %v3036
  %v3398 = vunpack.c.h.b16 %v3036
  %v3399 = vunpack.c.l.b16 %v3037
  %v3400 = vunpack.c.h.b16 %v3037
  %v3401 = vunpack.c.l.b16 %v3038
  %v3402 = vunpack.c.h.b16 %v3038
  %v3403 = vunpack.c.l.b16 %v3039
  %v3404 = vunpack.c.h.b16 %v3039
  %v3405 = vunpack.c.l.b16 %v3040
  %v3406 = vunpack.c.h.b16 %v3040
  %v3407 = vunpack.c.l.b16 %v3041
  %v3408 = vunpack.c.h.b16 %v3041
  %v3409 = vunpack.c.l.b16 %v3042
  %v3410 = vunpack.c.h.b16 %v3042
  %v3411 = vunpack.c.l.b16 %v3043
  %v3412 = vunpack.c.h.b16 %v3043
  %v3413 = vunpack.c.l.b16 %v3044
  %v3414 = vunpack.c.h.b16 %v3044
  %v3415 = vunpack.c.l.b16 %v3045
  %v3416 = vunpack.c.h.b16 %v3045
  %v3417 = vunpack.c.l.b16 %v3046
  %v3418 = vunpack.c.h.b16 %v3046
  %v3419 = vunpack.c.l.b16 %v3047
  %v3420 = vunpack.c.h.b16 %v3047
  %v3421 = vunpack.c.l.b16 %v3048
  %v3422 = vunpack.c.h.b16 %v3048
  %v3423 = vunpack.c.l.b16 %v3049
  %v3424 = vunpack.c.h.b16 %v3049
  %v3425 = vunpack.c.l.b16 %v3050
  %v3426 = vunpack.c.h.b16 %v3050
  %v3427 = vunpack.c.l.b16 %v3051
  %v3428 = vunpack.c.h.b16 %v3051
  %v3429 = vunpack.c.l.b16 %v3052
  %v3430 = vunpack.c.h.b16 %v3052
  %v3431 = vunpack.c.l.b16 %v3053
  %v3432 = vunpack.c.h.b16 %v3053
  %v3433 = vunpack.c.l.b16 %v3054
  %v3434 = vunpack.c.h.b16 %v3054
  %v3435 = vunpack.c.l.b16 %v3055
  %v3436 = vunpack.c.h.b16 %v3055
  %v3437 = vunpack.c.l.b16 %v3056
  %v3438 = vunpack.c.h.b16 %v3056
  %v3439 = vunpack.c.l.b16 %v3057
  %v3440 = vunpack.c.h.b16 %v3057
  %v3441 = vunpack.c.l.b16 %v3058
  %v3442 = vunpack.c.h.b16 %v3058
  %v3443 = vunpack.c.l.b16 %v3059
  %v3444 = vunpack.c.h.b16 %v3059
  %v3445 = vunpack.c.l.b16 %v3060
  %v3446 = vunpack.c.h.b16 %v3060
  %v3447 = vunpack.c.l.b16 %v3061
  %v3448 = vunpack.c.h.b16 %v3061
  %v3449 = vunpack.c.l.b16 %v3062
  %v3450 = vunpack.c.h.b16 %v3062
  %v3451 = vunpack.c.l.b16 %v3063
  %v3452 = vunpack.c.h.b16 %v3063
  %v3453 = vunpack.c.l.b16 %v3064
  %v3454 = vunpack.c.h.b16 %v3064
  %v3455 = vunpack.c.l.b16 %v3065
  %v3456 = vunpack.c.h.b16 %v3065
  %v3457 = vunpack.c.l.b16 %v3066
  %v3458 = vunpack.c.h.b16 %v3066
  %v3459 = vunpack.c.l.b16 %v3067
  %v3460 = vunpack.c.h.b16 %v3067
  %v3461 = vunpack.c.l.b16 %v3068
  %v3462 = vunpack.c.h.b16 %v3068
  %v3463 = vunpack.c.l.b16 %v3069
  %v3464 = vunpack.c.h.b16 %v3069
  %v3465 = vunpack.c.l.b16 %v3070
  %v3466 = vunpack.c.h.b16 %v3070
  %v3467 = vunpack.c.l.b16 %v3071
  %v3468 = vunpack.c.h.b16 %v3071
  %v3469 = vunpack.c.l.b16 %v3072
  %v3470 = vunpack.c.h.b16 %v3072
  %v3471 = vunpack.c.l.b16 %v3073
  %v3472 = vunpack.c.h.b16 %v3073
  %v3473 = vunpack.c.l.b16 %v3074
  %v3474 = vunpack.c.h.b16 %v3074
  %v3475 = vunpack.c.l.b16 %v3075
  %v3476 = vunpack.c.h.b16 %v3075
  %v3477 = vunpack.c.l.b16 %v3076
  %v3478 = vunpack.c.h.b16 %v3076
  %v3479 = vunpack.c.l.b16 %v3077
  %v3480 = vunpack.c.h.b16 %v3077
  %v3481 = vunpack.c.l.b16 %v3078
  %v3482 = vunpack.c.h.b16 %v3078
  %v3483 = vunpack.c.l.b16 %v3079
  %v3484 = vunpack.c.h.b16 %v3079
  %v3485 = vunpack.c.l.b16 %v3080
  %v3486 = vunpack.c.h.b16 %v3080
  %v3487 = vpack.c.b16 %v3235, %v3231
  %v3488 = vpack.c.b16 %v3236, %v3232
  %v3489 = vpack.c.b16 %v3237, %v3233
  %v3490 = vpack.c.b16 %v3238, %v3234
  %v3491 = vpack.c.b16 %v3243, %v3239
  %v3492 = vpack.c.b16 %v3244, %v3240
  %v3493 = vpack.c.b16 %v3245, %v3241
  %v3494 = vpack.c.b16 %v3246, %v3242
  %v3495 = vpack.c.b16 %v3251, %v3247
  %v3496 = vpack.c.b16 %v3252, %v3248
  %v3497 = vpack.c.b16 %v3253, %v3249
  %v3498 = vpack.c.b16 %v3254, %v3250
  %v3499 = vpack.c.b16 %v3259, %v3255
  %v3500 = vpack.c.b16 %v3260, %v3256
  %v3501 = vpack.c.b16 %v3261, %v3257
  %v3502 = vpack.c.b16 %v3262, %v3258
  %v3503 = vpack.c.b16 %v3267, %v3263
  %v3504 = vpack.c.b16 %v3268, %v3264
  %v3505 = vpack.c.b16 %v3269, %v3265
  %v3506 = vpack.c.b16 %v3270, %v3266
  %v3507 = vpack.c.b16 %v3275, %v3271
  %v3508 = vpack.c.b16 %v3276, %v3272
  %v3509 = vpack.c.b16 %v3277, %v3273
  %v3510 = vpack.c.b16 %v3278, %v3274
  %v3511 = vpack.c.b16 %v3283, %v3279
  %v3512 = vpack.c.b16 %v3284, %v3280
  %v3513 = vpack.c.b16 %v3285, %v3281
  %v3514 = vpack.c.b16 %v3286, %v3282
  %v3515 = vpack.c.b16 %v3291, %v3287
  %v3516 = vpack.c.b16 %v3292, %v3288
  %v3517 = vpack.c.b16 %v3293, %v3289
  %v3518 = vpack.c.b16 %v3294, %v3290
  %v3519 = vpack.c.b16 %v3299, %v3295
  %v3520 = vpack.c.b16 %v3300, %v3296
  %v3521 = vpack.c.b16 %v3301, %v3297
  %v3522 = vpack.c.b16 %v3302, %v3298
  %v3523 = vpack.c.b16 %v3307, %v3303
  %v3524 = vpack.c.b16 %v3308, %v3304
  %v3525 = vpack.c.b16 %v3309, %v3305
  %v3526 = vpack.c.b16 %v3310, %v3306
  %v3527 = vpack.c.b16 %v3315, %v3311
  %v3528 = vpack.c.b16 %v3316, %v3312
  %v3529 = vpack.c.b16 %v3317, %v3313
  %v3530 = vpack.c.b16 %v3318, %v3314
  %v3531 = vpack.c.b16 %v3323, %v3319
  %v3532 = vpack.c.b16 %v3324, %v3320
  %v3533 = vpack.c.b16 %v3325, %v3321
  %v3534 = vpack.c.b16 %v3326, %v3322
  %v3535 = vpack.c.b16 %v3331, %v3327
  %v3536 = vpack.c.b16 %v3332, %v3328
  %v3537 = vpack.c.b16 %v3333, %v3329
  %v3538 = vpack.c.b16 %v3334, %v3330
  %v3539 = vpack.c.b16 %v3339, %v3335
  %v3540 = vpack.c.b16 %v3340, %v3336
  %v3541 = vpack.c.b16 %v3341, %v3337
  %v3542 = vpack.c.b16 %v3342, %v3338
  %v3543 = vpack.c.b16 %v3347, %v3343
  %v3544 = vpack.c.b16 %v3348, %v3344
  %v3545 = vpack.c.b16 %v3349, %v3345
  %v3546 = vpack.c.b16 %v3350, %v3346
  %v3547 = vpack.c.b16 %v3355, %v3351
  %v3548 = vpack.c.b16 %v3356, %v3352
  %v3549 = vpack.c.b16 %v3357, %v3353
  %v3550 = vpack.c.b16 %v3358, %v3354
  %v3551 = vpack.c.b16 %v3363, %v3359
  %v3552 = vpack.c.b16 %v3364, %v3360
  %v3553 = vpack.c.b16 %v3365, %v3361
  %v3554 = vpack.c.b16 %v3366, %v3362
  %v3555 = vpack.c.b16 %v3371, %v3367
  %v3556 = vpack.c.b16 %v3372, %v3368
  %v3557 = vpack.c.b16 %v3373, %v3369
  %v3558 = vpack.c.b16 %v3374, %v3370
  %v3559 = vpack.c.b16 %v3379, %v3375
  %v3560 = vpack.c.b16 %v3380, %v3376
  %v3561 = vpack.c.b16 %v3381, %v3377
  %v3562 = vpack.c.b16 %v3382, %v3378
  %v3563 = vpack.c.b16 %v3387, %v3383
  %v3564 = vpack.c.b16 %v3388, %v3384
  %v3565 = vpack.c.b16 %v3389, %v3385
  %v3566 = vpack.c.b16 %v3390, %v3386
  %v3567 = vpack.c.b16 %v3395, %v3391
  %v3568 = vpack.c.b16 %v3396, %v3392
  %v3569 = vpack.c.b16 %v3397, %v3393
  %v3570 = vpack.c.b16 %v3398, %v3394
  %v3571 = vpack.c.b16 %v3403, %v3399
  %v3572 = vpack.c.b16 %v3404, %v3400
  %v3573 = vpack.c.b16 %v3405, %v3401
  %v3574 = vpack.c.b16 %v3406, %v3402
  %v3575 = vpack.c.b16 %v3411, %v3407
  %v3576 = vpack.c.b16 %v3412, %v3408
  %v3577 = vpack.c.b16 %v3413, %v3409
  %v3578 = vpack.c.b16 %v3414, %v3410
  %v3579 = vpack.c.b16 %v3419, %v3415
  %v3580 = vpack.c.b16 %v3420, %v3416
  %v3581 = vpack.c.b16 %v3421, %v3417
  %v3582 = vpack.c.b16 %v3422, %v3418
  %v3583 = vpack.c.b16 %v3427, %v3423
  %v3584 = vpack.c.b16 %v3428, %v3424
  %v3585 = vpack.c.b16 %v3429, %v3425
  %v3586 = vpack.c.b16 %v3430, %v3426
  %v3587 = vpack.c.b16 %v3435, %v3431
  %v3588 = vpack.c.b16 %v3436, %v3432
  %v3589 = vpack.c.b16 %v3437, %v3433
  %v3590 = vpack.c.b16 %v3438, %v3434
  %v3591 = vpack.c.b16 %v3443, %v3439
  %v3592 = vpack.c.b16 %v3444, %v3440
  %v3593 = vpack.c.b16 %v3445, %v3441
  %v3594 = vpack.c.b16 %v3446, %v3442
  %v3595 = vpack.c.b16 %v3451, %v3447
  %v3596 = vpack.c.b16 %v3452, %v3448
  %v3597 = vpack.c.b16 %v3453, %v3449
  %v3598 = vpack.c.b16 %v3454, %v3450
  %v3599 = vpack.c.b16 %v3459, %v3455
  %v3600 = vpack.c.b16 %v3460, %v3456
  %v3601 = vpack.c.b16 %v3461, %v3457
  %v3602 = vpack.c.b16 %v3462, %v3458
  %v3603 = vpack.c.b16 %v3467, %v3463
  %v3604 = vpack.c.b16 %v3468, %v3464
  %v3605 = vpack.c.b16 %v3469, %v3465
  %v3606 = vpack.c.b16 %v3470, %v3466
  %v3607 = vpack.c.b16 %v3475, %v3471
  %v3608 = vpack.c.b16 %v3476, %v3472
  %v3609 = vpack.c.b16 %v3477, %v3473
  %v3610 = vpack.c.b16 %v3478, %v3474
  %v3611 = vpack.c.b16 %v3483, %v3479
  %v3612 = vpack.c.b16 %v3484, %v3480
  %v3613 = vpack.c.b16 %v3485, %v3481
  %v3614 = vpack.c.b16 %v3486, %v3482
  %3743 = vmatprep.subr.bf16.mxu0 %v3488
  %3744 = vmatpush1.bf16.msra.mxu0 %v3487
  %3745 = vmatprep.subr.bf16.mxu0 %v3492
  %3746 = vmatpush1.bf16.msra.mxu0 %v3491
  %3747 = vmatprep.subr.bf16.mxu0 %v3496
  %3748 = vmatpush1.bf16.msra.mxu0 %v3495
  %3749 = vmatprep.subr.bf16.mxu0 %v3500
  %3750 = vmatpush1.bf16.msra.mxu0 %v3499
  %3751 = vmatprep.subr.bf16.mxu0 %v3504
  %3752 = vmatpush1.bf16.msra.mxu0 %v3503
  %3753 = vmatprep.subr.bf16.mxu0 %v3508
  %3754 = vmatpush1.bf16.msra.mxu0 %v3507
  %3755 = vmatprep.subr.bf16.mxu0 %v3512
  %3756 = vmatpush1.bf16.msra.mxu0 %v3511
  %3757 = vmatprep.subr.bf16.mxu0 %v3516
  %3758 = vmatpush1.bf16.msra.mxu0 %v3515
  %3759 = vmatprep.subr.bf16.mxu0 %v3520
  %3760 = vmatpush1.bf16.msra.mxu0 %v3519
  %3761 = vmatprep.subr.bf16.mxu0 %v3524
  %3762 = vmatpush1.bf16.msra.mxu0 %v3523
  %3763 = vmatprep.subr.bf16.mxu0 %v3528
  %3764 = vmatpush1.bf16.msra.mxu0 %v3527
  %3765 = vmatprep.subr.bf16.mxu0 %v3532
  %3766 = vmatpush1.bf16.msra.mxu0 %v3531
  %3767 = vmatprep.subr.bf16.mxu0 %v3536
  %3768 = vmatpush1.bf16.msra.mxu0 %v3535
  %3769 = vmatprep.subr.bf16.mxu0 %v3540
  %3770 = vmatpush1.bf16.msra.mxu0 %v3539
  %3771 = vmatprep.subr.bf16.mxu0 %v3544
  %3772 = vmatpush1.bf16.msra.mxu0 %v3543
  %3773 = vmatprep.subr.bf16.mxu0 %v3548
  %3774 = vmatpush1.bf16.msra.mxu0 %v3547
  %3775 = vmatprep.mubr.bf16.mxu0 %v2946
  %3776 = vmatmul.mubr.bf16.gmra.mrb[0].mxu0 %v2945
  %v3777 = vpop.f32.mrb[0].mxu0
  %v3778 = vadd.f32 %v3086, %v3777
  %v3779 = vpop.f32.mrb[0].mxu0
  %v3780 = vadd.f32 %v3090, %v3779
  %v3781 = vpop.f32.mrb[0].mxu0
  %v3782 = vpop.f32.mrb[0].mxu0
  %3783 = vdwg.mxu0
  %3784 = vmatprep.subr.bf16.mxu0 %v3552
  %3785 = vmatpush1.bf16.msra.mxu0 %v3551
  %3786 = vmatprep.subr.bf16.mxu0 %v3556
  %3787 = vmatpush1.bf16.msra.mxu0 %v3555
  %3788 = vmatprep.subr.bf16.mxu0 %v3560
  %3789 = vmatpush1.bf16.msra.mxu0 %v3559
  %3790 = vmatprep.subr.bf16.mxu0 %v3564
  %3791 = vmatpush1.bf16.msra.mxu0 %v3563
  %3792 = vmatprep.subr.bf16.mxu0 %v3568
  %3793 = vmatpush1.bf16.msra.mxu0 %v3567
  %3794 = vmatprep.subr.bf16.mxu0 %v3572
  %3795 = vmatpush1.bf16.msra.mxu0 %v3571
  %3796 = vmatprep.subr.bf16.mxu0 %v3576
  %3797 = vmatpush1.bf16.msra.mxu0 %v3575
  %3798 = vmatprep.subr.bf16.mxu0 %v3580
  %3799 = vmatpush1.bf16.msra.mxu0 %v3579
  %3800 = vmatprep.subr.bf16.mxu0 %v3584
  %3801 = vmatpush1.bf16.msra.mxu0 %v3583
  %3802 = vmatprep.subr.bf16.mxu0 %v3588
  %3803 = vmatpush1.bf16.msra.mxu0 %v3587
  %3804 = vmatprep.subr.bf16.mxu0 %v3592
  %3805 = vmatpush1.bf16.msra.mxu0 %v3591
  %3806 = vmatprep.subr.bf16.mxu0 %v3596
  %3807 = vmatpush1.bf16.msra.mxu0 %v3595
  %3808 = vmatprep.subr.bf16.mxu0 %v3600
  %3809 = vmatpush1.bf16.msra.mxu0 %v3599
  %3810 = vmatprep.subr.bf16.mxu0 %v3604
  %3811 = vmatpush1.bf16.msra.mxu0 %v3603
  %3812 = vmatprep.subr.bf16.mxu0 %v3608
  %3813 = vmatpush1.bf16.msra.mxu0 %v3607
  %3814 = vmatprep.subr.bf16.mxu0 %v3612
  %3815 = vmatpush1.bf16.msra.mxu0 %v3611
  %3816 = vmatprep.mubr.bf16.mxu0 %v2948
  %3817 = vmatmul.mubr.bf16.gmra.mrb[0].mxu0 %v2947
  %v3818 = vpop.f32.mrb[0].mxu0
  %v3819 = vadd.f32 %v3778, %v3818
  %v3820 = vpop.f32.mrb[0].mxu0
  %v3821 = vadd.f32 %v3780, %v3820
  %v3822 = vpop.f32.mrb[0].mxu0
  %v3823 = vpop.f32.mrb[0].mxu0
  %3824 = vdwg.mxu0
  %3825 = vmatprep.subr.bf16.mxu0 %v3490
  %3826 = vmatpush1.bf16.msra.mxu0 %v3489
  %3827 = vmatprep.subr.bf16.mxu0 %v3494
  %3828 = vmatpush1.bf16.msra.mxu0 %v3493
  %3829 = vmatprep.subr.bf16.mxu0 %v3498
  %3830 = vmatpush1.bf16.msra.mxu0 %v3497
  %3831 = vmatprep.subr.bf16.mxu0 %v3502
  %3832 = vmatpush1.bf16.msra.mxu0 %v3501
  %3833 = vmatprep.subr.bf16.mxu0 %v3506
  %3834 = vmatpush1.bf16.msra.mxu0 %v3505
  %3835 = vmatprep.subr.bf16.mxu0 %v3510
  %3836 = vmatpush1.bf16.msra.mxu0 %v3509
  %3837 = vmatprep.subr.bf16.mxu0 %v3514
  %3838 = vmatpush1.bf16.msra.mxu0 %v3513
  %3839 = vmatprep.subr.bf16.mxu0 %v3518
  %3840 = vmatpush1.bf16.msra.mxu0 %v3517
  %3841 = vmatprep.subr.bf16.mxu0 %v3522
  %3842 = vmatpush1.bf16.msra.mxu0 %v3521
  %3843 = vmatprep.subr.bf16.mxu0 %v3526
  %3844 = vmatpush1.bf16.msra.mxu0 %v3525
  %3845 = vmatprep.subr.bf16.mxu0 %v3530
  %3846 = vmatpush1.bf16.msra.mxu0 %v3529
  %3847 = vmatprep.subr.bf16.mxu0 %v3534
  %3848 = vmatpush1.bf16.msra.mxu0 %v3533
  %3849 = vmatprep.subr.bf16.mxu0 %v3538
  %3850 = vmatpush1.bf16.msra.mxu0 %v3537
  %3851 = vmatprep.subr.bf16.mxu0 %v3542
  %3852 = vmatpush1.bf16.msra.mxu0 %v3541
  %3853 = vmatprep.subr.bf16.mxu0 %v3546
  %3854 = vmatpush1.bf16.msra.mxu0 %v3545
  %3855 = vmatprep.subr.bf16.mxu0 %v3550
  %3856 = vmatpush1.bf16.msra.mxu0 %v3549
  %3857 = vmatprep.mubr.bf16.mxu0 %v2946
  %3858 = vmatmul.mubr.bf16.gmra.mrb[0].mxu0 %v2945
  %v3859 = vpop.f32.mrb[0].mxu0
  %v3860 = vadd.f32 %v3094, %v3859
  %v3861 = vpop.f32.mrb[0].mxu0
  %v3862 = vadd.f32 %v3098, %v3861
  %v3863 = vpop.f32.mrb[0].mxu0
  %v3864 = vpop.f32.mrb[0].mxu0
  %3865 = vdwg.mxu0
  %3866 = vmatprep.subr.bf16.mxu0 %v3554
  %3867 = vmatpush1.bf16.msra.mxu0 %v3553
  %3868 = vmatprep.subr.bf16.mxu0 %v3558
  %3869 = vmatpush1.bf16.msra.mxu0 %v3557
  %3870 = vmatprep.subr.bf16.mxu0 %v3562
  %3871 = vmatpush1.bf16.msra.mxu0 %v3561
  %3872 = vmatprep.subr.bf16.mxu0 %v3566
  %3873 = vmatpush1.bf16.msra.mxu0 %v3565
  %3874 = vmatprep.subr.bf16.mxu0 %v3570
  %3875 = vmatpush1.bf16.msra.mxu0 %v3569
  %3876 = vmatprep.subr.bf16.mxu0 %v3574
  %3877 = vmatpush1.bf16.msra.mxu0 %v3573
  %3878 = vmatprep.subr.bf16.mxu0 %v3578
  %3879 = vmatpush1.bf16.msra.mxu0 %v3577
  %3880 = vmatprep.subr.bf16.mxu0 %v3582
  %3881 = vmatpush1.bf16.msra.mxu0 %v3581
  %3882 = vmatprep.subr.bf16.mxu0 %v3586
  %3883 = vmatpush1.bf16.msra.mxu0 %v3585
  %3884 = vmatprep.subr.bf16.mxu0 %v3590
  %3885 = vmatpush1.bf16.msra.mxu0 %v3589
  %3886 = vmatprep.subr.bf16.mxu0 %v3594
  %3887 = vmatpush1.bf16.msra.mxu0 %v3593
  %3888 = vmatprep.subr.bf16.mxu0 %v3598
  %3889 = vmatpush1.bf16.msra.mxu0 %v3597
  %3890 = vmatprep.subr.bf16.mxu0 %v3602
  %3891 = vmatpush1.bf16.msra.mxu0 %v3601
  %3892 = vmatprep.subr.bf16.mxu0 %v3606
  %3893 = vmatpush1.bf16.msra.mxu0 %v3605
  %3894 = vmatprep.subr.bf16.mxu0 %v3610
  %3895 = vmatpush1.bf16.msra.mxu0 %v3609
  %3896 = vmatprep.subr.bf16.mxu0 %v3614
  %3897 = vmatpush1.bf16.msra.mxu0 %v3613
  %3898 = vmatprep.mubr.bf16.mxu0 %v2948
  %3899 = vmatmul.mubr.bf16.gmra.mrb[0].mxu0 %v2947
  %v3900 = vpop.f32.mrb[0].mxu0
  %v3901 = vadd.f32 %v3860, %v3900
  %v3902 = vpop.f32.mrb[0].mxu0
  %v3903 = vadd.f32 %v3862, %v3902
  %v3904 = vpop.f32.mrb[0].mxu0
  %v3905 = vpop.f32.mrb[0].mxu0
  %3906 = vdwg.mxu0
  %v3907 = vmax.f32 %v3819, 0.0
  %v3908 = vmax.f32 %v3821, 0.0
  %v3909 = vmax.f32 %v3901, 0.0
  %v3910 = vmax.f32 %v3903, 0.0
  %v3911 = vpack.c.bf16 %v3907, %v3907
  %v3912 = vpack.c.bf16 %v3908, %v3908
  %v3913 = vpack.c.bf16 %v3909, %v3909
  %v3914 = vpack.c.bf16 %v3910, %v3910
  %v3915 = vld [vmem:[%s11] sm:$0xff]
  %v3916 = vld [vmem:[%s11 + $0x8] sm:$0xff]
  %v3917 = vld [vmem:[%s11 + $0x10] sm:$0xff]
  %v3918 = vld [vmem:[%s11 + $0x18] sm:$0xff]
  %v3919 = vld [vmem:[%s11 + $0x20] sm:$0xff]
  %v3920 = vld [vmem:[%s11 + $0x28] sm:$0xff]
  %v3921 = vld [vmem:[%s11 + $0x30] sm:$0xff]
  %v3922 = vld [vmem:[%s11 + $0x38] sm:$0xff]
  %v3923 = vld [vmem:[%s11 + $0x40] sm:$0xff]
  %v3924 = vld [vmem:[%s11 + $0x48] sm:$0xff]
  %v3925 = vld [vmem:[%s11 + $0x50] sm:$0xff]
  %v3926 = vld [vmem:[%s11 + $0x58] sm:$0xff]
  %v3927 = vld [vmem:[%s11 + $0x60] sm:$0xff]
  %v3928 = vld [vmem:[%s11 + $0x68] sm:$0xff]
  %v3929 = vld [vmem:[%s11 + $0x70] sm:$0xff]
  %v3930 = vld [vmem:[%s11 + $0x78] sm:$0xff]
  %v3931 = vld [vmem:[%s11 + $0x80] sm:$0xff]
  %v3932 = vld [vmem:[%s11 + $0x88] sm:$0xff]
  %v3933 = vld [vmem:[%s11 + $0x90] sm:$0xff]
  %v3934 = vld [vmem:[%s11 + $0x98] sm:$0xff]
  %v3935 = vld [vmem:[%s11 + $0xa0] sm:$0xff]
  %v3936 = vld [vmem:[%s11 + $0xa8] sm:$0xff]
  %v3937 = vld [vmem:[%s11 + $0xb0] sm:$0xff]
  %v3938 = vld [vmem:[%s11 + $0xb8] sm:$0xff]
  %v3939 = vld [vmem:[%s11 + $0xc0] sm:$0xff]
  %v3940 = vld [vmem:[%s11 + $0xc8] sm:$0xff]
  %v3941 = vld [vmem:[%s11 + $0xd0] sm:$0xff]
  %v3942 = vld [vmem:[%s11 + $0xd8] sm:$0xff]
  %v3943 = vld [vmem:[%s11 + $0xe0] sm:$0xff]
  %v3944 = vld [vmem:[%s11 + $0xe8] sm:$0xff]
  %v3945 = vld [vmem:[%s11 + $0xf0] sm:$0xff]
  %v3946 = vld [vmem:[%s11 + $0xf8] sm:$0xff]
  %v3947 = vld [vmem:[%s11 + $0x100] sm:$0xff]
  %v3948 = vld [vmem:[%s11 + $0x108] sm:$0xff]
  %v3949 = vld [vmem:[%s11 + $0x110] sm:$0xff]
  %v3950 = vld [vmem:[%s11 + $0x118] sm:$0xff]
  %v3951 = vld [vmem:[%s11 + $0x120] sm:$0xff]
  %v3952 = vld [vmem:[%s11 + $0x128] sm:$0xff]
  %v3953 = vld [vmem:[%s11 + $0x130] sm:$0xff]
  %v3954 = vld [vmem:[%s11 + $0x138] sm:$0xff]
  %v3955 = vld [vmem:[%s11 + $0x140] sm:$0xff]
  %v3956 = vld [vmem:[%s11 + $0x148] sm:$0xff]
  %v3957 = vld [vmem:[%s11 + $0x150] sm:$0xff]
  %v3958 = vld [vmem:[%s11 + $0x158] sm:$0xff]
  %v3959 = vld [vmem:[%s11 + $0x160] sm:$0xff]
  %v3960 = vld [vmem:[%s11 + $0x168] sm:$0xff]
  %v3961 = vld [vmem:[%s11 + $0x170] sm:$0xff]
  %v3962 = vld [vmem:[%s11 + $0x178] sm:$0xff]
  %v3963 = vld [vmem:[%s11 + $0x180] sm:$0xff]
  %v3964 = vld [vmem:[%s11 + $0x188] sm:$0xff]
  %v3965 = vld [vmem:[%s11 + $0x190] sm:$0xff]
  %v3966 = vld [vmem:[%s11 + $0x198] sm:$0xff]
  %v3967 = vld [vmem:[%s11 + $0x1a0] sm:$0xff]
  %v3968 = vld [vmem:[%s11 + $0x1a8] sm:$0xff]
  %v3969 = vld [vmem:[%s11 + $0x1b0] sm:$0xff]
  %v3970 = vld [vmem:[%s11 + $0x1b8] sm:$0xff]
  %v3971 = vld [vmem:[%s11 + $0x1c0] sm:$0xff]
  %v3972 = vld [vmem:[%s11 + $0x1c8] sm:$0xff]
  %v3973 = vld [vmem:[%s11 + $0x1d0] sm:$0xff]
  %v3974 = vld [vmem:[%s11 + $0x1d8] sm:$0xff]
  %v3975 = vld [vmem:[%s11 + $0x1e0] sm:$0xff]
  %v3976 = vld [vmem:[%s11 + $0x1e8] sm:$0xff]
  %v3977 = vld [vmem:[%s11 + $0x1f0] sm:$0xff]
  %v3978 = vld [vmem:[%s11 + $0x1f8] sm:$0xff]
  %v3979 = vld [vmem:[%s11 + $0x200] sm:$0xff]
  %v3980 = vld [vmem:[%s11 + $0x208] sm:$0xff]
  %v3981 = vld [vmem:[%s11 + $0x210] sm:$0xff]
  %v3982 = vld [vmem:[%s11 + $0x218] sm:$0xff]
  %v3983 = vld [vmem:[%s11 + $0x220] sm:$0xff]
  %v3984 = vld [vmem:[%s11 + $0x228] sm:$0xff]
  %v3985 = vld [vmem:[%s11 + $0x230] sm:$0xff]
  %v3986 = vld [vmem:[%s11 + $0x238] sm:$0xff]
  %v3987 = vld [vmem:[%s11 + $0x240] sm:$0xff]
  %v3988 = vld [vmem:[%s11 + $0x248] sm:$0xff]
  %v3989 = vld [vmem:[%s11 + $0x250] sm:$0xff]
  %v3990 = vld [vmem:[%s11 + $0x258] sm:$0xff]
  %v3991 = vld [vmem:[%s11 + $0x260] sm:$0xff]
  %v3992 = vld [vmem:[%s11 + $0x268] sm:$0xff]
  %v3993 = vld [vmem:[%s11 + $0x270] sm:$0xff]
  %v3994 = vld [vmem:[%s11 + $0x278] sm:$0xff]
  %v3995 = vld [vmem:[%s11 + $0x280] sm:$0xff]
  %v3996 = vld [vmem:[%s11 + $0x288] sm:$0xff]
  %v3997 = vld [vmem:[%s11 + $0x290] sm:$0xff]
  %v3998 = vld [vmem:[%s11 + $0x298] sm:$0xff]
  %v3999 = vld [vmem:[%s11 + $0x2a0] sm:$0xff]
  %v4000 = vld [vmem:[%s11 + $0x2a8] sm:$0xff]
  %v4001 = vld [vmem:[%s11 + $0x2b0] sm:$0xff]
  %v4002 = vld [vmem:[%s11 + $0x2b8] sm:$0xff]
  %v4003 = vld [vmem:[%s11 + $0x2c0] sm:$0xff]
  %v4004 = vld [vmem:[%s11 + $0x2c8] sm:$0xff]
  %v4005 = vld [vmem:[%s11 + $0x2d0] sm:$0xff]
  %v4006 = vld [vmem:[%s11 + $0x2d8] sm:$0xff]
  %v4007 = vld [vmem:[%s11 + $0x2e0] sm:$0xff]
  %v4008 = vld [vmem:[%s11 + $0x2e8] sm:$0xff]
  %v4009 = vld [vmem:[%s11 + $0x2f0] sm:$0xff]
  %v4010 = vld [vmem:[%s11 + $0x2f8] sm:$0xff]
  %v4011 = vld [vmem:[%s11 + $0x300] sm:$0xff]
  %v4012 = vld [vmem:[%s11 + $0x308] sm:$0xff]
  %v4013 = vld [vmem:[%s11 + $0x310] sm:$0xff]
  %v4014 = vld [vmem:[%s11 + $0x318] sm:$0xff]
  %v4015 = vld [vmem:[%s11 + $0x320] sm:$0xff]
  %v4016 = vld [vmem:[%s11 + $0x328] sm:$0xff]
  %v4017 = vld [vmem:[%s11 + $0x330] sm:$0xff]
  %v4018 = vld [vmem:[%s11 + $0x338] sm:$0xff]
  %v4019 = vld [vmem:[%s11 + $0x340] sm:$0xff]
  %v4020 = vld [vmem:[%s11 + $0x348] sm:$0xff]
  %v4021 = vld [vmem:[%s11 + $0x350] sm:$0xff]
  %v4022 = vld [vmem:[%s11 + $0x358] sm:$0xff]
  %v4023 = vld [vmem:[%s11 + $0x360] sm:$0xff]
  %v4024 = vld [vmem:[%s11 + $0x368] sm:$0xff]
  %v4025 = vld [vmem:[%s11 + $0x370] sm:$0xff]
  %v4026 = vld [vmem:[%s11 + $0x378] sm:$0xff]
  %v4027 = vld [vmem:[%s11 + $0x380] sm:$0xff]
  %v4028 = vld [vmem:[%s11 + $0x388] sm:$0xff]
  %v4029 = vld [vmem:[%s11 + $0x390] sm:$0xff]
  %v4030 = vld [vmem:[%s11 + $0x398] sm:$0xff]
  %v4031 = vld [vmem:[%s11 + $0x3a0] sm:$0xff]
  %v4032 = vld [vmem:[%s11 + $0x3a8] sm:$0xff]
  %v4033 = vld [vmem:[%s11 + $0x3b0] sm:$0xff]
  %v4034 = vld [vmem:[%s11 + $0x3b8] sm:$0xff]
  %v4035 = vld [vmem:[%s11 + $0x3c0] sm:$0xff]
  %v4036 = vld [vmem:[%s11 + $0x3c8] sm:$0xff]
  %v4037 = vld [vmem:[%s11 + $0x3d0] sm:$0xff]
  %v4038 = vld [vmem:[%s11 + $0x3d8] sm:$0xff]
  %v4039 = vld [vmem:[%s11 + $0x3e0] sm:$0xff]
  %v4040 = vld [vmem:[%s11 + $0x3e8] sm:$0xff]
  %v4041 = vld [vmem:[%s11 + $0x3f0] sm:$0xff]
  %v4042 = vld [vmem:[%s11 + $0x3f8] sm:$0xff]
  %v4043 = vld [vmem:[%s12] sm:$0xf]
  %v4045 = vlaneseq
  %v4046 = vshrl.u32 %v4045, 7
  %v4047 = vsub.s32 0, %v4046
  %v4048 = vrot.slane %v4043, %v4047
  %v4049 = vlaneseq
  %v4050 = vshrl.u32 %v4049, 7
  %v4051 = vsub.s32 1, %v4050
  %v4052 = vrot.slane %v4043, %v4051
  %v4053 = vlaneseq
  %v4054 = vshrl.u32 %v4053, 7
  %v4055 = vsub.s32 2, %v4054
  %v4056 = vrot.slane %v4043, %v4055
  %v4057 = vlaneseq
  %v4058 = vshrl.u32 %v4057, 7
  %v4059 = vsub.s32 3, %v4058
  %v4060 = vrot.slane %v4043, %v4059
  %v4193 = vunpack.c.l.b16 %v3915
  %v4194 = vunpack.c.h.b16 %v3915
  %v4195 = vunpack.c.l.b16 %v3916
  %v4196 = vunpack.c.h.b16 %v3916
  %v4197 = vunpack.c.l.b16 %v3917
  %v4198 = vunpack.c.h.b16 %v3917
  %v4199 = vunpack.c.l.b16 %v3918
  %v4200 = vunpack.c.h.b16 %v3918
  %v4201 = vunpack.c.l.b16 %v3919
  %v4202 = vunpack.c.h.b16 %v3919
  %v4203 = vunpack.c.l.b16 %v3920
  %v4204 = vunpack.c.h.b16 %v3920
  %v4205 = vunpack.c.l.b16 %v3921
  %v4206 = vunpack.c.h.b16 %v3921
  %v4207 = vunpack.c.l.b16 %v3922
  %v4208 = vunpack.c.h.b16 %v3922
  %v4209 = vunpack.c.l.b16 %v3923
  %v4210 = vunpack.c.h.b16 %v3923
  %v4211 = vunpack.c.l.b16 %v3924
  %v4212 = vunpack.c.h.b16 %v3924
  %v4213 = vunpack.c.l.b16 %v3925
  %v4214 = vunpack.c.h.b16 %v3925
  %v4215 = vunpack.c.l.b16 %v3926
  %v4216 = vunpack.c.h.b16 %v3926
  %v4217 = vunpack.c.l.b16 %v3927
  %v4218 = vunpack.c.h.b16 %v3927
  %v4219 = vunpack.c.l.b16 %v3928
  %v4220 = vunpack.c.h.b16 %v3928
  %v4221 = vunpack.c.l.b16 %v3929
  %v4222 = vunpack.c.h.b16 %v3929
  %v4223 = vunpack.c.l.b16 %v3930
  %v4224 = vunpack.c.h.b16 %v3930
  %v4225 = vunpack.c.l.b16 %v3931
  %v4226 = vunpack.c.h.b16 %v3931
  %v4227 = vunpack.c.l.b16 %v3932
  %v4228 = vunpack.c.h.b16 %v3932
  %v4229 = vunpack.c.l.b16 %v3933
  %v4230 = vunpack.c.h.b16 %v3933
  %v4231 = vunpack.c.l.b16 %v3934
  %v4232 = vunpack.c.h.b16 %v3934
  %v4233 = vunpack.c.l.b16 %v3935
  %v4234 = vunpack.c.h.b16 %v3935
  %v4235 = vunpack.c.l.b16 %v3936
  %v4236 = vunpack.c.h.b16 %v3936
  %v4237 = vunpack.c.l.b16 %v3937
  %v4238 = vunpack.c.h.b16 %v3937
  %v4239 = vunpack.c.l.b16 %v3938
  %v4240 = vunpack.c.h.b16 %v3938
  %v4241 = vunpack.c.l.b16 %v3939
  %v4242 = vunpack.c.h.b16 %v3939
  %v4243 = vunpack.c.l.b16 %v3940
  %v4244 = vunpack.c.h.b16 %v3940
  %v4245 = vunpack.c.l.b16 %v3941
  %v4246 = vunpack.c.h.b16 %v3941
  %v4247 = vunpack.c.l.b16 %v3942
  %v4248 = vunpack.c.h.b16 %v3942
  %v4249 = vunpack.c.l.b16 %v3943
  %v4250 = vunpack.c.h.b16 %v3943
  %v4251 = vunpack.c.l.b16 %v3944
  %v4252 = vunpack.c.h.b16 %v3944
  %v4253 = vunpack.c.l.b16 %v3945
  %v4254 = vunpack.c.h.b16 %v3945
  %v4255 = vunpack.c.l.b16 %v3946
  %v4256 = vunpack.c.h.b16 %v3946
  %v4257 = vunpack.c.l.b16 %v3947
  %v4258 = vunpack.c.h.b16 %v3947
  %v4259 = vunpack.c.l.b16 %v3948
  %v4260 = vunpack.c.h.b16 %v3948
  %v4261 = vunpack.c.l.b16 %v3949
  %v4262 = vunpack.c.h.b16 %v3949
  %v4263 = vunpack.c.l.b16 %v3950
  %v4264 = vunpack.c.h.b16 %v3950
  %v4265 = vunpack.c.l.b16 %v3951
  %v4266 = vunpack.c.h.b16 %v3951
  %v4267 = vunpack.c.l.b16 %v3952
  %v4268 = vunpack.c.h.b16 %v3952
  %v4269 = vunpack.c.l.b16 %v3953
  %v4270 = vunpack.c.h.b16 %v3953
  %v4271 = vunpack.c.l.b16 %v3954
  %v4272 = vunpack.c.h.b16 %v3954
  %v4273 = vunpack.c.l.b16 %v3955
  %v4274 = vunpack.c.h.b16 %v3955
  %v4275 = vunpack.c.l.b16 %v3956
  %v4276 = vunpack.c.h.b16 %v3956
  %v4277 = vunpack.c.l.b16 %v3957
  %v4278 = vunpack.c.h.b16 %v3957
  %v4279 = vunpack.c.l.b16 %v3958
  %v4280 = vunpack.c.h.b16 %v3958
  %v4281 = vunpack.c.l.b16 %v3959
  %v4282 = vunpack.c.h.b16 %v3959
  %v4283 = vunpack.c.l.b16 %v3960
  %v4284 = vunpack.c.h.b16 %v3960
  %v4285 = vunpack.c.l.b16 %v3961
  %v4286 = vunpack.c.h.b16 %v3961
  %v4287 = vunpack.c.l.b16 %v3962
  %v4288 = vunpack.c.h.b16 %v3962
  %v4289 = vunpack.c.l.b16 %v3963
  %v4290 = vunpack.c.h.b16 %v3963
  %v4291 = vunpack.c.l.b16 %v3964
  %v4292 = vunpack.c.h.b16 %v3964
  %v4293 = vunpack.c.l.b16 %v3965
  %v4294 = vunpack.c.h.b16 %v3965
  %v4295 = vunpack.c.l.b16 %v3966
  %v4296 = vunpack.c.h.b16 %v3966
  %v4297 = vunpack.c.l.b16 %v3967
  %v4298 = vunpack.c.h.b16 %v3967
  %v4299 = vunpack.c.l.b16 %v3968
  %v4300 = vunpack.c.h.b16 %v3968
  %v4301 = vunpack.c.l.b16 %v3969
  %v4302 = vunpack.c.h.b16 %v3969
  %v4303 = vunpack.c.l.b16 %v3970
  %v4304 = vunpack.c.h.b16 %v3970
  %v4305 = vunpack.c.l.b16 %v3971
  %v4306 = vunpack.c.h.b16 %v3971
  %v4307 = vunpack.c.l.b16 %v3972
  %v4308 = vunpack.c.h.b16 %v3972
  %v4309 = vunpack.c.l.b16 %v3973
  %v4310 = vunpack.c.h.b16 %v3973
  %v4311 = vunpack.c.l.b16 %v3974
  %v4312 = vunpack.c.h.b16 %v3974
  %v4313 = vunpack.c.l.b16 %v3975
  %v4314 = vunpack.c.h.b16 %v3975
  %v4315 = vunpack.c.l.b16 %v3976
  %v4316 = vunpack.c.h.b16 %v3976
  %v4317 = vunpack.c.l.b16 %v3977
  %v4318 = vunpack.c.h.b16 %v3977
  %v4319 = vunpack.c.l.b16 %v3978
  %v4320 = vunpack.c.h.b16 %v3978
  %v4321 = vunpack.c.l.b16 %v3979
  %v4322 = vunpack.c.h.b16 %v3979
  %v4323 = vunpack.c.l.b16 %v3980
  %v4324 = vunpack.c.h.b16 %v3980
  %v4325 = vunpack.c.l.b16 %v3981
  %v4326 = vunpack.c.h.b16 %v3981
  %v4327 = vunpack.c.l.b16 %v3982
  %v4328 = vunpack.c.h.b16 %v3982
  %v4329 = vunpack.c.l.b16 %v3983
  %v4330 = vunpack.c.h.b16 %v3983
  %v4331 = vunpack.c.l.b16 %v3984
  %v4332 = vunpack.c.h.b16 %v3984
  %v4333 = vunpack.c.l.b16 %v3985
  %v4334 = vunpack.c.h.b16 %v3985
  %v4335 = vunpack.c.l.b16 %v3986
  %v4336 = vunpack.c.h.b16 %v3986
  %v4337 = vunpack.c.l.b16 %v3987
  %v4338 = vunpack.c.h.b16 %v3987
  %v4339 = vunpack.c.l.b16 %v3988
  %v4340 = vunpack.c.h.b16 %v3988
  %v4341 = vunpack.c.l.b16 %v3989
  %v4342 = vunpack.c.h.b16 %v3989
  %v4343 = vunpack.c.l.b16 %v3990
  %v4344 = vunpack.c.h.b16 %v3990
  %v4345 = vunpack.c.l.b16 %v3991
  %v4346 = vunpack.c.h.b16 %v3991
  %v4347 = vunpack.c.l.b16 %v3992
  %v4348 = vunpack.c.h.b16 %v3992
  %v4349 = vunpack.c.l.b16 %v3993
  %v4350 = vunpack.c.h.b16 %v3993
  %v4351 = vunpack.c.l.b16 %v3994
  %v4352 = vunpack.c.h.b16 %v3994
  %v4353 = vunpack.c.l.b16 %v3995
  %v4354 = vunpack.c.h.b16 %v3995
  %v4355 = vunpack.c.l.b16 %v3996
  %v4356 = vunpack.c.h.b16 %v3996
  %v4357 = vunpack.c.l.b16 %v3997
  %v4358 = vunpack.c.h.b16 %v3997
  %v4359 = vunpack.c.l.b16 %v3998
  %v4360 = vunpack.c.h.b16 %v3998
  %v4361 = vunpack.c.l.b16 %v3999
  %v4362 = vunpack.c.h.b16 %v3999
  %v4363 = vunpack.c.l.b16 %v4000
  %v4364 = vunpack.c.h.b16 %v4000
  %v4365 = vunpack.c.l.b16 %v4001
  %v4366 = vunpack.c.h.b16 %v4001
  %v4367 = vunpack.c.l.b16 %v4002
  %v4368 = vunpack.c.h.b16 %v4002
  %v4369 = vunpack.c.l.b16 %v4003
  %v4370 = vunpack.c.h.b16 %v4003
  %v4371 = vunpack.c.l.b16 %v4004
  %v4372 = vunpack.c.h.b16 %v4004
  %v4373 = vunpack.c.l.b16 %v4005
  %v4374 = vunpack.c.h.b16 %v4005
  %v4375 = vunpack.c.l.b16 %v4006
  %v4376 = vunpack.c.h.b16 %v4006
  %v4377 = vunpack.c.l.b16 %v4007
  %v4378 = vunpack.c.h.b16 %v4007
  %v4379 = vunpack.c.l.b16 %v4008
  %v4380 = vunpack.c.h.b16 %v4008
  %v4381 = vunpack.c.l.b16 %v4009
  %v4382 = vunpack.c.h.b16 %v4009
  %v4383 = vunpack.c.l.b16 %v4010
  %v4384 = vunpack.c.h.b16 %v4010
  %v4385 = vunpack.c.l.b16 %v4011
  %v4386 = vunpack.c.h.b16 %v4011
  %v4387 = vunpack.c.l.b16 %v4012
  %v4388 = vunpack.c.h.b16 %v4012
  %v4389 = vunpack.c.l.b16 %v4013
  %v4390 = vunpack.c.h.b16 %v4013
  %v4391 = vunpack.c.l.b16 %v4014
  %v4392 = vunpack.c.h.b16 %v4014
  %v4393 = vunpack.c.l.b16 %v4015
  %v4394 = vunpack.c.h.b16 %v4015
  %v4395 = vunpack.c.l.b16 %v4016
  %v4396 = vunpack.c.h.b16 %v4016
  %v4397 = vunpack.c.l.b16 %v4017
  %v4398 = vunpack.c.h.b16 %v4017
  %v4399 = vunpack.c.l.b16 %v4018
  %v4400 = vunpack.c.h.b16 %v4018
  %v4401 = vunpack.c.l.b16 %v4019
  %v4402 = vunpack.c.h.b16 %v4019
  %v4403 = vunpack.c.l.b16 %v4020
  %v4404 = vunpack.c.h.b16 %v4020
  %v4405 = vunpack.c.l.b16 %v4021
  %v4406 = vunpack.c.h.b16 %v4021
  %v4407 = vunpack.c.l.b16 %v4022
  %v4408 = vunpack.c.h.b16 %v4022
  %v4409 = vunpack.c.l.b16 %v4023
  %v4410 = vunpack.c.h.b16 %v4023
  %v4411 = vunpack.c.l.b16 %v4024
  %v4412 = vunpack.c.h.b16 %v4024
  %v4413 = vunpack.c.l.b16 %v4025
  %v4414 = vunpack.c.h.b16 %v4025
  %v4415 = vunpack.c.l.b16 %v4026
  %v4416 = vunpack.c.h.b16 %v4026
  %v4417 = vunpack.c.l.b16 %v4027
  %v4418 = vunpack.c.h.b16 %v4027
  %v4419 = vunpack.c.l.b16 %v4028
  %v4420 = vunpack.c.h.b16 %v4028
  %v4421 = vunpack.c.l.b16 %v4029
  %v4422 = vunpack.c.h.b16 %v4029
  %v4423 = vunpack.c.l.b16 %v4030
  %v4424 = vunpack.c.h.b16 %v4030
  %v4425 = vunpack.c.l.b16 %v4031
  %v4426 = vunpack.c.h.b16 %v4031
  %v4427 = vunpack.c.l.b16 %v4032
  %v4428 = vunpack.c.h.b16 %v4032
  %v4429 = vunpack.c.l.b16 %v4033
  %v4430 = vunpack.c.h.b16 %v4033
  %v4431 = vunpack.c.l.b16 %v4034
  %v4432 = vunpack.c.h.b16 %v4034
  %v4433 = vunpack.c.l.b16 %v4035
  %v4434 = vunpack.c.h.b16 %v4035
  %v4435 = vunpack.c.l.b16 %v4036
  %v4436 = vunpack.c.h.b16 %v4036
  %v4437 = vunpack.c.l.b16 %v4037
  %v4438 = vunpack.c.h.b16 %v4037
  %v4439 = vunpack.c.l.b16 %v4038
  %v4440 = vunpack.c.h.b16 %v4038
  %v4441 = vunpack.c.l.b16 %v4039
  %v4442 = vunpack.c.h.b16 %v4039
  %v4443 = vunpack.c.l.b16 %v4040
  %v4444 = vunpack.c.h.b16 %v4040
  %v4445 = vunpack.c.l.b16 %v4041
  %v4446 = vunpack.c.h.b16 %v4041
  %v4447 = vunpack.c.l.b16 %v4042
  %v4448 = vunpack.c.h.b16 %v4042
  %v4449 = vpack.c.b16 %v4197, %v4193
  %v4450 = vpack.c.b16 %v4198, %v4194
  %v4451 = vpack.c.b16 %v4199, %v4195
  %v4452 = vpack.c.b16 %v4200, %v4196
  %v4453 = vpack.c.b16 %v4205, %v4201
  %v4454 = vpack.c.b16 %v4206, %v4202
  %v4455 = vpack.c.b16 %v4207, %v4203
  %v4456 = vpack.c.b16 %v4208, %v4204
  %v4457 = vpack.c.b16 %v4213, %v4209
  %v4458 = vpack.c.b16 %v4214, %v4210
  %v4459 = vpack.c.b16 %v4215, %v4211
  %v4460 = vpack.c.b16 %v4216, %v4212
  %v4461 = vpack.c.b16 %v4221, %v4217
  %v4462 = vpack.c.b16 %v4222, %v4218
  %v4463 = vpack.c.b16 %v4223, %v4219
  %v4464 = vpack.c.b16 %v4224, %v4220
  %v4465 = vpack.c.b16 %v4229, %v4225
  %v4466 = vpack.c.b16 %v4230, %v4226
  %v4467 = vpack.c.b16 %v4231, %v4227
  %v4468 = vpack.c.b16 %v4232, %v4228
  %v4469 = vpack.c.b16 %v4237, %v4233
  %v4470 = vpack.c.b16 %v4238, %v4234
  %v4471 = vpack.c.b16 %v4239, %v4235
  %v4472 = vpack.c.b16 %v4240, %v4236
  %v4473 = vpack.c.b16 %v4245, %v4241
  %v4474 = vpack.c.b16 %v4246, %v4242
  %v4475 = vpack.c.b16 %v4247, %v4243
  %v4476 = vpack.c.b16 %v4248, %v4244
  %v4477 = vpack.c.b16 %v4253, %v4249
  %v4478 = vpack.c.b16 %v4254, %v4250
  %v4479 = vpack.c.b16 %v4255, %v4251
  %v4480 = vpack.c.b16 %v4256, %v4252
  %v4481 = vpack.c.b16 %v4261, %v4257
  %v4482 = vpack.c.b16 %v4262, %v4258
  %v4483 = vpack.c.b16 %v4263, %v4259
  %v4484 = vpack.c.b16 %v4264, %v4260
  %v4485 = vpack.c.b16 %v4269, %v4265
  %v4486 = vpack.c.b16 %v4270, %v4266
  %v4487 = vpack.c.b16 %v4271, %v4267
  %v4488 = vpack.c.b16 %v4272, %v4268
  %v4489 = vpack.c.b16 %v4277, %v4273
  %v4490 = vpack.c.b16 %v4278, %v4274
  %v4491 = vpack.c.b16 %v4279, %v4275
  %v4492 = vpack.c.b16 %v4280, %v4276
  %v4493 = vpack.c.b16 %v4285, %v4281
  %v4494 = vpack.c.b16 %v4286, %v4282
  %v4495 = vpack.c.b16 %v4287, %v4283
  %v4496 = vpack.c.b16 %v4288, %v4284
  %v4497 = vpack.c.b16 %v4293, %v4289
  %v4498 = vpack.c.b16 %v4294, %v4290
  %v4499 = vpack.c.b16 %v4295, %v4291
  %v4500 = vpack.c.b16 %v4296, %v4292
  %v4501 = vpack.c.b16 %v4301, %v4297
  %v4502 = vpack.c.b16 %v4302, %v4298
  %v4503 = vpack.c.b16 %v4303, %v4299
  %v4504 = vpack.c.b16 %v4304, %v4300
  %v4505 = vpack.c.b16 %v4309, %v4305
  %v4506 = vpack.c.b16 %v4310, %v4306
  %v4507 = vpack.c.b16 %v4311, %v4307
  %v4508 = vpack.c.b16 %v4312, %v4308
  %v4509 = vpack.c.b16 %v4317, %v4313
  %v4510 = vpack.c.b16 %v4318, %v4314
  %v4511 = vpack.c.b16 %v4319, %v4315
  %v4512 = vpack.c.b16 %v4320, %v4316
  %v4513 = vpack.c.b16 %v4325, %v4321
  %v4514 = vpack.c.b16 %v4326, %v4322
  %v4515 = vpack.c.b16 %v4327, %v4323
  %v4516 = vpack.c.b16 %v4328, %v4324
  %v4517 = vpack.c.b16 %v4333, %v4329
  %v4518 = vpack.c.b16 %v4334, %v4330
  %v4519 = vpack.c.b16 %v4335, %v4331
  %v4520 = vpack.c.b16 %v4336, %v4332
  %v4521 = vpack.c.b16 %v4341, %v4337
  %v4522 = vpack.c.b16 %v4342, %v4338
  %v4523 = vpack.c.b16 %v4343, %v4339
  %v4524 = vpack.c.b16 %v4344, %v4340
  %v4525 = vpack.c.b16 %v4349, %v4345
  %v4526 = vpack.c.b16 %v4350, %v4346
  %v4527 = vpack.c.b16 %v4351, %v4347
  %v4528 = vpack.c.b16 %v4352, %v4348
  %v4529 = vpack.c.b16 %v4357, %v4353
  %v4530 = vpack.c.b16 %v4358, %v4354
  %v4531 = vpack.c.b16 %v4359, %v4355
  %v4532 = vpack.c.b16 %v4360, %v4356
  %v4533 = vpack.c.b16 %v4365, %v4361
  %v4534 = vpack.c.b16 %v4366, %v4362
  %v4535 = vpack.c.b16 %v4367, %v4363
  %v4536 = vpack.c.b16 %v4368, %v4364
  %v4537 = vpack.c.b16 %v4373, %v4369
  %v4538 = vpack.c.b16 %v4374, %v4370
  %v4539 = vpack.c.b16 %v4375, %v4371
  %v4540 = vpack.c.b16 %v4376, %v4372
  %v4541 = vpack.c.b16 %v4381, %v4377
  %v4542 = vpack.c.b16 %v4382, %v4378
  %v4543 = vpack.c.b16 %v4383, %v4379
  %v4544 = vpack.c.b16 %v4384, %v4380
  %v4545 = vpack.c.b16 %v4389, %v4385
  %v4546 = vpack.c.b16 %v4390, %v4386
  %v4547 = vpack.c.b16 %v4391, %v4387
  %v4548 = vpack.c.b16 %v4392, %v4388
  %v4549 = vpack.c.b16 %v4397, %v4393
  %v4550 = vpack.c.b16 %v4398, %v4394
  %v4551 = vpack.c.b16 %v4399, %v4395
  %v4552 = vpack.c.b16 %v4400, %v4396
  %v4553 = vpack.c.b16 %v4405, %v4401
  %v4554 = vpack.c.b16 %v4406, %v4402
  %v4555 = vpack.c.b16 %v4407, %v4403
  %v4556 = vpack.c.b16 %v4408, %v4404
  %v4557 = vpack.c.b16 %v4413, %v4409
  %v4558 = vpack.c.b16 %v4414, %v4410
  %v4559 = vpack.c.b16 %v4415, %v4411
  %v4560 = vpack.c.b16 %v4416, %v4412
  %v4561 = vpack.c.b16 %v4421, %v4417
  %v4562 = vpack.c.b16 %v4422, %v4418
  %v4563 = vpack.c.b16 %v4423, %v4419
  %v4564 = vpack.c.b16 %v4424, %v4420
  %v4565 = vpack.c.b16 %v4429, %v4425
  %v4566 = vpack.c.b16 %v4430, %v4426
  %v4567 = vpack.c.b16 %v4431, %v4427
  %v4568 = vpack.c.b16 %v4432, %v4428
  %v4569 = vpack.c.b16 %v4437, %v4433
  %v4570 = vpack.c.b16 %v4438, %v4434
  %v4571 = vpack.c.b16 %v4439, %v4435
  %v4572 = vpack.c.b16 %v4440, %v4436
  %v4573 = vpack.c.b16 %v4445, %v4441
  %v4574 = vpack.c.b16 %v4446, %v4442
  %v4575 = vpack.c.b16 %v4447, %v4443
  %v4576 = vpack.c.b16 %v4448, %v4444
  %4705 = vmatprep.subr.bf16.mxu0 %v4450
  %4706 = vmatpush1.bf16.msra.mxu0 %v4449
  %4707 = vmatprep.subr.bf16.mxu0 %v4454
  %4708 = vmatpush1.bf16.msra.mxu0 %v4453
  %4709 = vmatprep.subr.bf16.mxu0 %v4458
  %4710 = vmatpush1.bf16.msra.mxu0 %v4457
  %4711 = vmatprep.subr.bf16.mxu0 %v4462
  %4712 = vmatpush1.bf16.msra.mxu0 %v4461
  %4713 = vmatprep.subr.bf16.mxu0 %v4466
  %4714 = vmatpush1.bf16.msra.mxu0 %v4465
  %4715 = vmatprep.subr.bf16.mxu0 %v4470
  %4716 = vmatpush1.bf16.msra.mxu0 %v4469
  %4717 = vmatprep.subr.bf16.mxu0 %v4474
  %4718 = vmatpush1.bf16.msra.mxu0 %v4473
  %4719 = vmatprep.subr.bf16.mxu0 %v4478
  %4720 = vmatpush1.bf16.msra.mxu0 %v4477
  %4721 = vmatprep.subr.bf16.mxu0 %v4482
  %4722 = vmatpush1.bf16.msra.mxu0 %v4481
  %4723 = vmatprep.subr.bf16.mxu0 %v4486
  %4724 = vmatpush1.bf16.msra.mxu0 %v4485
  %4725 = vmatprep.subr.bf16.mxu0 %v4490
  %4726 = vmatpush1.bf16.msra.mxu0 %v4489
  %4727 = vmatprep.subr.bf16.mxu0 %v4494
  %4728 = vmatpush1.bf16.msra.mxu0 %v4493
  %4729 = vmatprep.subr.bf16.mxu0 %v4498
  %4730 = vmatpush1.bf16.msra.mxu0 %v4497
  %4731 = vmatprep.subr.bf16.mxu0 %v4502
  %4732 = vmatpush1.bf16.msra.mxu0 %v4501
  %4733 = vmatprep.subr.bf16.mxu0 %v4506
  %4734 = vmatpush1.bf16.msra.mxu0 %v4505
  %4735 = vmatprep.subr.bf16.mxu0 %v4510
  %4736 = vmatpush1.bf16.msra.mxu0 %v4509
  %4737 = vmatprep.mubr.bf16.mxu0 %v2950
  %4738 = vmatmul.mubr.bf16.gmra.mrb[0].mxu0 %v2949
  %v4739 = vpop.f32.mrb[0].mxu0
  %v4740 = vadd.f32 %v4048, %v4739
  %v4741 = vpop.f32.mrb[0].mxu0
  %v4742 = vadd.f32 %v4052, %v4741
  %v4743 = vpop.f32.mrb[0].mxu0
  %v4744 = vpop.f32.mrb[0].mxu0
  %4745 = vdwg.mxu0
  %4746 = vmatprep.subr.bf16.mxu0 %v4514
  %4747 = vmatpush1.bf16.msra.mxu0 %v4513
  %4748 = vmatprep.subr.bf16.mxu0 %v4518
  %4749 = vmatpush1.bf16.msra.mxu0 %v4517
  %4750 = vmatprep.subr.bf16.mxu0 %v4522
  %4751 = vmatpush1.bf16.msra.mxu0 %v4521
  %4752 = vmatprep.subr.bf16.mxu0 %v4526
  %4753 = vmatpush1.bf16.msra.mxu0 %v4525
  %4754 = vmatprep.subr.bf16.mxu0 %v4530
  %4755 = vmatpush1.bf16.msra.mxu0 %v4529
  %4756 = vmatprep.subr.bf16.mxu0 %v4534
  %4757 = vmatpush1.bf16.msra.mxu0 %v4533
  %4758 = vmatprep.subr.bf16.mxu0 %v4538
  %4759 = vmatpush1.bf16.msra.mxu0 %v4537
  %4760 = vmatprep.subr.bf16.mxu0 %v4542
  %4761 = vmatpush1.bf16.msra.mxu0 %v4541
  %4762 = vmatprep.subr.bf16.mxu0 %v4546
  %4763 = vmatpush1.bf16.msra.mxu0 %v4545
  %4764 = vmatprep.subr.bf16.mxu0 %v4550
  %4765 = vmatpush1.bf16.msra.mxu0 %v4549
  %4766 = vmatprep.subr.bf16.mxu0 %v4554
  %4767 = vmatpush1.bf16.msra.mxu0 %v4553
  %4768 = vmatprep.subr.bf16.mxu0 %v4558
  %4769 = vmatpush1.bf16.msra.mxu0 %v4557
  %4770 = vmatprep.subr.bf16.mxu0 %v4562
  %4771 = vmatpush1.bf16.msra.mxu0 %v4561
  %4772 = vmatprep.subr.bf16.mxu0 %v4566
  %4773 = vmatpush1.bf16.msra.mxu0 %v4565
  %4774 = vmatprep.subr.bf16.mxu0 %v4570
  %4775 = vmatpush1.bf16.msra.mxu0 %v4569
  %4776 = vmatprep.subr.bf16.mxu0 %v4574
  %4777 = vmatpush1.bf16.msra.mxu0 %v4573
  %4778 = vmatprep.mubr.bf16.mxu0 %v2952
  %4779 = vmatmul.mubr.bf16.gmra.mrb[0].mxu0 %v2951
  %v4780 = vpop.f32.mrb[0].mxu0
  %v4781 = vadd.f32 %v4740, %v4780
  %v4782 = vpop.f32.mrb[0].mxu0
  %v4783 = vadd.f32 %v4742, %v4782
  %v4784 = vpop.f32.mrb[0].mxu0
  %v4785 = vpop.f32.mrb[0].mxu0
  %4786 = vdwg.mxu0
  %4787 = vmatprep.subr.bf16.mxu0 %v4452
  %4788 = vmatpush1.bf16.msra.mxu0 %v4451
  %4789 = vmatprep.subr.bf16.mxu0 %v4456
  %4790 = vmatpush1.bf16.msra.mxu0 %v4455
  %4791 = vmatprep.subr.bf16.mxu0 %v4460
  %4792 = vmatpush1.bf16.msra.mxu0 %v4459
  %4793 = vmatprep.subr.bf16.mxu0 %v4464
  %4794 = vmatpush1.bf16.msra.mxu0 %v4463
  %4795 = vmatprep.subr.bf16.mxu0 %v4468
  %4796 = vmatpush1.bf16.msra.mxu0 %v4467
  %4797 = vmatprep.subr.bf16.mxu0 %v4472
  %4798 = vmatpush1.bf16.msra.mxu0 %v4471
  %4799 = vmatprep.subr.bf16.mxu0 %v4476
  %4800 = vmatpush1.bf16.msra.mxu0 %v4475
  %4801 = vmatprep.subr.bf16.mxu0 %v4480
  %4802 = vmatpush1.bf16.msra.mxu0 %v4479
  %4803 = vmatprep.subr.bf16.mxu0 %v4484
  %4804 = vmatpush1.bf16.msra.mxu0 %v4483
  %4805 = vmatprep.subr.bf16.mxu0 %v4488
  %4806 = vmatpush1.bf16.msra.mxu0 %v4487
  %4807 = vmatprep.subr.bf16.mxu0 %v4492
  %4808 = vmatpush1.bf16.msra.mxu0 %v4491
  %4809 = vmatprep.subr.bf16.mxu0 %v4496
  %4810 = vmatpush1.bf16.msra.mxu0 %v4495
  %4811 = vmatprep.subr.bf16.mxu0 %v4500
  %4812 = vmatpush1.bf16.msra.mxu0 %v4499
  %4813 = vmatprep.subr.bf16.mxu0 %v4504
  %4814 = vmatpush1.bf16.msra.mxu0 %v4503
  %4815 = vmatprep.subr.bf16.mxu0 %v4508
  %4816 = vmatpush1.bf16.msra.mxu0 %v4507
  %4817 = vmatprep.subr.bf16.mxu0 %v4512
  %4818 = vmatpush1.bf16.msra.mxu0 %v4511
  %4819 = vmatprep.mubr.bf16.mxu0 %v2950
  %4820 = vmatmul.mubr.bf16.gmra.mrb[0].mxu0 %v2949
  %v4821 = vpop.f32.mrb[0].mxu0
  %v4822 = vadd.f32 %v4056, %v4821
  %v4823 = vpop.f32.mrb[0].mxu0
  %v4824 = vadd.f32 %v4060, %v4823
  %v4825 = vpop.f32.mrb[0].mxu0
  %v4826 = vpop.f32.mrb[0].mxu0
  %4827 = vdwg.mxu0
  %4828 = vmatprep.subr.bf16.mxu0 %v4516
  %4829 = vmatpush1.bf16.msra.mxu0 %v4515
  %4830 = vmatprep.subr.bf16.mxu0 %v4520
  %4831 = vmatpush1.bf16.msra.mxu0 %v4519
  %4832 = vmatprep.subr.bf16.mxu0 %v4524
  %4833 = vmatpush1.bf16.msra.mxu0 %v4523
  %4834 = vmatprep.subr.bf16.mxu0 %v4528
  %4835 = vmatpush1.bf16.msra.mxu0 %v4527
  %4836 = vmatprep.subr.bf16.mxu0 %v4532
  %4837 = vmatpush1.bf16.msra.mxu0 %v4531
  %4838 = vmatprep.subr.bf16.mxu0 %v4536
  %4839 = vmatpush1.bf16.msra.mxu0 %v4535
  %4840 = vmatprep.subr.bf16.mxu0 %v4540
  %4841 = vmatpush1.bf16.msra.mxu0 %v4539
  %4842 = vmatprep.subr.bf16.mxu0 %v4544
  %4843 = vmatpush1.bf16.msra.mxu0 %v4543
  %4844 = vmatprep.subr.bf16.mxu0 %v4548
  %4845 = vmatpush1.bf16.msra.mxu0 %v4547
  %4846 = vmatprep.subr.bf16.mxu0 %v4552
  %4847 = vmatpush1.bf16.msra.mxu0 %v4551
  %4848 = vmatprep.subr.bf16.mxu0 %v4556
  %4849 = vmatpush1.bf16.msra.mxu0 %v4555
  %4850 = vmatprep.subr.bf16.mxu0 %v4560
  %4851 = vmatpush1.bf16.msra.mxu0 %v4559
  %4852 = vmatprep.subr.bf16.mxu0 %v4564
  %4853 = vmatpush1.bf16.msra.mxu0 %v4563
  %4854 = vmatprep.subr.bf16.mxu0 %v4568
  %4855 = vmatpush1.bf16.msra.mxu0 %v4567
  %4856 = vmatprep.subr.bf16.mxu0 %v4572
  %4857 = vmatpush1.bf16.msra.mxu0 %v4571
  %4858 = vmatprep.subr.bf16.mxu0 %v4576
  %4859 = vmatpush1.bf16.msra.mxu0 %v4575
  %4860 = vmatprep.mubr.bf16.mxu0 %v2952
  %4861 = vmatmul.mubr.bf16.gmra.mrb[0].mxu0 %v2951
  %v4862 = vpop.f32.mrb[0].mxu0
  %v4863 = vadd.f32 %v4822, %v4862
  %v4864 = vpop.f32.mrb[0].mxu0
  %v4865 = vadd.f32 %v4824, %v4864
  %v4866 = vpop.f32.mrb[0].mxu0
  %v4867 = vpop.f32.mrb[0].mxu0
  %4868 = vdwg.mxu0
  %v4869 = vmax.f32 %v4781, 0.0
  %v4870 = vmax.f32 %v4783, 0.0
  %v4871 = vmax.f32 %v4863, 0.0
  %v4872 = vmax.f32 %v4865, 0.0
  %v4873 = vpack.c.bf16 %v4869, %v4869
  %v4874 = vpack.c.bf16 %v4870, %v4870
  %v4875 = vpack.c.bf16 %v4871, %v4871
  %v4876 = vpack.c.bf16 %v4872, %v4872
  %v4877 = vld [vmem:[%s13] sm:$0xf]
  %v4878 = vld [vmem:[%s13 + $0x4] sm:$0xf]
  %v4879 = vld [vmem:[%s13 + $0x8] sm:$0xf]
  %v4880 = vld [vmem:[%s13 + $0xc] sm:$0xf]
  %v4881 = vld [vmem:[%s13 + $0x10] sm:$0xf]
  %v4882 = vld [vmem:[%s13 + $0x14] sm:$0xf]
  %v4883 = vld [vmem:[%s13 + $0x18] sm:$0xf]
  %v4884 = vld [vmem:[%s13 + $0x1c] sm:$0xf]
  %v4885 = vld [vmem:[%s13 + $0x20] sm:$0xf]
  %v4886 = vld [vmem:[%s13 + $0x24] sm:$0xf]
  %v4887 = vld [vmem:[%s13 + $0x28] sm:$0xf]
  %v4888 = vld [vmem:[%s13 + $0x2c] sm:$0xf]
  %v4889 = vld [vmem:[%s13 + $0x30] sm:$0xf]
  %v4890 = vld [vmem:[%s13 + $0x34] sm:$0xf]
  %v4891 = vld [vmem:[%s13 + $0x38] sm:$0xf]
  %v4892 = vld [vmem:[%s13 + $0x3c] sm:$0xf]
  %v4893 = vld [vmem:[%s13 + $0x40] sm:$0xf]
  %v4894 = vld [vmem:[%s13 + $0x44] sm:$0xf]
  %v4895 = vld [vmem:[%s13 + $0x48] sm:$0xf]
  %v4896 = vld [vmem:[%s13 + $0x4c] sm:$0xf]
  %v4897 = vld [vmem:[%s13 + $0x50] sm:$0xf]
  %v4898 = vld [vmem:[%s13 + $0x54] sm:$0xf]
  %v4899 = vld [vmem:[%s13 + $0x58] sm:$0xf]
  %v4900 = vld [vmem:[%s13 + $0x5c] sm:$0xf]
  %v4901 = vld [vmem:[%s13 + $0x60] sm:$0xf]
  %v4902 = vld [vmem:[%s13 + $0x64] sm:$0xf]
  %v4903 = vld [vmem:[%s13 + $0x68] sm:$0xf]
  %v4904 = vld [vmem:[%s13 + $0x6c] sm:$0xf]
  %v4905 = vld [vmem:[%s13 + $0x70] sm:$0xf]
  %v4906 = vld [vmem:[%s13 + $0x74] sm:$0xf]
  %v4907 = vld [vmem:[%s13 + $0x78] sm:$0xf]
  %v4908 = vld [vmem:[%s13 + $0x7c] sm:$0xf]
  %v4909 = vld [vmem:[%s13 + $0x80] sm:$0xf]
  %v4910 = vld [vmem:[%s13 + $0x84] sm:$0xf]
  %v4911 = vld [vmem:[%s13 + $0x88] sm:$0xf]
  %v4912 = vld [vmem:[%s13 + $0x8c] sm:$0xf]
  %v4913 = vld [vmem:[%s13 + $0x90] sm:$0xf]
  %v4914 = vld [vmem:[%s13 + $0x94] sm:$0xf]
  %v4915 = vld [vmem:[%s13 + $0x98] sm:$0xf]
  %v4916 = vld [vmem:[%s13 + $0x9c] sm:$0xf]
  %v4917 = vld [vmem:[%s13 + $0xa0] sm:$0xf]
  %v4918 = vld [vmem:[%s13 + $0xa4] sm:$0xf]
  %v4919 = vld [vmem:[%s13 + $0xa8] sm:$0xf]
  %v4920 = vld [vmem:[%s13 + $0xac] sm:$0xf]
  %v4921 = vld [vmem:[%s13 + $0xb0] sm:$0xf]
  %v4922 = vld [vmem:[%s13 + $0xb4] sm:$0xf]
  %v4923 = vld [vmem:[%s13 + $0xb8] sm:$0xf]
  %v4924 = vld [vmem:[%s13 + $0xbc] sm:$0xf]
  %v4925 = vld [vmem:[%s13 + $0xc0] sm:$0xf]
  %v4926 = vld [vmem:[%s13 + $0xc4] sm:$0xf]
  %v4927 = vld [vmem:[%s13 + $0xc8] sm:$0xf]
  %v4928 = vld [vmem:[%s13 + $0xcc] sm:$0xf]
  %v4929 = vld [vmem:[%s13 + $0xd0] sm:$0xf]
  %v4930 = vld [vmem:[%s13 + $0xd4] sm:$0xf]
  %v4931 = vld [vmem:[%s13 + $0xd8] sm:$0xf]
  %v4932 = vld [vmem:[%s13 + $0xdc] sm:$0xf]
  %v4933 = vld [vmem:[%s13 + $0xe0] sm:$0xf]
  %v4934 = vld [vmem:[%s13 + $0xe4] sm:$0xf]
  %v4935 = vld [vmem:[%s13 + $0xe8] sm:$0xf]
  %v4936 = vld [vmem:[%s13 + $0xec] sm:$0xf]
  %v4937 = vld [vmem:[%s13 + $0xf0] sm:$0xf]
  %v4938 = vld [vmem:[%s13 + $0xf4] sm:$0xf]
  %v4939 = vld [vmem:[%s13 + $0xf8] sm:$0xf]
  %v4940 = vld [vmem:[%s13 + $0xfc] sm:$0xf]
  %v4941 = vld [vmem:[%s13 + $0x100] sm:$0xf]
  %v4942 = vld [vmem:[%s13 + $0x104] sm:$0xf]
  %v4943 = vld [vmem:[%s13 + $0x108] sm:$0xf]
  %v4944 = vld [vmem:[%s13 + $0x10c] sm:$0xf]
  %v4945 = vld [vmem:[%s13 + $0x110] sm:$0xf]
  %v4946 = vld [vmem:[%s13 + $0x114] sm:$0xf]
  %v4947 = vld [vmem:[%s13 + $0x118] sm:$0xf]
  %v4948 = vld [vmem:[%s13 + $0x11c] sm:$0xf]
  %v4949 = vld [vmem:[%s13 + $0x120] sm:$0xf]
  %v4950 = vld [vmem:[%s13 + $0x124] sm:$0xf]
  %v4951 = vld [vmem:[%s13 + $0x128] sm:$0xf]
  %v4952 = vld [vmem:[%s13 + $0x12c] sm:$0xf]
  %v4953 = vld [vmem:[%s13 + $0x130] sm:$0xf]
  %v4954 = vld [vmem:[%s13 + $0x134] sm:$0xf]
  %v4955 = vld [vmem:[%s13 + $0x138] sm:$0xf]
  %v4956 = vld [vmem:[%s13 + $0x13c] sm:$0xf]
  %v4957 = vld [vmem:[%s13 + $0x140] sm:$0xf]
  %v4958 = vld [vmem:[%s13 + $0x144] sm:$0xf]
  %v4959 = vld [vmem:[%s13 + $0x148] sm:$0xf]
  %v4960 = vld [vmem:[%s13 + $0x14c] sm:$0xf]
  %v4961 = vld [vmem:[%s13 + $0x150] sm:$0xf]
  %v4962 = vld [vmem:[%s13 + $0x154] sm:$0xf]
  %v4963 = vld [vmem:[%s13 + $0x158] sm:$0xf]
  %v4964 = vld [vmem:[%s13 + $0x15c] sm:$0xf]
  %v4965 = vld [vmem:[%s13 + $0x160] sm:$0xf]
  %v4966 = vld [vmem:[%s13 + $0x164] sm:$0xf]
  %v4967 = vld [vmem:[%s13 + $0x168] sm:$0xf]
  %v4968 = vld [vmem:[%s13 + $0x16c] sm:$0xf]
  %v4969 = vld [vmem:[%s13 + $0x170] sm:$0xf]
  %v4970 = vld [vmem:[%s13 + $0x174] sm:$0xf]
  %v4971 = vld [vmem:[%s13 + $0x178] sm:$0xf]
  %v4972 = vld [vmem:[%s13 + $0x17c] sm:$0xf]
  %v4973 = vld [vmem:[%s13 + $0x180] sm:$0xf]
  %v4974 = vld [vmem:[%s13 + $0x184] sm:$0xf]
  %v4975 = vld [vmem:[%s13 + $0x188] sm:$0xf]
  %v4976 = vld [vmem:[%s13 + $0x18c] sm:$0xf]
  %v4977 = vld [vmem:[%s13 + $0x190] sm:$0xf]
  %v4978 = vld [vmem:[%s13 + $0x194] sm:$0xf]
  %v4979 = vld [vmem:[%s13 + $0x198] sm:$0xf]
  %v4980 = vld [vmem:[%s13 + $0x19c] sm:$0xf]
  %v4981 = vld [vmem:[%s13 + $0x1a0] sm:$0xf]
  %v4982 = vld [vmem:[%s13 + $0x1a4] sm:$0xf]
  %v4983 = vld [vmem:[%s13 + $0x1a8] sm:$0xf]
  %v4984 = vld [vmem:[%s13 + $0x1ac] sm:$0xf]
  %v4985 = vld [vmem:[%s13 + $0x1b0] sm:$0xf]
  %v4986 = vld [vmem:[%s13 + $0x1b4] sm:$0xf]
  %v4987 = vld [vmem:[%s13 + $0x1b8] sm:$0xf]
  %v4988 = vld [vmem:[%s13 + $0x1bc] sm:$0xf]
  %v4989 = vld [vmem:[%s13 + $0x1c0] sm:$0xf]
  %v4990 = vld [vmem:[%s13 + $0x1c4] sm:$0xf]
  %v4991 = vld [vmem:[%s13 + $0x1c8] sm:$0xf]
  %v4992 = vld [vmem:[%s13 + $0x1cc] sm:$0xf]
  %v4993 = vld [vmem:[%s13 + $0x1d0] sm:$0xf]
  %v4994 = vld [vmem:[%s13 + $0x1d4] sm:$0xf]
  %v4995 = vld [vmem:[%s13 + $0x1d8] sm:$0xf]
  %v4996 = vld [vmem:[%s13 + $0x1dc] sm:$0xf]
  %v4997 = vld [vmem:[%s13 + $0x1e0] sm:$0xf]
  %v4998 = vld [vmem:[%s13 + $0x1e4] sm:$0xf]
  %v4999 = vld [vmem:[%s13 + $0x1e8] sm:$0xf]
  %v5000 = vld [vmem:[%s13 + $0x1ec] sm:$0xf]
  %v5001 = vld [vmem:[%s13 + $0x1f0] sm:$0xf]
  %v5002 = vld [vmem:[%s13 + $0x1f4] sm:$0xf]
  %v5003 = vld [vmem:[%s13 + $0x1f8] sm:$0xf]
  %v5004 = vld [vmem:[%s13 + $0x1fc] sm:$0xf]
  %v5005 = vld [vmem:[%s14] sm:$0x1]
  %v5007 = vlaneseq
  %v5008 = vshrl.u32 %v5007, 7
  %v5009 = vsub.s32 0, %v5008
  %v5010 = vrot.slane %v5005, %v5009
  %v5140 = vunpack.c.l.b16 %v4877
  %v5141 = vunpack.c.l.b16 %v4878
  %v5142 = vunpack.c.l.b16 %v4879
  %v5143 = vunpack.c.l.b16 %v4880
  %v5144 = vunpack.c.l.b16 %v4881
  %v5145 = vunpack.c.l.b16 %v4882
  %v5146 = vunpack.c.l.b16 %v4883
  %v5147 = vunpack.c.l.b16 %v4884
  %v5148 = vunpack.c.l.b16 %v4885
  %v5149 = vunpack.c.l.b16 %v4886
  %v5150 = vunpack.c.l.b16 %v4887
  %v5151 = vunpack.c.l.b16 %v4888
  %v5152 = vunpack.c.l.b16 %v4889
  %v5153 = vunpack.c.l.b16 %v4890
  %v5154 = vunpack.c.l.b16 %v4891
  %v5155 = vunpack.c.l.b16 %v4892
  %v5156 = vunpack.c.l.b16 %v4893
  %v5157 = vunpack.c.l.b16 %v4894
  %v5158 = vunpack.c.l.b16 %v4895
  %v5159 = vunpack.c.l.b16 %v4896
  %v5160 = vunpack.c.l.b16 %v4897
  %v5161 = vunpack.c.l.b16 %v4898
  %v5162 = vunpack.c.l.b16 %v4899
  %v5163 = vunpack.c.l.b16 %v4900
  %v5164 = vunpack.c.l.b16 %v4901
  %v5165 = vunpack.c.l.b16 %v4902
  %v5166 = vunpack.c.l.b16 %v4903
  %v5167 = vunpack.c.l.b16 %v4904
  %v5168 = vunpack.c.l.b16 %v4905
  %v5169 = vunpack.c.l.b16 %v4906
  %v5170 = vunpack.c.l.b16 %v4907
  %v5171 = vunpack.c.l.b16 %v4908
  %v5172 = vunpack.c.l.b16 %v4909
  %v5173 = vunpack.c.l.b16 %v4910
  %v5174 = vunpack.c.l.b16 %v4911
  %v5175 = vunpack.c.l.b16 %v4912
  %v5176 = vunpack.c.l.b16 %v4913
  %v5177 = vunpack.c.l.b16 %v4914
  %v5178 = vunpack.c.l.b16 %v4915
  %v5179 = vunpack.c.l.b16 %v4916
  %v5180 = vunpack.c.l.b16 %v4917
  %v5181 = vunpack.c.l.b16 %v4918
  %v5182 = vunpack.c.l.b16 %v4919
  %v5183 = vunpack.c.l.b16 %v4920
  %v5184 = vunpack.c.l.b16 %v4921
  %v5185 = vunpack.c.l.b16 %v4922
  %v5186 = vunpack.c.l.b16 %v4923
  %v5187 = vunpack.c.l.b16 %v4924
  %v5188 = vunpack.c.l.b16 %v4925
  %v5189 = vunpack.c.l.b16 %v4926
  %v5190 = vunpack.c.l.b16 %v4927
  %v5191 = vunpack.c.l.b16 %v4928
  %v5192 = vunpack.c.l.b16 %v4929
  %v5193 = vunpack.c.l.b16 %v4930
  %v5194 = vunpack.c.l.b16 %v4931
  %v5195 = vunpack.c.l.b16 %v4932
  %v5196 = vunpack.c.l.b16 %v4933
  %v5197 = vunpack.c.l.b16 %v4934
  %v5198 = vunpack.c.l.b16 %v4935
  %v5199 = vunpack.c.l.b16 %v4936
  %v5200 = vunpack.c.l.b16 %v4937
  %v5201 = vunpack.c.l.b16 %v4938
  %v5202 = vunpack.c.l.b16 %v4939
  %v5203 = vunpack.c.l.b16 %v4940
  %v5204 = vunpack.c.l.b16 %v4941
  %v5205 = vunpack.c.l.b16 %v4942
  %v5206 = vunpack.c.l.b16 %v4943
  %v5207 = vunpack.c.l.b16 %v4944
  %v5208 = vunpack.c.l.b16 %v4945
  %v5209 = vunpack.c.l.b16 %v4946
  %v5210 = vunpack.c.l.b16 %v4947
  %v5211 = vunpack.c.l.b16 %v4948
  %v5212 = vunpack.c.l.b16 %v4949
  %v5213 = vunpack.c.l.b16 %v4950
  %v5214 = vunpack.c.l.b16 %v4951
  %v5215 = vunpack.c.l.b16 %v4952
  %v5216 = vunpack.c.l.b16 %v4953
  %v5217 = vunpack.c.l.b16 %v4954
  %v5218 = vunpack.c.l.b16 %v4955
  %v5219 = vunpack.c.l.b16 %v4956
  %v5220 = vunpack.c.l.b16 %v4957
  %v5221 = vunpack.c.l.b16 %v4958
  %v5222 = vunpack.c.l.b16 %v4959
  %v5223 = vunpack.c.l.b16 %v4960
  %v5224 = vunpack.c.l.b16 %v4961
  %v5225 = vunpack.c.l.b16 %v4962
  %v5226 = vunpack.c.l.b16 %v4963
  %v5227 = vunpack.c.l.b16 %v4964
  %v5228 = vunpack.c.l.b16 %v4965
  %v5229 = vunpack.c.l.b16 %v4966
  %v5230 = vunpack.c.l.b16 %v4967
  %v5231 = vunpack.c.l.b16 %v4968
  %v5232 = vunpack.c.l.b16 %v4969
  %v5233 = vunpack.c.l.b16 %v4970
  %v5234 = vunpack.c.l.b16 %v4971
  %v5235 = vunpack.c.l.b16 %v4972
  %v5236 = vunpack.c.l.b16 %v4973
  %v5237 = vunpack.c.l.b16 %v4974
  %v5238 = vunpack.c.l.b16 %v4975
  %v5239 = vunpack.c.l.b16 %v4976
  %v5240 = vunpack.c.l.b16 %v4977
  %v5241 = vunpack.c.l.b16 %v4978
  %v5242 = vunpack.c.l.b16 %v4979
  %v5243 = vunpack.c.l.b16 %v4980
  %v5244 = vunpack.c.l.b16 %v4981
  %v5245 = vunpack.c.l.b16 %v4982
  %v5246 = vunpack.c.l.b16 %v4983
  %v5247 = vunpack.c.l.b16 %v4984
  %v5248 = vunpack.c.l.b16 %v4985
  %v5249 = vunpack.c.l.b16 %v4986
  %v5250 = vunpack.c.l.b16 %v4987
  %v5251 = vunpack.c.l.b16 %v4988
  %v5252 = vunpack.c.l.b16 %v4989
  %v5253 = vunpack.c.l.b16 %v4990
  %v5254 = vunpack.c.l.b16 %v4991
  %v5255 = vunpack.c.l.b16 %v4992
  %v5256 = vunpack.c.l.b16 %v4993
  %v5257 = vunpack.c.l.b16 %v4994
  %v5258 = vunpack.c.l.b16 %v4995
  %v5259 = vunpack.c.l.b16 %v4996
  %v5260 = vunpack.c.l.b16 %v4997
  %v5261 = vunpack.c.l.b16 %v4998
  %v5262 = vunpack.c.l.b16 %v4999
  %v5263 = vunpack.c.l.b16 %v5000
  %v5264 = vunpack.c.l.b16 %v5001
  %v5265 = vunpack.c.l.b16 %v5002
  %v5266 = vunpack.c.l.b16 %v5003
  %v5267 = vunpack.c.l.b16 %v5004
  %v5268 = vpack.c.b16 %v5141, %v5140
  %v5269 = vpack.c.b16 %v5143, %v5142
  %v5270 = vpack.c.b16 %v5145, %v5144
  %v5271 = vpack.c.b16 %v5147, %v5146
  %v5272 = vpack.c.b16 %v5149, %v5148
  %v5273 = vpack.c.b16 %v5151, %v5150
  %v5274 = vpack.c.b16 %v5153, %v5152
  %v5275 = vpack.c.b16 %v5155, %v5154
  %v5276 = vpack.c.b16 %v5157, %v5156
  %v5277 = vpack.c.b16 %v5159, %v5158
  %v5278 = vpack.c.b16 %v5161, %v5160
  %v5279 = vpack.c.b16 %v5163, %v5162
  %v5280 = vpack.c.b16 %v5165, %v5164
  %v5281 = vpack.c.b16 %v5167, %v5166
  %v5282 = vpack.c.b16 %v5169, %v5168
  %v5283 = vpack.c.b16 %v5171, %v5170
  %v5284 = vpack.c.b16 %v5173, %v5172
  %v5285 = vpack.c.b16 %v5175, %v5174
  %v5286 = vpack.c.b16 %v5177, %v5176
  %v5287 = vpack.c.b16 %v5179, %v5178
  %v5288 = vpack.c.b16 %v5181, %v5180
  %v5289 = vpack.c.b16 %v5183, %v5182
  %v5290 = vpack.c.b16 %v5185, %v5184
  %v5291 = vpack.c.b16 %v5187, %v5186
  %v5292 = vpack.c.b16 %v5189, %v5188
  %v5293 = vpack.c.b16 %v5191, %v5190
  %v5294 = vpack.c.b16 %v5193, %v5192
  %v5295 = vpack.c.b16 %v5195, %v5194
  %v5296 = vpack.c.b16 %v5197, %v5196
  %v5297 = vpack.c.b16 %v5199, %v5198
  %v5298 = vpack.c.b16 %v5201, %v5200
  %v5299 = vpack.c.b16 %v5203, %v5202
  %v5300 = vpack.c.b16 %v5205, %v5204
  %v5301 = vpack.c.b16 %v5207, %v5206
  %v5302 = vpack.c.b16 %v5209, %v5208
  %v5303 = vpack.c.b16 %v5211, %v5210
  %v5304 = vpack.c.b16 %v5213, %v5212
  %v5305 = vpack.c.b16 %v5215, %v5214
  %v5306 = vpack.c.b16 %v5217, %v5216
  %v5307 = vpack.c.b16 %v5219, %v5218
  %v5308 = vpack.c.b16 %v5221, %v5220
  %v5309 = vpack.c.b16 %v5223, %v5222
  %v5310 = vpack.c.b16 %v5225, %v5224
  %v5311 = vpack.c.b16 %v5227, %v5226
  %v5312 = vpack.c.b16 %v5229, %v5228
  %v5313 = vpack.c.b16 %v5231, %v5230
  %v5314 = vpack.c.b16 %v5233, %v5232
  %v5315 = vpack.c.b16 %v5235, %v5234
  %v5316 = vpack.c.b16 %v5237, %v5236
  %v5317 = vpack.c.b16 %v5239, %v5238
  %v5318 = vpack.c.b16 %v5241, %v5240
  %v5319 = vpack.c.b16 %v5243, %v5242
  %v5320 = vpack.c.b16 %v5245, %v5244
  %v5321 = vpack.c.b16 %v5247, %v5246
  %v5322 = vpack.c.b16 %v5249, %v5248
  %v5323 = vpack.c.b16 %v5251, %v5250
  %v5324 = vpack.c.b16 %v5253, %v5252
  %v5325 = vpack.c.b16 %v5255, %v5254
  %v5326 = vpack.c.b16 %v5257, %v5256
  %v5327 = vpack.c.b16 %v5259, %v5258
  %v5328 = vpack.c.b16 %v5261, %v5260
  %v5329 = vpack.c.b16 %v5263, %v5262
  %v5330 = vpack.c.b16 %v5265, %v5264
  %v5331 = vpack.c.b16 %v5267, %v5266
  %5396 = vmatprep.subr.bf16.mxu0 0
  %5397 = vmatpush1.bf16.msra.mxu0 %v5268
  %5398 = vmatprep.subr.bf16.mxu0 0
  %5399 = vmatpush1.bf16.msra.mxu0 %v5269
  %5400 = vmatprep.subr.bf16.mxu0 0
  %5401 = vmatpush1.bf16.msra.mxu0 %v5270
  %5402 = vmatprep.subr.bf16.mxu0 0
  %5403 = vmatpush1.bf16.msra.mxu0 %v5271
  %5404 = vmatprep.subr.bf16.mxu0 0
  %5405 = vmatpush1.bf16.msra.mxu0 %v5272
  %5406 = vmatprep.subr.bf16.mxu0 0
  %5407 = vmatpush1.bf16.msra.mxu0 %v5273
  %5408 = vmatprep.subr.bf16.mxu0 0
  %5409 = vmatpush1.bf16.msra.mxu0 %v5274
  %5410 = vmatprep.subr.bf16.mxu0 0
  %5411 = vmatpush1.bf16.msra.mxu0 %v5275
  %5412 = vmatprep.subr.bf16.mxu0 0
  %5413 = vmatpush1.bf16.msra.mxu0 %v5276
  %5414 = vmatprep.subr.bf16.mxu0 0
  %5415 = vmatpush1.bf16.msra.mxu0 %v5277
  %5416 = vmatprep.subr.bf16.mxu0 0
  %5417 = vmatpush1.bf16.msra.mxu0 %v5278
  %5418 = vmatprep.subr.bf16.mxu0 0
  %5419 = vmatpush1.bf16.msra.mxu0 %v5279
  %5420 = vmatprep.subr.bf16.mxu0 0
  %5421 = vmatpush1.bf16.msra.mxu0 %v5280
  %5422 = vmatprep.subr.bf16.mxu0 0
  %5423 = vmatpush1.bf16.msra.mxu0 %v5281
  %5424 = vmatprep.subr.bf16.mxu0 0
  %5425 = vmatpush1.bf16.msra.mxu0 %v5282
  %5426 = vmatprep.subr.bf16.mxu0 0
  %5427 = vmatpush1.bf16.msra.mxu0 %v5283
  %5428 = vmatprep.mubr.bf16.mxu0 %v3912
  %5429 = vmatmul.mubr.bf16.gmra.mrb[0].mxu0 %v3911
  %v5430 = vpop.f32.mrb[0].mxu0
  %v5431 = vadd.f32 %v5010, %v5430
  %v5432 = vpop.f32.mrb[0].mxu0
  %v5433 = vpop.f32.mrb[0].mxu0
  %v5434 = vpop.f32.mrb[0].mxu0
  %5435 = vdwg.mxu0
  %5436 = vmatprep.subr.bf16.mxu0 0
  %5437 = vmatpush1.bf16.msra.mxu0 %v5284
  %5438 = vmatprep.subr.bf16.mxu0 0
  %5439 = vmatpush1.bf16.msra.mxu0 %v5285
  %5440 = vmatprep.subr.bf16.mxu0 0
  %5441 = vmatpush1.bf16.msra.mxu0 %v5286
  %5442 = vmatprep.subr.bf16.mxu0 0
  %5443 = vmatpush1.bf16.msra.mxu0 %v5287
  %5444 = vmatprep.subr.bf16.mxu0 0
  %5445 = vmatpush1.bf16.msra.mxu0 %v5288
  %5446 = vmatprep.subr.bf16.mxu0 0
  %5447 = vmatpush1.bf16.msra.mxu0 %v5289
  %5448 = vmatprep.subr.bf16.mxu0 0
  %5449 = vmatpush1.bf16.msra.mxu0 %v5290
  %5450 = vmatprep.subr.bf16.mxu0 0
  %5451 = vmatpush1.bf16.msra.mxu0 %v5291
  %5452 = vmatprep.subr.bf16.mxu0 0
  %5453 = vmatpush1.bf16.msra.mxu0 %v5292
  %5454 = vmatprep.subr.bf16.mxu0 0
  %5455 = vmatpush1.bf16.msra.mxu0 %v5293
  %5456 = vmatprep.subr.bf16.mxu0 0
  %5457 = vmatpush1.bf16.msra.mxu0 %v5294
  %5458 = vmatprep.subr.bf16.mxu0 0
  %5459 = vmatpush1.bf16.msra.mxu0 %v5295
  %5460 = vmatprep.subr.bf16.mxu0 0
  %5461 = vmatpush1.bf16.msra.mxu0 %v5296
  %5462 = vmatprep.subr.bf16.mxu0 0
  %5463 = vmatpush1.bf16.msra.mxu0 %v5297
  %5464 = vmatprep.subr.bf16.mxu0 0
  %5465 = vmatpush1.bf16.msra.mxu0 %v5298
  %5466 = vmatprep.subr.bf16.mxu0 0
  %5467 = vmatpush1.bf16.msra.mxu0 %v5299
  %5468 = vmatprep.mubr.bf16.mxu0 %v3914
  %5469 = vmatmul.mubr.bf16.gmra.mrb[0].mxu0 %v3913
  %v5470 = vpop.f32.mrb[0].mxu0
  %v5471 = vadd.f32 %v5431, %v5470
  %v5472 = vpop.f32.mrb[0].mxu0
  %v5473 = vpop.f32.mrb[0].mxu0
  %v5474 = vpop.f32.mrb[0].mxu0
  %5475 = vdwg.mxu0
  %5476 = vmatprep.subr.bf16.mxu0 0
  %5477 = vmatpush1.bf16.msra.mxu0 %v5300
  %5478 = vmatprep.subr.bf16.mxu0 0
  %5479 = vmatpush1.bf16.msra.mxu0 %v5301
  %5480 = vmatprep.subr.bf16.mxu0 0
  %5481 = vmatpush1.bf16.msra.mxu0 %v5302
  %5482 = vmatprep.subr.bf16.mxu0 0
  %5483 = vmatpush1.bf16.msra.mxu0 %v5303
  %5484 = vmatprep.subr.bf16.mxu0 0
  %5485 = vmatpush1.bf16.msra.mxu0 %v5304
  %5486 = vmatprep.subr.bf16.mxu0 0
  %5487 = vmatpush1.bf16.msra.mxu0 %v5305
  %5488 = vmatprep.subr.bf16.mxu0 0
  %5489 = vmatpush1.bf16.msra.mxu0 %v5306
  %5490 = vmatprep.subr.bf16.mxu0 0
  %5491 = vmatpush1.bf16.msra.mxu0 %v5307
  %5492 = vmatprep.subr.bf16.mxu0 0
  %5493 = vmatpush1.bf16.msra.mxu0 %v5308
  %5494 = vmatprep.subr.bf16.mxu0 0
  %5495 = vmatpush1.bf16.msra.mxu0 %v5309
  %5496 = vmatprep.subr.bf16.mxu0 0
  %5497 = vmatpush1.bf16.msra.mxu0 %v5310
  %5498 = vmatprep.subr.bf16.mxu0 0
  %5499 = vmatpush1.bf16.msra.mxu0 %v5311
  %5500 = vmatprep.subr.bf16.mxu0 0
  %5501 = vmatpush1.bf16.msra.mxu0 %v5312
  %5502 = vmatprep.subr.bf16.mxu0 0
  %5503 = vmatpush1.bf16.msra.mxu0 %v5313
  %5504 = vmatprep.subr.bf16.mxu0 0
  %5505 = vmatpush1.bf16.msra.mxu0 %v5314
  %5506 = vmatprep.subr.bf16.mxu0 0
  %5507 = vmatpush1.bf16.msra.mxu0 %v5315
  %5508 = vmatprep.mubr.bf16.mxu0 %v4874
  %5509 = vmatmul.mubr.bf16.gmra.mrb[0].mxu0 %v4873
  %v5510 = vpop.f32.mrb[0].mxu0
  %v5511 = vadd.f32 %v5471, %v5510
  %v5512 = vpop.f32.mrb[0].mxu0
  %v5513 = vpop.f32.mrb[0].mxu0
  %v5514 = vpop.f32.mrb[0].mxu0
  %5515 = vdwg.mxu0
  %5516 = vmatprep.subr.bf16.mxu0 0
  %5517 = vmatpush1.bf16.msra.mxu0 %v5316
  %5518 = vmatprep.subr.bf16.mxu0 0
  %5519 = vmatpush1.bf16.msra.mxu0 %v5317
  %5520 = vmatprep.subr.bf16.mxu0 0
  %5521 = vmatpush1.bf16.msra.mxu0 %v5318
  %5522 = vmatprep.subr.bf16.mxu0 0
  %5523 = vmatpush1.bf16.msra.mxu0 %v5319
  %5524 = vmatprep.subr.bf16.mxu0 0
  %5525 = vmatpush1.bf16.msra.mxu0 %v5320
  %5526 = vmatprep.subr.bf16.mxu0 0
  %5527 = vmatpush1.bf16.msra.mxu0 %v5321
  %5528 = vmatprep.subr.bf16.mxu0 0
  %5529 = vmatpush1.bf16.msra.mxu0 %v5322
  %5530 = vmatprep.subr.bf16.mxu0 0
  %5531 = vmatpush1.bf16.msra.mxu0 %v5323
  %5532 = vmatprep.subr.bf16.mxu0 0
  %5533 = vmatpush1.bf16.msra.mxu0 %v5324
  %5534 = vmatprep.subr.bf16.mxu0 0
  %5535 = vmatpush1.bf16.msra.mxu0 %v5325
  %5536 = vmatprep.subr.bf16.mxu0 0
  %5537 = vmatpush1.bf16.msra.mxu0 %v5326
  %5538 = vmatprep.subr.bf16.mxu0 0
  %5539 = vmatpush1.bf16.msra.mxu0 %v5327
  %5540 = vmatprep.subr.bf16.mxu0 0
  %5541 = vmatpush1.bf16.msra.mxu0 %v5328
  %5542 = vmatprep.subr.bf16.mxu0 0
  %5543 = vmatpush1.bf16.msra.mxu0 %v5329
  %5544 = vmatprep.subr.bf16.mxu0 0
  %5545 = vmatpush1.bf16.msra.mxu0 %v5330
  %5546 = vmatprep.subr.bf16.mxu0 0
  %5547 = vmatpush1.bf16.msra.mxu0 %v5331
  %5548 = vmatprep.mubr.bf16.mxu0 %v4876
  %5549 = vmatmul.mubr.bf16.gmra.mrb[0].mxu0 %v4875
  %v5550 = vpop.f32.mrb[0].mxu0
  %v5551 = vadd.f32 %v5511, %v5550
  %v5552 = vpop.f32.mrb[0].mxu0
  %v5553 = vpop.f32.mrb[0].mxu0
  %v5554 = vpop.f32.mrb[0].mxu0
  %5555 = vdwg.mxu0
  %5556 = vst [vmem:[%s15] sm:$0x3] %v5551
  // Predicated region
  $region62: #{critic_forward.9} parent=0 // pred_check
    _
  $region63: #{critic_forward.9} parent=0 // pred_check_branch
    %5558 = sbr.rel (0) target = $region65
  $region64: #{critic_forward.9} parent=0 // pred_region
    _
  $region65: #{critic_forward.9} parent=0 // pred_fallthru
    _
  // Predicated region
  $region66: #{critic_forward.9} parent=0 // pred_check
    _
  $region67: #{critic_forward.9} parent=0 // pred_check_branch
    %5560 = sbr.rel (0) target = $region69
  $region68: #{critic_forward.9} parent=0 // pred_region
    _
  $region69: #{critic_forward.9} parent=0 // pred_fallthru
    _

</llo_original>
